<compile_context>
chip_gen: v7x
topology: tpu7x:2x2x1
jax: 0.10.0
libtpu: 0.0.40
codegen_flags: <defaults>
</compile_context>

<pallas_src>
import functools

import jax
import jax.numpy as jnp
from jax.experimental import pallas as pl
from jax.experimental.pallas import tpu as pltpu

_VMEM_LIMIT = 48 * 1024 * 1024   # explicit cap; v7x has 64 MiB VMEM per TC


# ----------------------------------------------------------------------------
# helpers
# ----------------------------------------------------------------------------
def _round_up(x, m):
    return ((x + m - 1) // m) * m


def _batch_tile(bt, max_tile):
    """Largest divisor of bt that is <= max_tile."""
    bb = max(1, min(bt, max_tile))
    while bt % bb:
        bb -= 1
    return bb


def _conv_batch_tile(bt, s, kk, cout):
    """Batch tile sized from a VMEM budget; >=2 grid steps for v7x megacore."""
    vmem_budget = 24 * 1024 * 1024    # headroom under the 48 MiB scoped limit
    per_img = (2 * (4 * s * kk * 2)       # double-buffered bf16 patches
               + 4 * s * cout * 4         # f32 GEMM result
               + 2 * (s * cout * 2))      # double-buffered bf16 output
    cap = max(1, vmem_budget // per_img)
    cap = min(cap, 64)
    if bt >= 2:
        cap = min(cap, bt // 2)           # keep >=2 parallel grid steps (2 TCs)
    return _batch_tile(bt, cap)


def _pick_tm(m):
    """FC M-tile: 8-aligned, >=2 tiles when m >= 16, minimal zero-padding."""
    if m < 16:
        return _round_up(m, 8)
    if m < 256:
        return _round_up((m + 1) // 2, 8)
    def score(t):
        mp = _round_up(m, t)
        return (mp - m, 0 if mp // t >= 2 else 1, -t)
    return min((128, 256), key=score)


def _leaky(y, slope):
    return jnp.where(y >= 0.0, y, slope * y)


# ----------------------------------------------------------------------------
# Pallas kernels
# ----------------------------------------------------------------------------
def _conv_act_pool_kernel(p_ref, w_ref, b_ref, o_ref, *, slope):
    """Fused conv-as-GEMM + 2x2 max-pool + bias + LeakyReLU.

    p_ref: (bb, 4*S, K) bf16 im2col patches; the leading factor 4 of the second
           axis indexes the four 2x2 pool-window parities, S = pooled_OH *
           pooled_OW, K = k*k*Cin.
    w_ref: (K, Cout) bf16;  b_ref: (1, Cout) f32;  o_ref: (bb, S, Cout) bf16.
    """
    bb, s4, kk = p_ref.shape
    c = w_ref.shape[1]
    s = s4 // 4
    # Single MXU push per tile (4x fewer push/drain sequences than per-parity).
    y = jnp.dot(p_ref[...].reshape(bb * s4, kk), w_ref[...],
                preferred_element_type=jnp.float32)
    # 2x2 max-pool = max over the parity axis (pure VPU, 8-aligned reshape).
    y = y.reshape(bb, 4, s, c).max(axis=1)
    # Pool commutes with bias + LeakyReLU (both monotone non-decreasing).
    y = _leaky(y + b_ref[...], slope)
    o_ref[...] = y.astype(o_ref.dtype)


def _fc_head_kernel(x_ref, w_ref, b_ref, wh_ref, bh_ref, o_ref, *, slope):
    """Fused Linear(K,N) + LeakyReLU + packed (N, NH) head matvec.

    Single-step K: the whole fc weight is one resident VMEM block, so there is
    no accumulator scratch and no init/finalize branching.
    """
    y = jnp.dot(x_ref[...], w_ref[...], preferred_element_type=jnp.float32)
    y = _leaky(y + b_ref[...], slope)
    h = jnp.dot(y.astype(jnp.bfloat16), wh_ref[...],
                preferred_element_type=jnp.float32) + bh_ref[...]
    o_ref[...] = h.astype(o_ref.dtype)


# ----------------------------------------------------------------------------
# Pallas wrappers
# ----------------------------------------------------------------------------
def conv_act_pool_pallas(x_nhwc, w, b, *, k=5, slope=0.2):
    """Conv2d(k, stride=1, valid) + LeakyReLU(0.2) + MaxPool2d(2,2), fused.

    x_nhwc: (B, H, W, Cin) bf16; w: (kh, kw, Cin, Cout) f32; b: (Cout,) f32.
    Returns (B, OH//2, OW//2, Cout) bf16.
    """
    bt, h, wdt, cin = x_nhwc.shape
    cout = w.shape[-1]
    oh, ow = h - k + 1, wdt - k + 1
    assert oh % 2 == 0 and ow % 2 == 0, "2x2 pool parity split needs even dims"
    ohp, owp = oh // 2, ow // 2
    s = ohp * owp
    kk = k * k * cin

    # im2col (feature order kh, kw, cin), split by 2x2 pool parity and packed
    # along one M axis so the kernel does a single GEMM per tile.
    cols = [x_nhwc[:, i:i + oh, j:j + ow, :] for i in range(k) for j in range(k)]
    p = jnp.concatenate(cols, axis=-1)                       # (B, OH, OW, K)
    parts = [p[:, di:2 * ohp:2, dj:2 * owp:2, :].reshape(bt, 1, s, kk)
             for di in (0, 1) for dj in (0, 1)]
    p4 = jnp.concatenate(parts, axis=1).reshape(bt, 4 * s, kk)

    w2 = w.reshape(kk, cout).astype(jnp.bfloat16)
    b2 = b.reshape(1, cout).astype(jnp.float32)

    bb = _conv_batch_tile(bt, s, kk, cout)
    kern = functools.partial(_conv_act_pool_kernel, slope=slope)
    out = pl.pallas_call(
        kern,
        out_shape=jax.ShapeDtypeStruct((bt, s, cout), jnp.bfloat16),
        grid=(bt // bb,),
        in_specs=[pl.BlockSpec((bb, 4 * s, kk), lambda i: (i, 0, 0)),
                  pl.BlockSpec((kk, cout), lambda i: (0, 0)),
                  pl.BlockSpec((1, cout), lambda i: (0, 0))],
        out_specs=pl.BlockSpec((bb, s, cout), lambda i: (i, 0, 0)),
        compiler_params=pltpu.CompilerParams(
            dimension_semantics=("parallel",),
            vmem_limit_bytes=_VMEM_LIMIT),
    )(p4, w2, b2)
    return out.reshape(bt, ohp, owp, cout)


def fc_head_pallas(feat, fc_w, fc_b, head_w, head_b, *, slope=0.2):
    """LeakyReLU(feat @ fc_w + fc_b) @ head_w + head_b, single fused kernel."""
    m, kdim = feat.shape
    n = fc_w.shape[1]
    nh = head_w.shape[1]

    tm = _pick_tm(m)
    mp = _round_up(m, tm)
    xb = feat.astype(jnp.bfloat16)
    if mp != m:
        xb = jnp.pad(xb, ((0, mp - m), (0, 0)))

    wb = fc_w.astype(jnp.bfloat16)
    whb = head_w.astype(jnp.bfloat16)
    bf = fc_b.reshape(1, n).astype(jnp.float32)
    bhf = head_b.reshape(1, nh).astype(jnp.float32)

    kern = functools.partial(_fc_head_kernel, slope=slope)
    out = pl.pallas_call(
        kern,
        out_shape=jax.ShapeDtypeStruct((mp, nh), jnp.float32),
        grid=(mp // tm,),
        in_specs=[
            pl.BlockSpec((tm, kdim), lambda i: (i, 0)),
            pl.BlockSpec((kdim, n), lambda i: (0, 0)),   # resident fc weight
            pl.BlockSpec((1, n), lambda i: (0, 0)),
            pl.BlockSpec((n, nh), lambda i: (0, 0)),     # packed heads
            pl.BlockSpec((1, nh), lambda i: (0, 0)),
        ],
        out_specs=pl.BlockSpec((tm, nh), lambda i: (i, 0)),
        compiler_params=pltpu.CompilerParams(
            dimension_semantics=("parallel",),
            vmem_limit_bytes=_VMEM_LIMIT),
    )(xb, wb, bf, whb, bhf)
    return out[:m]


# ----------------------------------------------------------------------------
# Pure-JAX references (same math & same bf16 quantization points; check only)
# ----------------------------------------------------------------------------
def conv_act_pool_ref(x_nhwc, w, b, *, k=5, slope=0.2):
    bt, h, wdt, cin = x_nhwc.shape
    cout = w.shape[-1]
    oh, ow = h - k + 1, wdt - k + 1
    cols = [x_nhwc[:, i:i + oh, j:j + ow, :] for i in range(k) for j in range(k)]
    p = jnp.concatenate(cols, axis=-1).astype(jnp.float32)
    wq = w.reshape(-1, cout).astype(jnp.bfloat16).astype(jnp.float32)
    y = jnp.einsum("bhwk,kc->bhwc", p, wq,
                   precision=jax.lax.Precision.HIGHEST)
    y = jnp.max(y.reshape(bt, oh // 2, 2, ow // 2, 2, cout), axis=(2, 4))
    y = _leaky(y + b.reshape(1, 1, 1, cout), slope)
    return y.astype(jnp.bfloat16)


def fc_head_ref(feat, fc_w, fc_b, head_w, head_b, *, slope=0.2):
    xq = feat.astype(jnp.bfloat16).astype(jnp.float32)
    wq = fc_w.astype(jnp.bfloat16).astype(jnp.float32)
    y = jnp.dot(xq, wq, precision=jax.lax.Precision.HIGHEST) + fc_b.reshape(1, -1)
    y = _leaky(y, slope)
    whq = head_w.astype(jnp.bfloat16).astype(jnp.float32)
    yq = y.astype(jnp.bfloat16).astype(jnp.float32)
    return jnp.dot(yq, whq, precision=jax.lax.Precision.HIGHEST) + head_b.reshape(1, -1)


# ----------------------------------------------------------------------------
# Model glue (mirrors CoGan/network.py::discriminator.forward)
# ----------------------------------------------------------------------------
def discriminator_forward(x_a_nchw, x_b_nchw, params, *, conv_fn, fc_head_fn):
    bsz = x_a_nchw.shape[0]
    # Shared trunk -> run both inputs through it as one batch of size 2B.
    x = jnp.concatenate([x_a_nchw, x_b_nchw], axis=0)
    x = jnp.transpose(x, (0, 2, 3, 1)).astype(jnp.bfloat16)   # NCHW -> NHWC, bf16

    y = conv_fn(x, params["conv1_w"], params["conv1_b"])      # (2B, 12, 12, 32)
    y = conv_fn(y, params["conv2_w"], params["conv2_b"])      # (2B, 4, 4, 64)

    # Flatten directly in NHWC order (no activation transpose + HBM round trip);
    # instead permute fc_w's 1024 input rows once from PyTorch CHW order to HWC.
    _, hh, ww, cc = y.shape
    feat = y.reshape(2 * bsz, hh * ww * cc)
    fc_w = params["fc_w"].reshape(cc, hh, ww, -1).transpose(1, 2, 0, 3)
    fc_w = fc_w.reshape(hh * ww * cc, -1)

    # Pack the two 1-unit heads into one (1024, 2) weight; select per input.
    head_w = jnp.concatenate([params["headA_w"], params["headB_w"]], axis=1)
    head_b = jnp.concatenate([params["headA_b"], params["headB_b"]], axis=0)
    out = fc_head_fn(feat, fc_w, params["fc_b"], head_w, head_b)

    out_a = out[:bsz, 0:1]      # discrim_A(trunk(x_a))
    out_b = out[bsz:, 1:2]      # discrim_B(trunk(x_b))
    return out_a, out_b


def init_params(key):
    ks = jax.random.split(key, 10)

    def dense(k, shape, fan_in):
        return jax.random.normal(k, shape, jnp.float32) / jnp.sqrt(float(fan_in))

    f = 4 * 4 * 64  # 1024
    return {
        "conv1_w": dense(ks[0], (5, 5, 3, 32), 5 * 5 * 3),
        "conv1_b": dense(ks[1], (32,), 5 * 5 * 3),
        "conv2_w": dense(ks[2], (5, 5, 32, 64), 5 * 5 * 32),
        "conv2_b": dense(ks[3], (64,), 5 * 5 * 32),
        "fc_w": dense(ks[4], (f, f), f),
        "fc_b": dense(ks[5], (f,), f),
        "headA_w": dense(ks[6], (f, 1), f),
        "headA_b": dense(ks[7], (1,), f),
        "headB_w": dense(ks[8], (f, 1), f),
        "headB_b": dense(ks[9], (1,), f),
    }


# ----------------------------------------------------------------------------
if __name__ == "__main__":
    key = jax.random.PRNGKey(0)
    k_params, k_a, k_b = jax.random.split(key, 3)

    B = 2
    params = init_params(k_params)
    # Spatial size must be 28x28 so the trunk flattens to 4*4*64 = 1024 features.
    x_a = jax.random.normal(k_a, (B, 3, 28, 28), jnp.float32)
    x_b = jax.random.normal(k_b, (B, 3, 28, 28), jnp.float32)

    fwd_pallas = jax.jit(functools.partial(
        discriminator_forward, conv_fn=conv_act_pool_pallas,
        fc_head_fn=fc_head_pallas))
    out_a, out_b = fwd_pallas(x_a, x_b, params)
    jax.block_until_ready((out_a, out_b))

    # Correctness check against a pure-JAX reference of the same math
    # (same bf16 quantization points, f32 accumulation).
    ref_a, ref_b = discriminator_forward(
        x_a, x_b, params, conv_fn=conv_act_pool_ref, fc_head_fn=fc_head_ref)

    assert out_a.shape == (B, 1) and out_b.shape == (B, 1)
    assert jnp.allclose(out_a, ref_a, rtol=2e-2, atol=2e-2), (out_a, ref_a)
    assert jnp.allclose(out_b, ref_b, rtol=2e-2, atol=2e-2), (out_b, ref_b)

    print("KERNEL_OK")
</pallas_src>

<mosaic_0001>
module attributes {stable_mosaic.version = 11 : i64} {
  func.func @_conv_act_pool_kernel(%arg0: i32, %arg1: memref<2x576x75xbf16, #tpu.memory_space<vmem>>, %arg2: memref<75x32xbf16, #tpu.memory_space<vmem>>, %arg3: memref<1x32xf32, #tpu.memory_space<vmem>>, %arg4: memref<2x144x32xbf16, #tpu.memory_space<vmem>>) attributes {dimension_semantics = [#tpu.dimension_semantics<parallel>], iteration_bounds = array<i64: 2>, scalar_prefetch = 0 : i64, scratch_operands = 0 : i64, tpu.core_type = #tpu.core_type<tc>, window_params = [{transform_indices = @transform_0, window_bounds = array<i64: 2, 576, 75>}, {pipeline_mode = #tpu.pipeline_mode<synchronous>, transform_indices = @transform_1, window_bounds = array<i64: 75, 32>}, {pipeline_mode = #tpu.pipeline_mode<synchronous>, transform_indices = @transform_2, window_bounds = array<i64: 1, 32>}, {transform_indices = @transform_3, window_bounds = array<i64: 2, 144, 32>}]} {
    %c0 = arith.constant 0 : index
    %c0_0 = arith.constant 0 : index
    %c0_1 = arith.constant 0 : index
    %0 = vector.load %arg1[%c0, %c0_0, %c0_1] : memref<2x576x75xbf16, #tpu.memory_space<vmem>>, vector<2x576x75xbf16>
    %1 = vector.shape_cast %0 : vector<2x576x75xbf16> to vector<1152x75xbf16>
    %c0_2 = arith.constant 0 : index
    %c0_3 = arith.constant 0 : index
    %2 = vector.load %arg2[%c0_2, %c0_3] : memref<75x32xbf16, #tpu.memory_space<vmem>>, vector<75x32xbf16>
    %cst = arith.constant dense<0.000000e+00> : vector<1152x32xf32>
    %3 = tpu.matmul %1, %2, %cst {dimension_numbers = #tpu.dot_dimension_numbers<[1], [0], [0], [1], [0, 0, 1, 1], [], []>} : vector<1152x75xbf16>, vector<75x32xbf16>, vector<1152x32xf32> -> vector<1152x32xf32>
    %4 = vector.shape_cast %3 : vector<1152x32xf32> to vector<2x4x144x32xf32>
    %cst_4 = arith.constant dense<0xFF800000> : vector<2x144x32xf32>
    %5 = vector.multi_reduction <maximumf>, %4, %cst_4 [1] : vector<2x4x144x32xf32> to vector<2x144x32xf32>
    %c0_5 = arith.constant 0 : index
    %c0_6 = arith.constant 0 : index
    %6 = vector.load %arg3[%c0_5, %c0_6] : memref<1x32xf32, #tpu.memory_space<vmem>>, vector<1x32xf32>
    %7 = vector.shape_cast %6 : vector<1x32xf32> to vector<1x1x32xf32>
    %8 = vector.broadcast %7 : vector<1x1x32xf32> to vector<2x144x32xf32>
    %9 = arith.addf %5, %8 : vector<2x144x32xf32>
    %cst_7 = arith.constant 0.000000e+00 : f32
    %10 = vector.broadcast %cst_7 : f32 to vector<2x144x32xf32>
    %11 = arith.cmpf oge, %9, %10 : vector<2x144x32xf32>
    %cst_8 = arith.constant 2.000000e-01 : f32
    %12 = vector.broadcast %cst_8 : f32 to vector<2x144x32xf32>
    %13 = arith.mulf %12, %9 : vector<2x144x32xf32>
    %14 = arith.select %11, %9, %13 : vector<2x144x32xi1>, vector<2x144x32xf32>
    %15 = arith.truncf %14 : vector<2x144x32xf32> to vector<2x144x32xbf16>
    %c0_9 = arith.constant 0 : index
    %c0_10 = arith.constant 0 : index
    %c0_11 = arith.constant 0 : index
    %16 = vector.load %arg4[%c0_9, %c0_10, %c0_11] : memref<2x144x32xbf16, #tpu.memory_space<vmem>>, vector<2x144x32xbf16>
    tpu.vector_store %arg4[%c0_9, %c0_10, %c0_11], %15 {strides = array<i32>} : memref<2x144x32xbf16, #tpu.memory_space<vmem>>, vector<2x144x32xbf16>,
    return
  }
  func.func @transform_0(%arg0: i32) -> (i32, i32, i32) {
    %c0_i32 = arith.constant 0 : i32
    %c0_i32_0 = arith.constant 0 : i32
    %c0_i32_1 = arith.constant 0 : i32
    return %arg0, %c0_i32, %c0_i32_0 : i32, i32, i32
  }
  func.func @transform_1(%arg0: i32) -> (i32, i32) {
    %c0_i32 = arith.constant 0 : i32
    %c0_i32_0 = arith.constant 0 : i32
    %c0_i32_1 = arith.constant 0 : i32
    return %c0_i32, %c0_i32_0 : i32, i32
  }
  func.func @transform_2(%arg0: i32) -> (i32, i32) {
    %c0_i32 = arith.constant 0 : i32
    %c0_i32_0 = arith.constant 0 : i32
    %c0_i32_1 = arith.constant 0 : i32
    return %c0_i32, %c0_i32_0 : i32, i32
  }
  func.func @transform_3(%arg0: i32) -> (i32, i32, i32) {
    %c0_i32 = arith.constant 0 : i32
    %c0_i32_0 = arith.constant 0 : i32
    %c0_i32_1 = arith.constant 0 : i32
    return %arg0, %c0_i32, %c0_i32_0 : i32, i32, i32
  }
}

module attributes {stable_mosaic.version = 11 : i64} {
  func.func @_conv_act_pool_kernel(%arg0: i32, %arg1: memref<2x64x800xbf16, #tpu.memory_space<vmem>>, %arg2: memref<800x64xbf16, #tpu.memory_space<vmem>>, %arg3: memref<1x64xf32, #tpu.memory_space<vmem>>, %arg4: memref<2x16x64xbf16, #tpu.memory_space<vmem>>) attributes {dimension_semantics = [#tpu.dimension_semantics<parallel>], iteration_bounds = array<i64: 2>, scalar_prefetch = 0 : i64, scratch_operands = 0 : i64, tpu.core_type = #tpu.core_type<tc>, window_params = [{transform_indices = @transform_0, window_bounds = array<i64: 2, 64, 800>}, {pipeline_mode = #tpu.pipeline_mode<synchronous>, transform_indices = @transform_1, window_bounds = array<i64: 800, 64>}, {pipeline_mode = #tpu.pipeline_mode<synchronous>, transform_indices = @transform_2, window_bounds = array<i64: 1, 64>}, {transform_indices = @transform_3, window_bounds = array<i64: 2, 16, 64>}]} {
    %c0 = arith.constant 0 : index
    %c0_0 = arith.constant 0 : index
    %c0_1 = arith.constant 0 : index
    %0 = vector.load %arg1[%c0, %c0_0, %c0_1] : memref<2x64x800xbf16, #tpu.memory_space<vmem>>, vector<2x64x800xbf16>
    %1 = vector.shape_cast %0 : vector<2x64x800xbf16> to vector<128x800xbf16>
    %c0_2 = arith.constant 0 : index
    %c0_3 = arith.constant 0 : index
    %2 = vector.load %arg2[%c0_2, %c0_3] : memref<800x64xbf16, #tpu.memory_space<vmem>>, vector<800x64xbf16>
    %cst = arith.constant dense<0.000000e+00> : vector<128x64xf32>
    %3 = tpu.matmul %1, %2, %cst {dimension_numbers = #tpu.dot_dimension_numbers<[1], [0], [0], [1], [0, 0, 1, 1], [], []>} : vector<128x800xbf16>, vector<800x64xbf16>, vector<128x64xf32> -> vector<128x64xf32>
    %4 = vector.shape_cast %3 : vector<128x64xf32> to vector<2x4x16x64xf32>
    %cst_4 = arith.constant dense<0xFF800000> : vector<2x16x64xf32>
    %5 = vector.multi_reduction <maximumf>, %4, %cst_4 [1] : vector<2x4x16x64xf32> to vector<2x16x64xf32>
    %c0_5 = arith.constant 0 : index
    %c0_6 = arith.constant 0 : index
    %6 = vector.load %arg3[%c0_5, %c0_6] : memref<1x64xf32, #tpu.memory_space<vmem>>, vector<1x64xf32>
    %7 = vector.shape_cast %6 : vector<1x64xf32> to vector<1x1x64xf32>
    %8 = vector.broadcast %7 : vector<1x1x64xf32> to vector<2x16x64xf32>
    %9 = arith.addf %5, %8 : vector<2x16x64xf32>
    %cst_7 = arith.constant 0.000000e+00 : f32
    %10 = vector.broadcast %cst_7 : f32 to vector<2x16x64xf32>
    %11 = arith.cmpf oge, %9, %10 : vector<2x16x64xf32>
    %cst_8 = arith.constant 2.000000e-01 : f32
    %12 = vector.broadcast %cst_8 : f32 to vector<2x16x64xf32>
    %13 = arith.mulf %12, %9 : vector<2x16x64xf32>
    %14 = arith.select %11, %9, %13 : vector<2x16x64xi1>, vector<2x16x64xf32>
    %15 = arith.truncf %14 : vector<2x16x64xf32> to vector<2x16x64xbf16>
    %c0_9 = arith.constant 0 : index
    %c0_10 = arith.constant 0 : index
    %c0_11 = arith.constant 0 : index
    %16 = vector.load %arg4[%c0_9, %c0_10, %c0_11] : memref<2x16x64xbf16, #tpu.memory_space<vmem>>, vector<2x16x64xbf16>
    tpu.vector_store %arg4[%c0_9, %c0_10, %c0_11], %15 {strides = array<i32>} : memref<2x16x64xbf16, #tpu.memory_space<vmem>>, vector<2x16x64xbf16>,
    return
  }
  func.func @transform_0(%arg0: i32) -> (i32, i32, i32) {
    %c0_i32 = arith.constant 0 : i32
    %c0_i32_0 = arith.constant 0 : i32
    %c0_i32_1 = arith.constant 0 : i32
    return %arg0, %c0_i32, %c0_i32_0 : i32, i32, i32
  }
  func.func @transform_1(%arg0: i32) -> (i32, i32) {
    %c0_i32 = arith.constant 0 : i32
    %c0_i32_0 = arith.constant 0 : i32
    %c0_i32_1 = arith.constant 0 : i32
    return %c0_i32, %c0_i32_0 : i32, i32
  }
  func.func @transform_2(%arg0: i32) -> (i32, i32) {
    %c0_i32 = arith.constant 0 : i32
    %c0_i32_0 = arith.constant 0 : i32
    %c0_i32_1 = arith.constant 0 : i32
    return %c0_i32, %c0_i32_0 : i32, i32
  }
  func.func @transform_3(%arg0: i32) -> (i32, i32, i32) {
    %c0_i32 = arith.constant 0 : i32
    %c0_i32_0 = arith.constant 0 : i32
    %c0_i32_1 = arith.constant 0 : i32
    return %arg0, %c0_i32, %c0_i32_0 : i32, i32, i32
  }
}

module attributes {stable_mosaic.version = 11 : i64} {
  func.func @_fc_head_kernel(%arg0: i32, %arg1: memref<8x1024xbf16, #tpu.memory_space<vmem>>, %arg2: memref<1024x1024xbf16, #tpu.memory_space<vmem>>, %arg3: memref<1x1024xf32, #tpu.memory_space<vmem>>, %arg4: memref<1024x2xbf16, #tpu.memory_space<vmem>>, %arg5: memref<1x2xf32, #tpu.memory_space<vmem>>, %arg6: memref<8x2xf32, #tpu.memory_space<vmem>>) attributes {dimension_semantics = [#tpu.dimension_semantics<parallel>], iteration_bounds = array<i64: 1>, scalar_prefetch = 0 : i64, scratch_operands = 0 : i64, tpu.core_type = #tpu.core_type<tc>, window_params = [{transform_indices = @transform_0, window_bounds = array<i64: 8, 1024>}, {pipeline_mode = #tpu.pipeline_mode<synchronous>, transform_indices = @transform_1, window_bounds = array<i64: 1024, 1024>}, {pipeline_mode = #tpu.pipeline_mode<synchronous>, transform_indices = @transform_2, window_bounds = array<i64: 1, 1024>}, {pipeline_mode = #tpu.pipeline_mode<synchronous>, transform_indices = @transform_3, window_bounds = array<i64: 1024, 2>}, {pipeline_mode = #tpu.pipeline_mode<synchronous>, transform_indices = @transform_4, window_bounds = array<i64: 1, 2>}, {transform_indices = @transform_5, window_bounds = array<i64: 8, 2>}]} {
    %c0 = arith.constant 0 : index
    %c0_0 = arith.constant 0 : index
    %0 = vector.load %arg1[%c0, %c0_0] : memref<8x1024xbf16, #tpu.memory_space<vmem>>, vector<8x1024xbf16>
    %c0_1 = arith.constant 0 : index
    %c0_2 = arith.constant 0 : index
    %1 = vector.load %arg2[%c0_1, %c0_2] : memref<1024x1024xbf16, #tpu.memory_space<vmem>>, vector<1024x1024xbf16>
    %cst = arith.constant dense<0.000000e+00> : vector<8x1024xf32>
    %2 = tpu.matmul %0, %1, %cst {dimension_numbers = #tpu.dot_dimension_numbers<[1], [0], [0], [1], [0, 0, 1, 1], [], []>} : vector<8x1024xbf16>, vector<1024x1024xbf16>, vector<8x1024xf32> -> vector<8x1024xf32>
    %c0_3 = arith.constant 0 : index
    %c0_4 = arith.constant 0 : index
    %3 = vector.load %arg3[%c0_3, %c0_4] : memref<1x1024xf32, #tpu.memory_space<vmem>>, vector<1x1024xf32>
    %4 = vector.broadcast %3 : vector<1x1024xf32> to vector<8x1024xf32>
    %5 = arith.addf %2, %4 : vector<8x1024xf32>
    %cst_5 = arith.constant 0.000000e+00 : f32
    %6 = vector.broadcast %cst_5 : f32 to vector<8x1024xf32>
    %7 = arith.cmpf oge, %5, %6 : vector<8x1024xf32>
    %cst_6 = arith.constant 2.000000e-01 : f32
    %8 = vector.broadcast %cst_6 : f32 to vector<8x1024xf32>
    %9 = arith.mulf %8, %5 : vector<8x1024xf32>
    %10 = arith.select %7, %5, %9 : vector<8x1024xi1>, vector<8x1024xf32>
    %11 = arith.truncf %10 : vector<8x1024xf32> to vector<8x1024xbf16>
    %c0_7 = arith.constant 0 : index
    %c0_8 = arith.constant 0 : index
    %12 = vector.load %arg4[%c0_7, %c0_8] : memref<1024x2xbf16, #tpu.memory_space<vmem>>, vector<1024x2xbf16>
    %cst_9 = arith.constant dense<0.000000e+00> : vector<8x2xf32>
    %13 = tpu.matmul %11, %12, %cst_9 {dimension_numbers = #tpu.dot_dimension_numbers<[1], [0], [0], [1], [0, 0, 1, 1], [], []>} : vector<8x1024xbf16>, vector<1024x2xbf16>, vector<8x2xf32> -> vector<8x2xf32>
    %c0_10 = arith.constant 0 : index
    %c0_11 = arith.constant 0 : index
    %14 = vector.load %arg5[%c0_10, %c0_11] : memref<1x2xf32, #tpu.memory_space<vmem>>, vector<1x2xf32>
    %15 = vector.broadcast %14 : vector<1x2xf32> to vector<8x2xf32>
    %16 = arith.addf %13, %15 : vector<8x2xf32>
    %c0_12 = arith.constant 0 : index
    %c0_13 = arith.constant 0 : index
    %17 = vector.load %arg6[%c0_12, %c0_13] : memref<8x2xf32, #tpu.memory_space<vmem>>, vector<8x2xf32>
    tpu.vector_store %arg6[%c0_12, %c0_13], %16 {strides = array<i32>} : memref<8x2xf32, #tpu.memory_space<vmem>>, vector<8x2xf32>,
    return
  }
  func.func @transform_0(%arg0: i32) -> (i32, i32) {
    %c0_i32 = arith.constant 0 : i32
    %c0_i32_0 = arith.constant 0 : i32
    return %arg0, %c0_i32 : i32, i32
  }
  func.func @transform_1(%arg0: i32) -> (i32, i32) {
    %c0_i32 = arith.constant 0 : i32
    %c0_i32_0 = arith.constant 0 : i32
    %c0_i32_1 = arith.constant 0 : i32
    return %c0_i32, %c0_i32_0 : i32, i32
  }
  func.func @transform_2(%arg0: i32) -> (i32, i32) {
    %c0_i32 = arith.constant 0 : i32
    %c0_i32_0 = arith.constant 0 : i32
    %c0_i32_1 = arith.constant 0 : i32
    return %c0_i32, %c0_i32_0 : i32, i32
  }
  func.func @transform_3(%arg0: i32) -> (i32, i32) {
    %c0_i32 = arith.constant 0 : i32
    %c0_i32_0 = arith.constant 0 : i32
    %c0_i32_1 = arith.constant 0 : i32
    return %c0_i32, %c0_i32_0 : i32, i32
  }
  func.func @transform_4(%arg0: i32) -> (i32, i32) {
    %c0_i32 = arith.constant 0 : i32
    %c0_i32_0 = arith.constant 0 : i32
    %c0_i32_1 = arith.constant 0 : i32
    return %c0_i32, %c0_i32_0 : i32, i32
  }
  func.func @transform_5(%arg0: i32) -> (i32, i32) {
    %c0_i32 = arith.constant 0 : i32
    %c0_i32_0 = arith.constant 0 : i32
    return %arg0, %c0_i32 : i32, i32
  }
}

</mosaic_0001>

<llo_original>
// kernel: discriminator_forward.3
$region0: #{discriminator_forward.3}
  #allocation0 [shape = 'u32[]', space=smem, size = 0x4, offset = 0x4, fixed_abs, tag = 'smem constant byte address 0x4 - core index']
  #allocation1 [shape = 'u32[144,128]{1,0:T(1,128)}', space=vmem, size = 0x12000, scoped, tag = 'internal scratch']
  %s0 = inlined_call_operand.vmem [shape: bf16[4,576,75], index: 0, kind: input, shape index: {}]
  %s1 = inlined_call_operand.vmem [shape: bf16[75,32], index: 1, kind: input, shape index: {}]
  %s2 = inlined_call_operand.vmem [shape: f32[1,32], index: 2, kind: input, shape index: {}]
  %s3 = inlined_call_operand.vmem [shape: bf16[4,144,32], index: 3, kind: output, shape index: {}]
  %s4 = sld [smem:[#allocation0]]
  $region45: #{discriminator_forward.3} parent=0
    _
  %s6 = ssub.s32 1, %s4
  %s7 = scalar_select 0, %s6, %s4
  loop: start=0, step=1, limit=4
  $region2: #{discriminator_forward.3} parent=0 // loop_pre_header
    _
  $region3: #{discriminator_forward.3} parent=0 // loop_header
    %s9 = sphi 0, %s13
    %p10 = scmp.ge.s32.totalorder %s9, 4
    %s19 = sphi 0, %s21
    %s22 = sphi 0, %s19
    %s23 = sphi 0, %s22
    %s39 = sphi 0, %s23
    %s43 = sphi 0, %s43
    %s45 = sphi 0, %s43
    %s46 = sphi 0, %s45
    %s60 = sphi 0, %s46
    %s64 = sphi 0, %s64
    %s66 = sphi 0, %s64
    %s67 = sphi 0, %s66
    %s81 = sphi 0, %s67
    %s87 = sphi 0, %s89
    %s90 = sphi 0, %s87
    %s91 = sphi 0, %s90
    %s107 = sphi 0, %s91
  $region4: #{discriminator_forward.3} parent=0 // loop_header_branch
    %12 = sbr.rel (%p10) target = $region8
  $region5: #{discriminator_forward.3} parent=0 // loop_body
    %s14 = ssub.s32 %s9, 1
    %s15 = ssub.s32 %s9, 2
    %s16 = sadd.s32 %s9, 1
    %s17 = ssub.s32 %s9, %s16
    %p18 = scmp.eq.s32.totalorder %s17, 0
    %s20 = sadd.s32 %s19, 1
    %s21 = scalar_select %p18, %s19, %s20
    %p24 = pneg %p18
    %p25 = scmp.eq.s32.totalorder %s9, 1
    %p26 = por %p24, %p25
    %p27 = scmp.ne.s32.totalorder %s19, %s22
    %p28 = scmp.eq.s32.totalorder %s9, 0
    %p29 = por %p27, %p28
    %p30 = scmp.ne.s32.totalorder %s19, %s22
    %p31 = scmp.eq.s32.totalorder %s14, 1
    %p32 = por %p30, %p31
    %p33 = scmp.ne.s32.totalorder %s22, %s23
    %p34 = scmp.eq.s32.totalorder %s14, 0
    %p35 = por %p33, %p34
    %p36 = scmp.ne.s32.totalorder %s22, %s23
    %p37 = scmp.eq.s32.totalorder %s15, 1
    %p38 = por %p36, %p37
    %p40 = scmp.ne.s32.totalorder %s23, %s39
    %p41 = scmp.eq.s32.totalorder %s15, 0
    %p42 = por %p40, %p41
    %s44 = sadd.s32 %s43, 1
    %p47 = scmp.eq.s32.totalorder %s9, 1
    %p48 = scmp.ne.s32.totalorder %s43, %s45
    %p49 = scmp.eq.s32.totalorder %s9, 0
    %p50 = por %p48, %p49
    %p51 = scmp.ne.s32.totalorder %s43, %s45
    %p52 = scmp.eq.s32.totalorder %s14, 1
    %p53 = por %p51, %p52
    %p54 = scmp.ne.s32.totalorder %s45, %s46
    %p55 = scmp.eq.s32.totalorder %s14, 0
    %p56 = por %p54, %p55
    %p57 = scmp.ne.s32.totalorder %s45, %s46
    %p58 = scmp.eq.s32.totalorder %s15, 1
    %p59 = por %p57, %p58
    %p61 = scmp.ne.s32.totalorder %s46, %s60
    %p62 = scmp.eq.s32.totalorder %s15, 0
    %p63 = por %p61, %p62
    %s65 = sadd.s32 %s64, 1
    %p68 = scmp.eq.s32.totalorder %s9, 1
    %p69 = scmp.ne.s32.totalorder %s64, %s66
    %p70 = scmp.eq.s32.totalorder %s9, 0
    %p71 = por %p69, %p70
    %p72 = scmp.ne.s32.totalorder %s64, %s66
    %p73 = scmp.eq.s32.totalorder %s14, 1
    %p74 = por %p72, %p73
    %p75 = scmp.ne.s32.totalorder %s66, %s67
    %p76 = scmp.eq.s32.totalorder %s14, 0
    %p77 = por %p75, %p76
    %p78 = scmp.ne.s32.totalorder %s66, %s67
    %p79 = scmp.eq.s32.totalorder %s15, 1
    %p80 = por %p78, %p79
    %p82 = scmp.ne.s32.totalorder %s67, %s81
    %p83 = scmp.eq.s32.totalorder %s15, 0
    %p84 = por %p82, %p83
    %s85 = ssub.s32 %s9, %s16
    %p86 = scmp.eq.s32.totalorder %s85, 0
    %s88 = sadd.s32 %s87, 1
    %s89 = scalar_select %p86, %s87, %s88
    %p92 = pneg %p86
    %p93 = scmp.eq.s32.totalorder %s9, 1
    %p94 = por %p92, %p93
    %p95 = scmp.ne.s32.totalorder %s87, %s90
    %p96 = scmp.eq.s32.totalorder %s9, 0
    %p97 = por %p95, %p96
    %p98 = scmp.ne.s32.totalorder %s87, %s90
    %p99 = scmp.eq.s32.totalorder %s14, 1
    %p100 = por %p98, %p99
    %p101 = scmp.ne.s32.totalorder %s90, %s91
    %p102 = scmp.eq.s32.totalorder %s14, 0
    %p103 = por %p101, %p102
    %p104 = scmp.ne.s32.totalorder %s90, %s91
    %p105 = scmp.eq.s32.totalorder %s15, 1
    %p106 = por %p104, %p105
    %p108 = scmp.ne.s32.totalorder %s91, %s107
    %p109 = scmp.eq.s32.totalorder %s15, 0
    %p110 = por %p108, %p109
    %p111 = scmp.le.s32.totalorder 1, %s9
    %p112 = scmp.lt.s32.totalorder %s9, 3
    %p113 = pnand %p111, %p112
    %p114 = pneg %p113
    // Predicated region
    $region9: #{discriminator_forward.3} parent=5 // pred_check
      _
    $region10: #{discriminator_forward.3} parent=5 // pred_check_branch
      %116 = sbr.rel (%p113) target = $region12
    $region11: #{discriminator_forward.3} parent=5 // pred_region
      %s117 = ssub.s32 %s9, 1
      // Predicated region
      $region13: #{discriminator_forward.3} parent=11 // pred_check
        %p118 = pneg %p56
      $region14: #{discriminator_forward.3} parent=11 // pred_check_branch
        %120 = sbr.rel (%p118) target = $region16
      $region15: #{discriminator_forward.3} parent=11 // pred_region
        _
      $region16: #{discriminator_forward.3} parent=11 // pred_fallthru
        _
      // Predicated region
      $region17: #{discriminator_forward.3} parent=11 // pred_check
        %p121 = pneg %p77
      $region18: #{discriminator_forward.3} parent=11 // pred_check_branch
        %123 = sbr.rel (%p121) target = $region20
      $region19: #{discriminator_forward.3} parent=11 // pred_region
        _
      $region20: #{discriminator_forward.3} parent=11 // pred_fallthru
        _
    $region12: #{discriminator_forward.3} parent=5 // pred_fallthru
      _
    %p124 = scmp.lt.s32.totalorder %s9, 2
    // Predicated region
    $region21: #{discriminator_forward.3} parent=5 // pred_check
      %p125 = pneg %p124
    $region22: #{discriminator_forward.3} parent=5 // pred_check_branch
      %127 = sbr.rel (%p125) target = $region24
    $region23: #{discriminator_forward.3} parent=5 // pred_region
      // Predicated region
      $region25: #{discriminator_forward.3} parent=23 // pred_check
        %p128 = pneg %p29
      $region26: #{discriminator_forward.3} parent=23 // pred_check_branch
        %130 = sbr.rel (%p128) target = $region28
      $region27: #{discriminator_forward.3} parent=23 // pred_region
        %s131 = smul.u32 2, %s9
        %p132 = scmp.lt.s32.totalorder %s131, 3
        %s133 = scalar_select %p132, %s131, 3
        %s134 = smul.addr %s133, 72
        %s135 = smul.addr %s134, 4
        %s136 = scalar_lea.vmem %s0, %s135
        %s137 = smul.u32 2, %s9
      $region28: #{discriminator_forward.3} parent=23 // pred_fallthru
        _
    $region24: #{discriminator_forward.3} parent=5 // pred_fallthru
      _
    %p138 = scmp.le.s32.totalorder 1, %s9
    %p139 = scmp.lt.s32.totalorder %s9, 3
    %p140 = pnand %p138, %p139
    %p141 = pneg %p140
    // Predicated region
    $region29: #{discriminator_forward.3} parent=5 // pred_check
      _
    $region30: #{discriminator_forward.3} parent=5 // pred_check_branch
      %143 = sbr.rel (%p140) target = $region32
    $region31: #{discriminator_forward.3} parent=5 // pred_region
      %s144 = ssub.s32 %s9, 1
      %s145 = smul.u32 2, %s14
      %p146 = scmp.lt.s32.totalorder %s145, 3
      %s147 = scalar_select %p146, %s145, 3
      %s148 = smul.addr %s147, 72
      %s149 = smul.addr %s148, 4
      %s150 = scalar_lea.vmem %s0, %s149
      %p151 = pneg %p35
      %p152 = pneg %p32
      %p153 = pneg %p56
      %p154 = pneg %p53
      %p155 = pneg %p77
      %p156 = pneg %p74
      %p157 = pneg %p103
      %p158 = pneg %p100
      %s159 = smul.u32 2, %s14
      %p160 = scmp.lt.s32.totalorder %s159, 3
      %s161 = scalar_select %p160, %s159, 3
      %s162 = smul.addr %s161, 18
      %s163 = smul.addr %s162, 4
      %s164 = scalar_lea.vmem %s3, %s163
      %s165 = smul.u32 2, %s14
      %p166 = scmp.lt.s32.totalorder %s165, 3
      %s167 = scalar_select %p166, %s165, 3
      %s168 = smul.addr %s167, 72
      %s169 = smul.addr %s168, 4
      %s170 = scalar_lea.vmem %s0, %s169
      %s171 = smul.u32 2, %s14
      %s172 = smul.u32 2, %s14
      %p173 = scmp.lt.s32.totalorder %s172, 3
      %s174 = scalar_select %p173, %s172, 3
      %s175 = smul.addr %s174, 18
      %s176 = smul.addr %s175, 4
      %s177 = scalar_lea.vmem %s3, %s176
      %s178 = smul.u32 2, %s14
      %v180 = vld [vmem:[%s170] sm:$0xf]
      %v181 = vld [vmem:[%s170 + $0x4] sm:$0xf]
      %v182 = vld [vmem:[%s170 + $0x8] sm:$0xf]
      %v183 = vld [vmem:[%s170 + $0xc] sm:$0xf]
      %v184 = vld [vmem:[%s170 + $0x10] sm:$0xf]
      %v185 = vld [vmem:[%s170 + $0x14] sm:$0xf]
      %v186 = vld [vmem:[%s170 + $0x18] sm:$0xf]
      %v187 = vld [vmem:[%s170 + $0x1c] sm:$0xf]
      %v188 = vld [vmem:[%s170 + $0x20] sm:$0xf]
      %v189 = vld [vmem:[%s170 + $0x24] sm:$0xf]
      %v190 = vld [vmem:[%s170 + $0x28] sm:$0xf]
      %v191 = vld [vmem:[%s170 + $0x2c] sm:$0xf]
      %v192 = vld [vmem:[%s170 + $0x30] sm:$0xf]
      %v193 = vld [vmem:[%s170 + $0x34] sm:$0xf]
      %v194 = vld [vmem:[%s170 + $0x38] sm:$0xf]
      %v195 = vld [vmem:[%s170 + $0x3c] sm:$0xf]
      %v196 = vld [vmem:[%s170 + $0x40] sm:$0xf]
      %v197 = vld [vmem:[%s170 + $0x44] sm:$0xf]
      %v198 = vld [vmem:[%s170 + $0x48] sm:$0xf]
      %v199 = vld [vmem:[%s170 + $0x4c] sm:$0xf]
      %v200 = vld [vmem:[%s170 + $0x50] sm:$0xf]
      %v201 = vld [vmem:[%s170 + $0x54] sm:$0xf]
      %v202 = vld [vmem:[%s170 + $0x58] sm:$0xf]
      %v203 = vld [vmem:[%s170 + $0x5c] sm:$0xf]
      %v204 = vld [vmem:[%s170 + $0x60] sm:$0xf]
      %v205 = vld [vmem:[%s170 + $0x64] sm:$0xf]
      %v206 = vld [vmem:[%s170 + $0x68] sm:$0xf]
      %v207 = vld [vmem:[%s170 + $0x6c] sm:$0xf]
      %v208 = vld [vmem:[%s170 + $0x70] sm:$0xf]
      %v209 = vld [vmem:[%s170 + $0x74] sm:$0xf]
      %v210 = vld [vmem:[%s170 + $0x78] sm:$0xf]
      %v211 = vld [vmem:[%s170 + $0x7c] sm:$0xf]
      %v212 = vld [vmem:[%s170 + $0x80] sm:$0xf]
      %v213 = vld [vmem:[%s170 + $0x84] sm:$0xf]
      %v214 = vld [vmem:[%s170 + $0x88] sm:$0xf]
      %v215 = vld [vmem:[%s170 + $0x8c] sm:$0xf]
      %v216 = vld [vmem:[%s170 + $0x90] sm:$0xf]
      %v217 = vld [vmem:[%s170 + $0x94] sm:$0xf]
      %v218 = vld [vmem:[%s170 + $0x98] sm:$0xf]
      %v219 = vld [vmem:[%s170 + $0x9c] sm:$0xf]
      %v220 = vld [vmem:[%s170 + $0xa0] sm:$0xf]
      %v221 = vld [vmem:[%s170 + $0xa4] sm:$0xf]
      %v222 = vld [vmem:[%s170 + $0xa8] sm:$0xf]
      %v223 = vld [vmem:[%s170 + $0xac] sm:$0xf]
      %v224 = vld [vmem:[%s170 + $0xb0] sm:$0xf]
      %v225 = vld [vmem:[%s170 + $0xb4] sm:$0xf]
      %v226 = vld [vmem:[%s170 + $0xb8] sm:$0xf]
      %v227 = vld [vmem:[%s170 + $0xbc] sm:$0xf]
      %v228 = vld [vmem:[%s170 + $0xc0] sm:$0xf]
      %v229 = vld [vmem:[%s170 + $0xc4] sm:$0xf]
      %v230 = vld [vmem:[%s170 + $0xc8] sm:$0xf]
      %v231 = vld [vmem:[%s170 + $0xcc] sm:$0xf]
      %v232 = vld [vmem:[%s170 + $0xd0] sm:$0xf]
      %v233 = vld [vmem:[%s170 + $0xd4] sm:$0xf]
      %v234 = vld [vmem:[%s170 + $0xd8] sm:$0xf]
      %v235 = vld [vmem:[%s170 + $0xdc] sm:$0xf]
      %v236 = vld [vmem:[%s170 + $0xe0] sm:$0xf]
      %v237 = vld [vmem:[%s170 + $0xe4] sm:$0xf]
      %v238 = vld [vmem:[%s170 + $0xe8] sm:$0xf]
      %v239 = vld [vmem:[%s170 + $0xec] sm:$0xf]
      %v240 = vld [vmem:[%s170 + $0xf0] sm:$0xf]
      %v241 = vld [vmem:[%s170 + $0xf4] sm:$0xf]
      %v242 = vld [vmem:[%s170 + $0xf8] sm:$0xf]
      %v243 = vld [vmem:[%s170 + $0xfc] sm:$0xf]
      %v244 = vld [vmem:[%s170 + $0x100] sm:$0xf]
      %v245 = vld [vmem:[%s170 + $0x104] sm:$0xf]
      %v246 = vld [vmem:[%s170 + $0x108] sm:$0xf]
      %v247 = vld [vmem:[%s170 + $0x10c] sm:$0xf]
      %v248 = vld [vmem:[%s170 + $0x110] sm:$0xf]
      %v249 = vld [vmem:[%s170 + $0x114] sm:$0xf]
      %v250 = vld [vmem:[%s170 + $0x118] sm:$0xf]
      %v251 = vld [vmem:[%s170 + $0x11c] sm:$0xf]
      %v252 = vld [vmem:[%s170 + $0x120] sm:$0xf]
      %v253 = vld [vmem:[%s170 + $0x124] sm:$0xf]
      %v254 = vld [vmem:[%s170 + $0x128] sm:$0xf]
      %v255 = vld [vmem:[%s170 + $0x12c] sm:$0xf]
      %v256 = vld [vmem:[%s170 + $0x130] sm:$0xf]
      %v257 = vld [vmem:[%s170 + $0x134] sm:$0xf]
      %v258 = vld [vmem:[%s170 + $0x138] sm:$0xf]
      %v259 = vld [vmem:[%s170 + $0x13c] sm:$0xf]
      %v260 = vld [vmem:[%s170 + $0x140] sm:$0xf]
      %v261 = vld [vmem:[%s170 + $0x144] sm:$0xf]
      %v262 = vld [vmem:[%s170 + $0x148] sm:$0xf]
      %v263 = vld [vmem:[%s170 + $0x14c] sm:$0xf]
      %v264 = vld [vmem:[%s170 + $0x150] sm:$0xf]
      %v265 = vld [vmem:[%s170 + $0x154] sm:$0xf]
      %v266 = vld [vmem:[%s170 + $0x158] sm:$0xf]
      %v267 = vld [vmem:[%s170 + $0x15c] sm:$0xf]
      %v268 = vld [vmem:[%s170 + $0x160] sm:$0xf]
      %v269 = vld [vmem:[%s170 + $0x164] sm:$0xf]
      %v270 = vld [vmem:[%s170 + $0x168] sm:$0xf]
      %v271 = vld [vmem:[%s170 + $0x16c] sm:$0xf]
      %v272 = vld [vmem:[%s170 + $0x170] sm:$0xf]
      %v273 = vld [vmem:[%s170 + $0x174] sm:$0xf]
      %v274 = vld [vmem:[%s170 + $0x178] sm:$0xf]
      %v275 = vld [vmem:[%s170 + $0x17c] sm:$0xf]
      %v276 = vld [vmem:[%s170 + $0x180] sm:$0xf]
      %v277 = vld [vmem:[%s170 + $0x184] sm:$0xf]
      %v278 = vld [vmem:[%s170 + $0x188] sm:$0xf]
      %v279 = vld [vmem:[%s170 + $0x18c] sm:$0xf]
      %v280 = vld [vmem:[%s170 + $0x190] sm:$0xf]
      %v281 = vld [vmem:[%s170 + $0x194] sm:$0xf]
      %v282 = vld [vmem:[%s170 + $0x198] sm:$0xf]
      %v283 = vld [vmem:[%s170 + $0x19c] sm:$0xf]
      %v284 = vld [vmem:[%s170 + $0x1a0] sm:$0xf]
      %v285 = vld [vmem:[%s170 + $0x1a4] sm:$0xf]
      %v286 = vld [vmem:[%s170 + $0x1a8] sm:$0xf]
      %v287 = vld [vmem:[%s170 + $0x1ac] sm:$0xf]
      %v288 = vld [vmem:[%s170 + $0x1b0] sm:$0xf]
      %v289 = vld [vmem:[%s170 + $0x1b4] sm:$0xf]
      %v290 = vld [vmem:[%s170 + $0x1b8] sm:$0xf]
      %v291 = vld [vmem:[%s170 + $0x1bc] sm:$0xf]
      %v292 = vld [vmem:[%s170 + $0x1c0] sm:$0xf]
      %v293 = vld [vmem:[%s170 + $0x1c4] sm:$0xf]
      %v294 = vld [vmem:[%s170 + $0x1c8] sm:$0xf]
      %v295 = vld [vmem:[%s170 + $0x1cc] sm:$0xf]
      %v296 = vld [vmem:[%s170 + $0x1d0] sm:$0xf]
      %v297 = vld [vmem:[%s170 + $0x1d4] sm:$0xf]
      %v298 = vld [vmem:[%s170 + $0x1d8] sm:$0xf]
      %v299 = vld [vmem:[%s170 + $0x1dc] sm:$0xf]
      %v300 = vld [vmem:[%s170 + $0x1e0] sm:$0xf]
      %v301 = vld [vmem:[%s170 + $0x1e4] sm:$0xf]
      %v302 = vld [vmem:[%s170 + $0x1e8] sm:$0xf]
      %v303 = vld [vmem:[%s170 + $0x1ec] sm:$0xf]
      %v304 = vld [vmem:[%s170 + $0x1f0] sm:$0xf]
      %v305 = vld [vmem:[%s170 + $0x1f4] sm:$0xf]
      %v306 = vld [vmem:[%s170 + $0x1f8] sm:$0xf]
      %v307 = vld [vmem:[%s170 + $0x1fc] sm:$0xf]
      %v308 = vld [vmem:[%s170 + $0x200] sm:$0xf]
      %v309 = vld [vmem:[%s170 + $0x204] sm:$0xf]
      %v310 = vld [vmem:[%s170 + $0x208] sm:$0xf]
      %v311 = vld [vmem:[%s170 + $0x20c] sm:$0xf]
      %v312 = vld [vmem:[%s170 + $0x210] sm:$0xf]
      %v313 = vld [vmem:[%s170 + $0x214] sm:$0xf]
      %v314 = vld [vmem:[%s170 + $0x218] sm:$0xf]
      %v315 = vld [vmem:[%s170 + $0x21c] sm:$0xf]
      %v316 = vld [vmem:[%s170 + $0x220] sm:$0xf]
      %v317 = vld [vmem:[%s170 + $0x224] sm:$0xf]
      %v318 = vld [vmem:[%s170 + $0x228] sm:$0xf]
      %v319 = vld [vmem:[%s170 + $0x22c] sm:$0xf]
      %v320 = vld [vmem:[%s170 + $0x230] sm:$0xf]
      %v321 = vld [vmem:[%s170 + $0x234] sm:$0xf]
      %v322 = vld [vmem:[%s170 + $0x238] sm:$0xf]
      %v323 = vld [vmem:[%s170 + $0x23c] sm:$0xf]
      %v324 = vld [vmem:[%s1] sm:$0xf]
      %v325 = vld [vmem:[%s1 + $0x4] sm:$0xf]
      %v326 = vld [vmem:[%s1 + $0x8] sm:$0xf]
      %v327 = vld [vmem:[%s1 + $0xc] sm:$0xf]
      %v328 = vld [vmem:[%s1 + $0x10] sm:$0xf]
      %v329 = vld [vmem:[%s1 + $0x14] sm:$0xf]
      %v330 = vld [vmem:[%s1 + $0x18] sm:$0xf]
      %v331 = vld [vmem:[%s1 + $0x1c] sm:$0xf]
      %v332 = vld [vmem:[%s1 + $0x20] sm:$0xf]
      %v333 = vld [vmem:[%s1 + $0x24] sm:$0x3]
      %v478 = vunpack.c.l.b16 %v180
      %v479 = vunpack.c.l.b16 %v181
      %v480 = vunpack.c.l.b16 %v182
      %v481 = vunpack.c.l.b16 %v183
      %v482 = vunpack.c.l.b16 %v184
      %v483 = vunpack.c.l.b16 %v185
      %v484 = vunpack.c.l.b16 %v186
      %v485 = vunpack.c.l.b16 %v187
      %v486 = vunpack.c.l.b16 %v188
      %v487 = vunpack.c.l.b16 %v189
      %v488 = vunpack.c.l.b16 %v190
      %v489 = vunpack.c.l.b16 %v191
      %v490 = vunpack.c.l.b16 %v192
      %v491 = vunpack.c.l.b16 %v193
      %v492 = vunpack.c.l.b16 %v194
      %v493 = vunpack.c.l.b16 %v195
      %v494 = vunpack.c.l.b16 %v196
      %v495 = vunpack.c.l.b16 %v197
      %v496 = vunpack.c.l.b16 %v198
      %v497 = vunpack.c.l.b16 %v199
      %v498 = vunpack.c.l.b16 %v200
      %v499 = vunpack.c.l.b16 %v201
      %v500 = vunpack.c.l.b16 %v202
      %v501 = vunpack.c.l.b16 %v203
      %v502 = vunpack.c.l.b16 %v204
      %v503 = vunpack.c.l.b16 %v205
      %v504 = vunpack.c.l.b16 %v206
      %v505 = vunpack.c.l.b16 %v207
      %v506 = vunpack.c.l.b16 %v208
      %v507 = vunpack.c.l.b16 %v209
      %v508 = vunpack.c.l.b16 %v210
      %v509 = vunpack.c.l.b16 %v211
      %v510 = vunpack.c.l.b16 %v212
      %v511 = vunpack.c.l.b16 %v213
      %v512 = vunpack.c.l.b16 %v214
      %v513 = vunpack.c.l.b16 %v215
      %v514 = vunpack.c.l.b16 %v216
      %v515 = vunpack.c.l.b16 %v217
      %v516 = vunpack.c.l.b16 %v218
      %v517 = vunpack.c.l.b16 %v219
      %v518 = vunpack.c.l.b16 %v220
      %v519 = vunpack.c.l.b16 %v221
      %v520 = vunpack.c.l.b16 %v222
      %v521 = vunpack.c.l.b16 %v223
      %v522 = vunpack.c.l.b16 %v224
      %v523 = vunpack.c.l.b16 %v225
      %v524 = vunpack.c.l.b16 %v226
      %v525 = vunpack.c.l.b16 %v227
      %v526 = vunpack.c.l.b16 %v228
      %v527 = vunpack.c.l.b16 %v229
      %v528 = vunpack.c.l.b16 %v230
      %v529 = vunpack.c.l.b16 %v231
      %v530 = vunpack.c.l.b16 %v232
      %v531 = vunpack.c.l.b16 %v233
      %v532 = vunpack.c.l.b16 %v234
      %v533 = vunpack.c.l.b16 %v235
      %v534 = vunpack.c.l.b16 %v236
      %v535 = vunpack.c.l.b16 %v237
      %v536 = vunpack.c.l.b16 %v238
      %v537 = vunpack.c.l.b16 %v239
      %v538 = vunpack.c.l.b16 %v240
      %v539 = vunpack.c.l.b16 %v241
      %v540 = vunpack.c.l.b16 %v242
      %v541 = vunpack.c.l.b16 %v243
      %v542 = vunpack.c.l.b16 %v244
      %v543 = vunpack.c.l.b16 %v245
      %v544 = vunpack.c.l.b16 %v246
      %v545 = vunpack.c.l.b16 %v247
      %v546 = vunpack.c.l.b16 %v248
      %v547 = vunpack.c.l.b16 %v249
      %v548 = vunpack.c.l.b16 %v250
      %v549 = vunpack.c.l.b16 %v251
      %v550 = vunpack.c.l.b16 %v252
      %v551 = vunpack.c.l.b16 %v253
      %v552 = vunpack.c.l.b16 %v254
      %v553 = vunpack.c.l.b16 %v255
      %v554 = vunpack.c.l.b16 %v256
      %v555 = vunpack.c.l.b16 %v257
      %v556 = vunpack.c.l.b16 %v258
      %v557 = vunpack.c.l.b16 %v259
      %v558 = vunpack.c.l.b16 %v260
      %v559 = vunpack.c.l.b16 %v261
      %v560 = vunpack.c.l.b16 %v262
      %v561 = vunpack.c.l.b16 %v263
      %v562 = vunpack.c.l.b16 %v264
      %v563 = vunpack.c.l.b16 %v265
      %v564 = vunpack.c.l.b16 %v266
      %v565 = vunpack.c.l.b16 %v267
      %v566 = vunpack.c.l.b16 %v268
      %v567 = vunpack.c.l.b16 %v269
      %v568 = vunpack.c.l.b16 %v270
      %v569 = vunpack.c.l.b16 %v271
      %v570 = vunpack.c.l.b16 %v272
      %v571 = vunpack.c.l.b16 %v273
      %v572 = vunpack.c.l.b16 %v274
      %v573 = vunpack.c.l.b16 %v275
      %v574 = vunpack.c.l.b16 %v276
      %v575 = vunpack.c.l.b16 %v277
      %v576 = vunpack.c.l.b16 %v278
      %v577 = vunpack.c.l.b16 %v279
      %v578 = vunpack.c.l.b16 %v280
      %v579 = vunpack.c.l.b16 %v281
      %v580 = vunpack.c.l.b16 %v282
      %v581 = vunpack.c.l.b16 %v283
      %v582 = vunpack.c.l.b16 %v284
      %v583 = vunpack.c.l.b16 %v285
      %v584 = vunpack.c.l.b16 %v286
      %v585 = vunpack.c.l.b16 %v287
      %v586 = vunpack.c.l.b16 %v288
      %v587 = vunpack.c.l.b16 %v289
      %v588 = vunpack.c.l.b16 %v290
      %v589 = vunpack.c.l.b16 %v291
      %v590 = vunpack.c.l.b16 %v292
      %v591 = vunpack.c.l.b16 %v293
      %v592 = vunpack.c.l.b16 %v294
      %v593 = vunpack.c.l.b16 %v295
      %v594 = vunpack.c.l.b16 %v296
      %v595 = vunpack.c.l.b16 %v297
      %v596 = vunpack.c.l.b16 %v298
      %v597 = vunpack.c.l.b16 %v299
      %v598 = vunpack.c.l.b16 %v300
      %v599 = vunpack.c.l.b16 %v301
      %v600 = vunpack.c.l.b16 %v302
      %v601 = vunpack.c.l.b16 %v303
      %v602 = vunpack.c.l.b16 %v304
      %v603 = vunpack.c.l.b16 %v305
      %v604 = vunpack.c.l.b16 %v306
      %v605 = vunpack.c.l.b16 %v307
      %v606 = vunpack.c.l.b16 %v308
      %v607 = vunpack.c.l.b16 %v309
      %v608 = vunpack.c.l.b16 %v310
      %v609 = vunpack.c.l.b16 %v311
      %v610 = vunpack.c.l.b16 %v312
      %v611 = vunpack.c.l.b16 %v313
      %v612 = vunpack.c.l.b16 %v314
      %v613 = vunpack.c.l.b16 %v315
      %v614 = vunpack.c.l.b16 %v316
      %v615 = vunpack.c.l.b16 %v317
      %v616 = vunpack.c.l.b16 %v318
      %v617 = vunpack.c.l.b16 %v319
      %v618 = vunpack.c.l.b16 %v320
      %v619 = vunpack.c.l.b16 %v321
      %v620 = vunpack.c.l.b16 %v322
      %v621 = vunpack.c.l.b16 %v323
      %v622 = vpack.c.b16 %v479, %v478
      %v623 = vpack.c.b16 %v481, %v480
      %v624 = vpack.c.b16 %v483, %v482
      %v625 = vpack.c.b16 %v485, %v484
      %v626 = vpack.c.b16 %v487, %v486
      %v627 = vpack.c.b16 %v489, %v488
      %v628 = vpack.c.b16 %v491, %v490
      %v629 = vpack.c.b16 %v493, %v492
      %v630 = vpack.c.b16 %v495, %v494
      %v631 = vpack.c.b16 %v497, %v496
      %v632 = vpack.c.b16 %v499, %v498
      %v633 = vpack.c.b16 %v501, %v500
      %v634 = vpack.c.b16 %v503, %v502
      %v635 = vpack.c.b16 %v505, %v504
      %v636 = vpack.c.b16 %v507, %v506
      %v637 = vpack.c.b16 %v509, %v508
      %v638 = vpack.c.b16 %v511, %v510
      %v639 = vpack.c.b16 %v513, %v512
      %v640 = vpack.c.b16 %v515, %v514
      %v641 = vpack.c.b16 %v517, %v516
      %v642 = vpack.c.b16 %v519, %v518
      %v643 = vpack.c.b16 %v521, %v520
      %v644 = vpack.c.b16 %v523, %v522
      %v645 = vpack.c.b16 %v525, %v524
      %v646 = vpack.c.b16 %v527, %v526
      %v647 = vpack.c.b16 %v529, %v528
      %v648 = vpack.c.b16 %v531, %v530
      %v649 = vpack.c.b16 %v533, %v532
      %v650 = vpack.c.b16 %v535, %v534
      %v651 = vpack.c.b16 %v537, %v536
      %v652 = vpack.c.b16 %v539, %v538
      %v653 = vpack.c.b16 %v541, %v540
      %v654 = vpack.c.b16 %v543, %v542
      %v655 = vpack.c.b16 %v545, %v544
      %v656 = vpack.c.b16 %v547, %v546
      %v657 = vpack.c.b16 %v549, %v548
      %v658 = vpack.c.b16 %v551, %v550
      %v659 = vpack.c.b16 %v553, %v552
      %v660 = vpack.c.b16 %v555, %v554
      %v661 = vpack.c.b16 %v557, %v556
      %v662 = vpack.c.b16 %v559, %v558
      %v663 = vpack.c.b16 %v561, %v560
      %v664 = vpack.c.b16 %v563, %v562
      %v665 = vpack.c.b16 %v565, %v564
      %v666 = vpack.c.b16 %v567, %v566
      %v667 = vpack.c.b16 %v569, %v568
      %v668 = vpack.c.b16 %v571, %v570
      %v669 = vpack.c.b16 %v573, %v572
      %v670 = vpack.c.b16 %v575, %v574
      %v671 = vpack.c.b16 %v577, %v576
      %v672 = vpack.c.b16 %v579, %v578
      %v673 = vpack.c.b16 %v581, %v580
      %v674 = vpack.c.b16 %v583, %v582
      %v675 = vpack.c.b16 %v585, %v584
      %v676 = vpack.c.b16 %v587, %v586
      %v677 = vpack.c.b16 %v589, %v588
      %v678 = vpack.c.b16 %v591, %v590
      %v679 = vpack.c.b16 %v593, %v592
      %v680 = vpack.c.b16 %v595, %v594
      %v681 = vpack.c.b16 %v597, %v596
      %v682 = vpack.c.b16 %v599, %v598
      %v683 = vpack.c.b16 %v601, %v600
      %v684 = vpack.c.b16 %v603, %v602
      %v685 = vpack.c.b16 %v605, %v604
      %v686 = vpack.c.b16 %v607, %v606
      %v687 = vpack.c.b16 %v609, %v608
      %v688 = vpack.c.b16 %v611, %v610
      %v689 = vpack.c.b16 %v613, %v612
      %v690 = vpack.c.b16 %v615, %v614
      %v691 = vpack.c.b16 %v617, %v616
      %v692 = vpack.c.b16 %v619, %v618
      %v693 = vpack.c.b16 %v621, %v620
      %v704 = vunpack.c.l.b16 %v324
      %v705 = vunpack.c.l.b16 %v325
      %v706 = vunpack.c.l.b16 %v326
      %v707 = vunpack.c.l.b16 %v327
      %v708 = vunpack.c.l.b16 %v328
      %v709 = vunpack.c.l.b16 %v329
      %v710 = vunpack.c.l.b16 %v330
      %v711 = vunpack.c.l.b16 %v331
      %v712 = vunpack.c.l.b16 %v332
      %v713 = vunpack.c.l.b16 %v333
      %v714 = vpack.c.b16 %v705, %v704
      %v715 = vpack.c.b16 %v707, %v706
      %v716 = vpack.c.b16 %v709, %v708
      %v717 = vpack.c.b16 %v711, %v710
      %v718 = vpack.c.b16 %v713, %v712
      %vm723 = vcmask 613376
      %v725 = vsel %vm723, %v622, 0
      %v728 = vsel %vm723, %v623, 0
      %v731 = vsel %vm723, %v624, 0
      %v734 = vsel %vm723, %v625, 0
      %v737 = vsel %vm723, %v626, 0
      %v740 = vsel %vm723, %v627, 0
      %v743 = vsel %vm723, %v628, 0
      %v746 = vsel %vm723, %v629, 0
      %v749 = vsel %vm723, %v630, 0
      %v752 = vsel %vm723, %v631, 0
      %v755 = vsel %vm723, %v632, 0
      %v758 = vsel %vm723, %v633, 0
      %v761 = vsel %vm723, %v634, 0
      %v764 = vsel %vm723, %v635, 0
      %v767 = vsel %vm723, %v636, 0
      %v770 = vsel %vm723, %v637, 0
      %v773 = vsel %vm723, %v638, 0
      %v776 = vsel %vm723, %v639, 0
      %v779 = vsel %vm723, %v640, 0
      %v782 = vsel %vm723, %v641, 0
      %v785 = vsel %vm723, %v642, 0
      %v788 = vsel %vm723, %v643, 0
      %v791 = vsel %vm723, %v644, 0
      %v794 = vsel %vm723, %v645, 0
      %v797 = vsel %vm723, %v646, 0
      %v800 = vsel %vm723, %v647, 0
      %v803 = vsel %vm723, %v648, 0
      %v806 = vsel %vm723, %v649, 0
      %v809 = vsel %vm723, %v650, 0
      %v812 = vsel %vm723, %v651, 0
      %v815 = vsel %vm723, %v652, 0
      %v818 = vsel %vm723, %v653, 0
      %v821 = vsel %vm723, %v654, 0
      %v824 = vsel %vm723, %v655, 0
      %v827 = vsel %vm723, %v656, 0
      %v830 = vsel %vm723, %v657, 0
      %v833 = vsel %vm723, %v658, 0
      %v836 = vsel %vm723, %v659, 0
      %v839 = vsel %vm723, %v660, 0
      %v842 = vsel %vm723, %v661, 0
      %v845 = vsel %vm723, %v662, 0
      %v848 = vsel %vm723, %v663, 0
      %v851 = vsel %vm723, %v664, 0
      %v854 = vsel %vm723, %v665, 0
      %v857 = vsel %vm723, %v666, 0
      %v860 = vsel %vm723, %v667, 0
      %v863 = vsel %vm723, %v668, 0
      %v866 = vsel %vm723, %v669, 0
      %v869 = vsel %vm723, %v670, 0
      %v872 = vsel %vm723, %v671, 0
      %v875 = vsel %vm723, %v672, 0
      %v878 = vsel %vm723, %v673, 0
      %v881 = vsel %vm723, %v674, 0
      %v884 = vsel %vm723, %v675, 0
      %v887 = vsel %vm723, %v676, 0
      %v890 = vsel %vm723, %v677, 0
      %v893 = vsel %vm723, %v678, 0
      %v896 = vsel %vm723, %v679, 0
      %v899 = vsel %vm723, %v680, 0
      %v902 = vsel %vm723, %v681, 0
      %v905 = vsel %vm723, %v682, 0
      %v908 = vsel %vm723, %v683, 0
      %v911 = vsel %vm723, %v684, 0
      %v914 = vsel %vm723, %v685, 0
      %v917 = vsel %vm723, %v686, 0
      %v920 = vsel %vm723, %v687, 0
      %v923 = vsel %vm723, %v688, 0
      %v926 = vsel %vm723, %v689, 0
      %v929 = vsel %vm723, %v690, 0
      %v932 = vsel %vm723, %v691, 0
      %v935 = vsel %vm723, %v692, 0
      %v938 = vsel %vm723, %v693, 0
      %vm940 = vcmask 1044480
      %vm941 = vcmask 1045504
      %v942 = vsel %vm940, 4294967295, 65535
      %v943 = vsel %vm941, %v942, 0
      %v945 = vand.u32 %v718, %v943
      %947 = vmatprep.subr.bf16.mxu0 0
      %948 = vmatpush1.bf16.msra.mxu0 %v714
      %949 = vmatprep.subr.bf16.mxu0 0
      %950 = vmatpush1.bf16.msra.mxu0 %v715
      %951 = vmatprep.subr.bf16.mxu0 0
      %952 = vmatpush1.bf16.msra.mxu0 %v716
      %953 = vmatprep.subr.bf16.mxu0 0
      %954 = vmatpush1.bf16.msra.mxu0 %v717
      %955 = vmatprep.subr.bf16.mxu0 0
      %956 = vmatpush1.bf16.msra.mxu0 %v945
      %957 = vmatprep.subr.bf16.mxu0 0
      %958 = vmatpush1.bf16.msra.mxu0 0
      %959 = vmatprep.subr.bf16.mxu0 0
      %960 = vmatpush1.bf16.msra.mxu0 0
      %961 = vmatprep.subr.bf16.mxu0 0
      %962 = vmatpush1.bf16.msra.mxu0 0
      %963 = vmatprep.subr.bf16.mxu0 0
      %964 = vmatpush1.bf16.msra.mxu0 0
      %965 = vmatprep.subr.bf16.mxu0 0
      %966 = vmatpush1.bf16.msra.mxu0 0
      %967 = vmatprep.subr.bf16.mxu0 0
      %968 = vmatpush1.bf16.msra.mxu0 0
      %969 = vmatprep.subr.bf16.mxu0 0
      %970 = vmatpush1.bf16.msra.mxu0 0
      %971 = vmatprep.subr.bf16.mxu0 0
      %972 = vmatpush1.bf16.msra.mxu0 0
      %973 = vmatprep.subr.bf16.mxu0 0
      %974 = vmatpush1.bf16.msra.mxu0 0
      %975 = vmatprep.subr.bf16.mxu0 0
      %976 = vmatpush1.bf16.msra.mxu0 0
      %977 = vmatprep.subr.bf16.mxu0 0
      %978 = vmatpush1.bf16.msra.mxu0 0
      %979 = vmatprep.mubr.bf16.mxu0 0
      %980 = vmatmul.mubr.bf16.gmra.mrb[0].mxu0 %v725
      %v981 = vpop.f32.mrb[0].mxu0
      %v982 = vadd.f32 0.0, %v981
      %v983 = vpop.f32.mrb[0].mxu0
      %v984 = vpop.f32.mrb[0].mxu0
      %v985 = vadd.f32 0.0, %v984
      %v986 = vpop.f32.mrb[0].mxu0
      %987 = vmatprep.mubr.bf16.mxu0 0
      %988 = vmatmul.mubr.bf16.gmra.mrb[0].mxu0 %v728
      %v989 = vpop.f32.mrb[0].mxu0
      %v990 = vadd.f32 0.0, %v989
      %v991 = vpop.f32.mrb[0].mxu0
      %v992 = vpop.f32.mrb[0].mxu0
      %v993 = vadd.f32 0.0, %v992
      %v994 = vpop.f32.mrb[0].mxu0
      %995 = vmatprep.mubr.bf16.mxu0 0
      %996 = vmatmul.mubr.bf16.gmra.mrb[0].mxu0 %v731
      %v997 = vpop.f32.mrb[0].mxu0
      %v998 = vadd.f32 0.0, %v997
      %v999 = vpop.f32.mrb[0].mxu0
      %v1000 = vpop.f32.mrb[0].mxu0
      %v1001 = vadd.f32 0.0, %v1000
      %v1002 = vpop.f32.mrb[0].mxu0
      %1003 = vmatprep.mubr.bf16.mxu0 0
      %1004 = vmatmul.mubr.bf16.gmra.mrb[0].mxu0 %v734
      %v1005 = vpop.f32.mrb[0].mxu0
      %v1006 = vadd.f32 0.0, %v1005
      %v1007 = vpop.f32.mrb[0].mxu0
      %v1008 = vpop.f32.mrb[0].mxu0
      %v1009 = vadd.f32 0.0, %v1008
      %v1010 = vpop.f32.mrb[0].mxu0
      %1011 = vmatprep.mubr.bf16.mxu0 0
      %1012 = vmatmul.mubr.bf16.gmra.mrb[0].mxu0 %v737
      %v1013 = vpop.f32.mrb[0].mxu0
      %v1014 = vadd.f32 0.0, %v1013
      %v1015 = vpop.f32.mrb[0].mxu0
      %v1016 = vpop.f32.mrb[0].mxu0
      %v1017 = vadd.f32 0.0, %v1016
      %v1018 = vpop.f32.mrb[0].mxu0
      %1019 = vmatprep.mubr.bf16.mxu0 0
      %1020 = vmatmul.mubr.bf16.gmra.mrb[0].mxu0 %v740
      %v1021 = vpop.f32.mrb[0].mxu0
      %v1022 = vadd.f32 0.0, %v1021
      %v1023 = vpop.f32.mrb[0].mxu0
      %v1024 = vpop.f32.mrb[0].mxu0
      %v1025 = vadd.f32 0.0, %v1024
      %v1026 = vpop.f32.mrb[0].mxu0
      %1027 = vmatprep.mubr.bf16.mxu0 0
      %1028 = vmatmul.mubr.bf16.gmra.mrb[0].mxu0 %v743
      %v1029 = vpop.f32.mrb[0].mxu0
      %v1030 = vadd.f32 0.0, %v1029
      %v1031 = vpop.f32.mrb[0].mxu0
      %v1032 = vpop.f32.mrb[0].mxu0
      %v1033 = vadd.f32 0.0, %v1032
      %v1034 = vpop.f32.mrb[0].mxu0
      %1035 = vmatprep.mubr.bf16.mxu0 0
      %1036 = vmatmul.mubr.bf16.gmra.mrb[0].mxu0 %v746
      %v1037 = vpop.f32.mrb[0].mxu0
      %v1038 = vadd.f32 0.0, %v1037
      %v1039 = vpop.f32.mrb[0].mxu0
      %v1040 = vpop.f32.mrb[0].mxu0
      %v1041 = vadd.f32 0.0, %v1040
      %v1042 = vpop.f32.mrb[0].mxu0
      %1043 = vmatprep.mubr.bf16.mxu0 0
      %1044 = vmatmul.mubr.bf16.gmra.mrb[0].mxu0 %v749
      %v1045 = vpop.f32.mrb[0].mxu0
      %v1046 = vadd.f32 0.0, %v1045
      %v1047 = vpop.f32.mrb[0].mxu0
      %v1048 = vpop.f32.mrb[0].mxu0
      %v1049 = vadd.f32 0.0, %v1048
      %v1050 = vpop.f32.mrb[0].mxu0
      %1051 = vmatprep.mubr.bf16.mxu0 0
      %1052 = vmatmul.mubr.bf16.gmra.mrb[0].mxu0 %v752
      %v1053 = vpop.f32.mrb[0].mxu0
      %v1054 = vadd.f32 0.0, %v1053
      %v1055 = vpop.f32.mrb[0].mxu0
      %v1056 = vpop.f32.mrb[0].mxu0
      %v1057 = vadd.f32 0.0, %v1056
      %v1058 = vpop.f32.mrb[0].mxu0
      %1059 = vmatprep.mubr.bf16.mxu0 0
      %1060 = vmatmul.mubr.bf16.gmra.mrb[0].mxu0 %v755
      %v1061 = vpop.f32.mrb[0].mxu0
      %v1062 = vadd.f32 0.0, %v1061
      %v1063 = vpop.f32.mrb[0].mxu0
      %v1064 = vpop.f32.mrb[0].mxu0
      %v1065 = vadd.f32 0.0, %v1064
      %v1066 = vpop.f32.mrb[0].mxu0
      %1067 = vmatprep.mubr.bf16.mxu0 0
      %1068 = vmatmul.mubr.bf16.gmra.mrb[0].mxu0 %v758
      %v1069 = vpop.f32.mrb[0].mxu0
      %v1070 = vadd.f32 0.0, %v1069
      %v1071 = vpop.f32.mrb[0].mxu0
      %v1072 = vpop.f32.mrb[0].mxu0
      %v1073 = vadd.f32 0.0, %v1072
      %v1074 = vpop.f32.mrb[0].mxu0
      %1075 = vmatprep.mubr.bf16.mxu0 0
      %1076 = vmatmul.mubr.bf16.gmra.mrb[0].mxu0 %v761
      %v1077 = vpop.f32.mrb[0].mxu0
      %v1078 = vadd.f32 0.0, %v1077
      %v1079 = vpop.f32.mrb[0].mxu0
      %v1080 = vpop.f32.mrb[0].mxu0
      %v1081 = vadd.f32 0.0, %v1080
      %v1082 = vpop.f32.mrb[0].mxu0
      %1083 = vmatprep.mubr.bf16.mxu0 0
      %1084 = vmatmul.mubr.bf16.gmra.mrb[0].mxu0 %v764
      %v1085 = vpop.f32.mrb[0].mxu0
      %v1086 = vadd.f32 0.0, %v1085
      %v1087 = vpop.f32.mrb[0].mxu0
      %v1088 = vpop.f32.mrb[0].mxu0
      %v1089 = vadd.f32 0.0, %v1088
      %v1090 = vpop.f32.mrb[0].mxu0
      %1091 = vmatprep.mubr.bf16.mxu0 0
      %1092 = vmatmul.mubr.bf16.gmra.mrb[0].mxu0 %v767
      %v1093 = vpop.f32.mrb[0].mxu0
      %v1094 = vadd.f32 0.0, %v1093
      %v1095 = vpop.f32.mrb[0].mxu0
      %v1096 = vpop.f32.mrb[0].mxu0
      %v1097 = vadd.f32 0.0, %v1096
      %v1098 = vpop.f32.mrb[0].mxu0
      %1099 = vmatprep.mubr.bf16.mxu0 0
      %1100 = vmatmul.mubr.bf16.gmra.mrb[0].mxu0 %v770
      %v1101 = vpop.f32.mrb[0].mxu0
      %v1102 = vadd.f32 0.0, %v1101
      %v1103 = vpop.f32.mrb[0].mxu0
      %v1104 = vpop.f32.mrb[0].mxu0
      %v1105 = vadd.f32 0.0, %v1104
      %v1106 = vpop.f32.mrb[0].mxu0
      %1107 = vmatprep.mubr.bf16.mxu0 0
      %1108 = vmatmul.mubr.bf16.gmra.mrb[0].mxu0 %v773
      %v1109 = vpop.f32.mrb[0].mxu0
      %v1110 = vadd.f32 0.0, %v1109
      %v1111 = vpop.f32.mrb[0].mxu0
      %v1112 = vpop.f32.mrb[0].mxu0
      %v1113 = vadd.f32 0.0, %v1112
      %v1114 = vpop.f32.mrb[0].mxu0
      %1115 = vmatprep.mubr.bf16.mxu0 0
      %1116 = vmatmul.mubr.bf16.gmra.mrb[0].mxu0 %v776
      %v1117 = vpop.f32.mrb[0].mxu0
      %v1118 = vadd.f32 0.0, %v1117
      %v1119 = vpop.f32.mrb[0].mxu0
      %v1120 = vpop.f32.mrb[0].mxu0
      %v1121 = vadd.f32 0.0, %v1120
      %v1122 = vpop.f32.mrb[0].mxu0
      %1123 = vmatprep.mubr.bf16.mxu0 0
      %1124 = vmatmul.mubr.bf16.gmra.mrb[0].mxu0 %v779
      %v1125 = vpop.f32.mrb[0].mxu0
      %v1126 = vadd.f32 0.0, %v1125
      %v1127 = vpop.f32.mrb[0].mxu0
      %v1128 = vpop.f32.mrb[0].mxu0
      %v1129 = vadd.f32 0.0, %v1128
      %v1130 = vpop.f32.mrb[0].mxu0
      %1131 = vmatprep.mubr.bf16.mxu0 0
      %1132 = vmatmul.mubr.bf16.gmra.mrb[0].mxu0 %v782
      %v1133 = vpop.f32.mrb[0].mxu0
      %v1134 = vadd.f32 0.0, %v1133
      %v1135 = vpop.f32.mrb[0].mxu0
      %v1136 = vpop.f32.mrb[0].mxu0
      %v1137 = vadd.f32 0.0, %v1136
      %v1138 = vpop.f32.mrb[0].mxu0
      %1139 = vmatprep.mubr.bf16.mxu0 0
      %1140 = vmatmul.mubr.bf16.gmra.mrb[0].mxu0 %v785
      %v1141 = vpop.f32.mrb[0].mxu0
      %v1142 = vadd.f32 0.0, %v1141
      %v1143 = vpop.f32.mrb[0].mxu0
      %v1144 = vpop.f32.mrb[0].mxu0
      %v1145 = vadd.f32 0.0, %v1144
      %v1146 = vpop.f32.mrb[0].mxu0
      %1147 = vmatprep.mubr.bf16.mxu0 0
      %1148 = vmatmul.mubr.bf16.gmra.mrb[0].mxu0 %v788
      %v1149 = vpop.f32.mrb[0].mxu0
      %v1150 = vadd.f32 0.0, %v1149
      %v1151 = vpop.f32.mrb[0].mxu0
      %v1152 = vpop.f32.mrb[0].mxu0
      %v1153 = vadd.f32 0.0, %v1152
      %v1154 = vpop.f32.mrb[0].mxu0
      %1155 = vmatprep.mubr.bf16.mxu0 0
      %1156 = vmatmul.mubr.bf16.gmra.mrb[0].mxu0 %v791
      %v1157 = vpop.f32.mrb[0].mxu0
      %v1158 = vadd.f32 0.0, %v1157
      %v1159 = vpop.f32.mrb[0].mxu0
      %v1160 = vpop.f32.mrb[0].mxu0
      %v1161 = vadd.f32 0.0, %v1160
      %v1162 = vpop.f32.mrb[0].mxu0
      %1163 = vmatprep.mubr.bf16.mxu0 0
      %1164 = vmatmul.mubr.bf16.gmra.mrb[0].mxu0 %v794
      %v1165 = vpop.f32.mrb[0].mxu0
      %v1166 = vadd.f32 0.0, %v1165
      %v1167 = vpop.f32.mrb[0].mxu0
      %v1168 = vpop.f32.mrb[0].mxu0
      %v1169 = vadd.f32 0.0, %v1168
      %v1170 = vpop.f32.mrb[0].mxu0
      %1171 = vmatprep.mubr.bf16.mxu0 0
      %1172 = vmatmul.mubr.bf16.gmra.mrb[0].mxu0 %v797
      %v1173 = vpop.f32.mrb[0].mxu0
      %v1174 = vadd.f32 0.0, %v1173
      %v1175 = vpop.f32.mrb[0].mxu0
      %v1176 = vpop.f32.mrb[0].mxu0
      %v1177 = vadd.f32 0.0, %v1176
      %v1178 = vpop.f32.mrb[0].mxu0
      %1179 = vmatprep.mubr.bf16.mxu0 0
      %1180 = vmatmul.mubr.bf16.gmra.mrb[0].mxu0 %v800
      %v1181 = vpop.f32.mrb[0].mxu0
      %v1182 = vadd.f32 0.0, %v1181
      %v1183 = vpop.f32.mrb[0].mxu0
      %v1184 = vpop.f32.mrb[0].mxu0
      %v1185 = vadd.f32 0.0, %v1184
      %v1186 = vpop.f32.mrb[0].mxu0
      %1187 = vmatprep.mubr.bf16.mxu0 0
      %1188 = vmatmul.mubr.bf16.gmra.mrb[0].mxu0 %v803
      %v1189 = vpop.f32.mrb[0].mxu0
      %v1190 = vadd.f32 0.0, %v1189
      %v1191 = vpop.f32.mrb[0].mxu0
      %v1192 = vpop.f32.mrb[0].mxu0
      %v1193 = vadd.f32 0.0, %v1192
      %v1194 = vpop.f32.mrb[0].mxu0
      %1195 = vmatprep.mubr.bf16.mxu0 0
      %1196 = vmatmul.mubr.bf16.gmra.mrb[0].mxu0 %v806
      %v1197 = vpop.f32.mrb[0].mxu0
      %v1198 = vadd.f32 0.0, %v1197
      %v1199 = vpop.f32.mrb[0].mxu0
      %v1200 = vpop.f32.mrb[0].mxu0
      %v1201 = vadd.f32 0.0, %v1200
      %v1202 = vpop.f32.mrb[0].mxu0
      %1203 = vmatprep.mubr.bf16.mxu0 0
      %1204 = vmatmul.mubr.bf16.gmra.mrb[0].mxu0 %v809
      %v1205 = vpop.f32.mrb[0].mxu0
      %v1206 = vadd.f32 0.0, %v1205
      %v1207 = vpop.f32.mrb[0].mxu0
      %v1208 = vpop.f32.mrb[0].mxu0
      %v1209 = vadd.f32 0.0, %v1208
      %v1210 = vpop.f32.mrb[0].mxu0
      %1211 = vmatprep.mubr.bf16.mxu0 0
      %1212 = vmatmul.mubr.bf16.gmra.mrb[0].mxu0 %v812
      %v1213 = vpop.f32.mrb[0].mxu0
      %v1214 = vadd.f32 0.0, %v1213
      %v1215 = vpop.f32.mrb[0].mxu0
      %v1216 = vpop.f32.mrb[0].mxu0
      %v1217 = vadd.f32 0.0, %v1216
      %v1218 = vpop.f32.mrb[0].mxu0
      %1219 = vmatprep.mubr.bf16.mxu0 0
      %1220 = vmatmul.mubr.bf16.gmra.mrb[0].mxu0 %v815
      %v1221 = vpop.f32.mrb[0].mxu0
      %v1222 = vadd.f32 0.0, %v1221
      %v1223 = vpop.f32.mrb[0].mxu0
      %v1224 = vpop.f32.mrb[0].mxu0
      %v1225 = vadd.f32 0.0, %v1224
      %v1226 = vpop.f32.mrb[0].mxu0
      %1227 = vmatprep.mubr.bf16.mxu0 0
      %1228 = vmatmul.mubr.bf16.gmra.mrb[0].mxu0 %v818
      %v1229 = vpop.f32.mrb[0].mxu0
      %v1230 = vadd.f32 0.0, %v1229
      %v1231 = vpop.f32.mrb[0].mxu0
      %v1232 = vpop.f32.mrb[0].mxu0
      %v1233 = vadd.f32 0.0, %v1232
      %v1234 = vpop.f32.mrb[0].mxu0
      %1235 = vmatprep.mubr.bf16.mxu0 0
      %1236 = vmatmul.mubr.bf16.gmra.mrb[0].mxu0 %v821
      %v1237 = vpop.f32.mrb[0].mxu0
      %v1238 = vadd.f32 0.0, %v1237
      %v1239 = vpop.f32.mrb[0].mxu0
      %v1240 = vpop.f32.mrb[0].mxu0
      %v1241 = vadd.f32 0.0, %v1240
      %v1242 = vpop.f32.mrb[0].mxu0
      %1243 = vmatprep.mubr.bf16.mxu0 0
      %1244 = vmatmul.mubr.bf16.gmra.mrb[0].mxu0 %v824
      %v1245 = vpop.f32.mrb[0].mxu0
      %v1246 = vadd.f32 0.0, %v1245
      %v1247 = vpop.f32.mrb[0].mxu0
      %v1248 = vpop.f32.mrb[0].mxu0
      %v1249 = vadd.f32 0.0, %v1248
      %v1250 = vpop.f32.mrb[0].mxu0
      %1251 = vmatprep.mubr.bf16.mxu0 0
      %1252 = vmatmul.mubr.bf16.gmra.mrb[0].mxu0 %v827
      %v1253 = vpop.f32.mrb[0].mxu0
      %v1254 = vadd.f32 0.0, %v1253
      %v1255 = vpop.f32.mrb[0].mxu0
      %v1256 = vpop.f32.mrb[0].mxu0
      %v1257 = vadd.f32 0.0, %v1256
      %v1258 = vpop.f32.mrb[0].mxu0
      %1259 = vmatprep.mubr.bf16.mxu0 0
      %1260 = vmatmul.mubr.bf16.gmra.mrb[0].mxu0 %v830
      %v1261 = vpop.f32.mrb[0].mxu0
      %v1262 = vadd.f32 0.0, %v1261
      %v1263 = vpop.f32.mrb[0].mxu0
      %v1264 = vpop.f32.mrb[0].mxu0
      %v1265 = vadd.f32 0.0, %v1264
      %v1266 = vpop.f32.mrb[0].mxu0
      %1267 = vmatprep.mubr.bf16.mxu0 0
      %1268 = vmatmul.mubr.bf16.gmra.mrb[0].mxu0 %v833
      %v1269 = vpop.f32.mrb[0].mxu0
      %v1270 = vadd.f32 0.0, %v1269
      %v1271 = vpop.f32.mrb[0].mxu0
      %v1272 = vpop.f32.mrb[0].mxu0
      %v1273 = vadd.f32 0.0, %v1272
      %v1274 = vpop.f32.mrb[0].mxu0
      %1275 = vmatprep.mubr.bf16.mxu0 0
      %1276 = vmatmul.mubr.bf16.gmra.mrb[0].mxu0 %v836
      %v1277 = vpop.f32.mrb[0].mxu0
      %v1278 = vadd.f32 0.0, %v1277
      %v1279 = vpop.f32.mrb[0].mxu0
      %v1280 = vpop.f32.mrb[0].mxu0
      %v1281 = vadd.f32 0.0, %v1280
      %v1282 = vpop.f32.mrb[0].mxu0
      %1283 = vmatprep.mubr.bf16.mxu0 0
      %1284 = vmatmul.mubr.bf16.gmra.mrb[0].mxu0 %v839
      %v1285 = vpop.f32.mrb[0].mxu0
      %v1286 = vadd.f32 0.0, %v1285
      %v1287 = vpop.f32.mrb[0].mxu0
      %v1288 = vpop.f32.mrb[0].mxu0
      %v1289 = vadd.f32 0.0, %v1288
      %v1290 = vpop.f32.mrb[0].mxu0
      %1291 = vmatprep.mubr.bf16.mxu0 0
      %1292 = vmatmul.mubr.bf16.gmra.mrb[0].mxu0 %v842
      %v1293 = vpop.f32.mrb[0].mxu0
      %v1294 = vadd.f32 0.0, %v1293
      %v1295 = vpop.f32.mrb[0].mxu0
      %v1296 = vpop.f32.mrb[0].mxu0
      %v1297 = vadd.f32 0.0, %v1296
      %v1298 = vpop.f32.mrb[0].mxu0
      %1299 = vmatprep.mubr.bf16.mxu0 0
      %1300 = vmatmul.mubr.bf16.gmra.mrb[0].mxu0 %v845
      %v1301 = vpop.f32.mrb[0].mxu0
      %v1302 = vadd.f32 0.0, %v1301
      %v1303 = vpop.f32.mrb[0].mxu0
      %v1304 = vpop.f32.mrb[0].mxu0
      %v1305 = vadd.f32 0.0, %v1304
      %v1306 = vpop.f32.mrb[0].mxu0
      %1307 = vmatprep.mubr.bf16.mxu0 0
      %1308 = vmatmul.mubr.bf16.gmra.mrb[0].mxu0 %v848
      %v1309 = vpop.f32.mrb[0].mxu0
      %v1310 = vadd.f32 0.0, %v1309
      %v1311 = vpop.f32.mrb[0].mxu0
      %v1312 = vpop.f32.mrb[0].mxu0
      %v1313 = vadd.f32 0.0, %v1312
      %v1314 = vpop.f32.mrb[0].mxu0
      %1315 = vmatprep.mubr.bf16.mxu0 0
      %1316 = vmatmul.mubr.bf16.gmra.mrb[0].mxu0 %v851
      %v1317 = vpop.f32.mrb[0].mxu0
      %v1318 = vadd.f32 0.0, %v1317
      %v1319 = vpop.f32.mrb[0].mxu0
      %v1320 = vpop.f32.mrb[0].mxu0
      %v1321 = vadd.f32 0.0, %v1320
      %v1322 = vpop.f32.mrb[0].mxu0
      %1323 = vmatprep.mubr.bf16.mxu0 0
      %1324 = vmatmul.mubr.bf16.gmra.mrb[0].mxu0 %v854
      %v1325 = vpop.f32.mrb[0].mxu0
      %v1326 = vadd.f32 0.0, %v1325
      %v1327 = vpop.f32.mrb[0].mxu0
      %v1328 = vpop.f32.mrb[0].mxu0
      %v1329 = vadd.f32 0.0, %v1328
      %v1330 = vpop.f32.mrb[0].mxu0
      %1331 = vmatprep.mubr.bf16.mxu0 0
      %1332 = vmatmul.mubr.bf16.gmra.mrb[0].mxu0 %v857
      %v1333 = vpop.f32.mrb[0].mxu0
      %v1334 = vadd.f32 0.0, %v1333
      %v1335 = vpop.f32.mrb[0].mxu0
      %v1336 = vpop.f32.mrb[0].mxu0
      %v1337 = vadd.f32 0.0, %v1336
      %v1338 = vpop.f32.mrb[0].mxu0
      %1339 = vmatprep.mubr.bf16.mxu0 0
      %1340 = vmatmul.mubr.bf16.gmra.mrb[0].mxu0 %v860
      %v1341 = vpop.f32.mrb[0].mxu0
      %v1342 = vadd.f32 0.0, %v1341
      %v1343 = vpop.f32.mrb[0].mxu0
      %v1344 = vpop.f32.mrb[0].mxu0
      %v1345 = vadd.f32 0.0, %v1344
      %v1346 = vpop.f32.mrb[0].mxu0
      %1347 = vmatprep.mubr.bf16.mxu0 0
      %1348 = vmatmul.mubr.bf16.gmra.mrb[0].mxu0 %v863
      %v1349 = vpop.f32.mrb[0].mxu0
      %v1350 = vadd.f32 0.0, %v1349
      %v1351 = vpop.f32.mrb[0].mxu0
      %v1352 = vpop.f32.mrb[0].mxu0
      %v1353 = vadd.f32 0.0, %v1352
      %v1354 = vpop.f32.mrb[0].mxu0
      %1355 = vmatprep.mubr.bf16.mxu0 0
      %1356 = vmatmul.mubr.bf16.gmra.mrb[0].mxu0 %v866
      %v1357 = vpop.f32.mrb[0].mxu0
      %v1358 = vadd.f32 0.0, %v1357
      %v1359 = vpop.f32.mrb[0].mxu0
      %v1360 = vpop.f32.mrb[0].mxu0
      %v1361 = vadd.f32 0.0, %v1360
      %v1362 = vpop.f32.mrb[0].mxu0
      %1363 = vmatprep.mubr.bf16.mxu0 0
      %1364 = vmatmul.mubr.bf16.gmra.mrb[0].mxu0 %v869
      %v1365 = vpop.f32.mrb[0].mxu0
      %v1366 = vadd.f32 0.0, %v1365
      %v1367 = vpop.f32.mrb[0].mxu0
      %v1368 = vpop.f32.mrb[0].mxu0
      %v1369 = vadd.f32 0.0, %v1368
      %v1370 = vpop.f32.mrb[0].mxu0
      %1371 = vmatprep.mubr.bf16.mxu0 0
      %1372 = vmatmul.mubr.bf16.gmra.mrb[0].mxu0 %v872
      %v1373 = vpop.f32.mrb[0].mxu0
      %v1374 = vadd.f32 0.0, %v1373
      %v1375 = vpop.f32.mrb[0].mxu0
      %v1376 = vpop.f32.mrb[0].mxu0
      %v1377 = vadd.f32 0.0, %v1376
      %v1378 = vpop.f32.mrb[0].mxu0
      %1379 = vmatprep.mubr.bf16.mxu0 0
      %1380 = vmatmul.mubr.bf16.gmra.mrb[0].mxu0 %v875
      %v1381 = vpop.f32.mrb[0].mxu0
      %v1382 = vadd.f32 0.0, %v1381
      %v1383 = vpop.f32.mrb[0].mxu0
      %v1384 = vpop.f32.mrb[0].mxu0
      %v1385 = vadd.f32 0.0, %v1384
      %v1386 = vpop.f32.mrb[0].mxu0
      %1387 = vmatprep.mubr.bf16.mxu0 0
      %1388 = vmatmul.mubr.bf16.gmra.mrb[0].mxu0 %v878
      %v1389 = vpop.f32.mrb[0].mxu0
      %v1390 = vadd.f32 0.0, %v1389
      %v1391 = vpop.f32.mrb[0].mxu0
      %v1392 = vpop.f32.mrb[0].mxu0
      %v1393 = vadd.f32 0.0, %v1392
      %v1394 = vpop.f32.mrb[0].mxu0
      %1395 = vmatprep.mubr.bf16.mxu0 0
      %1396 = vmatmul.mubr.bf16.gmra.mrb[0].mxu0 %v881
      %v1397 = vpop.f32.mrb[0].mxu0
      %v1398 = vadd.f32 0.0, %v1397
      %v1399 = vpop.f32.mrb[0].mxu0
      %v1400 = vpop.f32.mrb[0].mxu0
      %v1401 = vadd.f32 0.0, %v1400
      %v1402 = vpop.f32.mrb[0].mxu0
      %1403 = vmatprep.mubr.bf16.mxu0 0
      %1404 = vmatmul.mubr.bf16.gmra.mrb[0].mxu0 %v884
      %v1405 = vpop.f32.mrb[0].mxu0
      %v1406 = vadd.f32 0.0, %v1405
      %v1407 = vpop.f32.mrb[0].mxu0
      %v1408 = vpop.f32.mrb[0].mxu0
      %v1409 = vadd.f32 0.0, %v1408
      %v1410 = vpop.f32.mrb[0].mxu0
      %1411 = vmatprep.mubr.bf16.mxu0 0
      %1412 = vmatmul.mubr.bf16.gmra.mrb[0].mxu0 %v887
      %v1413 = vpop.f32.mrb[0].mxu0
      %v1414 = vadd.f32 0.0, %v1413
      %v1415 = vpop.f32.mrb[0].mxu0
      %v1416 = vpop.f32.mrb[0].mxu0
      %v1417 = vadd.f32 0.0, %v1416
      %v1418 = vpop.f32.mrb[0].mxu0
      %1419 = vmatprep.mubr.bf16.mxu0 0
      %1420 = vmatmul.mubr.bf16.gmra.mrb[0].mxu0 %v890
      %v1421 = vpop.f32.mrb[0].mxu0
      %v1422 = vadd.f32 0.0, %v1421
      %v1423 = vpop.f32.mrb[0].mxu0
      %v1424 = vpop.f32.mrb[0].mxu0
      %v1425 = vadd.f32 0.0, %v1424
      %v1426 = vpop.f32.mrb[0].mxu0
      %1427 = vmatprep.mubr.bf16.mxu0 0
      %1428 = vmatmul.mubr.bf16.gmra.mrb[0].mxu0 %v893
      %v1429 = vpop.f32.mrb[0].mxu0
      %v1430 = vadd.f32 0.0, %v1429
      %v1431 = vpop.f32.mrb[0].mxu0
      %v1432 = vpop.f32.mrb[0].mxu0
      %v1433 = vadd.f32 0.0, %v1432
      %v1434 = vpop.f32.mrb[0].mxu0
      %1435 = vmatprep.mubr.bf16.mxu0 0
      %1436 = vmatmul.mubr.bf16.gmra.mrb[0].mxu0 %v896
      %v1437 = vpop.f32.mrb[0].mxu0
      %v1438 = vadd.f32 0.0, %v1437
      %v1439 = vpop.f32.mrb[0].mxu0
      %v1440 = vpop.f32.mrb[0].mxu0
      %v1441 = vadd.f32 0.0, %v1440
      %v1442 = vpop.f32.mrb[0].mxu0
      %1443 = vmatprep.mubr.bf16.mxu0 0
      %1444 = vmatmul.mubr.bf16.gmra.mrb[0].mxu0 %v899
      %v1445 = vpop.f32.mrb[0].mxu0
      %v1446 = vadd.f32 0.0, %v1445
      %v1447 = vpop.f32.mrb[0].mxu0
      %v1448 = vpop.f32.mrb[0].mxu0
      %v1449 = vadd.f32 0.0, %v1448
      %v1450 = vpop.f32.mrb[0].mxu0
      %1451 = vmatprep.mubr.bf16.mxu0 0
      %1452 = vmatmul.mubr.bf16.gmra.mrb[0].mxu0 %v902
      %v1453 = vpop.f32.mrb[0].mxu0
      %v1454 = vadd.f32 0.0, %v1453
      %v1455 = vpop.f32.mrb[0].mxu0
      %v1456 = vpop.f32.mrb[0].mxu0
      %v1457 = vadd.f32 0.0, %v1456
      %v1458 = vpop.f32.mrb[0].mxu0
      %1459 = vmatprep.mubr.bf16.mxu0 0
      %1460 = vmatmul.mubr.bf16.gmra.mrb[0].mxu0 %v905
      %v1461 = vpop.f32.mrb[0].mxu0
      %v1462 = vadd.f32 0.0, %v1461
      %v1463 = vpop.f32.mrb[0].mxu0
      %v1464 = vpop.f32.mrb[0].mxu0
      %v1465 = vadd.f32 0.0, %v1464
      %v1466 = vpop.f32.mrb[0].mxu0
      %1467 = vmatprep.mubr.bf16.mxu0 0
      %1468 = vmatmul.mubr.bf16.gmra.mrb[0].mxu0 %v908
      %v1469 = vpop.f32.mrb[0].mxu0
      %v1470 = vadd.f32 0.0, %v1469
      %v1471 = vpop.f32.mrb[0].mxu0
      %v1472 = vpop.f32.mrb[0].mxu0
      %v1473 = vadd.f32 0.0, %v1472
      %v1474 = vpop.f32.mrb[0].mxu0
      %1475 = vmatprep.mubr.bf16.mxu0 0
      %1476 = vmatmul.mubr.bf16.gmra.mrb[0].mxu0 %v911
      %v1477 = vpop.f32.mrb[0].mxu0
      %v1478 = vadd.f32 0.0, %v1477
      %v1479 = vpop.f32.mrb[0].mxu0
      %v1480 = vpop.f32.mrb[0].mxu0
      %v1481 = vadd.f32 0.0, %v1480
      %v1482 = vpop.f32.mrb[0].mxu0
      %1483 = vmatprep.mubr.bf16.mxu0 0
      %1484 = vmatmul.mubr.bf16.gmra.mrb[0].mxu0 %v914
      %v1485 = vpop.f32.mrb[0].mxu0
      %v1486 = vadd.f32 0.0, %v1485
      %v1487 = vpop.f32.mrb[0].mxu0
      %v1488 = vpop.f32.mrb[0].mxu0
      %v1489 = vadd.f32 0.0, %v1488
      %v1490 = vpop.f32.mrb[0].mxu0
      %1491 = vmatprep.mubr.bf16.mxu0 0
      %1492 = vmatmul.mubr.bf16.gmra.mrb[0].mxu0 %v917
      %v1493 = vpop.f32.mrb[0].mxu0
      %v1494 = vadd.f32 0.0, %v1493
      %v1495 = vpop.f32.mrb[0].mxu0
      %v1496 = vpop.f32.mrb[0].mxu0
      %v1497 = vadd.f32 0.0, %v1496
      %v1498 = vpop.f32.mrb[0].mxu0
      %1499 = vmatprep.mubr.bf16.mxu0 0
      %1500 = vmatmul.mubr.bf16.gmra.mrb[0].mxu0 %v920
      %v1501 = vpop.f32.mrb[0].mxu0
      %v1502 = vadd.f32 0.0, %v1501
      %v1503 = vpop.f32.mrb[0].mxu0
      %v1504 = vpop.f32.mrb[0].mxu0
      %v1505 = vadd.f32 0.0, %v1504
      %v1506 = vpop.f32.mrb[0].mxu0
      %1507 = vmatprep.mubr.bf16.mxu0 0
      %1508 = vmatmul.mubr.bf16.gmra.mrb[0].mxu0 %v923
      %v1509 = vpop.f32.mrb[0].mxu0
      %v1510 = vadd.f32 0.0, %v1509
      %v1511 = vpop.f32.mrb[0].mxu0
      %v1512 = vpop.f32.mrb[0].mxu0
      %v1513 = vadd.f32 0.0, %v1512
      %v1514 = vpop.f32.mrb[0].mxu0
      %1515 = vmatprep.mubr.bf16.mxu0 0
      %1516 = vmatmul.mubr.bf16.gmra.mrb[0].mxu0 %v926
      %v1517 = vpop.f32.mrb[0].mxu0
      %v1518 = vadd.f32 0.0, %v1517
      %v1519 = vpop.f32.mrb[0].mxu0
      %v1520 = vpop.f32.mrb[0].mxu0
      %v1521 = vadd.f32 0.0, %v1520
      %v1522 = vpop.f32.mrb[0].mxu0
      %1523 = vmatprep.mubr.bf16.mxu0 0
      %1524 = vmatmul.mubr.bf16.gmra.mrb[0].mxu0 %v929
      %v1525 = vpop.f32.mrb[0].mxu0
      %v1526 = vadd.f32 0.0, %v1525
      %v1527 = vpop.f32.mrb[0].mxu0
      %v1528 = vpop.f32.mrb[0].mxu0
      %v1529 = vadd.f32 0.0, %v1528
      %v1530 = vpop.f32.mrb[0].mxu0
      %1531 = vmatprep.mubr.bf16.mxu0 0
      %1532 = vmatmul.mubr.bf16.gmra.mrb[0].mxu0 %v932
      %v1533 = vpop.f32.mrb[0].mxu0
      %v1534 = vadd.f32 0.0, %v1533
      %v1535 = vpop.f32.mrb[0].mxu0
      %v1536 = vpop.f32.mrb[0].mxu0
      %v1537 = vadd.f32 0.0, %v1536
      %v1538 = vpop.f32.mrb[0].mxu0
      %1539 = vmatprep.mubr.bf16.mxu0 0
      %1540 = vmatmul.mubr.bf16.gmra.mrb[0].mxu0 %v935
      %v1541 = vpop.f32.mrb[0].mxu0
      %v1542 = vadd.f32 0.0, %v1541
      %v1543 = vpop.f32.mrb[0].mxu0
      %v1544 = vpop.f32.mrb[0].mxu0
      %v1545 = vadd.f32 0.0, %v1544
      %v1546 = vpop.f32.mrb[0].mxu0
      %1547 = vmatprep.mubr.bf16.mxu0 0
      %1548 = vmatmul.mubr.bf16.gmra.mrb[0].mxu0 %v938
      %v1549 = vpop.f32.mrb[0].mxu0
      %v1550 = vadd.f32 0.0, %v1549
      %v1551 = vpop.f32.mrb[0].mxu0
      %v1552 = vpop.f32.mrb[0].mxu0
      %v1553 = vadd.f32 0.0, %v1552
      %v1554 = vpop.f32.mrb[0].mxu0
      %1555 = vdwg.mxu0
      %vm1556 = vcmask 261120
      %v1557 = vsel %vm1556, %v982, -inf
      %v1558 = vsel %vm1556, %v1054, -inf
      %v1559 = vmax.f32 %v1557, %v1558
      %v1560 = vsel %vm1556, %v1126, -inf
      %v1561 = vmax.f32 %v1559, %v1560
      %v1562 = vsel %vm1556, %v1198, -inf
      %v1563 = vmax.f32 %v1561, %v1562
      %v1564 = vsel %vm1556, %v985, -inf
      %v1565 = vsel %vm1556, %v1057, -inf
      %v1566 = vmax.f32 %v1564, %v1565
      %v1567 = vsel %vm1556, %v1129, -inf
      %v1568 = vmax.f32 %v1566, %v1567
      %v1569 = vsel %vm1556, %v1201, -inf
      %v1570 = vmax.f32 %v1568, %v1569
      %v1571 = vsel %vm1556, %v990, -inf
      %v1572 = vsel %vm1556, %v1062, -inf
      %v1573 = vmax.f32 %v1571, %v1572
      %v1574 = vsel %vm1556, %v1134, -inf
      %v1575 = vmax.f32 %v1573, %v1574
      %v1576 = vsel %vm1556, %v1206, -inf
      %v1577 = vmax.f32 %v1575, %v1576
      %v1578 = vsel %vm1556, %v993, -inf
      %v1579 = vsel %vm1556, %v1065, -inf
      %v1580 = vmax.f32 %v1578, %v1579
      %v1581 = vsel %vm1556, %v1137, -inf
      %v1582 = vmax.f32 %v1580, %v1581
      %v1583 = vsel %vm1556, %v1209, -inf
      %v1584 = vmax.f32 %v1582, %v1583
      %v1585 = vsel %vm1556, %v998, -inf
      %v1586 = vsel %vm1556, %v1070, -inf
      %v1587 = vmax.f32 %v1585, %v1586
      %v1588 = vsel %vm1556, %v1142, -inf
      %v1589 = vmax.f32 %v1587, %v1588
      %v1590 = vsel %vm1556, %v1214, -inf
      %v1591 = vmax.f32 %v1589, %v1590
      %v1592 = vsel %vm1556, %v1001, -inf
      %v1593 = vsel %vm1556, %v1073, -inf
      %v1594 = vmax.f32 %v1592, %v1593
      %v1595 = vsel %vm1556, %v1145, -inf
      %v1596 = vmax.f32 %v1594, %v1595
      %v1597 = vsel %vm1556, %v1217, -inf
      %v1598 = vmax.f32 %v1596, %v1597
      %v1599 = vsel %vm1556, %v1006, -inf
      %v1600 = vsel %vm1556, %v1078, -inf
      %v1601 = vmax.f32 %v1599, %v1600
      %v1602 = vsel %vm1556, %v1150, -inf
      %v1603 = vmax.f32 %v1601, %v1602
      %v1604 = vsel %vm1556, %v1222, -inf
      %v1605 = vmax.f32 %v1603, %v1604
      %v1606 = vsel %vm1556, %v1009, -inf
      %v1607 = vsel %vm1556, %v1081, -inf
      %v1608 = vmax.f32 %v1606, %v1607
      %v1609 = vsel %vm1556, %v1153, -inf
      %v1610 = vmax.f32 %v1608, %v1609
      %v1611 = vsel %vm1556, %v1225, -inf
      %v1612 = vmax.f32 %v1610, %v1611
      %v1613 = vsel %vm1556, %v1014, -inf
      %v1614 = vsel %vm1556, %v1086, -inf
      %v1615 = vmax.f32 %v1613, %v1614
      %v1616 = vsel %vm1556, %v1158, -inf
      %v1617 = vmax.f32 %v1615, %v1616
      %v1618 = vsel %vm1556, %v1230, -inf
      %v1619 = vmax.f32 %v1617, %v1618
      %v1620 = vsel %vm1556, %v1017, -inf
      %v1621 = vsel %vm1556, %v1089, -inf
      %v1622 = vmax.f32 %v1620, %v1621
      %v1623 = vsel %vm1556, %v1161, -inf
      %v1624 = vmax.f32 %v1622, %v1623
      %v1625 = vsel %vm1556, %v1233, -inf
      %v1626 = vmax.f32 %v1624, %v1625
      %v1627 = vsel %vm1556, %v1022, -inf
      %v1628 = vsel %vm1556, %v1094, -inf
      %v1629 = vmax.f32 %v1627, %v1628
      %v1630 = vsel %vm1556, %v1166, -inf
      %v1631 = vmax.f32 %v1629, %v1630
      %v1632 = vsel %vm1556, %v1238, -inf
      %v1633 = vmax.f32 %v1631, %v1632
      %v1634 = vsel %vm1556, %v1025, -inf
      %v1635 = vsel %vm1556, %v1097, -inf
      %v1636 = vmax.f32 %v1634, %v1635
      %v1637 = vsel %vm1556, %v1169, -inf
      %v1638 = vmax.f32 %v1636, %v1637
      %v1639 = vsel %vm1556, %v1241, -inf
      %v1640 = vmax.f32 %v1638, %v1639
      %v1641 = vsel %vm1556, %v1030, -inf
      %v1642 = vsel %vm1556, %v1102, -inf
      %v1643 = vmax.f32 %v1641, %v1642
      %v1644 = vsel %vm1556, %v1174, -inf
      %v1645 = vmax.f32 %v1643, %v1644
      %v1646 = vsel %vm1556, %v1246, -inf
      %v1647 = vmax.f32 %v1645, %v1646
      %v1648 = vsel %vm1556, %v1033, -inf
      %v1649 = vsel %vm1556, %v1105, -inf
      %v1650 = vmax.f32 %v1648, %v1649
      %v1651 = vsel %vm1556, %v1177, -inf
      %v1652 = vmax.f32 %v1650, %v1651
      %v1653 = vsel %vm1556, %v1249, -inf
      %v1654 = vmax.f32 %v1652, %v1653
      %v1655 = vsel %vm1556, %v1038, -inf
      %v1656 = vsel %vm1556, %v1110, -inf
      %v1657 = vmax.f32 %v1655, %v1656
      %v1658 = vsel %vm1556, %v1182, -inf
      %v1659 = vmax.f32 %v1657, %v1658
      %v1660 = vsel %vm1556, %v1254, -inf
      %v1661 = vmax.f32 %v1659, %v1660
      %v1662 = vsel %vm1556, %v1041, -inf
      %v1663 = vsel %vm1556, %v1113, -inf
      %v1664 = vmax.f32 %v1662, %v1663
      %v1665 = vsel %vm1556, %v1185, -inf
      %v1666 = vmax.f32 %v1664, %v1665
      %v1667 = vsel %vm1556, %v1257, -inf
      %v1668 = vmax.f32 %v1666, %v1667
      %v1669 = vsel %vm1556, %v1046, -inf
      %v1670 = vsel %vm1556, %v1118, -inf
      %v1671 = vmax.f32 %v1669, %v1670
      %v1672 = vsel %vm1556, %v1190, -inf
      %v1673 = vmax.f32 %v1671, %v1672
      %v1674 = vsel %vm1556, %v1262, -inf
      %v1675 = vmax.f32 %v1673, %v1674
      %v1676 = vsel %vm1556, %v1049, -inf
      %v1677 = vsel %vm1556, %v1121, -inf
      %v1678 = vmax.f32 %v1676, %v1677
      %v1679 = vsel %vm1556, %v1193, -inf
      %v1680 = vmax.f32 %v1678, %v1679
      %v1681 = vsel %vm1556, %v1265, -inf
      %v1682 = vmax.f32 %v1680, %v1681
      %v1683 = vsel %vm1556, %v1270, -inf
      %v1684 = vsel %vm1556, %v1342, -inf
      %v1685 = vmax.f32 %v1683, %v1684
      %v1686 = vsel %vm1556, %v1414, -inf
      %v1687 = vmax.f32 %v1685, %v1686
      %v1688 = vsel %vm1556, %v1486, -inf
      %v1689 = vmax.f32 %v1687, %v1688
      %v1690 = vsel %vm1556, %v1273, -inf
      %v1691 = vsel %vm1556, %v1345, -inf
      %v1692 = vmax.f32 %v1690, %v1691
      %v1693 = vsel %vm1556, %v1417, -inf
      %v1694 = vmax.f32 %v1692, %v1693
      %v1695 = vsel %vm1556, %v1489, -inf
      %v1696 = vmax.f32 %v1694, %v1695
      %v1697 = vsel %vm1556, %v1278, -inf
      %v1698 = vsel %vm1556, %v1350, -inf
      %v1699 = vmax.f32 %v1697, %v1698
      %v1700 = vsel %vm1556, %v1422, -inf
      %v1701 = vmax.f32 %v1699, %v1700
      %v1702 = vsel %vm1556, %v1494, -inf
      %v1703 = vmax.f32 %v1701, %v1702
      %v1704 = vsel %vm1556, %v1281, -inf
      %v1705 = vsel %vm1556, %v1353, -inf
      %v1706 = vmax.f32 %v1704, %v1705
      %v1707 = vsel %vm1556, %v1425, -inf
      %v1708 = vmax.f32 %v1706, %v1707
      %v1709 = vsel %vm1556, %v1497, -inf
      %v1710 = vmax.f32 %v1708, %v1709
      %v1711 = vsel %vm1556, %v1286, -inf
      %v1712 = vsel %vm1556, %v1358, -inf
      %v1713 = vmax.f32 %v1711, %v1712
      %v1714 = vsel %vm1556, %v1430, -inf
      %v1715 = vmax.f32 %v1713, %v1714
      %v1716 = vsel %vm1556, %v1502, -inf
      %v1717 = vmax.f32 %v1715, %v1716
      %v1718 = vsel %vm1556, %v1289, -inf
      %v1719 = vsel %vm1556, %v1361, -inf
      %v1720 = vmax.f32 %v1718, %v1719
      %v1721 = vsel %vm1556, %v1433, -inf
      %v1722 = vmax.f32 %v1720, %v1721
      %v1723 = vsel %vm1556, %v1505, -inf
      %v1724 = vmax.f32 %v1722, %v1723
      %v1725 = vsel %vm1556, %v1294, -inf
      %v1726 = vsel %vm1556, %v1366, -inf
      %v1727 = vmax.f32 %v1725, %v1726
      %v1728 = vsel %vm1556, %v1438, -inf
      %v1729 = vmax.f32 %v1727, %v1728
      %v1730 = vsel %vm1556, %v1510, -inf
      %v1731 = vmax.f32 %v1729, %v1730
      %v1732 = vsel %vm1556, %v1297, -inf
      %v1733 = vsel %vm1556, %v1369, -inf
      %v1734 = vmax.f32 %v1732, %v1733
      %v1735 = vsel %vm1556, %v1441, -inf
      %v1736 = vmax.f32 %v1734, %v1735
      %v1737 = vsel %vm1556, %v1513, -inf
      %v1738 = vmax.f32 %v1736, %v1737
      %v1739 = vsel %vm1556, %v1302, -inf
      %v1740 = vsel %vm1556, %v1374, -inf
      %v1741 = vmax.f32 %v1739, %v1740
      %v1742 = vsel %vm1556, %v1446, -inf
      %v1743 = vmax.f32 %v1741, %v1742
      %v1744 = vsel %vm1556, %v1518, -inf
      %v1745 = vmax.f32 %v1743, %v1744
      %v1746 = vsel %vm1556, %v1305, -inf
      %v1747 = vsel %vm1556, %v1377, -inf
      %v1748 = vmax.f32 %v1746, %v1747
      %v1749 = vsel %vm1556, %v1449, -inf
      %v1750 = vmax.f32 %v1748, %v1749
      %v1751 = vsel %vm1556, %v1521, -inf
      %v1752 = vmax.f32 %v1750, %v1751
      %v1753 = vsel %vm1556, %v1310, -inf
      %v1754 = vsel %vm1556, %v1382, -inf
      %v1755 = vmax.f32 %v1753, %v1754
      %v1756 = vsel %vm1556, %v1454, -inf
      %v1757 = vmax.f32 %v1755, %v1756
      %v1758 = vsel %vm1556, %v1526, -inf
      %v1759 = vmax.f32 %v1757, %v1758
      %v1760 = vsel %vm1556, %v1313, -inf
      %v1761 = vsel %vm1556, %v1385, -inf
      %v1762 = vmax.f32 %v1760, %v1761
      %v1763 = vsel %vm1556, %v1457, -inf
      %v1764 = vmax.f32 %v1762, %v1763
      %v1765 = vsel %vm1556, %v1529, -inf
      %v1766 = vmax.f32 %v1764, %v1765
      %v1767 = vsel %vm1556, %v1318, -inf
      %v1768 = vsel %vm1556, %v1390, -inf
      %v1769 = vmax.f32 %v1767, %v1768
      %v1770 = vsel %vm1556, %v1462, -inf
      %v1771 = vmax.f32 %v1769, %v1770
      %v1772 = vsel %vm1556, %v1534, -inf
      %v1773 = vmax.f32 %v1771, %v1772
      %v1774 = vsel %vm1556, %v1321, -inf
      %v1775 = vsel %vm1556, %v1393, -inf
      %v1776 = vmax.f32 %v1774, %v1775
      %v1777 = vsel %vm1556, %v1465, -inf
      %v1778 = vmax.f32 %v1776, %v1777
      %v1779 = vsel %vm1556, %v1537, -inf
      %v1780 = vmax.f32 %v1778, %v1779
      %v1781 = vsel %vm1556, %v1326, -inf
      %v1782 = vsel %vm1556, %v1398, -inf
      %v1783 = vmax.f32 %v1781, %v1782
      %v1784 = vsel %vm1556, %v1470, -inf
      %v1785 = vmax.f32 %v1783, %v1784
      %v1786 = vsel %vm1556, %v1542, -inf
      %v1787 = vmax.f32 %v1785, %v1786
      %v1788 = vsel %vm1556, %v1329, -inf
      %v1789 = vsel %vm1556, %v1401, -inf
      %v1790 = vmax.f32 %v1788, %v1789
      %v1791 = vsel %vm1556, %v1473, -inf
      %v1792 = vmax.f32 %v1790, %v1791
      %v1793 = vsel %vm1556, %v1545, -inf
      %v1794 = vmax.f32 %v1792, %v1793
      %v1795 = vsel %vm1556, %v1334, -inf
      %v1796 = vsel %vm1556, %v1406, -inf
      %v1797 = vmax.f32 %v1795, %v1796
      %v1798 = vsel %vm1556, %v1478, -inf
      %v1799 = vmax.f32 %v1797, %v1798
      %v1800 = vsel %vm1556, %v1550, -inf
      %v1801 = vmax.f32 %v1799, %v1800
      %v1802 = vsel %vm1556, %v1337, -inf
      %v1803 = vsel %vm1556, %v1409, -inf
      %v1804 = vmax.f32 %v1802, %v1803
      %v1805 = vsel %vm1556, %v1481, -inf
      %v1806 = vmax.f32 %v1804, %v1805
      %v1807 = vsel %vm1556, %v1553, -inf
      %v1808 = vmax.f32 %v1806, %v1807
      %v1809 = vld [vmem:[%s2] sm:$0x1]
      %v1811 = vlaneseq
      %v1812 = vshrl.u32 %v1811, 7
      %v1813 = vsub.s32 0, %v1812
      %v1814 = vrot.slane %v1809, %v1813
      %v1816 = vadd.f32 %v1563, %v1814
      %v1817 = vadd.f32 %v1570, %v1814
      %v1818 = vadd.f32 %v1577, %v1814
      %v1819 = vadd.f32 %v1584, %v1814
      %v1820 = vadd.f32 %v1591, %v1814
      %v1821 = vadd.f32 %v1598, %v1814
      %v1822 = vadd.f32 %v1605, %v1814
      %v1823 = vadd.f32 %v1612, %v1814
      %v1824 = vadd.f32 %v1619, %v1814
      %v1825 = vadd.f32 %v1626, %v1814
      %v1826 = vadd.f32 %v1633, %v1814
      %v1827 = vadd.f32 %v1640, %v1814
      %v1828 = vadd.f32 %v1647, %v1814
      %v1829 = vadd.f32 %v1654, %v1814
      %v1830 = vadd.f32 %v1661, %v1814
      %v1831 = vadd.f32 %v1668, %v1814
      %v1832 = vadd.f32 %v1675, %v1814
      %v1833 = vadd.f32 %v1682, %v1814
      %v1834 = vadd.f32 %v1689, %v1814
      %v1835 = vadd.f32 %v1696, %v1814
      %v1836 = vadd.f32 %v1703, %v1814
      %v1837 = vadd.f32 %v1710, %v1814
      %v1838 = vadd.f32 %v1717, %v1814
      %v1839 = vadd.f32 %v1724, %v1814
      %v1840 = vadd.f32 %v1731, %v1814
      %v1841 = vadd.f32 %v1738, %v1814
      %v1842 = vadd.f32 %v1745, %v1814
      %v1843 = vadd.f32 %v1752, %v1814
      %v1844 = vadd.f32 %v1759, %v1814
      %v1845 = vadd.f32 %v1766, %v1814
      %v1846 = vadd.f32 %v1773, %v1814
      %v1847 = vadd.f32 %v1780, %v1814
      %v1848 = vadd.f32 %v1787, %v1814
      %v1849 = vadd.f32 %v1794, %v1814
      %v1850 = vadd.f32 %v1801, %v1814
      %v1851 = vadd.f32 %v1808, %v1814
      %vm1852 = vcmp.ge.f32.partialorder %v1816, 0.0
      %vm1853 = vcmp.ge.f32.partialorder %v1817, 0.0
      %vm1854 = vcmp.ge.f32.partialorder %v1818, 0.0
      %vm1855 = vcmp.ge.f32.partialorder %v1819, 0.0
      %vm1856 = vcmp.ge.f32.partialorder %v1820, 0.0
      %vm1857 = vcmp.ge.f32.partialorder %v1821, 0.0
      %vm1858 = vcmp.ge.f32.partialorder %v1822, 0.0
      %vm1859 = vcmp.ge.f32.partialorder %v1823, 0.0
      %vm1860 = vcmp.ge.f32.partialorder %v1824, 0.0
      %vm1861 = vcmp.ge.f32.partialorder %v1825, 0.0
      %vm1862 = vcmp.ge.f32.partialorder %v1826, 0.0
      %vm1863 = vcmp.ge.f32.partialorder %v1827, 0.0
      %vm1864 = vcmp.ge.f32.partialorder %v1828, 0.0
      %vm1865 = vcmp.ge.f32.partialorder %v1829, 0.0
      %vm1866 = vcmp.ge.f32.partialorder %v1830, 0.0
      %vm1867 = vcmp.ge.f32.partialorder %v1831, 0.0
      %vm1868 = vcmp.ge.f32.partialorder %v1832, 0.0
      %vm1869 = vcmp.ge.f32.partialorder %v1833, 0.0
      %vm1870 = vcmp.ge.f32.partialorder %v1834, 0.0
      %vm1871 = vcmp.ge.f32.partialorder %v1835, 0.0
      %vm1872 = vcmp.ge.f32.partialorder %v1836, 0.0
      %vm1873 = vcmp.ge.f32.partialorder %v1837, 0.0
      %vm1874 = vcmp.ge.f32.partialorder %v1838, 0.0
      %vm1875 = vcmp.ge.f32.partialorder %v1839, 0.0
      %vm1876 = vcmp.ge.f32.partialorder %v1840, 0.0
      %vm1877 = vcmp.ge.f32.partialorder %v1841, 0.0
      %vm1878 = vcmp.ge.f32.partialorder %v1842, 0.0
      %vm1879 = vcmp.ge.f32.partialorder %v1843, 0.0
      %vm1880 = vcmp.ge.f32.partialorder %v1844, 0.0
      %vm1881 = vcmp.ge.f32.partialorder %v1845, 0.0
      %vm1882 = vcmp.ge.f32.partialorder %v1846, 0.0
      %vm1883 = vcmp.ge.f32.partialorder %v1847, 0.0
      %vm1884 = vcmp.ge.f32.partialorder %v1848, 0.0
      %vm1885 = vcmp.ge.f32.partialorder %v1849, 0.0
      %vm1886 = vcmp.ge.f32.partialorder %v1850, 0.0
      %vm1887 = vcmp.ge.f32.partialorder %v1851, 0.0
      %v1888 = vmul.f32 %v1816, 0.2
      %v1889 = vmul.f32 %v1817, 0.2
      %v1890 = vmul.f32 %v1818, 0.2
      %v1891 = vmul.f32 %v1819, 0.2
      %v1892 = vmul.f32 %v1820, 0.2
      %v1893 = vmul.f32 %v1821, 0.2
      %v1894 = vmul.f32 %v1822, 0.2
      %v1895 = vmul.f32 %v1823, 0.2
      %v1896 = vmul.f32 %v1824, 0.2
      %v1897 = vmul.f32 %v1825, 0.2
      %v1898 = vmul.f32 %v1826, 0.2
      %v1899 = vmul.f32 %v1827, 0.2
      %v1900 = vmul.f32 %v1828, 0.2
      %v1901 = vmul.f32 %v1829, 0.2
      %v1902 = vmul.f32 %v1830, 0.2
      %v1903 = vmul.f32 %v1831, 0.2
      %v1904 = vmul.f32 %v1832, 0.2
      %v1905 = vmul.f32 %v1833, 0.2
      %v1906 = vmul.f32 %v1834, 0.2
      %v1907 = vmul.f32 %v1835, 0.2
      %v1908 = vmul.f32 %v1836, 0.2
      %v1909 = vmul.f32 %v1837, 0.2
      %v1910 = vmul.f32 %v1838, 0.2
      %v1911 = vmul.f32 %v1839, 0.2
      %v1912 = vmul.f32 %v1840, 0.2
      %v1913 = vmul.f32 %v1841, 0.2
      %v1914 = vmul.f32 %v1842, 0.2
      %v1915 = vmul.f32 %v1843, 0.2
      %v1916 = vmul.f32 %v1844, 0.2
      %v1917 = vmul.f32 %v1845, 0.2
      %v1918 = vmul.f32 %v1846, 0.2
      %v1919 = vmul.f32 %v1847, 0.2
      %v1920 = vmul.f32 %v1848, 0.2
      %v1921 = vmul.f32 %v1849, 0.2
      %v1922 = vmul.f32 %v1850, 0.2
      %v1923 = vmul.f32 %v1851, 0.2
      %v1924 = vsel %vm1852, %v1816, %v1888
      %v1925 = vsel %vm1853, %v1817, %v1889
      %v1926 = vsel %vm1854, %v1818, %v1890
      %v1927 = vsel %vm1855, %v1819, %v1891
      %v1928 = vsel %vm1856, %v1820, %v1892
      %v1929 = vsel %vm1857, %v1821, %v1893
      %v1930 = vsel %vm1858, %v1822, %v1894
      %v1931 = vsel %vm1859, %v1823, %v1895
      %v1932 = vsel %vm1860, %v1824, %v1896
      %v1933 = vsel %vm1861, %v1825, %v1897
      %v1934 = vsel %vm1862, %v1826, %v1898
      %v1935 = vsel %vm1863, %v1827, %v1899
      %v1936 = vsel %vm1864, %v1828, %v1900
      %v1937 = vsel %vm1865, %v1829, %v1901
      %v1938 = vsel %vm1866, %v1830, %v1902
      %v1939 = vsel %vm1867, %v1831, %v1903
      %v1940 = vsel %vm1868, %v1832, %v1904
      %v1941 = vsel %vm1869, %v1833, %v1905
      %v1942 = vsel %vm1870, %v1834, %v1906
      %v1943 = vsel %vm1871, %v1835, %v1907
      %v1944 = vsel %vm1872, %v1836, %v1908
      %v1945 = vsel %vm1873, %v1837, %v1909
      %v1946 = vsel %vm1874, %v1838, %v1910
      %v1947 = vsel %vm1875, %v1839, %v1911
      %v1948 = vsel %vm1876, %v1840, %v1912
      %v1949 = vsel %vm1877, %v1841, %v1913
      %v1950 = vsel %vm1878, %v1842, %v1914
      %v1951 = vsel %vm1879, %v1843, %v1915
      %v1952 = vsel %vm1880, %v1844, %v1916
      %v1953 = vsel %vm1881, %v1845, %v1917
      %v1954 = vsel %vm1882, %v1846, %v1918
      %v1955 = vsel %vm1883, %v1847, %v1919
      %v1956 = vsel %vm1884, %v1848, %v1920
      %v1957 = vsel %vm1885, %v1849, %v1921
      %v1958 = vsel %vm1886, %v1850, %v1922
      %v1959 = vsel %vm1887, %v1851, %v1923
      %v1960 = vpack.c.bf16 %v1925, %v1924
      %v1961 = vpack.c.bf16 %v1927, %v1926
      %v1962 = vpack.c.bf16 %v1929, %v1928
      %v1963 = vpack.c.bf16 %v1931, %v1930
      %v1964 = vpack.c.bf16 %v1933, %v1932
      %v1965 = vpack.c.bf16 %v1935, %v1934
      %v1966 = vpack.c.bf16 %v1937, %v1936
      %v1967 = vpack.c.bf16 %v1939, %v1938
      %v1968 = vpack.c.bf16 %v1941, %v1940
      %v1969 = vpack.c.bf16 %v1943, %v1942
      %v1970 = vpack.c.bf16 %v1945, %v1944
      %v1971 = vpack.c.bf16 %v1947, %v1946
      %v1972 = vpack.c.bf16 %v1949, %v1948
      %v1973 = vpack.c.bf16 %v1951, %v1950
      %v1974 = vpack.c.bf16 %v1953, %v1952
      %v1975 = vpack.c.bf16 %v1955, %v1954
      %v1976 = vpack.c.bf16 %v1957, %v1956
      %v1977 = vpack.c.bf16 %v1959, %v1958
      %v1996 = vunpack.c.l.b16 %v1960
      %v1997 = vunpack.c.h.b16 %v1960
      %v1998 = vunpack.c.l.b16 %v1961
      %v1999 = vunpack.c.h.b16 %v1961
      %v2000 = vunpack.c.l.b16 %v1962
      %v2001 = vunpack.c.h.b16 %v1962
      %v2002 = vunpack.c.l.b16 %v1963
      %v2003 = vunpack.c.h.b16 %v1963
      %v2004 = vunpack.c.l.b16 %v1964
      %v2005 = vunpack.c.h.b16 %v1964
      %v2006 = vunpack.c.l.b16 %v1965
      %v2007 = vunpack.c.h.b16 %v1965
      %v2008 = vunpack.c.l.b16 %v1966
      %v2009 = vunpack.c.h.b16 %v1966
      %v2010 = vunpack.c.l.b16 %v1967
      %v2011 = vunpack.c.h.b16 %v1967
      %v2012 = vunpack.c.l.b16 %v1968
      %v2013 = vunpack.c.h.b16 %v1968
      %v2014 = vunpack.c.l.b16 %v1969
      %v2015 = vunpack.c.h.b16 %v1969
      %v2016 = vunpack.c.l.b16 %v1970
      %v2017 = vunpack.c.h.b16 %v1970
      %v2018 = vunpack.c.l.b16 %v1971
      %v2019 = vunpack.c.h.b16 %v1971
      %v2020 = vunpack.c.l.b16 %v1972
      %v2021 = vunpack.c.h.b16 %v1972
      %v2022 = vunpack.c.l.b16 %v1973
      %v2023 = vunpack.c.h.b16 %v1973
      %v2024 = vunpack.c.l.b16 %v1974
      %v2025 = vunpack.c.h.b16 %v1974
      %v2026 = vunpack.c.l.b16 %v1975
      %v2027 = vunpack.c.h.b16 %v1975
      %v2028 = vunpack.c.l.b16 %v1976
      %v2029 = vunpack.c.h.b16 %v1976
      %v2030 = vunpack.c.l.b16 %v1977
      %v2031 = vunpack.c.h.b16 %v1977
      %v2032 = vpack.c.b16 %v1996, %v1996
      %v2033 = vpack.c.b16 %v1997, %v1997
      %v2034 = vpack.c.b16 %v1998, %v1998
      %v2035 = vpack.c.b16 %v1999, %v1999
      %v2036 = vpack.c.b16 %v2000, %v2000
      %v2037 = vpack.c.b16 %v2001, %v2001
      %v2038 = vpack.c.b16 %v2002, %v2002
      %v2039 = vpack.c.b16 %v2003, %v2003
      %v2040 = vpack.c.b16 %v2004, %v2004
      %v2041 = vpack.c.b16 %v2005, %v2005
      %v2042 = vpack.c.b16 %v2006, %v2006
      %v2043 = vpack.c.b16 %v2007, %v2007
      %v2044 = vpack.c.b16 %v2008, %v2008
      %v2045 = vpack.c.b16 %v2009, %v2009
      %v2046 = vpack.c.b16 %v2010, %v2010
      %v2047 = vpack.c.b16 %v2011, %v2011
      %v2048 = vpack.c.b16 %v2012, %v2012
      %v2049 = vpack.c.b16 %v2013, %v2013
      %v2050 = vpack.c.b16 %v2014, %v2014
      %v2051 = vpack.c.b16 %v2015, %v2015
      %v2052 = vpack.c.b16 %v2016, %v2016
      %v2053 = vpack.c.b16 %v2017, %v2017
      %v2054 = vpack.c.b16 %v2018, %v2018
      %v2055 = vpack.c.b16 %v2019, %v2019
      %v2056 = vpack.c.b16 %v2020, %v2020
      %v2057 = vpack.c.b16 %v2021, %v2021
      %v2058 = vpack.c.b16 %v2022, %v2022
      %v2059 = vpack.c.b16 %v2023, %v2023
      %v2060 = vpack.c.b16 %v2024, %v2024
      %v2061 = vpack.c.b16 %v2025, %v2025
      %v2062 = vpack.c.b16 %v2026, %v2026
      %v2063 = vpack.c.b16 %v2027, %v2027
      %v2064 = vpack.c.b16 %v2028, %v2028
      %v2065 = vpack.c.b16 %v2029, %v2029
      %v2066 = vpack.c.b16 %v2030, %v2030
      %v2067 = vpack.c.b16 %v2031, %v2031
      %vm2104 = vcmask 257024
      %2105 = vst.msk [vmem:[%s177] sm:$0xf] %vm2104, %v2032
      %2106 = vst.msk [vmem:[%s177 + $0x4] sm:$0xf] %vm2104, %v2033
      %2107 = vst.msk [vmem:[%s177 + $0x8] sm:$0xf] %vm2104, %v2034
      %2108 = vst.msk [vmem:[%s177 + $0xc] sm:$0xf] %vm2104, %v2035
      %2109 = vst.msk [vmem:[%s177 + $0x10] sm:$0xf] %vm2104, %v2036
      %2110 = vst.msk [vmem:[%s177 + $0x14] sm:$0xf] %vm2104, %v2037
      %2111 = vst.msk [vmem:[%s177 + $0x18] sm:$0xf] %vm2104, %v2038
      %2112 = vst.msk [vmem:[%s177 + $0x1c] sm:$0xf] %vm2104, %v2039
      %2113 = vst.msk [vmem:[%s177 + $0x20] sm:$0xf] %vm2104, %v2040
      %2114 = vst.msk [vmem:[%s177 + $0x24] sm:$0xf] %vm2104, %v2041
      %2115 = vst.msk [vmem:[%s177 + $0x28] sm:$0xf] %vm2104, %v2042
      %2116 = vst.msk [vmem:[%s177 + $0x2c] sm:$0xf] %vm2104, %v2043
      %2117 = vst.msk [vmem:[%s177 + $0x30] sm:$0xf] %vm2104, %v2044
      %2118 = vst.msk [vmem:[%s177 + $0x34] sm:$0xf] %vm2104, %v2045
      %2119 = vst.msk [vmem:[%s177 + $0x38] sm:$0xf] %vm2104, %v2046
      %2120 = vst.msk [vmem:[%s177 + $0x3c] sm:$0xf] %vm2104, %v2047
      %2121 = vst.msk [vmem:[%s177 + $0x40] sm:$0xf] %vm2104, %v2048
      %2122 = vst.msk [vmem:[%s177 + $0x44] sm:$0xf] %vm2104, %v2049
      %2123 = vst.msk [vmem:[%s177 + $0x48] sm:$0xf] %vm2104, %v2050
      %2124 = vst.msk [vmem:[%s177 + $0x4c] sm:$0xf] %vm2104, %v2051
      %2125 = vst.msk [vmem:[%s177 + $0x50] sm:$0xf] %vm2104, %v2052
      %2126 = vst.msk [vmem:[%s177 + $0x54] sm:$0xf] %vm2104, %v2053
      %2127 = vst.msk [vmem:[%s177 + $0x58] sm:$0xf] %vm2104, %v2054
      %2128 = vst.msk [vmem:[%s177 + $0x5c] sm:$0xf] %vm2104, %v2055
      %2129 = vst.msk [vmem:[%s177 + $0x60] sm:$0xf] %vm2104, %v2056
      %2130 = vst.msk [vmem:[%s177 + $0x64] sm:$0xf] %vm2104, %v2057
      %2131 = vst.msk [vmem:[%s177 + $0x68] sm:$0xf] %vm2104, %v2058
      %2132 = vst.msk [vmem:[%s177 + $0x6c] sm:$0xf] %vm2104, %v2059
      %2133 = vst.msk [vmem:[%s177 + $0x70] sm:$0xf] %vm2104, %v2060
      %2134 = vst.msk [vmem:[%s177 + $0x74] sm:$0xf] %vm2104, %v2061
      %2135 = vst.msk [vmem:[%s177 + $0x78] sm:$0xf] %vm2104, %v2062
      %2136 = vst.msk [vmem:[%s177 + $0x7c] sm:$0xf] %vm2104, %v2063
      %2137 = vst.msk [vmem:[%s177 + $0x80] sm:$0xf] %vm2104, %v2064
      %2138 = vst.msk [vmem:[%s177 + $0x84] sm:$0xf] %vm2104, %v2065
      %2139 = vst.msk [vmem:[%s177 + $0x88] sm:$0xf] %vm2104, %v2066
      %2140 = vst.msk [vmem:[%s177 + $0x8c] sm:$0xf] %vm2104, %v2067
      %s2141 = smul.u32 2, %s14
      %p2142 = scmp.lt.s32.totalorder %s2141, 3
      %s2143 = scalar_select %p2142, %s2141, 3
      %s2144 = smul.addr %s2143, 18
      %s2145 = smul.addr %s2144, 4
      %s2146 = scalar_lea.vmem %s3, %s2145
      // Predicated region
      $region33: #{discriminator_forward.3} parent=31 // pred_check
        %p2147 = pneg %p100
      $region34: #{discriminator_forward.3} parent=31 // pred_check_branch
        %2149 = sbr.rel (%p2147) target = $region36
      $region35: #{discriminator_forward.3} parent=31 // pred_region
        %s2150 = smul.u32 2, %s14
      $region36: #{discriminator_forward.3} parent=31 // pred_fallthru
        _
    $region32: #{discriminator_forward.3} parent=5 // pred_fallthru
      _
    %p2151 = scmp.le.s32.totalorder 2, %s9
    // Predicated region
    $region37: #{discriminator_forward.3} parent=5 // pred_check
      %p2152 = pneg %p2151
    $region38: #{discriminator_forward.3} parent=5 // pred_check_branch
      %2154 = sbr.rel (%p2152) target = $region40
    $region39: #{discriminator_forward.3} parent=5 // pred_region
      %s2155 = ssub.s32 %s9, 2
      // Predicated region
      $region41: #{discriminator_forward.3} parent=39 // pred_check
        %p2156 = pneg %p106
      $region42: #{discriminator_forward.3} parent=39 // pred_check_branch
        %2158 = sbr.rel (%p2156) target = $region44
      $region43: #{discriminator_forward.3} parent=39 // pred_region
        %s2159 = smul.u32 2, %s15
        %p2160 = scmp.lt.s32.totalorder %s2159, 3
        %s2161 = scalar_select %p2160, %s2159, 3
        %s2162 = smul.addr %s2161, 18
        %s2163 = smul.addr %s2162, 4
        %s2164 = scalar_lea.vmem %s3, %s2163
      $region44: #{discriminator_forward.3} parent=39 // pred_fallthru
        _
    $region40: #{discriminator_forward.3} parent=5 // pred_fallthru
      _
  $region6: #{discriminator_forward.3} parent=0 // loop_footer
    %s13 = sadd.s32 1, %s9
  $region7: #{discriminator_forward.3} parent=0 // loop_footer_branch
    %8 = sbr.rel target = $region3
  $region8: #{discriminator_forward.3} parent=0 // loop_exit
    _

// kernel: discriminator_forward.4
$region0: #{discriminator_forward.4}
  #allocation0 [shape = 'u32[]', space=smem, size = 0x4, offset = 0x4, fixed_abs, tag = 'smem constant byte address 0x4 - core index']
  #allocation1 [shape = 'u32[144,128]{1,0:T(1,128)}', space=vmem, size = 0x12000, scoped, tag = 'internal scratch']
  %s0 = inlined_call_operand.vmem [shape: bf16[4,64,800], index: 0, kind: input, shape index: {}]
  %s1 = inlined_call_operand.vmem [shape: bf16[800,64], index: 1, kind: input, shape index: {}]
  %s2 = inlined_call_operand.vmem [shape: f32[1,64], index: 2, kind: input, shape index: {}]
  %s3 = inlined_call_operand.vmem [shape: bf16[4,16,64], index: 3, kind: output, shape index: {}]
  %s4 = sld [smem:[#allocation0]]
  $region45: #{discriminator_forward.4} parent=0
    _
  %s6 = ssub.s32 1, %s4
  %s7 = scalar_select 0, %s6, %s4
  loop: start=0, step=1, limit=4
  $region2: #{discriminator_forward.4} parent=0 // loop_pre_header
    _
  $region3: #{discriminator_forward.4} parent=0 // loop_header
    %s9 = sphi 0, %s13
    %p10 = scmp.ge.s32.totalorder %s9, 4
    %s19 = sphi 0, %s21
    %s22 = sphi 0, %s19
    %s23 = sphi 0, %s22
    %s39 = sphi 0, %s23
    %s43 = sphi 0, %s43
    %s45 = sphi 0, %s43
    %s46 = sphi 0, %s45
    %s60 = sphi 0, %s46
    %s64 = sphi 0, %s64
    %s66 = sphi 0, %s64
    %s67 = sphi 0, %s66
    %s81 = sphi 0, %s67
    %s87 = sphi 0, %s89
    %s90 = sphi 0, %s87
    %s91 = sphi 0, %s90
    %s107 = sphi 0, %s91
  $region4: #{discriminator_forward.4} parent=0 // loop_header_branch
    %12 = sbr.rel (%p10) target = $region8
  $region5: #{discriminator_forward.4} parent=0 // loop_body
    %s14 = ssub.s32 %s9, 1
    %s15 = ssub.s32 %s9, 2
    %s16 = sadd.s32 %s9, 1
    %s17 = ssub.s32 %s9, %s16
    %p18 = scmp.eq.s32.totalorder %s17, 0
    %s20 = sadd.s32 %s19, 1
    %s21 = scalar_select %p18, %s19, %s20
    %p24 = pneg %p18
    %p25 = scmp.eq.s32.totalorder %s9, 1
    %p26 = por %p24, %p25
    %p27 = scmp.ne.s32.totalorder %s19, %s22
    %p28 = scmp.eq.s32.totalorder %s9, 0
    %p29 = por %p27, %p28
    %p30 = scmp.ne.s32.totalorder %s19, %s22
    %p31 = scmp.eq.s32.totalorder %s14, 1
    %p32 = por %p30, %p31
    %p33 = scmp.ne.s32.totalorder %s22, %s23
    %p34 = scmp.eq.s32.totalorder %s14, 0
    %p35 = por %p33, %p34
    %p36 = scmp.ne.s32.totalorder %s22, %s23
    %p37 = scmp.eq.s32.totalorder %s15, 1
    %p38 = por %p36, %p37
    %p40 = scmp.ne.s32.totalorder %s23, %s39
    %p41 = scmp.eq.s32.totalorder %s15, 0
    %p42 = por %p40, %p41
    %s44 = sadd.s32 %s43, 1
    %p47 = scmp.eq.s32.totalorder %s9, 1
    %p48 = scmp.ne.s32.totalorder %s43, %s45
    %p49 = scmp.eq.s32.totalorder %s9, 0
    %p50 = por %p48, %p49
    %p51 = scmp.ne.s32.totalorder %s43, %s45
    %p52 = scmp.eq.s32.totalorder %s14, 1
    %p53 = por %p51, %p52
    %p54 = scmp.ne.s32.totalorder %s45, %s46
    %p55 = scmp.eq.s32.totalorder %s14, 0
    %p56 = por %p54, %p55
    %p57 = scmp.ne.s32.totalorder %s45, %s46
    %p58 = scmp.eq.s32.totalorder %s15, 1
    %p59 = por %p57, %p58
    %p61 = scmp.ne.s32.totalorder %s46, %s60
    %p62 = scmp.eq.s32.totalorder %s15, 0
    %p63 = por %p61, %p62
    %s65 = sadd.s32 %s64, 1
    %p68 = scmp.eq.s32.totalorder %s9, 1
    %p69 = scmp.ne.s32.totalorder %s64, %s66
    %p70 = scmp.eq.s32.totalorder %s9, 0
    %p71 = por %p69, %p70
    %p72 = scmp.ne.s32.totalorder %s64, %s66
    %p73 = scmp.eq.s32.totalorder %s14, 1
    %p74 = por %p72, %p73
    %p75 = scmp.ne.s32.totalorder %s66, %s67
    %p76 = scmp.eq.s32.totalorder %s14, 0
    %p77 = por %p75, %p76
    %p78 = scmp.ne.s32.totalorder %s66, %s67
    %p79 = scmp.eq.s32.totalorder %s15, 1
    %p80 = por %p78, %p79
    %p82 = scmp.ne.s32.totalorder %s67, %s81
    %p83 = scmp.eq.s32.totalorder %s15, 0
    %p84 = por %p82, %p83
    %s85 = ssub.s32 %s9, %s16
    %p86 = scmp.eq.s32.totalorder %s85, 0
    %s88 = sadd.s32 %s87, 1
    %s89 = scalar_select %p86, %s87, %s88
    %p92 = pneg %p86
    %p93 = scmp.eq.s32.totalorder %s9, 1
    %p94 = por %p92, %p93
    %p95 = scmp.ne.s32.totalorder %s87, %s90
    %p96 = scmp.eq.s32.totalorder %s9, 0
    %p97 = por %p95, %p96
    %p98 = scmp.ne.s32.totalorder %s87, %s90
    %p99 = scmp.eq.s32.totalorder %s14, 1
    %p100 = por %p98, %p99
    %p101 = scmp.ne.s32.totalorder %s90, %s91
    %p102 = scmp.eq.s32.totalorder %s14, 0
    %p103 = por %p101, %p102
    %p104 = scmp.ne.s32.totalorder %s90, %s91
    %p105 = scmp.eq.s32.totalorder %s15, 1
    %p106 = por %p104, %p105
    %p108 = scmp.ne.s32.totalorder %s91, %s107
    %p109 = scmp.eq.s32.totalorder %s15, 0
    %p110 = por %p108, %p109
    %p111 = scmp.le.s32.totalorder 1, %s9
    %p112 = scmp.lt.s32.totalorder %s9, 3
    %p113 = pnand %p111, %p112
    %p114 = pneg %p113
    // Predicated region
    $region9: #{discriminator_forward.4} parent=5 // pred_check
      _
    $region10: #{discriminator_forward.4} parent=5 // pred_check_branch
      %116 = sbr.rel (%p113) target = $region12
    $region11: #{discriminator_forward.4} parent=5 // pred_region
      %s117 = ssub.s32 %s9, 1
      // Predicated region
      $region13: #{discriminator_forward.4} parent=11 // pred_check
        %p118 = pneg %p56
      $region14: #{discriminator_forward.4} parent=11 // pred_check_branch
        %120 = sbr.rel (%p118) target = $region16
      $region15: #{discriminator_forward.4} parent=11 // pred_region
        _
      $region16: #{discriminator_forward.4} parent=11 // pred_fallthru
        _
      // Predicated region
      $region17: #{discriminator_forward.4} parent=11 // pred_check
        %p121 = pneg %p77
      $region18: #{discriminator_forward.4} parent=11 // pred_check_branch
        %123 = sbr.rel (%p121) target = $region20
      $region19: #{discriminator_forward.4} parent=11 // pred_region
        _
      $region20: #{discriminator_forward.4} parent=11 // pred_fallthru
        _
    $region12: #{discriminator_forward.4} parent=5 // pred_fallthru
      _
    %p124 = scmp.lt.s32.totalorder %s9, 2
    // Predicated region
    $region21: #{discriminator_forward.4} parent=5 // pred_check
      %p125 = pneg %p124
    $region22: #{discriminator_forward.4} parent=5 // pred_check_branch
      %127 = sbr.rel (%p125) target = $region24
    $region23: #{discriminator_forward.4} parent=5 // pred_region
      // Predicated region
      $region25: #{discriminator_forward.4} parent=23 // pred_check
        %p128 = pneg %p29
      $region26: #{discriminator_forward.4} parent=23 // pred_check_branch
        %130 = sbr.rel (%p128) target = $region28
      $region27: #{discriminator_forward.4} parent=23 // pred_region
        %s131 = smul.u32 2, %s9
        %p132 = scmp.lt.s32.totalorder %s131, 3
        %s133 = scalar_select %p132, %s131, 3
        %s134 = smul.addr %s133, 56
        %s135 = smul.addr %s134, 4
        %s136 = scalar_lea.vmem %s0, %s135
        %s137 = smul.u32 2, %s9
      $region28: #{discriminator_forward.4} parent=23 // pred_fallthru
        _
    $region24: #{discriminator_forward.4} parent=5 // pred_fallthru
      _
    %p138 = scmp.le.s32.totalorder 1, %s9
    %p139 = scmp.lt.s32.totalorder %s9, 3
    %p140 = pnand %p138, %p139
    %p141 = pneg %p140
    // Predicated region
    $region29: #{discriminator_forward.4} parent=5 // pred_check
      _
    $region30: #{discriminator_forward.4} parent=5 // pred_check_branch
      %143 = sbr.rel (%p140) target = $region32
    $region31: #{discriminator_forward.4} parent=5 // pred_region
      %s144 = ssub.s32 %s9, 1
      %s145 = smul.u32 2, %s14
      %p146 = scmp.lt.s32.totalorder %s145, 3
      %s147 = scalar_select %p146, %s145, 3
      %s148 = smul.addr %s147, 56
      %s149 = smul.addr %s148, 4
      %s150 = scalar_lea.vmem %s0, %s149
      %p151 = pneg %p35
      %p152 = pneg %p32
      %p153 = pneg %p56
      %p154 = pneg %p53
      %p155 = pneg %p77
      %p156 = pneg %p74
      %p157 = pneg %p103
      %p158 = pneg %p100
      %s159 = smul.u32 2, %s14
      %p160 = scmp.lt.s32.totalorder %s159, 3
      %s161 = scalar_select %p160, %s159, 3
      %s162 = smul.addr %s161, 2
      %s163 = smul.addr %s162, 4
      %s164 = scalar_lea.vmem %s3, %s163
      %s165 = smul.u32 2, %s14
      %p166 = scmp.lt.s32.totalorder %s165, 3
      %s167 = scalar_select %p166, %s165, 3
      %s168 = smul.addr %s167, 56
      %s169 = smul.addr %s168, 4
      %s170 = scalar_lea.vmem %s0, %s169
      %s171 = smul.u32 2, %s14
      %s172 = smul.u32 2, %s14
      %p173 = scmp.lt.s32.totalorder %s172, 3
      %s174 = scalar_select %p173, %s172, 3
      %s175 = smul.addr %s174, 2
      %s176 = smul.addr %s175, 4
      %s177 = scalar_lea.vmem %s3, %s176
      %s178 = smul.u32 2, %s14
      %v180 = vld [vmem:[%s170] sm:$0xff]
      %v181 = vld [vmem:[%s170 + $0x8] sm:$0xff]
      %v182 = vld [vmem:[%s170 + $0x10] sm:$0xff]
      %v183 = vld [vmem:[%s170 + $0x18] sm:$0xf]
      %v184 = vld [vmem:[%s170 + $0x1c] sm:$0xff]
      %v185 = vld [vmem:[%s170 + $0x24] sm:$0xff]
      %v186 = vld [vmem:[%s170 + $0x2c] sm:$0xff]
      %v187 = vld [vmem:[%s170 + $0x34] sm:$0xf]
      %v188 = vld [vmem:[%s170 + $0x38] sm:$0xff]
      %v189 = vld [vmem:[%s170 + $0x40] sm:$0xff]
      %v190 = vld [vmem:[%s170 + $0x48] sm:$0xff]
      %v191 = vld [vmem:[%s170 + $0x50] sm:$0xf]
      %v192 = vld [vmem:[%s170 + $0x54] sm:$0xff]
      %v193 = vld [vmem:[%s170 + $0x5c] sm:$0xff]
      %v194 = vld [vmem:[%s170 + $0x64] sm:$0xff]
      %v195 = vld [vmem:[%s170 + $0x6c] sm:$0xf]
      %v196 = vld [vmem:[%s170 + $0x70] sm:$0xff]
      %v197 = vld [vmem:[%s170 + $0x78] sm:$0xff]
      %v198 = vld [vmem:[%s170 + $0x80] sm:$0xff]
      %v199 = vld [vmem:[%s170 + $0x88] sm:$0xf]
      %v200 = vld [vmem:[%s170 + $0x8c] sm:$0xff]
      %v201 = vld [vmem:[%s170 + $0x94] sm:$0xff]
      %v202 = vld [vmem:[%s170 + $0x9c] sm:$0xff]
      %v203 = vld [vmem:[%s170 + $0xa4] sm:$0xf]
      %v204 = vld [vmem:[%s170 + $0xa8] sm:$0xff]
      %v205 = vld [vmem:[%s170 + $0xb0] sm:$0xff]
      %v206 = vld [vmem:[%s170 + $0xb8] sm:$0xff]
      %v207 = vld [vmem:[%s170 + $0xc0] sm:$0xf]
      %v208 = vld [vmem:[%s170 + $0xc4] sm:$0xff]
      %v209 = vld [vmem:[%s170 + $0xcc] sm:$0xff]
      %v210 = vld [vmem:[%s170 + $0xd4] sm:$0xff]
      %v211 = vld [vmem:[%s170 + $0xdc] sm:$0xf]
      %v212 = vld [vmem:[%s170 + $0xe0] sm:$0xff]
      %v213 = vld [vmem:[%s170 + $0xe8] sm:$0xff]
      %v214 = vld [vmem:[%s170 + $0xf0] sm:$0xff]
      %v215 = vld [vmem:[%s170 + $0xf8] sm:$0xf]
      %v216 = vld [vmem:[%s170 + $0xfc] sm:$0xff]
      %v217 = vld [vmem:[%s170 + $0x104] sm:$0xff]
      %v218 = vld [vmem:[%s170 + $0x10c] sm:$0xff]
      %v219 = vld [vmem:[%s170 + $0x114] sm:$0xf]
      %v220 = vld [vmem:[%s170 + $0x118] sm:$0xff]
      %v221 = vld [vmem:[%s170 + $0x120] sm:$0xff]
      %v222 = vld [vmem:[%s170 + $0x128] sm:$0xff]
      %v223 = vld [vmem:[%s170 + $0x130] sm:$0xf]
      %v224 = vld [vmem:[%s170 + $0x134] sm:$0xff]
      %v225 = vld [vmem:[%s170 + $0x13c] sm:$0xff]
      %v226 = vld [vmem:[%s170 + $0x144] sm:$0xff]
      %v227 = vld [vmem:[%s170 + $0x14c] sm:$0xf]
      %v228 = vld [vmem:[%s170 + $0x150] sm:$0xff]
      %v229 = vld [vmem:[%s170 + $0x158] sm:$0xff]
      %v230 = vld [vmem:[%s170 + $0x160] sm:$0xff]
      %v231 = vld [vmem:[%s170 + $0x168] sm:$0xf]
      %v232 = vld [vmem:[%s170 + $0x16c] sm:$0xff]
      %v233 = vld [vmem:[%s170 + $0x174] sm:$0xff]
      %v234 = vld [vmem:[%s170 + $0x17c] sm:$0xff]
      %v235 = vld [vmem:[%s170 + $0x184] sm:$0xf]
      %v236 = vld [vmem:[%s170 + $0x188] sm:$0xff]
      %v237 = vld [vmem:[%s170 + $0x190] sm:$0xff]
      %v238 = vld [vmem:[%s170 + $0x198] sm:$0xff]
      %v239 = vld [vmem:[%s170 + $0x1a0] sm:$0xf]
      %v240 = vld [vmem:[%s170 + $0x1a4] sm:$0xff]
      %v241 = vld [vmem:[%s170 + $0x1ac] sm:$0xff]
      %v242 = vld [vmem:[%s170 + $0x1b4] sm:$0xff]
      %v243 = vld [vmem:[%s170 + $0x1bc] sm:$0xf]
      %v244 = vld [vmem:[%s1] sm:$0xf]
      %v245 = vld [vmem:[%s1 + $0x4] sm:$0xf]
      %v246 = vld [vmem:[%s1 + $0x8] sm:$0xf]
      %v247 = vld [vmem:[%s1 + $0xc] sm:$0xf]
      %v248 = vld [vmem:[%s1 + $0x10] sm:$0xf]
      %v249 = vld [vmem:[%s1 + $0x14] sm:$0xf]
      %v250 = vld [vmem:[%s1 + $0x18] sm:$0xf]
      %v251 = vld [vmem:[%s1 + $0x1c] sm:$0xf]
      %v252 = vld [vmem:[%s1 + $0x20] sm:$0xf]
      %v253 = vld [vmem:[%s1 + $0x24] sm:$0xf]
      %v254 = vld [vmem:[%s1 + $0x28] sm:$0xf]
      %v255 = vld [vmem:[%s1 + $0x2c] sm:$0xf]
      %v256 = vld [vmem:[%s1 + $0x30] sm:$0xf]
      %v257 = vld [vmem:[%s1 + $0x34] sm:$0xf]
      %v258 = vld [vmem:[%s1 + $0x38] sm:$0xf]
      %v259 = vld [vmem:[%s1 + $0x3c] sm:$0xf]
      %v260 = vld [vmem:[%s1 + $0x40] sm:$0xf]
      %v261 = vld [vmem:[%s1 + $0x44] sm:$0xf]
      %v262 = vld [vmem:[%s1 + $0x48] sm:$0xf]
      %v263 = vld [vmem:[%s1 + $0x4c] sm:$0xf]
      %v264 = vld [vmem:[%s1 + $0x50] sm:$0xf]
      %v265 = vld [vmem:[%s1 + $0x54] sm:$0xf]
      %v266 = vld [vmem:[%s1 + $0x58] sm:$0xf]
      %v267 = vld [vmem:[%s1 + $0x5c] sm:$0xf]
      %v268 = vld [vmem:[%s1 + $0x60] sm:$0xf]
      %v269 = vld [vmem:[%s1 + $0x64] sm:$0xf]
      %v270 = vld [vmem:[%s1 + $0x68] sm:$0xf]
      %v271 = vld [vmem:[%s1 + $0x6c] sm:$0xf]
      %v272 = vld [vmem:[%s1 + $0x70] sm:$0xf]
      %v273 = vld [vmem:[%s1 + $0x74] sm:$0xf]
      %v274 = vld [vmem:[%s1 + $0x78] sm:$0xf]
      %v275 = vld [vmem:[%s1 + $0x7c] sm:$0xf]
      %v276 = vld [vmem:[%s1 + $0x80] sm:$0xf]
      %v277 = vld [vmem:[%s1 + $0x84] sm:$0xf]
      %v278 = vld [vmem:[%s1 + $0x88] sm:$0xf]
      %v279 = vld [vmem:[%s1 + $0x8c] sm:$0xf]
      %v280 = vld [vmem:[%s1 + $0x90] sm:$0xf]
      %v281 = vld [vmem:[%s1 + $0x94] sm:$0xf]
      %v282 = vld [vmem:[%s1 + $0x98] sm:$0xf]
      %v283 = vld [vmem:[%s1 + $0x9c] sm:$0xf]
      %v284 = vld [vmem:[%s1 + $0xa0] sm:$0xf]
      %v285 = vld [vmem:[%s1 + $0xa4] sm:$0xf]
      %v286 = vld [vmem:[%s1 + $0xa8] sm:$0xf]
      %v287 = vld [vmem:[%s1 + $0xac] sm:$0xf]
      %v288 = vld [vmem:[%s1 + $0xb0] sm:$0xf]
      %v289 = vld [vmem:[%s1 + $0xb4] sm:$0xf]
      %v290 = vld [vmem:[%s1 + $0xb8] sm:$0xf]
      %v291 = vld [vmem:[%s1 + $0xbc] sm:$0xf]
      %v292 = vld [vmem:[%s1 + $0xc0] sm:$0xf]
      %v293 = vld [vmem:[%s1 + $0xc4] sm:$0xf]
      %v294 = vld [vmem:[%s1 + $0xc8] sm:$0xf]
      %v295 = vld [vmem:[%s1 + $0xcc] sm:$0xf]
      %v296 = vld [vmem:[%s1 + $0xd0] sm:$0xf]
      %v297 = vld [vmem:[%s1 + $0xd4] sm:$0xf]
      %v298 = vld [vmem:[%s1 + $0xd8] sm:$0xf]
      %v299 = vld [vmem:[%s1 + $0xdc] sm:$0xf]
      %v300 = vld [vmem:[%s1 + $0xe0] sm:$0xf]
      %v301 = vld [vmem:[%s1 + $0xe4] sm:$0xf]
      %v302 = vld [vmem:[%s1 + $0xe8] sm:$0xf]
      %v303 = vld [vmem:[%s1 + $0xec] sm:$0xf]
      %v304 = vld [vmem:[%s1 + $0xf0] sm:$0xf]
      %v305 = vld [vmem:[%s1 + $0xf4] sm:$0xf]
      %v306 = vld [vmem:[%s1 + $0xf8] sm:$0xf]
      %v307 = vld [vmem:[%s1 + $0xfc] sm:$0xf]
      %v308 = vld [vmem:[%s1 + $0x100] sm:$0xf]
      %v309 = vld [vmem:[%s1 + $0x104] sm:$0xf]
      %v310 = vld [vmem:[%s1 + $0x108] sm:$0xf]
      %v311 = vld [vmem:[%s1 + $0x10c] sm:$0xf]
      %v312 = vld [vmem:[%s1 + $0x110] sm:$0xf]
      %v313 = vld [vmem:[%s1 + $0x114] sm:$0xf]
      %v314 = vld [vmem:[%s1 + $0x118] sm:$0xf]
      %v315 = vld [vmem:[%s1 + $0x11c] sm:$0xf]
      %v316 = vld [vmem:[%s1 + $0x120] sm:$0xf]
      %v317 = vld [vmem:[%s1 + $0x124] sm:$0xf]
      %v318 = vld [vmem:[%s1 + $0x128] sm:$0xf]
      %v319 = vld [vmem:[%s1 + $0x12c] sm:$0xf]
      %v320 = vld [vmem:[%s1 + $0x130] sm:$0xf]
      %v321 = vld [vmem:[%s1 + $0x134] sm:$0xf]
      %v322 = vld [vmem:[%s1 + $0x138] sm:$0xf]
      %v323 = vld [vmem:[%s1 + $0x13c] sm:$0xf]
      %v324 = vld [vmem:[%s1 + $0x140] sm:$0xf]
      %v325 = vld [vmem:[%s1 + $0x144] sm:$0xf]
      %v326 = vld [vmem:[%s1 + $0x148] sm:$0xf]
      %v327 = vld [vmem:[%s1 + $0x14c] sm:$0xf]
      %v328 = vld [vmem:[%s1 + $0x150] sm:$0xf]
      %v329 = vld [vmem:[%s1 + $0x154] sm:$0xf]
      %v330 = vld [vmem:[%s1 + $0x158] sm:$0xf]
      %v331 = vld [vmem:[%s1 + $0x15c] sm:$0xf]
      %v332 = vld [vmem:[%s1 + $0x160] sm:$0xf]
      %v333 = vld [vmem:[%s1 + $0x164] sm:$0xf]
      %v334 = vld [vmem:[%s1 + $0x168] sm:$0xf]
      %v335 = vld [vmem:[%s1 + $0x16c] sm:$0xf]
      %v336 = vld [vmem:[%s1 + $0x170] sm:$0xf]
      %v337 = vld [vmem:[%s1 + $0x174] sm:$0xf]
      %v338 = vld [vmem:[%s1 + $0x178] sm:$0xf]
      %v339 = vld [vmem:[%s1 + $0x17c] sm:$0xf]
      %v340 = vld [vmem:[%s1 + $0x180] sm:$0xf]
      %v341 = vld [vmem:[%s1 + $0x184] sm:$0xf]
      %v342 = vld [vmem:[%s1 + $0x188] sm:$0xf]
      %v343 = vld [vmem:[%s1 + $0x18c] sm:$0xf]
      %v408 = vunpack.c.l.b16 %v180
      %v409 = vunpack.c.h.b16 %v180
      %v410 = vunpack.c.l.b16 %v181
      %v411 = vunpack.c.h.b16 %v181
      %v412 = vunpack.c.l.b16 %v182
      %v413 = vunpack.c.h.b16 %v182
      %v414 = vunpack.c.l.b16 %v183
      %v415 = vunpack.c.l.b16 %v184
      %v416 = vunpack.c.h.b16 %v184
      %v417 = vunpack.c.l.b16 %v185
      %v418 = vunpack.c.h.b16 %v185
      %v419 = vunpack.c.l.b16 %v186
      %v420 = vunpack.c.h.b16 %v186
      %v421 = vunpack.c.l.b16 %v187
      %v422 = vunpack.c.l.b16 %v188
      %v423 = vunpack.c.h.b16 %v188
      %v424 = vunpack.c.l.b16 %v189
      %v425 = vunpack.c.h.b16 %v189
      %v426 = vunpack.c.l.b16 %v190
      %v427 = vunpack.c.h.b16 %v190
      %v428 = vunpack.c.l.b16 %v191
      %v429 = vunpack.c.l.b16 %v192
      %v430 = vunpack.c.h.b16 %v192
      %v431 = vunpack.c.l.b16 %v193
      %v432 = vunpack.c.h.b16 %v193
      %v433 = vunpack.c.l.b16 %v194
      %v434 = vunpack.c.h.b16 %v194
      %v435 = vunpack.c.l.b16 %v195
      %v436 = vunpack.c.l.b16 %v196
      %v437 = vunpack.c.h.b16 %v196
      %v438 = vunpack.c.l.b16 %v197
      %v439 = vunpack.c.h.b16 %v197
      %v440 = vunpack.c.l.b16 %v198
      %v441 = vunpack.c.h.b16 %v198
      %v442 = vunpack.c.l.b16 %v199
      %v443 = vunpack.c.l.b16 %v200
      %v444 = vunpack.c.h.b16 %v200
      %v445 = vunpack.c.l.b16 %v201
      %v446 = vunpack.c.h.b16 %v201
      %v447 = vunpack.c.l.b16 %v202
      %v448 = vunpack.c.h.b16 %v202
      %v449 = vunpack.c.l.b16 %v203
      %v450 = vunpack.c.l.b16 %v204
      %v451 = vunpack.c.h.b16 %v204
      %v452 = vunpack.c.l.b16 %v205
      %v453 = vunpack.c.h.b16 %v205
      %v454 = vunpack.c.l.b16 %v206
      %v455 = vunpack.c.h.b16 %v206
      %v456 = vunpack.c.l.b16 %v207
      %v457 = vunpack.c.l.b16 %v208
      %v458 = vunpack.c.h.b16 %v208
      %v459 = vunpack.c.l.b16 %v209
      %v460 = vunpack.c.h.b16 %v209
      %v461 = vunpack.c.l.b16 %v210
      %v462 = vunpack.c.h.b16 %v210
      %v463 = vunpack.c.l.b16 %v211
      %v464 = vunpack.c.l.b16 %v212
      %v465 = vunpack.c.h.b16 %v212
      %v466 = vunpack.c.l.b16 %v213
      %v467 = vunpack.c.h.b16 %v213
      %v468 = vunpack.c.l.b16 %v214
      %v469 = vunpack.c.h.b16 %v214
      %v470 = vunpack.c.l.b16 %v215
      %v471 = vunpack.c.l.b16 %v216
      %v472 = vunpack.c.h.b16 %v216
      %v473 = vunpack.c.l.b16 %v217
      %v474 = vunpack.c.h.b16 %v217
      %v475 = vunpack.c.l.b16 %v218
      %v476 = vunpack.c.h.b16 %v218
      %v477 = vunpack.c.l.b16 %v219
      %v478 = vunpack.c.l.b16 %v220
      %v479 = vunpack.c.h.b16 %v220
      %v480 = vunpack.c.l.b16 %v221
      %v481 = vunpack.c.h.b16 %v221
      %v482 = vunpack.c.l.b16 %v222
      %v483 = vunpack.c.h.b16 %v222
      %v484 = vunpack.c.l.b16 %v223
      %v485 = vunpack.c.l.b16 %v224
      %v486 = vunpack.c.h.b16 %v224
      %v487 = vunpack.c.l.b16 %v225
      %v488 = vunpack.c.h.b16 %v225
      %v489 = vunpack.c.l.b16 %v226
      %v490 = vunpack.c.h.b16 %v226
      %v491 = vunpack.c.l.b16 %v227
      %v492 = vunpack.c.l.b16 %v228
      %v493 = vunpack.c.h.b16 %v228
      %v494 = vunpack.c.l.b16 %v229
      %v495 = vunpack.c.h.b16 %v229
      %v496 = vunpack.c.l.b16 %v230
      %v497 = vunpack.c.h.b16 %v230
      %v498 = vunpack.c.l.b16 %v231
      %v499 = vunpack.c.l.b16 %v232
      %v500 = vunpack.c.h.b16 %v232
      %v501 = vunpack.c.l.b16 %v233
      %v502 = vunpack.c.h.b16 %v233
      %v503 = vunpack.c.l.b16 %v234
      %v504 = vunpack.c.h.b16 %v234
      %v505 = vunpack.c.l.b16 %v235
      %v506 = vunpack.c.l.b16 %v236
      %v507 = vunpack.c.h.b16 %v236
      %v508 = vunpack.c.l.b16 %v237
      %v509 = vunpack.c.h.b16 %v237
      %v510 = vunpack.c.l.b16 %v238
      %v511 = vunpack.c.h.b16 %v238
      %v512 = vunpack.c.l.b16 %v239
      %v513 = vunpack.c.l.b16 %v240
      %v514 = vunpack.c.h.b16 %v240
      %v515 = vunpack.c.l.b16 %v241
      %v516 = vunpack.c.h.b16 %v241
      %v517 = vunpack.c.l.b16 %v242
      %v518 = vunpack.c.h.b16 %v242
      %v519 = vunpack.c.l.b16 %v243
      %v520 = vpack.c.b16 %v415, %v408
      %v521 = vpack.c.b16 %v416, %v409
      %v522 = vpack.c.b16 %v417, %v410
      %v523 = vpack.c.b16 %v418, %v411
      %v524 = vpack.c.b16 %v419, %v412
      %v525 = vpack.c.b16 %v420, %v413
      %v526 = vpack.c.b16 %v421, %v414
      %v527 = vpack.c.b16 %v429, %v422
      %v528 = vpack.c.b16 %v430, %v423
      %v529 = vpack.c.b16 %v431, %v424
      %v530 = vpack.c.b16 %v432, %v425
      %v531 = vpack.c.b16 %v433, %v426
      %v532 = vpack.c.b16 %v434, %v427
      %v533 = vpack.c.b16 %v435, %v428
      %v534 = vpack.c.b16 %v443, %v436
      %v535 = vpack.c.b16 %v444, %v437
      %v536 = vpack.c.b16 %v445, %v438
      %v537 = vpack.c.b16 %v446, %v439
      %v538 = vpack.c.b16 %v447, %v440
      %v539 = vpack.c.b16 %v448, %v441
      %v540 = vpack.c.b16 %v449, %v442
      %v541 = vpack.c.b16 %v457, %v450
      %v542 = vpack.c.b16 %v458, %v451
      %v543 = vpack.c.b16 %v459, %v452
      %v544 = vpack.c.b16 %v460, %v453
      %v545 = vpack.c.b16 %v461, %v454
      %v546 = vpack.c.b16 %v462, %v455
      %v547 = vpack.c.b16 %v463, %v456
      %v548 = vpack.c.b16 %v471, %v464
      %v549 = vpack.c.b16 %v472, %v465
      %v550 = vpack.c.b16 %v473, %v466
      %v551 = vpack.c.b16 %v474, %v467
      %v552 = vpack.c.b16 %v475, %v468
      %v553 = vpack.c.b16 %v476, %v469
      %v554 = vpack.c.b16 %v477, %v470
      %v555 = vpack.c.b16 %v485, %v478
      %v556 = vpack.c.b16 %v486, %v479
      %v557 = vpack.c.b16 %v487, %v480
      %v558 = vpack.c.b16 %v488, %v481
      %v559 = vpack.c.b16 %v489, %v482
      %v560 = vpack.c.b16 %v490, %v483
      %v561 = vpack.c.b16 %v491, %v484
      %v562 = vpack.c.b16 %v499, %v492
      %v563 = vpack.c.b16 %v500, %v493
      %v564 = vpack.c.b16 %v501, %v494
      %v565 = vpack.c.b16 %v502, %v495
      %v566 = vpack.c.b16 %v503, %v496
      %v567 = vpack.c.b16 %v504, %v497
      %v568 = vpack.c.b16 %v505, %v498
      %v569 = vpack.c.b16 %v513, %v506
      %v570 = vpack.c.b16 %v514, %v507
      %v571 = vpack.c.b16 %v515, %v508
      %v572 = vpack.c.b16 %v516, %v509
      %v573 = vpack.c.b16 %v517, %v510
      %v574 = vpack.c.b16 %v518, %v511
      %v575 = vpack.c.b16 %v519, %v512
      %v724 = vunpack.c.l.b16 %v244
      %v725 = vunpack.c.l.b16 %v245
      %v726 = vunpack.c.l.b16 %v246
      %v727 = vunpack.c.l.b16 %v247
      %v728 = vunpack.c.l.b16 %v248
      %v729 = vunpack.c.l.b16 %v249
      %v730 = vunpack.c.l.b16 %v250
      %v731 = vunpack.c.l.b16 %v251
      %v732 = vunpack.c.l.b16 %v252
      %v733 = vunpack.c.l.b16 %v253
      %v734 = vunpack.c.l.b16 %v254
      %v735 = vunpack.c.l.b16 %v255
      %v736 = vunpack.c.l.b16 %v256
      %v737 = vunpack.c.l.b16 %v257
      %v738 = vunpack.c.l.b16 %v258
      %v739 = vunpack.c.l.b16 %v259
      %v740 = vunpack.c.l.b16 %v260
      %v741 = vunpack.c.l.b16 %v261
      %v742 = vunpack.c.l.b16 %v262
      %v743 = vunpack.c.l.b16 %v263
      %v744 = vunpack.c.l.b16 %v264
      %v745 = vunpack.c.l.b16 %v265
      %v746 = vunpack.c.l.b16 %v266
      %v747 = vunpack.c.l.b16 %v267
      %v748 = vunpack.c.l.b16 %v268
      %v749 = vunpack.c.l.b16 %v269
      %v750 = vunpack.c.l.b16 %v270
      %v751 = vunpack.c.l.b16 %v271
      %v752 = vunpack.c.l.b16 %v272
      %v753 = vunpack.c.l.b16 %v273
      %v754 = vunpack.c.l.b16 %v274
      %v755 = vunpack.c.l.b16 %v275
      %v756 = vunpack.c.l.b16 %v276
      %v757 = vunpack.c.l.b16 %v277
      %v758 = vunpack.c.l.b16 %v278
      %v759 = vunpack.c.l.b16 %v279
      %v760 = vunpack.c.l.b16 %v280
      %v761 = vunpack.c.l.b16 %v281
      %v762 = vunpack.c.l.b16 %v282
      %v763 = vunpack.c.l.b16 %v283
      %v764 = vunpack.c.l.b16 %v284
      %v765 = vunpack.c.l.b16 %v285
      %v766 = vunpack.c.l.b16 %v286
      %v767 = vunpack.c.l.b16 %v287
      %v768 = vunpack.c.l.b16 %v288
      %v769 = vunpack.c.l.b16 %v289
      %v770 = vunpack.c.l.b16 %v290
      %v771 = vunpack.c.l.b16 %v291
      %v772 = vunpack.c.l.b16 %v292
      %v773 = vunpack.c.l.b16 %v293
      %v774 = vunpack.c.l.b16 %v294
      %v775 = vunpack.c.l.b16 %v295
      %v776 = vunpack.c.l.b16 %v296
      %v777 = vunpack.c.l.b16 %v297
      %v778 = vunpack.c.l.b16 %v298
      %v779 = vunpack.c.l.b16 %v299
      %v780 = vunpack.c.l.b16 %v300
      %v781 = vunpack.c.l.b16 %v301
      %v782 = vunpack.c.l.b16 %v302
      %v783 = vunpack.c.l.b16 %v303
      %v784 = vunpack.c.l.b16 %v304
      %v785 = vunpack.c.l.b16 %v305
      %v786 = vunpack.c.l.b16 %v306
      %v787 = vunpack.c.l.b16 %v307
      %v788 = vunpack.c.l.b16 %v308
      %v789 = vunpack.c.l.b16 %v309
      %v790 = vunpack.c.l.b16 %v310
      %v791 = vunpack.c.l.b16 %v311
      %v792 = vunpack.c.l.b16 %v312
      %v793 = vunpack.c.l.b16 %v313
      %v794 = vunpack.c.l.b16 %v314
      %v795 = vunpack.c.l.b16 %v315
      %v796 = vunpack.c.l.b16 %v316
      %v797 = vunpack.c.l.b16 %v317
      %v798 = vunpack.c.l.b16 %v318
      %v799 = vunpack.c.l.b16 %v319
      %v800 = vunpack.c.l.b16 %v320
      %v801 = vunpack.c.l.b16 %v321
      %v802 = vunpack.c.l.b16 %v322
      %v803 = vunpack.c.l.b16 %v323
      %v804 = vunpack.c.l.b16 %v324
      %v805 = vunpack.c.l.b16 %v325
      %v806 = vunpack.c.l.b16 %v326
      %v807 = vunpack.c.l.b16 %v327
      %v808 = vunpack.c.l.b16 %v328
      %v809 = vunpack.c.l.b16 %v329
      %v810 = vunpack.c.l.b16 %v330
      %v811 = vunpack.c.l.b16 %v331
      %v812 = vunpack.c.l.b16 %v332
      %v813 = vunpack.c.l.b16 %v333
      %v814 = vunpack.c.l.b16 %v334
      %v815 = vunpack.c.l.b16 %v335
      %v816 = vunpack.c.l.b16 %v336
      %v817 = vunpack.c.l.b16 %v337
      %v818 = vunpack.c.l.b16 %v338
      %v819 = vunpack.c.l.b16 %v339
      %v820 = vunpack.c.l.b16 %v340
      %v821 = vunpack.c.l.b16 %v341
      %v822 = vunpack.c.l.b16 %v342
      %v823 = vunpack.c.l.b16 %v343
      %v824 = vpack.c.b16 %v725, %v724
      %v825 = vpack.c.b16 %v727, %v726
      %v826 = vpack.c.b16 %v729, %v728
      %v827 = vpack.c.b16 %v731, %v730
      %v828 = vpack.c.b16 %v733, %v732
      %v829 = vpack.c.b16 %v735, %v734
      %v830 = vpack.c.b16 %v737, %v736
      %v831 = vpack.c.b16 %v739, %v738
      %v832 = vpack.c.b16 %v741, %v740
      %v833 = vpack.c.b16 %v743, %v742
      %v834 = vpack.c.b16 %v745, %v744
      %v835 = vpack.c.b16 %v747, %v746
      %v836 = vpack.c.b16 %v749, %v748
      %v837 = vpack.c.b16 %v751, %v750
      %v838 = vpack.c.b16 %v753, %v752
      %v839 = vpack.c.b16 %v755, %v754
      %v840 = vpack.c.b16 %v757, %v756
      %v841 = vpack.c.b16 %v759, %v758
      %v842 = vpack.c.b16 %v761, %v760
      %v843 = vpack.c.b16 %v763, %v762
      %v844 = vpack.c.b16 %v765, %v764
      %v845 = vpack.c.b16 %v767, %v766
      %v846 = vpack.c.b16 %v769, %v768
      %v847 = vpack.c.b16 %v771, %v770
      %v848 = vpack.c.b16 %v773, %v772
      %v849 = vpack.c.b16 %v775, %v774
      %v850 = vpack.c.b16 %v777, %v776
      %v851 = vpack.c.b16 %v779, %v778
      %v852 = vpack.c.b16 %v781, %v780
      %v853 = vpack.c.b16 %v783, %v782
      %v854 = vpack.c.b16 %v785, %v784
      %v855 = vpack.c.b16 %v787, %v786
      %v856 = vpack.c.b16 %v789, %v788
      %v857 = vpack.c.b16 %v791, %v790
      %v858 = vpack.c.b16 %v793, %v792
      %v859 = vpack.c.b16 %v795, %v794
      %v860 = vpack.c.b16 %v797, %v796
      %v861 = vpack.c.b16 %v799, %v798
      %v862 = vpack.c.b16 %v801, %v800
      %v863 = vpack.c.b16 %v803, %v802
      %v864 = vpack.c.b16 %v805, %v804
      %v865 = vpack.c.b16 %v807, %v806
      %v866 = vpack.c.b16 %v809, %v808
      %v867 = vpack.c.b16 %v811, %v810
      %v868 = vpack.c.b16 %v813, %v812
      %v869 = vpack.c.b16 %v815, %v814
      %v870 = vpack.c.b16 %v817, %v816
      %v871 = vpack.c.b16 %v819, %v818
      %v872 = vpack.c.b16 %v821, %v820
      %v873 = vpack.c.b16 %v823, %v822
      %vm924 = vcmask 261120
      %v926 = vsel %vm924, %v526, 0
      %v929 = vsel %vm924, %v533, 0
      %v932 = vsel %vm924, %v540, 0
      %v935 = vsel %vm924, %v547, 0
      %v938 = vsel %vm924, %v554, 0
      %v941 = vsel %vm924, %v561, 0
      %v944 = vsel %vm924, %v568, 0
      %v947 = vsel %vm924, %v575, 0
      %949 = vmatprep.subr.bf16.mxu0 0
      %950 = vmatpush1.bf16.msra.mxu0 %v824
      %951 = vmatprep.subr.bf16.mxu0 0
      %952 = vmatpush1.bf16.msra.mxu0 %v825
      %953 = vmatprep.subr.bf16.mxu0 0
      %954 = vmatpush1.bf16.msra.mxu0 %v826
      %955 = vmatprep.subr.bf16.mxu0 0
      %956 = vmatpush1.bf16.msra.mxu0 %v827
      %957 = vmatprep.subr.bf16.mxu0 0
      %958 = vmatpush1.bf16.msra.mxu0 %v828
      %959 = vmatprep.subr.bf16.mxu0 0
      %960 = vmatpush1.bf16.msra.mxu0 %v829
      %961 = vmatprep.subr.bf16.mxu0 0
      %962 = vmatpush1.bf16.msra.mxu0 %v830
      %963 = vmatprep.subr.bf16.mxu0 0
      %964 = vmatpush1.bf16.msra.mxu0 %v831
      %965 = vmatprep.subr.bf16.mxu0 0
      %966 = vmatpush1.bf16.msra.mxu0 %v832
      %967 = vmatprep.subr.bf16.mxu0 0
      %968 = vmatpush1.bf16.msra.mxu0 %v833
      %969 = vmatprep.subr.bf16.mxu0 0
      %970 = vmatpush1.bf16.msra.mxu0 %v834
      %971 = vmatprep.subr.bf16.mxu0 0
      %972 = vmatpush1.bf16.msra.mxu0 %v835
      %973 = vmatprep.subr.bf16.mxu0 0
      %974 = vmatpush1.bf16.msra.mxu0 %v836
      %975 = vmatprep.subr.bf16.mxu0 0
      %976 = vmatpush1.bf16.msra.mxu0 %v837
      %977 = vmatprep.subr.bf16.mxu0 0
      %978 = vmatpush1.bf16.msra.mxu0 %v838
      %979 = vmatprep.subr.bf16.mxu0 0
      %980 = vmatpush1.bf16.msra.mxu0 %v839
      %981 = vmatprep.mubr.bf16.mxu0 %v521
      %982 = vmatmul.mubr.bf16.gmra.mrb[0].mxu0 %v520
      %v983 = vpop.f32.mrb[0].mxu0
      %v984 = vadd.f32 0.0, %v983
      %v985 = vpop.f32.mrb[0].mxu0
      %v986 = vpop.f32.mrb[0].mxu0
      %v987 = vadd.f32 0.0, %v986
      %v988 = vpop.f32.mrb[0].mxu0
      %989 = vmatprep.mubr.bf16.mxu0 %v528
      %990 = vmatmul.mubr.bf16.gmra.mrb[0].mxu0 %v527
      %v991 = vpop.f32.mrb[0].mxu0
      %v992 = vadd.f32 0.0, %v991
      %v993 = vpop.f32.mrb[0].mxu0
      %v994 = vpop.f32.mrb[0].mxu0
      %v995 = vadd.f32 0.0, %v994
      %v996 = vpop.f32.mrb[0].mxu0
      %997 = vmatprep.mubr.bf16.mxu0 %v535
      %998 = vmatmul.mubr.bf16.gmra.mrb[0].mxu0 %v534
      %v999 = vpop.f32.mrb[0].mxu0
      %v1000 = vadd.f32 0.0, %v999
      %v1001 = vpop.f32.mrb[0].mxu0
      %v1002 = vpop.f32.mrb[0].mxu0
      %v1003 = vadd.f32 0.0, %v1002
      %v1004 = vpop.f32.mrb[0].mxu0
      %1005 = vmatprep.mubr.bf16.mxu0 %v542
      %1006 = vmatmul.mubr.bf16.gmra.mrb[0].mxu0 %v541
      %v1007 = vpop.f32.mrb[0].mxu0
      %v1008 = vadd.f32 0.0, %v1007
      %v1009 = vpop.f32.mrb[0].mxu0
      %v1010 = vpop.f32.mrb[0].mxu0
      %v1011 = vadd.f32 0.0, %v1010
      %v1012 = vpop.f32.mrb[0].mxu0
      %1013 = vmatprep.mubr.bf16.mxu0 %v549
      %1014 = vmatmul.mubr.bf16.gmra.mrb[0].mxu0 %v548
      %v1015 = vpop.f32.mrb[0].mxu0
      %v1016 = vadd.f32 0.0, %v1015
      %v1017 = vpop.f32.mrb[0].mxu0
      %v1018 = vpop.f32.mrb[0].mxu0
      %v1019 = vadd.f32 0.0, %v1018
      %v1020 = vpop.f32.mrb[0].mxu0
      %1021 = vmatprep.mubr.bf16.mxu0 %v556
      %1022 = vmatmul.mubr.bf16.gmra.mrb[0].mxu0 %v555
      %v1023 = vpop.f32.mrb[0].mxu0
      %v1024 = vadd.f32 0.0, %v1023
      %v1025 = vpop.f32.mrb[0].mxu0
      %v1026 = vpop.f32.mrb[0].mxu0
      %v1027 = vadd.f32 0.0, %v1026
      %v1028 = vpop.f32.mrb[0].mxu0
      %1029 = vmatprep.mubr.bf16.mxu0 %v563
      %1030 = vmatmul.mubr.bf16.gmra.mrb[0].mxu0 %v562
      %v1031 = vpop.f32.mrb[0].mxu0
      %v1032 = vadd.f32 0.0, %v1031
      %v1033 = vpop.f32.mrb[0].mxu0
      %v1034 = vpop.f32.mrb[0].mxu0
      %v1035 = vadd.f32 0.0, %v1034
      %v1036 = vpop.f32.mrb[0].mxu0
      %1037 = vmatprep.mubr.bf16.mxu0 %v570
      %1038 = vmatmul.mubr.bf16.gmra.mrb[0].mxu0 %v569
      %v1039 = vpop.f32.mrb[0].mxu0
      %v1040 = vadd.f32 0.0, %v1039
      %v1041 = vpop.f32.mrb[0].mxu0
      %v1042 = vpop.f32.mrb[0].mxu0
      %v1043 = vadd.f32 0.0, %v1042
      %v1044 = vpop.f32.mrb[0].mxu0
      %1045 = vdwg.mxu0
      %1046 = vmatprep.subr.bf16.mxu0 0
      %1047 = vmatpush1.bf16.msra.mxu0 %v840
      %1048 = vmatprep.subr.bf16.mxu0 0
      %1049 = vmatpush1.bf16.msra.mxu0 %v841
      %1050 = vmatprep.subr.bf16.mxu0 0
      %1051 = vmatpush1.bf16.msra.mxu0 %v842
      %1052 = vmatprep.subr.bf16.mxu0 0
      %1053 = vmatpush1.bf16.msra.mxu0 %v843
      %1054 = vmatprep.subr.bf16.mxu0 0
      %1055 = vmatpush1.bf16.msra.mxu0 %v844
      %1056 = vmatprep.subr.bf16.mxu0 0
      %1057 = vmatpush1.bf16.msra.mxu0 %v845
      %1058 = vmatprep.subr.bf16.mxu0 0
      %1059 = vmatpush1.bf16.msra.mxu0 %v846
      %1060 = vmatprep.subr.bf16.mxu0 0
      %1061 = vmatpush1.bf16.msra.mxu0 %v847
      %1062 = vmatprep.subr.bf16.mxu0 0
      %1063 = vmatpush1.bf16.msra.mxu0 %v848
      %1064 = vmatprep.subr.bf16.mxu0 0
      %1065 = vmatpush1.bf16.msra.mxu0 %v849
      %1066 = vmatprep.subr.bf16.mxu0 0
      %1067 = vmatpush1.bf16.msra.mxu0 %v850
      %1068 = vmatprep.subr.bf16.mxu0 0
      %1069 = vmatpush1.bf16.msra.mxu0 %v851
      %1070 = vmatprep.subr.bf16.mxu0 0
      %1071 = vmatpush1.bf16.msra.mxu0 %v852
      %1072 = vmatprep.subr.bf16.mxu0 0
      %1073 = vmatpush1.bf16.msra.mxu0 %v853
      %1074 = vmatprep.subr.bf16.mxu0 0
      %1075 = vmatpush1.bf16.msra.mxu0 %v854
      %1076 = vmatprep.subr.bf16.mxu0 0
      %1077 = vmatpush1.bf16.msra.mxu0 %v855
      %1078 = vmatprep.mubr.bf16.mxu0 %v523
      %1079 = vmatmul.mubr.bf16.gmra.mrb[0].mxu0 %v522
      %v1080 = vpop.f32.mrb[0].mxu0
      %v1081 = vadd.f32 %v984, %v1080
      %v1082 = vpop.f32.mrb[0].mxu0
      %v1083 = vpop.f32.mrb[0].mxu0
      %v1084 = vadd.f32 %v987, %v1083
      %v1085 = vpop.f32.mrb[0].mxu0
      %1086 = vmatprep.mubr.bf16.mxu0 %v530
      %1087 = vmatmul.mubr.bf16.gmra.mrb[0].mxu0 %v529
      %v1088 = vpop.f32.mrb[0].mxu0
      %v1089 = vadd.f32 %v992, %v1088
      %v1090 = vpop.f32.mrb[0].mxu0
      %v1091 = vpop.f32.mrb[0].mxu0
      %v1092 = vadd.f32 %v995, %v1091
      %v1093 = vpop.f32.mrb[0].mxu0
      %1094 = vmatprep.mubr.bf16.mxu0 %v537
      %1095 = vmatmul.mubr.bf16.gmra.mrb[0].mxu0 %v536
      %v1096 = vpop.f32.mrb[0].mxu0
      %v1097 = vadd.f32 %v1000, %v1096
      %v1098 = vpop.f32.mrb[0].mxu0
      %v1099 = vpop.f32.mrb[0].mxu0
      %v1100 = vadd.f32 %v1003, %v1099
      %v1101 = vpop.f32.mrb[0].mxu0
      %1102 = vmatprep.mubr.bf16.mxu0 %v544
      %1103 = vmatmul.mubr.bf16.gmra.mrb[0].mxu0 %v543
      %v1104 = vpop.f32.mrb[0].mxu0
      %v1105 = vadd.f32 %v1008, %v1104
      %v1106 = vpop.f32.mrb[0].mxu0
      %v1107 = vpop.f32.mrb[0].mxu0
      %v1108 = vadd.f32 %v1011, %v1107
      %v1109 = vpop.f32.mrb[0].mxu0
      %1110 = vmatprep.mubr.bf16.mxu0 %v551
      %1111 = vmatmul.mubr.bf16.gmra.mrb[0].mxu0 %v550
      %v1112 = vpop.f32.mrb[0].mxu0
      %v1113 = vadd.f32 %v1016, %v1112
      %v1114 = vpop.f32.mrb[0].mxu0
      %v1115 = vpop.f32.mrb[0].mxu0
      %v1116 = vadd.f32 %v1019, %v1115
      %v1117 = vpop.f32.mrb[0].mxu0
      %1118 = vmatprep.mubr.bf16.mxu0 %v558
      %1119 = vmatmul.mubr.bf16.gmra.mrb[0].mxu0 %v557
      %v1120 = vpop.f32.mrb[0].mxu0
      %v1121 = vadd.f32 %v1024, %v1120
      %v1122 = vpop.f32.mrb[0].mxu0
      %v1123 = vpop.f32.mrb[0].mxu0
      %v1124 = vadd.f32 %v1027, %v1123
      %v1125 = vpop.f32.mrb[0].mxu0
      %1126 = vmatprep.mubr.bf16.mxu0 %v565
      %1127 = vmatmul.mubr.bf16.gmra.mrb[0].mxu0 %v564
      %v1128 = vpop.f32.mrb[0].mxu0
      %v1129 = vadd.f32 %v1032, %v1128
      %v1130 = vpop.f32.mrb[0].mxu0
      %v1131 = vpop.f32.mrb[0].mxu0
      %v1132 = vadd.f32 %v1035, %v1131
      %v1133 = vpop.f32.mrb[0].mxu0
      %1134 = vmatprep.mubr.bf16.mxu0 %v572
      %1135 = vmatmul.mubr.bf16.gmra.mrb[0].mxu0 %v571
      %v1136 = vpop.f32.mrb[0].mxu0
      %v1137 = vadd.f32 %v1040, %v1136
      %v1138 = vpop.f32.mrb[0].mxu0
      %v1139 = vpop.f32.mrb[0].mxu0
      %v1140 = vadd.f32 %v1043, %v1139
      %v1141 = vpop.f32.mrb[0].mxu0
      %1142 = vdwg.mxu0
      %1143 = vmatprep.subr.bf16.mxu0 0
      %1144 = vmatpush1.bf16.msra.mxu0 %v856
      %1145 = vmatprep.subr.bf16.mxu0 0
      %1146 = vmatpush1.bf16.msra.mxu0 %v857
      %1147 = vmatprep.subr.bf16.mxu0 0
      %1148 = vmatpush1.bf16.msra.mxu0 %v858
      %1149 = vmatprep.subr.bf16.mxu0 0
      %1150 = vmatpush1.bf16.msra.mxu0 %v859
      %1151 = vmatprep.subr.bf16.mxu0 0
      %1152 = vmatpush1.bf16.msra.mxu0 %v860
      %1153 = vmatprep.subr.bf16.mxu0 0
      %1154 = vmatpush1.bf16.msra.mxu0 %v861
      %1155 = vmatprep.subr.bf16.mxu0 0
      %1156 = vmatpush1.bf16.msra.mxu0 %v862
      %1157 = vmatprep.subr.bf16.mxu0 0
      %1158 = vmatpush1.bf16.msra.mxu0 %v863
      %1159 = vmatprep.subr.bf16.mxu0 0
      %1160 = vmatpush1.bf16.msra.mxu0 %v864
      %1161 = vmatprep.subr.bf16.mxu0 0
      %1162 = vmatpush1.bf16.msra.mxu0 %v865
      %1163 = vmatprep.subr.bf16.mxu0 0
      %1164 = vmatpush1.bf16.msra.mxu0 %v866
      %1165 = vmatprep.subr.bf16.mxu0 0
      %1166 = vmatpush1.bf16.msra.mxu0 %v867
      %1167 = vmatprep.subr.bf16.mxu0 0
      %1168 = vmatpush1.bf16.msra.mxu0 %v868
      %1169 = vmatprep.subr.bf16.mxu0 0
      %1170 = vmatpush1.bf16.msra.mxu0 %v869
      %1171 = vmatprep.subr.bf16.mxu0 0
      %1172 = vmatpush1.bf16.msra.mxu0 %v870
      %1173 = vmatprep.subr.bf16.mxu0 0
      %1174 = vmatpush1.bf16.msra.mxu0 %v871
      %1175 = vmatprep.mubr.bf16.mxu0 %v525
      %1176 = vmatmul.mubr.bf16.gmra.mrb[0].mxu0 %v524
      %v1177 = vpop.f32.mrb[0].mxu0
      %v1178 = vadd.f32 %v1081, %v1177
      %v1179 = vpop.f32.mrb[0].mxu0
      %v1180 = vpop.f32.mrb[0].mxu0
      %v1181 = vadd.f32 %v1084, %v1180
      %v1182 = vpop.f32.mrb[0].mxu0
      %1183 = vmatprep.mubr.bf16.mxu0 %v532
      %1184 = vmatmul.mubr.bf16.gmra.mrb[0].mxu0 %v531
      %v1185 = vpop.f32.mrb[0].mxu0
      %v1186 = vadd.f32 %v1089, %v1185
      %v1187 = vpop.f32.mrb[0].mxu0
      %v1188 = vpop.f32.mrb[0].mxu0
      %v1189 = vadd.f32 %v1092, %v1188
      %v1190 = vpop.f32.mrb[0].mxu0
      %1191 = vmatprep.mubr.bf16.mxu0 %v539
      %1192 = vmatmul.mubr.bf16.gmra.mrb[0].mxu0 %v538
      %v1193 = vpop.f32.mrb[0].mxu0
      %v1194 = vadd.f32 %v1097, %v1193
      %v1195 = vpop.f32.mrb[0].mxu0
      %v1196 = vpop.f32.mrb[0].mxu0
      %v1197 = vadd.f32 %v1100, %v1196
      %v1198 = vpop.f32.mrb[0].mxu0
      %1199 = vmatprep.mubr.bf16.mxu0 %v546
      %1200 = vmatmul.mubr.bf16.gmra.mrb[0].mxu0 %v545
      %v1201 = vpop.f32.mrb[0].mxu0
      %v1202 = vadd.f32 %v1105, %v1201
      %v1203 = vpop.f32.mrb[0].mxu0
      %v1204 = vpop.f32.mrb[0].mxu0
      %v1205 = vadd.f32 %v1108, %v1204
      %v1206 = vpop.f32.mrb[0].mxu0
      %1207 = vmatprep.mubr.bf16.mxu0 %v553
      %1208 = vmatmul.mubr.bf16.gmra.mrb[0].mxu0 %v552
      %v1209 = vpop.f32.mrb[0].mxu0
      %v1210 = vadd.f32 %v1113, %v1209
      %v1211 = vpop.f32.mrb[0].mxu0
      %v1212 = vpop.f32.mrb[0].mxu0
      %v1213 = vadd.f32 %v1116, %v1212
      %v1214 = vpop.f32.mrb[0].mxu0
      %1215 = vmatprep.mubr.bf16.mxu0 %v560
      %1216 = vmatmul.mubr.bf16.gmra.mrb[0].mxu0 %v559
      %v1217 = vpop.f32.mrb[0].mxu0
      %v1218 = vadd.f32 %v1121, %v1217
      %v1219 = vpop.f32.mrb[0].mxu0
      %v1220 = vpop.f32.mrb[0].mxu0
      %v1221 = vadd.f32 %v1124, %v1220
      %v1222 = vpop.f32.mrb[0].mxu0
      %1223 = vmatprep.mubr.bf16.mxu0 %v567
      %1224 = vmatmul.mubr.bf16.gmra.mrb[0].mxu0 %v566
      %v1225 = vpop.f32.mrb[0].mxu0
      %v1226 = vadd.f32 %v1129, %v1225
      %v1227 = vpop.f32.mrb[0].mxu0
      %v1228 = vpop.f32.mrb[0].mxu0
      %v1229 = vadd.f32 %v1132, %v1228
      %v1230 = vpop.f32.mrb[0].mxu0
      %1231 = vmatprep.mubr.bf16.mxu0 %v574
      %1232 = vmatmul.mubr.bf16.gmra.mrb[0].mxu0 %v573
      %v1233 = vpop.f32.mrb[0].mxu0
      %v1234 = vadd.f32 %v1137, %v1233
      %v1235 = vpop.f32.mrb[0].mxu0
      %v1236 = vpop.f32.mrb[0].mxu0
      %v1237 = vadd.f32 %v1140, %v1236
      %v1238 = vpop.f32.mrb[0].mxu0
      %1239 = vdwg.mxu0
      %1240 = vmatprep.subr.bf16.mxu0 0
      %1241 = vmatpush1.bf16.msra.mxu0 %v872
      %1242 = vmatprep.subr.bf16.mxu0 0
      %1243 = vmatpush1.bf16.msra.mxu0 %v873
      %1244 = vmatprep.subr.bf16.mxu0 0
      %1245 = vmatpush1.bf16.msra.mxu0 0
      %1246 = vmatprep.subr.bf16.mxu0 0
      %1247 = vmatpush1.bf16.msra.mxu0 0
      %1248 = vmatprep.subr.bf16.mxu0 0
      %1249 = vmatpush1.bf16.msra.mxu0 0
      %1250 = vmatprep.subr.bf16.mxu0 0
      %1251 = vmatpush1.bf16.msra.mxu0 0
      %1252 = vmatprep.subr.bf16.mxu0 0
      %1253 = vmatpush1.bf16.msra.mxu0 0
      %1254 = vmatprep.subr.bf16.mxu0 0
      %1255 = vmatpush1.bf16.msra.mxu0 0
      %1256 = vmatprep.subr.bf16.mxu0 0
      %1257 = vmatpush1.bf16.msra.mxu0 0
      %1258 = vmatprep.subr.bf16.mxu0 0
      %1259 = vmatpush1.bf16.msra.mxu0 0
      %1260 = vmatprep.subr.bf16.mxu0 0
      %1261 = vmatpush1.bf16.msra.mxu0 0
      %1262 = vmatprep.subr.bf16.mxu0 0
      %1263 = vmatpush1.bf16.msra.mxu0 0
      %1264 = vmatprep.subr.bf16.mxu0 0
      %1265 = vmatpush1.bf16.msra.mxu0 0
      %1266 = vmatprep.subr.bf16.mxu0 0
      %1267 = vmatpush1.bf16.msra.mxu0 0
      %1268 = vmatprep.subr.bf16.mxu0 0
      %1269 = vmatpush1.bf16.msra.mxu0 0
      %1270 = vmatprep.subr.bf16.mxu0 0
      %1271 = vmatpush1.bf16.msra.mxu0 0
      %1272 = vmatprep.mubr.bf16.mxu0 0
      %1273 = vmatmul.mubr.bf16.gmra.mrb[0].mxu0 %v926
      %v1274 = vpop.f32.mrb[0].mxu0
      %v1275 = vadd.f32 %v1178, %v1274
      %v1276 = vpop.f32.mrb[0].mxu0
      %v1277 = vpop.f32.mrb[0].mxu0
      %v1278 = vadd.f32 %v1181, %v1277
      %v1279 = vpop.f32.mrb[0].mxu0
      %1280 = vmatprep.mubr.bf16.mxu0 0
      %1281 = vmatmul.mubr.bf16.gmra.mrb[0].mxu0 %v929
      %v1282 = vpop.f32.mrb[0].mxu0
      %v1283 = vadd.f32 %v1186, %v1282
      %v1284 = vpop.f32.mrb[0].mxu0
      %v1285 = vpop.f32.mrb[0].mxu0
      %v1286 = vadd.f32 %v1189, %v1285
      %v1287 = vpop.f32.mrb[0].mxu0
      %1288 = vmatprep.mubr.bf16.mxu0 0
      %1289 = vmatmul.mubr.bf16.gmra.mrb[0].mxu0 %v932
      %v1290 = vpop.f32.mrb[0].mxu0
      %v1291 = vadd.f32 %v1194, %v1290
      %v1292 = vpop.f32.mrb[0].mxu0
      %v1293 = vpop.f32.mrb[0].mxu0
      %v1294 = vadd.f32 %v1197, %v1293
      %v1295 = vpop.f32.mrb[0].mxu0
      %1296 = vmatprep.mubr.bf16.mxu0 0
      %1297 = vmatmul.mubr.bf16.gmra.mrb[0].mxu0 %v935
      %v1298 = vpop.f32.mrb[0].mxu0
      %v1299 = vadd.f32 %v1202, %v1298
      %v1300 = vpop.f32.mrb[0].mxu0
      %v1301 = vpop.f32.mrb[0].mxu0
      %v1302 = vadd.f32 %v1205, %v1301
      %v1303 = vpop.f32.mrb[0].mxu0
      %1304 = vmatprep.mubr.bf16.mxu0 0
      %1305 = vmatmul.mubr.bf16.gmra.mrb[0].mxu0 %v938
      %v1306 = vpop.f32.mrb[0].mxu0
      %v1307 = vadd.f32 %v1210, %v1306
      %v1308 = vpop.f32.mrb[0].mxu0
      %v1309 = vpop.f32.mrb[0].mxu0
      %v1310 = vadd.f32 %v1213, %v1309
      %v1311 = vpop.f32.mrb[0].mxu0
      %1312 = vmatprep.mubr.bf16.mxu0 0
      %1313 = vmatmul.mubr.bf16.gmra.mrb[0].mxu0 %v941
      %v1314 = vpop.f32.mrb[0].mxu0
      %v1315 = vadd.f32 %v1218, %v1314
      %v1316 = vpop.f32.mrb[0].mxu0
      %v1317 = vpop.f32.mrb[0].mxu0
      %v1318 = vadd.f32 %v1221, %v1317
      %v1319 = vpop.f32.mrb[0].mxu0
      %1320 = vmatprep.mubr.bf16.mxu0 0
      %1321 = vmatmul.mubr.bf16.gmra.mrb[0].mxu0 %v944
      %v1322 = vpop.f32.mrb[0].mxu0
      %v1323 = vadd.f32 %v1226, %v1322
      %v1324 = vpop.f32.mrb[0].mxu0
      %v1325 = vpop.f32.mrb[0].mxu0
      %v1326 = vadd.f32 %v1229, %v1325
      %v1327 = vpop.f32.mrb[0].mxu0
      %1328 = vmatprep.mubr.bf16.mxu0 0
      %1329 = vmatmul.mubr.bf16.gmra.mrb[0].mxu0 %v947
      %v1330 = vpop.f32.mrb[0].mxu0
      %v1331 = vadd.f32 %v1234, %v1330
      %v1332 = vpop.f32.mrb[0].mxu0
      %v1333 = vpop.f32.mrb[0].mxu0
      %v1334 = vadd.f32 %v1237, %v1333
      %v1335 = vpop.f32.mrb[0].mxu0
      %1336 = vdwg.mxu0
      %vm1337 = vcmask 523264
      %v1338 = vsel %vm1337, %v1275, -inf
      %v1339 = vsel %vm1337, %v1283, -inf
      %v1340 = vmax.f32 %v1338, %v1339
      %v1341 = vsel %vm1337, %v1291, -inf
      %v1342 = vmax.f32 %v1340, %v1341
      %v1343 = vsel %vm1337, %v1299, -inf
      %v1344 = vmax.f32 %v1342, %v1343
      %v1345 = vsel %vm1337, %v1278, -inf
      %v1346 = vsel %vm1337, %v1286, -inf
      %v1347 = vmax.f32 %v1345, %v1346
      %v1348 = vsel %vm1337, %v1294, -inf
      %v1349 = vmax.f32 %v1347, %v1348
      %v1350 = vsel %vm1337, %v1302, -inf
      %v1351 = vmax.f32 %v1349, %v1350
      %v1352 = vsel %vm1337, %v1307, -inf
      %v1353 = vsel %vm1337, %v1315, -inf
      %v1354 = vmax.f32 %v1352, %v1353
      %v1355 = vsel %vm1337, %v1323, -inf
      %v1356 = vmax.f32 %v1354, %v1355
      %v1357 = vsel %vm1337, %v1331, -inf
      %v1358 = vmax.f32 %v1356, %v1357
      %v1359 = vsel %vm1337, %v1310, -inf
      %v1360 = vsel %vm1337, %v1318, -inf
      %v1361 = vmax.f32 %v1359, %v1360
      %v1362 = vsel %vm1337, %v1326, -inf
      %v1363 = vmax.f32 %v1361, %v1362
      %v1364 = vsel %vm1337, %v1334, -inf
      %v1365 = vmax.f32 %v1363, %v1364
      %v1366 = vld [vmem:[%s2] sm:$0x1]
      %v1368 = vlaneseq
      %v1369 = vshrl.u32 %v1368, 7
      %v1370 = vsub.s32 0, %v1369
      %v1371 = vrot.slane %v1366, %v1370
      %v1373 = vadd.f32 %v1344, %v1371
      %v1374 = vadd.f32 %v1351, %v1371
      %v1375 = vadd.f32 %v1358, %v1371
      %v1376 = vadd.f32 %v1365, %v1371
      %vm1377 = vcmp.ge.f32.partialorder %v1373, 0.0
      %vm1378 = vcmp.ge.f32.partialorder %v1374, 0.0
      %vm1379 = vcmp.ge.f32.partialorder %v1375, 0.0
      %vm1380 = vcmp.ge.f32.partialorder %v1376, 0.0
      %v1381 = vmul.f32 %v1373, 0.2
      %v1382 = vmul.f32 %v1374, 0.2
      %v1383 = vmul.f32 %v1375, 0.2
      %v1384 = vmul.f32 %v1376, 0.2
      %v1385 = vsel %vm1377, %v1373, %v1381
      %v1386 = vsel %vm1378, %v1374, %v1382
      %v1387 = vsel %vm1379, %v1375, %v1383
      %v1388 = vsel %vm1380, %v1376, %v1384
      %v1389 = vpack.c.bf16 %v1386, %v1385
      %v1390 = vpack.c.bf16 %v1388, %v1387
      %v1393 = vunpack.c.l.b16 %v1389
      %v1394 = vunpack.c.h.b16 %v1389
      %v1395 = vunpack.c.l.b16 %v1390
      %v1396 = vunpack.c.h.b16 %v1390
      %v1397 = vpack.c.b16 %v1393, %v1393
      %v1398 = vpack.c.b16 %v1394, %v1394
      %v1399 = vpack.c.b16 %v1395, %v1395
      %v1400 = vpack.c.b16 %v1396, %v1396
      %vm1405 = vcmask 519168
      %1406 = vst.msk [vmem:[%s177] sm:$0xf] %vm1405, %v1397
      %1407 = vst.msk [vmem:[%s177 + $0x4] sm:$0xf] %vm1405, %v1398
      %1408 = vst.msk [vmem:[%s177 + $0x8] sm:$0xf] %vm1405, %v1399
      %1409 = vst.msk [vmem:[%s177 + $0xc] sm:$0xf] %vm1405, %v1400
      %s1410 = smul.u32 2, %s14
      %p1411 = scmp.lt.s32.totalorder %s1410, 3
      %s1412 = scalar_select %p1411, %s1410, 3
      %s1413 = smul.addr %s1412, 2
      %s1414 = smul.addr %s1413, 4
      %s1415 = scalar_lea.vmem %s3, %s1414
      // Predicated region
      $region33: #{discriminator_forward.4} parent=31 // pred_check
        %p1416 = pneg %p100
      $region34: #{discriminator_forward.4} parent=31 // pred_check_branch
        %1418 = sbr.rel (%p1416) target = $region36
      $region35: #{discriminator_forward.4} parent=31 // pred_region
        %s1419 = smul.u32 2, %s14
      $region36: #{discriminator_forward.4} parent=31 // pred_fallthru
        _
    $region32: #{discriminator_forward.4} parent=5 // pred_fallthru
      _
    %p1420 = scmp.le.s32.totalorder 2, %s9
    // Predicated region
    $region37: #{discriminator_forward.4} parent=5 // pred_check
      %p1421 = pneg %p1420
    $region38: #{discriminator_forward.4} parent=5 // pred_check_branch
      %1423 = sbr.rel (%p1421) target = $region40
    $region39: #{discriminator_forward.4} parent=5 // pred_region
      %s1424 = ssub.s32 %s9, 2
      // Predicated region
      $region41: #{discriminator_forward.4} parent=39 // pred_check
        %p1425 = pneg %p106
      $region42: #{discriminator_forward.4} parent=39 // pred_check_branch
        %1427 = sbr.rel (%p1425) target = $region44
      $region43: #{discriminator_forward.4} parent=39 // pred_region
        %s1428 = smul.u32 2, %s15
        %p1429 = scmp.lt.s32.totalorder %s1428, 3
        %s1430 = scalar_select %p1429, %s1428, 3
        %s1431 = smul.addr %s1430, 2
        %s1432 = smul.addr %s1431, 4
        %s1433 = scalar_lea.vmem %s3, %s1432
      $region44: #{discriminator_forward.4} parent=39 // pred_fallthru
        _
    $region40: #{discriminator_forward.4} parent=5 // pred_fallthru
      _
  $region6: #{discriminator_forward.4} parent=0 // loop_footer
    %s13 = sadd.s32 1, %s9
  $region7: #{discriminator_forward.4} parent=0 // loop_footer_branch
    %8 = sbr.rel target = $region3
  $region8: #{discriminator_forward.4} parent=0 // loop_exit
    _

// kernel: discriminator_forward.5
$region0: #{discriminator_forward.5}
  #allocation0 [shape = 'u32[]', space=smem, size = 0x4, offset = 0x4, fixed_abs, tag = 'smem constant byte address 0x4 - core index']
  #allocation1 [shape = 'u32[144,128]{1,0:T(1,128)}', space=vmem, size = 0x12000, scoped, tag = 'internal scratch']
  %s0 = inlined_call_operand.vmem [shape: bf16[8,1024], index: 0, kind: input, shape index: {}]
  %s1 = inlined_call_operand.vmem [shape: bf16[1024,1024], index: 1, kind: input, shape index: {}]
  %s2 = inlined_call_operand.vmem [shape: f32[1,1024], index: 2, kind: input, shape index: {}]
  %s3 = inlined_call_operand.vmem [shape: bf16[1024,2], index: 3, kind: input, shape index: {}]
  %s4 = inlined_call_operand.vmem [shape: f32[1,2], index: 4, kind: input, shape index: {}]
  %s5 = inlined_call_operand.vmem [shape: f32[8,2], index: 5, kind: output, shape index: {}]
  %s6 = sld [smem:[#allocation0]]
  $region30: #{discriminator_forward.5} parent=0
    _
  %s8 = ssub.s32 1, %s6
  %s9 = scalar_select 0, %s8, %s6
  // Predicated region
  $region2: #{discriminator_forward.5} parent=0 // pred_check
    _
  $region3: #{discriminator_forward.5} parent=0 // pred_check_branch
    %11 = sbr.rel (0) target = $region5
  $region4: #{discriminator_forward.5} parent=0 // pred_region
    _
  $region5: #{discriminator_forward.5} parent=0 // pred_fallthru
    _
  // Predicated region
  $region6: #{discriminator_forward.5} parent=0 // pred_check
    _
  $region7: #{discriminator_forward.5} parent=0 // pred_check_branch
    %13 = sbr.rel (0) target = $region9
  $region8: #{discriminator_forward.5} parent=0 // pred_region
    _
  $region9: #{discriminator_forward.5} parent=0 // pred_fallthru
    _
  // Predicated region
  $region10: #{discriminator_forward.5} parent=0 // pred_check
    _
  $region11: #{discriminator_forward.5} parent=0 // pred_check_branch
    %15 = sbr.rel (0) target = $region13
  $region12: #{discriminator_forward.5} parent=0 // pred_region
    _
  $region13: #{discriminator_forward.5} parent=0 // pred_fallthru
    _
  // Predicated region
  $region14: #{discriminator_forward.5} parent=0 // pred_check
    _
  $region15: #{discriminator_forward.5} parent=0 // pred_check_branch
    %17 = sbr.rel (0) target = $region17
  $region16: #{discriminator_forward.5} parent=0 // pred_region
    _
  $region17: #{discriminator_forward.5} parent=0 // pred_fallthru
    _
  // Predicated region
  $region18: #{discriminator_forward.5} parent=0 // pred_check
    _
  $region19: #{discriminator_forward.5} parent=0 // pred_check_branch
    %19 = sbr.rel (0) target = $region21
  $region20: #{discriminator_forward.5} parent=0 // pred_region
    _
  $region21: #{discriminator_forward.5} parent=0 // pred_fallthru
    _
  %v21 = vld [vmem:[%s0] sm:$0xff]
  %v22 = vld [vmem:[%s0 + $0x8] sm:$0xff]
  %v23 = vld [vmem:[%s0 + $0x10] sm:$0xff]
  %v24 = vld [vmem:[%s0 + $0x18] sm:$0xff]
  %v25 = vld [vmem:[%s1] sm:$0xff]
  %v26 = vld [vmem:[%s1 + $0x8] sm:$0xff]
  %v27 = vld [vmem:[%s1 + $0x10] sm:$0xff]
  %v28 = vld [vmem:[%s1 + $0x18] sm:$0xff]
  %v29 = vld [vmem:[%s1 + $0x20] sm:$0xff]
  %v30 = vld [vmem:[%s1 + $0x28] sm:$0xff]
  %v31 = vld [vmem:[%s1 + $0x30] sm:$0xff]
  %v32 = vld [vmem:[%s1 + $0x38] sm:$0xff]
  %v33 = vld [vmem:[%s1 + $0x40] sm:$0xff]
  %v34 = vld [vmem:[%s1 + $0x48] sm:$0xff]
  %v35 = vld [vmem:[%s1 + $0x50] sm:$0xff]
  %v36 = vld [vmem:[%s1 + $0x58] sm:$0xff]
  %v37 = vld [vmem:[%s1 + $0x60] sm:$0xff]
  %v38 = vld [vmem:[%s1 + $0x68] sm:$0xff]
  %v39 = vld [vmem:[%s1 + $0x70] sm:$0xff]
  %v40 = vld [vmem:[%s1 + $0x78] sm:$0xff]
  %v41 = vld [vmem:[%s1 + $0x80] sm:$0xff]
  %v42 = vld [vmem:[%s1 + $0x88] sm:$0xff]
  %v43 = vld [vmem:[%s1 + $0x90] sm:$0xff]
  %v44 = vld [vmem:[%s1 + $0x98] sm:$0xff]
  %v45 = vld [vmem:[%s1 + $0xa0] sm:$0xff]
  %v46 = vld [vmem:[%s1 + $0xa8] sm:$0xff]
  %v47 = vld [vmem:[%s1 + $0xb0] sm:$0xff]
  %v48 = vld [vmem:[%s1 + $0xb8] sm:$0xff]
  %v49 = vld [vmem:[%s1 + $0xc0] sm:$0xff]
  %v50 = vld [vmem:[%s1 + $0xc8] sm:$0xff]
  %v51 = vld [vmem:[%s1 + $0xd0] sm:$0xff]
  %v52 = vld [vmem:[%s1 + $0xd8] sm:$0xff]
  %v53 = vld [vmem:[%s1 + $0xe0] sm:$0xff]
  %v54 = vld [vmem:[%s1 + $0xe8] sm:$0xff]
  %v55 = vld [vmem:[%s1 + $0xf0] sm:$0xff]
  %v56 = vld [vmem:[%s1 + $0xf8] sm:$0xff]
  %v57 = vld [vmem:[%s1 + $0x100] sm:$0xff]
  %v58 = vld [vmem:[%s1 + $0x108] sm:$0xff]
  %v59 = vld [vmem:[%s1 + $0x110] sm:$0xff]
  %v60 = vld [vmem:[%s1 + $0x118] sm:$0xff]
  %v61 = vld [vmem:[%s1 + $0x120] sm:$0xff]
  %v62 = vld [vmem:[%s1 + $0x128] sm:$0xff]
  %v63 = vld [vmem:[%s1 + $0x130] sm:$0xff]
  %v64 = vld [vmem:[%s1 + $0x138] sm:$0xff]
  %v65 = vld [vmem:[%s1 + $0x140] sm:$0xff]
  %v66 = vld [vmem:[%s1 + $0x148] sm:$0xff]
  %v67 = vld [vmem:[%s1 + $0x150] sm:$0xff]
  %v68 = vld [vmem:[%s1 + $0x158] sm:$0xff]
  %v69 = vld [vmem:[%s1 + $0x160] sm:$0xff]
  %v70 = vld [vmem:[%s1 + $0x168] sm:$0xff]
  %v71 = vld [vmem:[%s1 + $0x170] sm:$0xff]
  %v72 = vld [vmem:[%s1 + $0x178] sm:$0xff]
  %v73 = vld [vmem:[%s1 + $0x180] sm:$0xff]
  %v74 = vld [vmem:[%s1 + $0x188] sm:$0xff]
  %v75 = vld [vmem:[%s1 + $0x190] sm:$0xff]
  %v76 = vld [vmem:[%s1 + $0x198] sm:$0xff]
  %v77 = vld [vmem:[%s1 + $0x1a0] sm:$0xff]
  %v78 = vld [vmem:[%s1 + $0x1a8] sm:$0xff]
  %v79 = vld [vmem:[%s1 + $0x1b0] sm:$0xff]
  %v80 = vld [vmem:[%s1 + $0x1b8] sm:$0xff]
  %v81 = vld [vmem:[%s1 + $0x1c0] sm:$0xff]
  %v82 = vld [vmem:[%s1 + $0x1c8] sm:$0xff]
  %v83 = vld [vmem:[%s1 + $0x1d0] sm:$0xff]
  %v84 = vld [vmem:[%s1 + $0x1d8] sm:$0xff]
  %v85 = vld [vmem:[%s1 + $0x1e0] sm:$0xff]
  %v86 = vld [vmem:[%s1 + $0x1e8] sm:$0xff]
  %v87 = vld [vmem:[%s1 + $0x1f0] sm:$0xff]
  %v88 = vld [vmem:[%s1 + $0x1f8] sm:$0xff]
  %v89 = vld [vmem:[%s1 + $0x200] sm:$0xff]
  %v90 = vld [vmem:[%s1 + $0x208] sm:$0xff]
  %v91 = vld [vmem:[%s1 + $0x210] sm:$0xff]
  %v92 = vld [vmem:[%s1 + $0x218] sm:$0xff]
  %v93 = vld [vmem:[%s1 + $0x220] sm:$0xff]
  %v94 = vld [vmem:[%s1 + $0x228] sm:$0xff]
  %v95 = vld [vmem:[%s1 + $0x230] sm:$0xff]
  %v96 = vld [vmem:[%s1 + $0x238] sm:$0xff]
  %v97 = vld [vmem:[%s1 + $0x240] sm:$0xff]
  %v98 = vld [vmem:[%s1 + $0x248] sm:$0xff]
  %v99 = vld [vmem:[%s1 + $0x250] sm:$0xff]
  %v100 = vld [vmem:[%s1 + $0x258] sm:$0xff]
  %v101 = vld [vmem:[%s1 + $0x260] sm:$0xff]
  %v102 = vld [vmem:[%s1 + $0x268] sm:$0xff]
  %v103 = vld [vmem:[%s1 + $0x270] sm:$0xff]
  %v104 = vld [vmem:[%s1 + $0x278] sm:$0xff]
  %v105 = vld [vmem:[%s1 + $0x280] sm:$0xff]
  %v106 = vld [vmem:[%s1 + $0x288] sm:$0xff]
  %v107 = vld [vmem:[%s1 + $0x290] sm:$0xff]
  %v108 = vld [vmem:[%s1 + $0x298] sm:$0xff]
  %v109 = vld [vmem:[%s1 + $0x2a0] sm:$0xff]
  %v110 = vld [vmem:[%s1 + $0x2a8] sm:$0xff]
  %v111 = vld [vmem:[%s1 + $0x2b0] sm:$0xff]
  %v112 = vld [vmem:[%s1 + $0x2b8] sm:$0xff]
  %v113 = vld [vmem:[%s1 + $0x2c0] sm:$0xff]
  %v114 = vld [vmem:[%s1 + $0x2c8] sm:$0xff]
  %v115 = vld [vmem:[%s1 + $0x2d0] sm:$0xff]
  %v116 = vld [vmem:[%s1 + $0x2d8] sm:$0xff]
  %v117 = vld [vmem:[%s1 + $0x2e0] sm:$0xff]
  %v118 = vld [vmem:[%s1 + $0x2e8] sm:$0xff]
  %v119 = vld [vmem:[%s1 + $0x2f0] sm:$0xff]
  %v120 = vld [vmem:[%s1 + $0x2f8] sm:$0xff]
  %v121 = vld [vmem:[%s1 + $0x300] sm:$0xff]
  %v122 = vld [vmem:[%s1 + $0x308] sm:$0xff]
  %v123 = vld [vmem:[%s1 + $0x310] sm:$0xff]
  %v124 = vld [vmem:[%s1 + $0x318] sm:$0xff]
  %v125 = vld [vmem:[%s1 + $0x320] sm:$0xff]
  %v126 = vld [vmem:[%s1 + $0x328] sm:$0xff]
  %v127 = vld [vmem:[%s1 + $0x330] sm:$0xff]
  %v128 = vld [vmem:[%s1 + $0x338] sm:$0xff]
  %v129 = vld [vmem:[%s1 + $0x340] sm:$0xff]
  %v130 = vld [vmem:[%s1 + $0x348] sm:$0xff]
  %v131 = vld [vmem:[%s1 + $0x350] sm:$0xff]
  %v132 = vld [vmem:[%s1 + $0x358] sm:$0xff]
  %v133 = vld [vmem:[%s1 + $0x360] sm:$0xff]
  %v134 = vld [vmem:[%s1 + $0x368] sm:$0xff]
  %v135 = vld [vmem:[%s1 + $0x370] sm:$0xff]
  %v136 = vld [vmem:[%s1 + $0x378] sm:$0xff]
  %v137 = vld [vmem:[%s1 + $0x380] sm:$0xff]
  %v138 = vld [vmem:[%s1 + $0x388] sm:$0xff]
  %v139 = vld [vmem:[%s1 + $0x390] sm:$0xff]
  %v140 = vld [vmem:[%s1 + $0x398] sm:$0xff]
  %v141 = vld [vmem:[%s1 + $0x3a0] sm:$0xff]
  %v142 = vld [vmem:[%s1 + $0x3a8] sm:$0xff]
  %v143 = vld [vmem:[%s1 + $0x3b0] sm:$0xff]
  %v144 = vld [vmem:[%s1 + $0x3b8] sm:$0xff]
  %v145 = vld [vmem:[%s1 + $0x3c0] sm:$0xff]
  %v146 = vld [vmem:[%s1 + $0x3c8] sm:$0xff]
  %v147 = vld [vmem:[%s1 + $0x3d0] sm:$0xff]
  %v148 = vld [vmem:[%s1 + $0x3d8] sm:$0xff]
  %v149 = vld [vmem:[%s1 + $0x3e0] sm:$0xff]
  %v150 = vld [vmem:[%s1 + $0x3e8] sm:$0xff]
  %v151 = vld [vmem:[%s1 + $0x3f0] sm:$0xff]
  %v152 = vld [vmem:[%s1 + $0x3f8] sm:$0xff]
  %v153 = vld [vmem:[%s1 + $0x400] sm:$0xff]
  %v154 = vld [vmem:[%s1 + $0x408] sm:$0xff]
  %v155 = vld [vmem:[%s1 + $0x410] sm:$0xff]
  %v156 = vld [vmem:[%s1 + $0x418] sm:$0xff]
  %v157 = vld [vmem:[%s1 + $0x420] sm:$0xff]
  %v158 = vld [vmem:[%s1 + $0x428] sm:$0xff]
  %v159 = vld [vmem:[%s1 + $0x430] sm:$0xff]
  %v160 = vld [vmem:[%s1 + $0x438] sm:$0xff]
  %v161 = vld [vmem:[%s1 + $0x440] sm:$0xff]
  %v162 = vld [vmem:[%s1 + $0x448] sm:$0xff]
  %v163 = vld [vmem:[%s1 + $0x450] sm:$0xff]
  %v164 = vld [vmem:[%s1 + $0x458] sm:$0xff]
  %v165 = vld [vmem:[%s1 + $0x460] sm:$0xff]
  %v166 = vld [vmem:[%s1 + $0x468] sm:$0xff]
  %v167 = vld [vmem:[%s1 + $0x470] sm:$0xff]
  %v168 = vld [vmem:[%s1 + $0x478] sm:$0xff]
  %v169 = vld [vmem:[%s1 + $0x480] sm:$0xff]
  %v170 = vld [vmem:[%s1 + $0x488] sm:$0xff]
  %v171 = vld [vmem:[%s1 + $0x490] sm:$0xff]
  %v172 = vld [vmem:[%s1 + $0x498] sm:$0xff]
  %v173 = vld [vmem:[%s1 + $0x4a0] sm:$0xff]
  %v174 = vld [vmem:[%s1 + $0x4a8] sm:$0xff]
  %v175 = vld [vmem:[%s1 + $0x4b0] sm:$0xff]
  %v176 = vld [vmem:[%s1 + $0x4b8] sm:$0xff]
  %v177 = vld [vmem:[%s1 + $0x4c0] sm:$0xff]
  %v178 = vld [vmem:[%s1 + $0x4c8] sm:$0xff]
  %v179 = vld [vmem:[%s1 + $0x4d0] sm:$0xff]
  %v180 = vld [vmem:[%s1 + $0x4d8] sm:$0xff]
  %v181 = vld [vmem:[%s1 + $0x4e0] sm:$0xff]
  %v182 = vld [vmem:[%s1 + $0x4e8] sm:$0xff]
  %v183 = vld [vmem:[%s1 + $0x4f0] sm:$0xff]
  %v184 = vld [vmem:[%s1 + $0x4f8] sm:$0xff]
  %v185 = vld [vmem:[%s1 + $0x500] sm:$0xff]
  %v186 = vld [vmem:[%s1 + $0x508] sm:$0xff]
  %v187 = vld [vmem:[%s1 + $0x510] sm:$0xff]
  %v188 = vld [vmem:[%s1 + $0x518] sm:$0xff]
  %v189 = vld [vmem:[%s1 + $0x520] sm:$0xff]
  %v190 = vld [vmem:[%s1 + $0x528] sm:$0xff]
  %v191 = vld [vmem:[%s1 + $0x530] sm:$0xff]
  %v192 = vld [vmem:[%s1 + $0x538] sm:$0xff]
  %v193 = vld [vmem:[%s1 + $0x540] sm:$0xff]
  %v194 = vld [vmem:[%s1 + $0x548] sm:$0xff]
  %v195 = vld [vmem:[%s1 + $0x550] sm:$0xff]
  %v196 = vld [vmem:[%s1 + $0x558] sm:$0xff]
  %v197 = vld [vmem:[%s1 + $0x560] sm:$0xff]
  %v198 = vld [vmem:[%s1 + $0x568] sm:$0xff]
  %v199 = vld [vmem:[%s1 + $0x570] sm:$0xff]
  %v200 = vld [vmem:[%s1 + $0x578] sm:$0xff]
  %v201 = vld [vmem:[%s1 + $0x580] sm:$0xff]
  %v202 = vld [vmem:[%s1 + $0x588] sm:$0xff]
  %v203 = vld [vmem:[%s1 + $0x590] sm:$0xff]
  %v204 = vld [vmem:[%s1 + $0x598] sm:$0xff]
  %v205 = vld [vmem:[%s1 + $0x5a0] sm:$0xff]
  %v206 = vld [vmem:[%s1 + $0x5a8] sm:$0xff]
  %v207 = vld [vmem:[%s1 + $0x5b0] sm:$0xff]
  %v208 = vld [vmem:[%s1 + $0x5b8] sm:$0xff]
  %v209 = vld [vmem:[%s1 + $0x5c0] sm:$0xff]
  %v210 = vld [vmem:[%s1 + $0x5c8] sm:$0xff]
  %v211 = vld [vmem:[%s1 + $0x5d0] sm:$0xff]
  %v212 = vld [vmem:[%s1 + $0x5d8] sm:$0xff]
  %v213 = vld [vmem:[%s1 + $0x5e0] sm:$0xff]
  %v214 = vld [vmem:[%s1 + $0x5e8] sm:$0xff]
  %v215 = vld [vmem:[%s1 + $0x5f0] sm:$0xff]
  %v216 = vld [vmem:[%s1 + $0x5f8] sm:$0xff]
  %v217 = vld [vmem:[%s1 + $0x600] sm:$0xff]
  %v218 = vld [vmem:[%s1 + $0x608] sm:$0xff]
  %v219 = vld [vmem:[%s1 + $0x610] sm:$0xff]
  %v220 = vld [vmem:[%s1 + $0x618] sm:$0xff]
  %v221 = vld [vmem:[%s1 + $0x620] sm:$0xff]
  %v222 = vld [vmem:[%s1 + $0x628] sm:$0xff]
  %v223 = vld [vmem:[%s1 + $0x630] sm:$0xff]
  %v224 = vld [vmem:[%s1 + $0x638] sm:$0xff]
  %v225 = vld [vmem:[%s1 + $0x640] sm:$0xff]
  %v226 = vld [vmem:[%s1 + $0x648] sm:$0xff]
  %v227 = vld [vmem:[%s1 + $0x650] sm:$0xff]
  %v228 = vld [vmem:[%s1 + $0x658] sm:$0xff]
  %v229 = vld [vmem:[%s1 + $0x660] sm:$0xff]
  %v230 = vld [vmem:[%s1 + $0x668] sm:$0xff]
  %v231 = vld [vmem:[%s1 + $0x670] sm:$0xff]
  %v232 = vld [vmem:[%s1 + $0x678] sm:$0xff]
  %v233 = vld [vmem:[%s1 + $0x680] sm:$0xff]
  %v234 = vld [vmem:[%s1 + $0x688] sm:$0xff]
  %v235 = vld [vmem:[%s1 + $0x690] sm:$0xff]
  %v236 = vld [vmem:[%s1 + $0x698] sm:$0xff]
  %v237 = vld [vmem:[%s1 + $0x6a0] sm:$0xff]
  %v238 = vld [vmem:[%s1 + $0x6a8] sm:$0xff]
  %v239 = vld [vmem:[%s1 + $0x6b0] sm:$0xff]
  %v240 = vld [vmem:[%s1 + $0x6b8] sm:$0xff]
  %v241 = vld [vmem:[%s1 + $0x6c0] sm:$0xff]
  %v242 = vld [vmem:[%s1 + $0x6c8] sm:$0xff]
  %v243 = vld [vmem:[%s1 + $0x6d0] sm:$0xff]
  %v244 = vld [vmem:[%s1 + $0x6d8] sm:$0xff]
  %v245 = vld [vmem:[%s1 + $0x6e0] sm:$0xff]
  %v246 = vld [vmem:[%s1 + $0x6e8] sm:$0xff]
  %v247 = vld [vmem:[%s1 + $0x6f0] sm:$0xff]
  %v248 = vld [vmem:[%s1 + $0x6f8] sm:$0xff]
  %v249 = vld [vmem:[%s1 + $0x700] sm:$0xff]
  %v250 = vld [vmem:[%s1 + $0x708] sm:$0xff]
  %v251 = vld [vmem:[%s1 + $0x710] sm:$0xff]
  %v252 = vld [vmem:[%s1 + $0x718] sm:$0xff]
  %v253 = vld [vmem:[%s1 + $0x720] sm:$0xff]
  %v254 = vld [vmem:[%s1 + $0x728] sm:$0xff]
  %v255 = vld [vmem:[%s1 + $0x730] sm:$0xff]
  %v256 = vld [vmem:[%s1 + $0x738] sm:$0xff]
  %v257 = vld [vmem:[%s1 + $0x740] sm:$0xff]
  %v258 = vld [vmem:[%s1 + $0x748] sm:$0xff]
  %v259 = vld [vmem:[%s1 + $0x750] sm:$0xff]
  %v260 = vld [vmem:[%s1 + $0x758] sm:$0xff]
  %v261 = vld [vmem:[%s1 + $0x760] sm:$0xff]
  %v262 = vld [vmem:[%s1 + $0x768] sm:$0xff]
  %v263 = vld [vmem:[%s1 + $0x770] sm:$0xff]
  %v264 = vld [vmem:[%s1 + $0x778] sm:$0xff]
  %v265 = vld [vmem:[%s1 + $0x780] sm:$0xff]
  %v266 = vld [vmem:[%s1 + $0x788] sm:$0xff]
  %v267 = vld [vmem:[%s1 + $0x790] sm:$0xff]
  %v268 = vld [vmem:[%s1 + $0x798] sm:$0xff]
  %v269 = vld [vmem:[%s1 + $0x7a0] sm:$0xff]
  %v270 = vld [vmem:[%s1 + $0x7a8] sm:$0xff]
  %v271 = vld [vmem:[%s1 + $0x7b0] sm:$0xff]
  %v272 = vld [vmem:[%s1 + $0x7b8] sm:$0xff]
  %v273 = vld [vmem:[%s1 + $0x7c0] sm:$0xff]
  %v274 = vld [vmem:[%s1 + $0x7c8] sm:$0xff]
  %v275 = vld [vmem:[%s1 + $0x7d0] sm:$0xff]
  %v276 = vld [vmem:[%s1 + $0x7d8] sm:$0xff]
  %v277 = vld [vmem:[%s1 + $0x7e0] sm:$0xff]
  %v278 = vld [vmem:[%s1 + $0x7e8] sm:$0xff]
  %v279 = vld [vmem:[%s1 + $0x7f0] sm:$0xff]
  %v280 = vld [vmem:[%s1 + $0x7f8] sm:$0xff]
  %v281 = vld [vmem:[%s1 + $0x800] sm:$0xff]
  %v282 = vld [vmem:[%s1 + $0x808] sm:$0xff]
  %v283 = vld [vmem:[%s1 + $0x810] sm:$0xff]
  %v284 = vld [vmem:[%s1 + $0x818] sm:$0xff]
  %v285 = vld [vmem:[%s1 + $0x820] sm:$0xff]
  %v286 = vld [vmem:[%s1 + $0x828] sm:$0xff]
  %v287 = vld [vmem:[%s1 + $0x830] sm:$0xff]
  %v288 = vld [vmem:[%s1 + $0x838] sm:$0xff]
  %v289 = vld [vmem:[%s1 + $0x840] sm:$0xff]
  %v290 = vld [vmem:[%s1 + $0x848] sm:$0xff]
  %v291 = vld [vmem:[%s1 + $0x850] sm:$0xff]
  %v292 = vld [vmem:[%s1 + $0x858] sm:$0xff]
  %v293 = vld [vmem:[%s1 + $0x860] sm:$0xff]
  %v294 = vld [vmem:[%s1 + $0x868] sm:$0xff]
  %v295 = vld [vmem:[%s1 + $0x870] sm:$0xff]
  %v296 = vld [vmem:[%s1 + $0x878] sm:$0xff]
  %v297 = vld [vmem:[%s1 + $0x880] sm:$0xff]
  %v298 = vld [vmem:[%s1 + $0x888] sm:$0xff]
  %v299 = vld [vmem:[%s1 + $0x890] sm:$0xff]
  %v300 = vld [vmem:[%s1 + $0x898] sm:$0xff]
  %v301 = vld [vmem:[%s1 + $0x8a0] sm:$0xff]
  %v302 = vld [vmem:[%s1 + $0x8a8] sm:$0xff]
  %v303 = vld [vmem:[%s1 + $0x8b0] sm:$0xff]
  %v304 = vld [vmem:[%s1 + $0x8b8] sm:$0xff]
  %v305 = vld [vmem:[%s1 + $0x8c0] sm:$0xff]
  %v306 = vld [vmem:[%s1 + $0x8c8] sm:$0xff]
  %v307 = vld [vmem:[%s1 + $0x8d0] sm:$0xff]
  %v308 = vld [vmem:[%s1 + $0x8d8] sm:$0xff]
  %v309 = vld [vmem:[%s1 + $0x8e0] sm:$0xff]
  %v310 = vld [vmem:[%s1 + $0x8e8] sm:$0xff]
  %v311 = vld [vmem:[%s1 + $0x8f0] sm:$0xff]
  %v312 = vld [vmem:[%s1 + $0x8f8] sm:$0xff]
  %v313 = vld [vmem:[%s1 + $0x900] sm:$0xff]
  %v314 = vld [vmem:[%s1 + $0x908] sm:$0xff]
  %v315 = vld [vmem:[%s1 + $0x910] sm:$0xff]
  %v316 = vld [vmem:[%s1 + $0x918] sm:$0xff]
  %v317 = vld [vmem:[%s1 + $0x920] sm:$0xff]
  %v318 = vld [vmem:[%s1 + $0x928] sm:$0xff]
  %v319 = vld [vmem:[%s1 + $0x930] sm:$0xff]
  %v320 = vld [vmem:[%s1 + $0x938] sm:$0xff]
  %v321 = vld [vmem:[%s1 + $0x940] sm:$0xff]
  %v322 = vld [vmem:[%s1 + $0x948] sm:$0xff]
  %v323 = vld [vmem:[%s1 + $0x950] sm:$0xff]
  %v324 = vld [vmem:[%s1 + $0x958] sm:$0xff]
  %v325 = vld [vmem:[%s1 + $0x960] sm:$0xff]
  %v326 = vld [vmem:[%s1 + $0x968] sm:$0xff]
  %v327 = vld [vmem:[%s1 + $0x970] sm:$0xff]
  %v328 = vld [vmem:[%s1 + $0x978] sm:$0xff]
  %v329 = vld [vmem:[%s1 + $0x980] sm:$0xff]
  %v330 = vld [vmem:[%s1 + $0x988] sm:$0xff]
  %v331 = vld [vmem:[%s1 + $0x990] sm:$0xff]
  %v332 = vld [vmem:[%s1 + $0x998] sm:$0xff]
  %v333 = vld [vmem:[%s1 + $0x9a0] sm:$0xff]
  %v334 = vld [vmem:[%s1 + $0x9a8] sm:$0xff]
  %v335 = vld [vmem:[%s1 + $0x9b0] sm:$0xff]
  %v336 = vld [vmem:[%s1 + $0x9b8] sm:$0xff]
  %v337 = vld [vmem:[%s1 + $0x9c0] sm:$0xff]
  %v338 = vld [vmem:[%s1 + $0x9c8] sm:$0xff]
  %v339 = vld [vmem:[%s1 + $0x9d0] sm:$0xff]
  %v340 = vld [vmem:[%s1 + $0x9d8] sm:$0xff]
  %v341 = vld [vmem:[%s1 + $0x9e0] sm:$0xff]
  %v342 = vld [vmem:[%s1 + $0x9e8] sm:$0xff]
  %v343 = vld [vmem:[%s1 + $0x9f0] sm:$0xff]
  %v344 = vld [vmem:[%s1 + $0x9f8] sm:$0xff]
  %v345 = vld [vmem:[%s1 + $0xa00] sm:$0xff]
  %v346 = vld [vmem:[%s1 + $0xa08] sm:$0xff]
  %v347 = vld [vmem:[%s1 + $0xa10] sm:$0xff]
  %v348 = vld [vmem:[%s1 + $0xa18] sm:$0xff]
  %v349 = vld [vmem:[%s1 + $0xa20] sm:$0xff]
  %v350 = vld [vmem:[%s1 + $0xa28] sm:$0xff]
  %v351 = vld [vmem:[%s1 + $0xa30] sm:$0xff]
  %v352 = vld [vmem:[%s1 + $0xa38] sm:$0xff]
  %v353 = vld [vmem:[%s1 + $0xa40] sm:$0xff]
  %v354 = vld [vmem:[%s1 + $0xa48] sm:$0xff]
  %v355 = vld [vmem:[%s1 + $0xa50] sm:$0xff]
  %v356 = vld [vmem:[%s1 + $0xa58] sm:$0xff]
  %v357 = vld [vmem:[%s1 + $0xa60] sm:$0xff]
  %v358 = vld [vmem:[%s1 + $0xa68] sm:$0xff]
  %v359 = vld [vmem:[%s1 + $0xa70] sm:$0xff]
  %v360 = vld [vmem:[%s1 + $0xa78] sm:$0xff]
  %v361 = vld [vmem:[%s1 + $0xa80] sm:$0xff]
  %v362 = vld [vmem:[%s1 + $0xa88] sm:$0xff]
  %v363 = vld [vmem:[%s1 + $0xa90] sm:$0xff]
  %v364 = vld [vmem:[%s1 + $0xa98] sm:$0xff]
  %v365 = vld [vmem:[%s1 + $0xaa0] sm:$0xff]
  %v366 = vld [vmem:[%s1 + $0xaa8] sm:$0xff]
  %v367 = vld [vmem:[%s1 + $0xab0] sm:$0xff]
  %v368 = vld [vmem:[%s1 + $0xab8] sm:$0xff]
  %v369 = vld [vmem:[%s1 + $0xac0] sm:$0xff]
  %v370 = vld [vmem:[%s1 + $0xac8] sm:$0xff]
  %v371 = vld [vmem:[%s1 + $0xad0] sm:$0xff]
  %v372 = vld [vmem:[%s1 + $0xad8] sm:$0xff]
  %v373 = vld [vmem:[%s1 + $0xae0] sm:$0xff]
  %v374 = vld [vmem:[%s1 + $0xae8] sm:$0xff]
  %v375 = vld [vmem:[%s1 + $0xaf0] sm:$0xff]
  %v376 = vld [vmem:[%s1 + $0xaf8] sm:$0xff]
  %v377 = vld [vmem:[%s1 + $0xb00] sm:$0xff]
  %v378 = vld [vmem:[%s1 + $0xb08] sm:$0xff]
  %v379 = vld [vmem:[%s1 + $0xb10] sm:$0xff]
  %v380 = vld [vmem:[%s1 + $0xb18] sm:$0xff]
  %v381 = vld [vmem:[%s1 + $0xb20] sm:$0xff]
  %v382 = vld [vmem:[%s1 + $0xb28] sm:$0xff]
  %v383 = vld [vmem:[%s1 + $0xb30] sm:$0xff]
  %v384 = vld [vmem:[%s1 + $0xb38] sm:$0xff]
  %v385 = vld [vmem:[%s1 + $0xb40] sm:$0xff]
  %v386 = vld [vmem:[%s1 + $0xb48] sm:$0xff]
  %v387 = vld [vmem:[%s1 + $0xb50] sm:$0xff]
  %v388 = vld [vmem:[%s1 + $0xb58] sm:$0xff]
  %v389 = vld [vmem:[%s1 + $0xb60] sm:$0xff]
  %v390 = vld [vmem:[%s1 + $0xb68] sm:$0xff]
  %v391 = vld [vmem:[%s1 + $0xb70] sm:$0xff]
  %v392 = vld [vmem:[%s1 + $0xb78] sm:$0xff]
  %v393 = vld [vmem:[%s1 + $0xb80] sm:$0xff]
  %v394 = vld [vmem:[%s1 + $0xb88] sm:$0xff]
  %v395 = vld [vmem:[%s1 + $0xb90] sm:$0xff]
  %v396 = vld [vmem:[%s1 + $0xb98] sm:$0xff]
  %v397 = vld [vmem:[%s1 + $0xba0] sm:$0xff]
  %v398 = vld [vmem:[%s1 + $0xba8] sm:$0xff]
  %v399 = vld [vmem:[%s1 + $0xbb0] sm:$0xff]
  %v400 = vld [vmem:[%s1 + $0xbb8] sm:$0xff]
  %v401 = vld [vmem:[%s1 + $0xbc0] sm:$0xff]
  %v402 = vld [vmem:[%s1 + $0xbc8] sm:$0xff]
  %v403 = vld [vmem:[%s1 + $0xbd0] sm:$0xff]
  %v404 = vld [vmem:[%s1 + $0xbd8] sm:$0xff]
  %v405 = vld [vmem:[%s1 + $0xbe0] sm:$0xff]
  %v406 = vld [vmem:[%s1 + $0xbe8] sm:$0xff]
  %v407 = vld [vmem:[%s1 + $0xbf0] sm:$0xff]
  %v408 = vld [vmem:[%s1 + $0xbf8] sm:$0xff]
  %v409 = vld [vmem:[%s1 + $0xc00] sm:$0xff]
  %v410 = vld [vmem:[%s1 + $0xc08] sm:$0xff]
  %v411 = vld [vmem:[%s1 + $0xc10] sm:$0xff]
  %v412 = vld [vmem:[%s1 + $0xc18] sm:$0xff]
  %v413 = vld [vmem:[%s1 + $0xc20] sm:$0xff]
  %v414 = vld [vmem:[%s1 + $0xc28] sm:$0xff]
  %v415 = vld [vmem:[%s1 + $0xc30] sm:$0xff]
  %v416 = vld [vmem:[%s1 + $0xc38] sm:$0xff]
  %v417 = vld [vmem:[%s1 + $0xc40] sm:$0xff]
  %v418 = vld [vmem:[%s1 + $0xc48] sm:$0xff]
  %v419 = vld [vmem:[%s1 + $0xc50] sm:$0xff]
  %v420 = vld [vmem:[%s1 + $0xc58] sm:$0xff]
  %v421 = vld [vmem:[%s1 + $0xc60] sm:$0xff]
  %v422 = vld [vmem:[%s1 + $0xc68] sm:$0xff]
  %v423 = vld [vmem:[%s1 + $0xc70] sm:$0xff]
  %v424 = vld [vmem:[%s1 + $0xc78] sm:$0xff]
  %v425 = vld [vmem:[%s1 + $0xc80] sm:$0xff]
  %v426 = vld [vmem:[%s1 + $0xc88] sm:$0xff]
  %v427 = vld [vmem:[%s1 + $0xc90] sm:$0xff]
  %v428 = vld [vmem:[%s1 + $0xc98] sm:$0xff]
  %v429 = vld [vmem:[%s1 + $0xca0] sm:$0xff]
  %v430 = vld [vmem:[%s1 + $0xca8] sm:$0xff]
  %v431 = vld [vmem:[%s1 + $0xcb0] sm:$0xff]
  %v432 = vld [vmem:[%s1 + $0xcb8] sm:$0xff]
  %v433 = vld [vmem:[%s1 + $0xcc0] sm:$0xff]
  %v434 = vld [vmem:[%s1 + $0xcc8] sm:$0xff]
  %v435 = vld [vmem:[%s1 + $0xcd0] sm:$0xff]
  %v436 = vld [vmem:[%s1 + $0xcd8] sm:$0xff]
  %v437 = vld [vmem:[%s1 + $0xce0] sm:$0xff]
  %v438 = vld [vmem:[%s1 + $0xce8] sm:$0xff]
  %v439 = vld [vmem:[%s1 + $0xcf0] sm:$0xff]
  %v440 = vld [vmem:[%s1 + $0xcf8] sm:$0xff]
  %v441 = vld [vmem:[%s1 + $0xd00] sm:$0xff]
  %v442 = vld [vmem:[%s1 + $0xd08] sm:$0xff]
  %v443 = vld [vmem:[%s1 + $0xd10] sm:$0xff]
  %v444 = vld [vmem:[%s1 + $0xd18] sm:$0xff]
  %v445 = vld [vmem:[%s1 + $0xd20] sm:$0xff]
  %v446 = vld [vmem:[%s1 + $0xd28] sm:$0xff]
  %v447 = vld [vmem:[%s1 + $0xd30] sm:$0xff]
  %v448 = vld [vmem:[%s1 + $0xd38] sm:$0xff]
  %v449 = vld [vmem:[%s1 + $0xd40] sm:$0xff]
  %v450 = vld [vmem:[%s1 + $0xd48] sm:$0xff]
  %v451 = vld [vmem:[%s1 + $0xd50] sm:$0xff]
  %v452 = vld [vmem:[%s1 + $0xd58] sm:$0xff]
  %v453 = vld [vmem:[%s1 + $0xd60] sm:$0xff]
  %v454 = vld [vmem:[%s1 + $0xd68] sm:$0xff]
  %v455 = vld [vmem:[%s1 + $0xd70] sm:$0xff]
  %v456 = vld [vmem:[%s1 + $0xd78] sm:$0xff]
  %v457 = vld [vmem:[%s1 + $0xd80] sm:$0xff]
  %v458 = vld [vmem:[%s1 + $0xd88] sm:$0xff]
  %v459 = vld [vmem:[%s1 + $0xd90] sm:$0xff]
  %v460 = vld [vmem:[%s1 + $0xd98] sm:$0xff]
  %v461 = vld [vmem:[%s1 + $0xda0] sm:$0xff]
  %v462 = vld [vmem:[%s1 + $0xda8] sm:$0xff]
  %v463 = vld [vmem:[%s1 + $0xdb0] sm:$0xff]
  %v464 = vld [vmem:[%s1 + $0xdb8] sm:$0xff]
  %v465 = vld [vmem:[%s1 + $0xdc0] sm:$0xff]
  %v466 = vld [vmem:[%s1 + $0xdc8] sm:$0xff]
  %v467 = vld [vmem:[%s1 + $0xdd0] sm:$0xff]
  %v468 = vld [vmem:[%s1 + $0xdd8] sm:$0xff]
  %v469 = vld [vmem:[%s1 + $0xde0] sm:$0xff]
  %v470 = vld [vmem:[%s1 + $0xde8] sm:$0xff]
  %v471 = vld [vmem:[%s1 + $0xdf0] sm:$0xff]
  %v472 = vld [vmem:[%s1 + $0xdf8] sm:$0xff]
  %v473 = vld [vmem:[%s1 + $0xe00] sm:$0xff]
  %v474 = vld [vmem:[%s1 + $0xe08] sm:$0xff]
  %v475 = vld [vmem:[%s1 + $0xe10] sm:$0xff]
  %v476 = vld [vmem:[%s1 + $0xe18] sm:$0xff]
  %v477 = vld [vmem:[%s1 + $0xe20] sm:$0xff]
  %v478 = vld [vmem:[%s1 + $0xe28] sm:$0xff]
  %v479 = vld [vmem:[%s1 + $0xe30] sm:$0xff]
  %v480 = vld [vmem:[%s1 + $0xe38] sm:$0xff]
  %v481 = vld [vmem:[%s1 + $0xe40] sm:$0xff]
  %v482 = vld [vmem:[%s1 + $0xe48] sm:$0xff]
  %v483 = vld [vmem:[%s1 + $0xe50] sm:$0xff]
  %v484 = vld [vmem:[%s1 + $0xe58] sm:$0xff]
  %v485 = vld [vmem:[%s1 + $0xe60] sm:$0xff]
  %v486 = vld [vmem:[%s1 + $0xe68] sm:$0xff]
  %v487 = vld [vmem:[%s1 + $0xe70] sm:$0xff]
  %v488 = vld [vmem:[%s1 + $0xe78] sm:$0xff]
  %v489 = vld [vmem:[%s1 + $0xe80] sm:$0xff]
  %v490 = vld [vmem:[%s1 + $0xe88] sm:$0xff]
  %v491 = vld [vmem:[%s1 + $0xe90] sm:$0xff]
  %v492 = vld [vmem:[%s1 + $0xe98] sm:$0xff]
  %v493 = vld [vmem:[%s1 + $0xea0] sm:$0xff]
  %v494 = vld [vmem:[%s1 + $0xea8] sm:$0xff]
  %v495 = vld [vmem:[%s1 + $0xeb0] sm:$0xff]
  %v496 = vld [vmem:[%s1 + $0xeb8] sm:$0xff]
  %v497 = vld [vmem:[%s1 + $0xec0] sm:$0xff]
  %v498 = vld [vmem:[%s1 + $0xec8] sm:$0xff]
  %v499 = vld [vmem:[%s1 + $0xed0] sm:$0xff]
  %v500 = vld [vmem:[%s1 + $0xed8] sm:$0xff]
  %v501 = vld [vmem:[%s1 + $0xee0] sm:$0xff]
  %v502 = vld [vmem:[%s1 + $0xee8] sm:$0xff]
  %v503 = vld [vmem:[%s1 + $0xef0] sm:$0xff]
  %v504 = vld [vmem:[%s1 + $0xef8] sm:$0xff]
  %v505 = vld [vmem:[%s1 + $0xf00] sm:$0xff]
  %v506 = vld [vmem:[%s1 + $0xf08] sm:$0xff]
  %v507 = vld [vmem:[%s1 + $0xf10] sm:$0xff]
  %v508 = vld [vmem:[%s1 + $0xf18] sm:$0xff]
  %v509 = vld [vmem:[%s1 + $0xf20] sm:$0xff]
  %v510 = vld [vmem:[%s1 + $0xf28] sm:$0xff]
  %v511 = vld [vmem:[%s1 + $0xf30] sm:$0xff]
  %v512 = vld [vmem:[%s1 + $0xf38] sm:$0xff]
  %v513 = vld [vmem:[%s1 + $0xf40] sm:$0xff]
  %v514 = vld [vmem:[%s1 + $0xf48] sm:$0xff]
  %v515 = vld [vmem:[%s1 + $0xf50] sm:$0xff]
  %v516 = vld [vmem:[%s1 + $0xf58] sm:$0xff]
  %v517 = vld [vmem:[%s1 + $0xf60] sm:$0xff]
  %v518 = vld [vmem:[%s1 + $0xf68] sm:$0xff]
  %v519 = vld [vmem:[%s1 + $0xf70] sm:$0xff]
  %v520 = vld [vmem:[%s1 + $0xf78] sm:$0xff]
  %v521 = vld [vmem:[%s1 + $0xf80] sm:$0xff]
  %v522 = vld [vmem:[%s1 + $0xf88] sm:$0xff]
  %v523 = vld [vmem:[%s1 + $0xf90] sm:$0xff]
  %v524 = vld [vmem:[%s1 + $0xf98] sm:$0xff]
  %v525 = vld [vmem:[%s1 + $0xfa0] sm:$0xff]
  %v526 = vld [vmem:[%s1 + $0xfa8] sm:$0xff]
  %v527 = vld [vmem:[%s1 + $0xfb0] sm:$0xff]
  %v528 = vld [vmem:[%s1 + $0xfb8] sm:$0xff]
  %v529 = vld [vmem:[%s1 + $0xfc0] sm:$0xff]
  %v530 = vld [vmem:[%s1 + $0xfc8] sm:$0xff]
  %v531 = vld [vmem:[%s1 + $0xfd0] sm:$0xff]
  %v532 = vld [vmem:[%s1 + $0xfd8] sm:$0xff]
  %v533 = vld [vmem:[%s1 + $0xfe0] sm:$0xff]
  %v534 = vld [vmem:[%s1 + $0xfe8] sm:$0xff]
  %v535 = vld [vmem:[%s1 + $0xff0] sm:$0xff]
  %v536 = vld [vmem:[%s1 + $0xff8] sm:$0xff]
  %v537 = vld [vmem:[%s2] sm:$0xff]
  %v539 = vlaneseq
  %v540 = vshrl.u32 %v539, 7
  %v541 = vsub.s32 0, %v540
  %v542 = vrot.slane %v537, %v541
  %v543 = vlaneseq
  %v544 = vshrl.u32 %v543, 7
  %v545 = vsub.s32 1, %v544
  %v546 = vrot.slane %v537, %v545
  %v547 = vlaneseq
  %v548 = vshrl.u32 %v547, 7
  %v549 = vsub.s32 2, %v548
  %v550 = vrot.slane %v537, %v549
  %v551 = vlaneseq
  %v552 = vshrl.u32 %v551, 7
  %v553 = vsub.s32 3, %v552
  %v554 = vrot.slane %v537, %v553
  %v555 = vlaneseq
  %v556 = vshrl.u32 %v555, 7
  %v557 = vsub.s32 4, %v556
  %v558 = vrot.slane %v537, %v557
  %v559 = vlaneseq
  %v560 = vshrl.u32 %v559, 7
  %v561 = vsub.s32 5, %v560
  %v562 = vrot.slane %v537, %v561
  %v563 = vlaneseq
  %v564 = vshrl.u32 %v563, 7
  %v565 = vsub.s32 6, %v564
  %v566 = vrot.slane %v537, %v565
  %v567 = vlaneseq
  %v568 = vshrl.u32 %v567, 7
  %v569 = vsub.s32 7, %v568
  %v570 = vrot.slane %v537, %v569
  %v583 = vunpack.c.l.b16 %v21
  %v584 = vunpack.c.h.b16 %v21
  %v585 = vunpack.c.l.b16 %v22
  %v586 = vunpack.c.h.b16 %v22
  %v587 = vunpack.c.l.b16 %v23
  %v588 = vunpack.c.h.b16 %v23
  %v589 = vunpack.c.l.b16 %v24
  %v590 = vunpack.c.h.b16 %v24
  %v591 = vpack.c.b16 %v583, %v583
  %v592 = vpack.c.b16 %v584, %v584
  %v593 = vpack.c.b16 %v585, %v585
  %v594 = vpack.c.b16 %v586, %v586
  %v595 = vpack.c.b16 %v587, %v587
  %v596 = vpack.c.b16 %v588, %v588
  %v597 = vpack.c.b16 %v589, %v589
  %v598 = vpack.c.b16 %v590, %v590
  %v1119 = vunpack.c.l.b16 %v25
  %v1120 = vunpack.c.h.b16 %v25
  %v1121 = vunpack.c.l.b16 %v26
  %v1122 = vunpack.c.h.b16 %v26
  %v1123 = vunpack.c.l.b16 %v27
  %v1124 = vunpack.c.h.b16 %v27
  %v1125 = vunpack.c.l.b16 %v28
  %v1126 = vunpack.c.h.b16 %v28
  %v1127 = vunpack.c.l.b16 %v29
  %v1128 = vunpack.c.h.b16 %v29
  %v1129 = vunpack.c.l.b16 %v30
  %v1130 = vunpack.c.h.b16 %v30
  %v1131 = vunpack.c.l.b16 %v31
  %v1132 = vunpack.c.h.b16 %v31
  %v1133 = vunpack.c.l.b16 %v32
  %v1134 = vunpack.c.h.b16 %v32
  %v1135 = vunpack.c.l.b16 %v33
  %v1136 = vunpack.c.h.b16 %v33
  %v1137 = vunpack.c.l.b16 %v34
  %v1138 = vunpack.c.h.b16 %v34
  %v1139 = vunpack.c.l.b16 %v35
  %v1140 = vunpack.c.h.b16 %v35
  %v1141 = vunpack.c.l.b16 %v36
  %v1142 = vunpack.c.h.b16 %v36
  %v1143 = vunpack.c.l.b16 %v37
  %v1144 = vunpack.c.h.b16 %v37
  %v1145 = vunpack.c.l.b16 %v38
  %v1146 = vunpack.c.h.b16 %v38
  %v1147 = vunpack.c.l.b16 %v39
  %v1148 = vunpack.c.h.b16 %v39
  %v1149 = vunpack.c.l.b16 %v40
  %v1150 = vunpack.c.h.b16 %v40
  %v1151 = vunpack.c.l.b16 %v41
  %v1152 = vunpack.c.h.b16 %v41
  %v1153 = vunpack.c.l.b16 %v42
  %v1154 = vunpack.c.h.b16 %v42
  %v1155 = vunpack.c.l.b16 %v43
  %v1156 = vunpack.c.h.b16 %v43
  %v1157 = vunpack.c.l.b16 %v44
  %v1158 = vunpack.c.h.b16 %v44
  %v1159 = vunpack.c.l.b16 %v45
  %v1160 = vunpack.c.h.b16 %v45
  %v1161 = vunpack.c.l.b16 %v46
  %v1162 = vunpack.c.h.b16 %v46
  %v1163 = vunpack.c.l.b16 %v47
  %v1164 = vunpack.c.h.b16 %v47
  %v1165 = vunpack.c.l.b16 %v48
  %v1166 = vunpack.c.h.b16 %v48
  %v1167 = vunpack.c.l.b16 %v49
  %v1168 = vunpack.c.h.b16 %v49
  %v1169 = vunpack.c.l.b16 %v50
  %v1170 = vunpack.c.h.b16 %v50
  %v1171 = vunpack.c.l.b16 %v51
  %v1172 = vunpack.c.h.b16 %v51
  %v1173 = vunpack.c.l.b16 %v52
  %v1174 = vunpack.c.h.b16 %v52
  %v1175 = vunpack.c.l.b16 %v53
  %v1176 = vunpack.c.h.b16 %v53
  %v1177 = vunpack.c.l.b16 %v54
  %v1178 = vunpack.c.h.b16 %v54
  %v1179 = vunpack.c.l.b16 %v55
  %v1180 = vunpack.c.h.b16 %v55
  %v1181 = vunpack.c.l.b16 %v56
  %v1182 = vunpack.c.h.b16 %v56
  %v1183 = vunpack.c.l.b16 %v57
  %v1184 = vunpack.c.h.b16 %v57
  %v1185 = vunpack.c.l.b16 %v58
  %v1186 = vunpack.c.h.b16 %v58
  %v1187 = vunpack.c.l.b16 %v59
  %v1188 = vunpack.c.h.b16 %v59
  %v1189 = vunpack.c.l.b16 %v60
  %v1190 = vunpack.c.h.b16 %v60
  %v1191 = vunpack.c.l.b16 %v61
  %v1192 = vunpack.c.h.b16 %v61
  %v1193 = vunpack.c.l.b16 %v62
  %v1194 = vunpack.c.h.b16 %v62
  %v1195 = vunpack.c.l.b16 %v63
  %v1196 = vunpack.c.h.b16 %v63
  %v1197 = vunpack.c.l.b16 %v64
  %v1198 = vunpack.c.h.b16 %v64
  %v1199 = vunpack.c.l.b16 %v65
  %v1200 = vunpack.c.h.b16 %v65
  %v1201 = vunpack.c.l.b16 %v66
  %v1202 = vunpack.c.h.b16 %v66
  %v1203 = vunpack.c.l.b16 %v67
  %v1204 = vunpack.c.h.b16 %v67
  %v1205 = vunpack.c.l.b16 %v68
  %v1206 = vunpack.c.h.b16 %v68
  %v1207 = vunpack.c.l.b16 %v69
  %v1208 = vunpack.c.h.b16 %v69
  %v1209 = vunpack.c.l.b16 %v70
  %v1210 = vunpack.c.h.b16 %v70
  %v1211 = vunpack.c.l.b16 %v71
  %v1212 = vunpack.c.h.b16 %v71
  %v1213 = vunpack.c.l.b16 %v72
  %v1214 = vunpack.c.h.b16 %v72
  %v1215 = vunpack.c.l.b16 %v73
  %v1216 = vunpack.c.h.b16 %v73
  %v1217 = vunpack.c.l.b16 %v74
  %v1218 = vunpack.c.h.b16 %v74
  %v1219 = vunpack.c.l.b16 %v75
  %v1220 = vunpack.c.h.b16 %v75
  %v1221 = vunpack.c.l.b16 %v76
  %v1222 = vunpack.c.h.b16 %v76
  %v1223 = vunpack.c.l.b16 %v77
  %v1224 = vunpack.c.h.b16 %v77
  %v1225 = vunpack.c.l.b16 %v78
  %v1226 = vunpack.c.h.b16 %v78
  %v1227 = vunpack.c.l.b16 %v79
  %v1228 = vunpack.c.h.b16 %v79
  %v1229 = vunpack.c.l.b16 %v80
  %v1230 = vunpack.c.h.b16 %v80
  %v1231 = vunpack.c.l.b16 %v81
  %v1232 = vunpack.c.h.b16 %v81
  %v1233 = vunpack.c.l.b16 %v82
  %v1234 = vunpack.c.h.b16 %v82
  %v1235 = vunpack.c.l.b16 %v83
  %v1236 = vunpack.c.h.b16 %v83
  %v1237 = vunpack.c.l.b16 %v84
  %v1238 = vunpack.c.h.b16 %v84
  %v1239 = vunpack.c.l.b16 %v85
  %v1240 = vunpack.c.h.b16 %v85
  %v1241 = vunpack.c.l.b16 %v86
  %v1242 = vunpack.c.h.b16 %v86
  %v1243 = vunpack.c.l.b16 %v87
  %v1244 = vunpack.c.h.b16 %v87
  %v1245 = vunpack.c.l.b16 %v88
  %v1246 = vunpack.c.h.b16 %v88
  %v1247 = vunpack.c.l.b16 %v89
  %v1248 = vunpack.c.h.b16 %v89
  %v1249 = vunpack.c.l.b16 %v90
  %v1250 = vunpack.c.h.b16 %v90
  %v1251 = vunpack.c.l.b16 %v91
  %v1252 = vunpack.c.h.b16 %v91
  %v1253 = vunpack.c.l.b16 %v92
  %v1254 = vunpack.c.h.b16 %v92
  %v1255 = vunpack.c.l.b16 %v93
  %v1256 = vunpack.c.h.b16 %v93
  %v1257 = vunpack.c.l.b16 %v94
  %v1258 = vunpack.c.h.b16 %v94
  %v1259 = vunpack.c.l.b16 %v95
  %v1260 = vunpack.c.h.b16 %v95
  %v1261 = vunpack.c.l.b16 %v96
  %v1262 = vunpack.c.h.b16 %v96
  %v1263 = vunpack.c.l.b16 %v97
  %v1264 = vunpack.c.h.b16 %v97
  %v1265 = vunpack.c.l.b16 %v98
  %v1266 = vunpack.c.h.b16 %v98
  %v1267 = vunpack.c.l.b16 %v99
  %v1268 = vunpack.c.h.b16 %v99
  %v1269 = vunpack.c.l.b16 %v100
  %v1270 = vunpack.c.h.b16 %v100
  %v1271 = vunpack.c.l.b16 %v101
  %v1272 = vunpack.c.h.b16 %v101
  %v1273 = vunpack.c.l.b16 %v102
  %v1274 = vunpack.c.h.b16 %v102
  %v1275 = vunpack.c.l.b16 %v103
  %v1276 = vunpack.c.h.b16 %v103
  %v1277 = vunpack.c.l.b16 %v104
  %v1278 = vunpack.c.h.b16 %v104
  %v1279 = vunpack.c.l.b16 %v105
  %v1280 = vunpack.c.h.b16 %v105
  %v1281 = vunpack.c.l.b16 %v106
  %v1282 = vunpack.c.h.b16 %v106
  %v1283 = vunpack.c.l.b16 %v107
  %v1284 = vunpack.c.h.b16 %v107
  %v1285 = vunpack.c.l.b16 %v108
  %v1286 = vunpack.c.h.b16 %v108
  %v1287 = vunpack.c.l.b16 %v109
  %v1288 = vunpack.c.h.b16 %v109
  %v1289 = vunpack.c.l.b16 %v110
  %v1290 = vunpack.c.h.b16 %v110
  %v1291 = vunpack.c.l.b16 %v111
  %v1292 = vunpack.c.h.b16 %v111
  %v1293 = vunpack.c.l.b16 %v112
  %v1294 = vunpack.c.h.b16 %v112
  %v1295 = vunpack.c.l.b16 %v113
  %v1296 = vunpack.c.h.b16 %v113
  %v1297 = vunpack.c.l.b16 %v114
  %v1298 = vunpack.c.h.b16 %v114
  %v1299 = vunpack.c.l.b16 %v115
  %v1300 = vunpack.c.h.b16 %v115
  %v1301 = vunpack.c.l.b16 %v116
  %v1302 = vunpack.c.h.b16 %v116
  %v1303 = vunpack.c.l.b16 %v117
  %v1304 = vunpack.c.h.b16 %v117
  %v1305 = vunpack.c.l.b16 %v118
  %v1306 = vunpack.c.h.b16 %v118
  %v1307 = vunpack.c.l.b16 %v119
  %v1308 = vunpack.c.h.b16 %v119
  %v1309 = vunpack.c.l.b16 %v120
  %v1310 = vunpack.c.h.b16 %v120
  %v1311 = vunpack.c.l.b16 %v121
  %v1312 = vunpack.c.h.b16 %v121
  %v1313 = vunpack.c.l.b16 %v122
  %v1314 = vunpack.c.h.b16 %v122
  %v1315 = vunpack.c.l.b16 %v123
  %v1316 = vunpack.c.h.b16 %v123
  %v1317 = vunpack.c.l.b16 %v124
  %v1318 = vunpack.c.h.b16 %v124
  %v1319 = vunpack.c.l.b16 %v125
  %v1320 = vunpack.c.h.b16 %v125
  %v1321 = vunpack.c.l.b16 %v126
  %v1322 = vunpack.c.h.b16 %v126
  %v1323 = vunpack.c.l.b16 %v127
  %v1324 = vunpack.c.h.b16 %v127
  %v1325 = vunpack.c.l.b16 %v128
  %v1326 = vunpack.c.h.b16 %v128
  %v1327 = vunpack.c.l.b16 %v129
  %v1328 = vunpack.c.h.b16 %v129
  %v1329 = vunpack.c.l.b16 %v130
  %v1330 = vunpack.c.h.b16 %v130
  %v1331 = vunpack.c.l.b16 %v131
  %v1332 = vunpack.c.h.b16 %v131
  %v1333 = vunpack.c.l.b16 %v132
  %v1334 = vunpack.c.h.b16 %v132
  %v1335 = vunpack.c.l.b16 %v133
  %v1336 = vunpack.c.h.b16 %v133
  %v1337 = vunpack.c.l.b16 %v134
  %v1338 = vunpack.c.h.b16 %v134
  %v1339 = vunpack.c.l.b16 %v135
  %v1340 = vunpack.c.h.b16 %v135
  %v1341 = vunpack.c.l.b16 %v136
  %v1342 = vunpack.c.h.b16 %v136
  %v1343 = vunpack.c.l.b16 %v137
  %v1344 = vunpack.c.h.b16 %v137
  %v1345 = vunpack.c.l.b16 %v138
  %v1346 = vunpack.c.h.b16 %v138
  %v1347 = vunpack.c.l.b16 %v139
  %v1348 = vunpack.c.h.b16 %v139
  %v1349 = vunpack.c.l.b16 %v140
  %v1350 = vunpack.c.h.b16 %v140
  %v1351 = vunpack.c.l.b16 %v141
  %v1352 = vunpack.c.h.b16 %v141
  %v1353 = vunpack.c.l.b16 %v142
  %v1354 = vunpack.c.h.b16 %v142
  %v1355 = vunpack.c.l.b16 %v143
  %v1356 = vunpack.c.h.b16 %v143
  %v1357 = vunpack.c.l.b16 %v144
  %v1358 = vunpack.c.h.b16 %v144
  %v1359 = vunpack.c.l.b16 %v145
  %v1360 = vunpack.c.h.b16 %v145
  %v1361 = vunpack.c.l.b16 %v146
  %v1362 = vunpack.c.h.b16 %v146
  %v1363 = vunpack.c.l.b16 %v147
  %v1364 = vunpack.c.h.b16 %v147
  %v1365 = vunpack.c.l.b16 %v148
  %v1366 = vunpack.c.h.b16 %v148
  %v1367 = vunpack.c.l.b16 %v149
  %v1368 = vunpack.c.h.b16 %v149
  %v1369 = vunpack.c.l.b16 %v150
  %v1370 = vunpack.c.h.b16 %v150
  %v1371 = vunpack.c.l.b16 %v151
  %v1372 = vunpack.c.h.b16 %v151
  %v1373 = vunpack.c.l.b16 %v152
  %v1374 = vunpack.c.h.b16 %v152
  %v1375 = vunpack.c.l.b16 %v153
  %v1376 = vunpack.c.h.b16 %v153
  %v1377 = vunpack.c.l.b16 %v154
  %v1378 = vunpack.c.h.b16 %v154
  %v1379 = vunpack.c.l.b16 %v155
  %v1380 = vunpack.c.h.b16 %v155
  %v1381 = vunpack.c.l.b16 %v156
  %v1382 = vunpack.c.h.b16 %v156
  %v1383 = vunpack.c.l.b16 %v157
  %v1384 = vunpack.c.h.b16 %v157
  %v1385 = vunpack.c.l.b16 %v158
  %v1386 = vunpack.c.h.b16 %v158
  %v1387 = vunpack.c.l.b16 %v159
  %v1388 = vunpack.c.h.b16 %v159
  %v1389 = vunpack.c.l.b16 %v160
  %v1390 = vunpack.c.h.b16 %v160
  %v1391 = vunpack.c.l.b16 %v161
  %v1392 = vunpack.c.h.b16 %v161
  %v1393 = vunpack.c.l.b16 %v162
  %v1394 = vunpack.c.h.b16 %v162
  %v1395 = vunpack.c.l.b16 %v163
  %v1396 = vunpack.c.h.b16 %v163
  %v1397 = vunpack.c.l.b16 %v164
  %v1398 = vunpack.c.h.b16 %v164
  %v1399 = vunpack.c.l.b16 %v165
  %v1400 = vunpack.c.h.b16 %v165
  %v1401 = vunpack.c.l.b16 %v166
  %v1402 = vunpack.c.h.b16 %v166
  %v1403 = vunpack.c.l.b16 %v167
  %v1404 = vunpack.c.h.b16 %v167
  %v1405 = vunpack.c.l.b16 %v168
  %v1406 = vunpack.c.h.b16 %v168
  %v1407 = vunpack.c.l.b16 %v169
  %v1408 = vunpack.c.h.b16 %v169
  %v1409 = vunpack.c.l.b16 %v170
  %v1410 = vunpack.c.h.b16 %v170
  %v1411 = vunpack.c.l.b16 %v171
  %v1412 = vunpack.c.h.b16 %v171
  %v1413 = vunpack.c.l.b16 %v172
  %v1414 = vunpack.c.h.b16 %v172
  %v1415 = vunpack.c.l.b16 %v173
  %v1416 = vunpack.c.h.b16 %v173
  %v1417 = vunpack.c.l.b16 %v174
  %v1418 = vunpack.c.h.b16 %v174
  %v1419 = vunpack.c.l.b16 %v175
  %v1420 = vunpack.c.h.b16 %v175
  %v1421 = vunpack.c.l.b16 %v176
  %v1422 = vunpack.c.h.b16 %v176
  %v1423 = vunpack.c.l.b16 %v177
  %v1424 = vunpack.c.h.b16 %v177
  %v1425 = vunpack.c.l.b16 %v178
  %v1426 = vunpack.c.h.b16 %v178
  %v1427 = vunpack.c.l.b16 %v179
  %v1428 = vunpack.c.h.b16 %v179
  %v1429 = vunpack.c.l.b16 %v180
  %v1430 = vunpack.c.h.b16 %v180
  %v1431 = vunpack.c.l.b16 %v181
  %v1432 = vunpack.c.h.b16 %v181
  %v1433 = vunpack.c.l.b16 %v182
  %v1434 = vunpack.c.h.b16 %v182
  %v1435 = vunpack.c.l.b16 %v183
  %v1436 = vunpack.c.h.b16 %v183
  %v1437 = vunpack.c.l.b16 %v184
  %v1438 = vunpack.c.h.b16 %v184
  %v1439 = vunpack.c.l.b16 %v185
  %v1440 = vunpack.c.h.b16 %v185
  %v1441 = vunpack.c.l.b16 %v186
  %v1442 = vunpack.c.h.b16 %v186
  %v1443 = vunpack.c.l.b16 %v187
  %v1444 = vunpack.c.h.b16 %v187
  %v1445 = vunpack.c.l.b16 %v188
  %v1446 = vunpack.c.h.b16 %v188
  %v1447 = vunpack.c.l.b16 %v189
  %v1448 = vunpack.c.h.b16 %v189
  %v1449 = vunpack.c.l.b16 %v190
  %v1450 = vunpack.c.h.b16 %v190
  %v1451 = vunpack.c.l.b16 %v191
  %v1452 = vunpack.c.h.b16 %v191
  %v1453 = vunpack.c.l.b16 %v192
  %v1454 = vunpack.c.h.b16 %v192
  %v1455 = vunpack.c.l.b16 %v193
  %v1456 = vunpack.c.h.b16 %v193
  %v1457 = vunpack.c.l.b16 %v194
  %v1458 = vunpack.c.h.b16 %v194
  %v1459 = vunpack.c.l.b16 %v195
  %v1460 = vunpack.c.h.b16 %v195
  %v1461 = vunpack.c.l.b16 %v196
  %v1462 = vunpack.c.h.b16 %v196
  %v1463 = vunpack.c.l.b16 %v197
  %v1464 = vunpack.c.h.b16 %v197
  %v1465 = vunpack.c.l.b16 %v198
  %v1466 = vunpack.c.h.b16 %v198
  %v1467 = vunpack.c.l.b16 %v199
  %v1468 = vunpack.c.h.b16 %v199
  %v1469 = vunpack.c.l.b16 %v200
  %v1470 = vunpack.c.h.b16 %v200
  %v1471 = vunpack.c.l.b16 %v201
  %v1472 = vunpack.c.h.b16 %v201
  %v1473 = vunpack.c.l.b16 %v202
  %v1474 = vunpack.c.h.b16 %v202
  %v1475 = vunpack.c.l.b16 %v203
  %v1476 = vunpack.c.h.b16 %v203
  %v1477 = vunpack.c.l.b16 %v204
  %v1478 = vunpack.c.h.b16 %v204
  %v1479 = vunpack.c.l.b16 %v205
  %v1480 = vunpack.c.h.b16 %v205
  %v1481 = vunpack.c.l.b16 %v206
  %v1482 = vunpack.c.h.b16 %v206
  %v1483 = vunpack.c.l.b16 %v207
  %v1484 = vunpack.c.h.b16 %v207
  %v1485 = vunpack.c.l.b16 %v208
  %v1486 = vunpack.c.h.b16 %v208
  %v1487 = vunpack.c.l.b16 %v209
  %v1488 = vunpack.c.h.b16 %v209
  %v1489 = vunpack.c.l.b16 %v210
  %v1490 = vunpack.c.h.b16 %v210
  %v1491 = vunpack.c.l.b16 %v211
  %v1492 = vunpack.c.h.b16 %v211
  %v1493 = vunpack.c.l.b16 %v212
  %v1494 = vunpack.c.h.b16 %v212
  %v1495 = vunpack.c.l.b16 %v213
  %v1496 = vunpack.c.h.b16 %v213
  %v1497 = vunpack.c.l.b16 %v214
  %v1498 = vunpack.c.h.b16 %v214
  %v1499 = vunpack.c.l.b16 %v215
  %v1500 = vunpack.c.h.b16 %v215
  %v1501 = vunpack.c.l.b16 %v216
  %v1502 = vunpack.c.h.b16 %v216
  %v1503 = vunpack.c.l.b16 %v217
  %v1504 = vunpack.c.h.b16 %v217
  %v1505 = vunpack.c.l.b16 %v218
  %v1506 = vunpack.c.h.b16 %v218
  %v1507 = vunpack.c.l.b16 %v219
  %v1508 = vunpack.c.h.b16 %v219
  %v1509 = vunpack.c.l.b16 %v220
  %v1510 = vunpack.c.h.b16 %v220
  %v1511 = vunpack.c.l.b16 %v221
  %v1512 = vunpack.c.h.b16 %v221
  %v1513 = vunpack.c.l.b16 %v222
  %v1514 = vunpack.c.h.b16 %v222
  %v1515 = vunpack.c.l.b16 %v223
  %v1516 = vunpack.c.h.b16 %v223
  %v1517 = vunpack.c.l.b16 %v224
  %v1518 = vunpack.c.h.b16 %v224
  %v1519 = vunpack.c.l.b16 %v225
  %v1520 = vunpack.c.h.b16 %v225
  %v1521 = vunpack.c.l.b16 %v226
  %v1522 = vunpack.c.h.b16 %v226
  %v1523 = vunpack.c.l.b16 %v227
  %v1524 = vunpack.c.h.b16 %v227
  %v1525 = vunpack.c.l.b16 %v228
  %v1526 = vunpack.c.h.b16 %v228
  %v1527 = vunpack.c.l.b16 %v229
  %v1528 = vunpack.c.h.b16 %v229
  %v1529 = vunpack.c.l.b16 %v230
  %v1530 = vunpack.c.h.b16 %v230
  %v1531 = vunpack.c.l.b16 %v231
  %v1532 = vunpack.c.h.b16 %v231
  %v1533 = vunpack.c.l.b16 %v232
  %v1534 = vunpack.c.h.b16 %v232
  %v1535 = vunpack.c.l.b16 %v233
  %v1536 = vunpack.c.h.b16 %v233
  %v1537 = vunpack.c.l.b16 %v234
  %v1538 = vunpack.c.h.b16 %v234
  %v1539 = vunpack.c.l.b16 %v235
  %v1540 = vunpack.c.h.b16 %v235
  %v1541 = vunpack.c.l.b16 %v236
  %v1542 = vunpack.c.h.b16 %v236
  %v1543 = vunpack.c.l.b16 %v237
  %v1544 = vunpack.c.h.b16 %v237
  %v1545 = vunpack.c.l.b16 %v238
  %v1546 = vunpack.c.h.b16 %v238
  %v1547 = vunpack.c.l.b16 %v239
  %v1548 = vunpack.c.h.b16 %v239
  %v1549 = vunpack.c.l.b16 %v240
  %v1550 = vunpack.c.h.b16 %v240
  %v1551 = vunpack.c.l.b16 %v241
  %v1552 = vunpack.c.h.b16 %v241
  %v1553 = vunpack.c.l.b16 %v242
  %v1554 = vunpack.c.h.b16 %v242
  %v1555 = vunpack.c.l.b16 %v243
  %v1556 = vunpack.c.h.b16 %v243
  %v1557 = vunpack.c.l.b16 %v244
  %v1558 = vunpack.c.h.b16 %v244
  %v1559 = vunpack.c.l.b16 %v245
  %v1560 = vunpack.c.h.b16 %v245
  %v1561 = vunpack.c.l.b16 %v246
  %v1562 = vunpack.c.h.b16 %v246
  %v1563 = vunpack.c.l.b16 %v247
  %v1564 = vunpack.c.h.b16 %v247
  %v1565 = vunpack.c.l.b16 %v248
  %v1566 = vunpack.c.h.b16 %v248
  %v1567 = vunpack.c.l.b16 %v249
  %v1568 = vunpack.c.h.b16 %v249
  %v1569 = vunpack.c.l.b16 %v250
  %v1570 = vunpack.c.h.b16 %v250
  %v1571 = vunpack.c.l.b16 %v251
  %v1572 = vunpack.c.h.b16 %v251
  %v1573 = vunpack.c.l.b16 %v252
  %v1574 = vunpack.c.h.b16 %v252
  %v1575 = vunpack.c.l.b16 %v253
  %v1576 = vunpack.c.h.b16 %v253
  %v1577 = vunpack.c.l.b16 %v254
  %v1578 = vunpack.c.h.b16 %v254
  %v1579 = vunpack.c.l.b16 %v255
  %v1580 = vunpack.c.h.b16 %v255
  %v1581 = vunpack.c.l.b16 %v256
  %v1582 = vunpack.c.h.b16 %v256
  %v1583 = vunpack.c.l.b16 %v257
  %v1584 = vunpack.c.h.b16 %v257
  %v1585 = vunpack.c.l.b16 %v258
  %v1586 = vunpack.c.h.b16 %v258
  %v1587 = vunpack.c.l.b16 %v259
  %v1588 = vunpack.c.h.b16 %v259
  %v1589 = vunpack.c.l.b16 %v260
  %v1590 = vunpack.c.h.b16 %v260
  %v1591 = vunpack.c.l.b16 %v261
  %v1592 = vunpack.c.h.b16 %v261
  %v1593 = vunpack.c.l.b16 %v262
  %v1594 = vunpack.c.h.b16 %v262
  %v1595 = vunpack.c.l.b16 %v263
  %v1596 = vunpack.c.h.b16 %v263
  %v1597 = vunpack.c.l.b16 %v264
  %v1598 = vunpack.c.h.b16 %v264
  %v1599 = vunpack.c.l.b16 %v265
  %v1600 = vunpack.c.h.b16 %v265
  %v1601 = vunpack.c.l.b16 %v266
  %v1602 = vunpack.c.h.b16 %v266
  %v1603 = vunpack.c.l.b16 %v267
  %v1604 = vunpack.c.h.b16 %v267
  %v1605 = vunpack.c.l.b16 %v268
  %v1606 = vunpack.c.h.b16 %v268
  %v1607 = vunpack.c.l.b16 %v269
  %v1608 = vunpack.c.h.b16 %v269
  %v1609 = vunpack.c.l.b16 %v270
  %v1610 = vunpack.c.h.b16 %v270
  %v1611 = vunpack.c.l.b16 %v271
  %v1612 = vunpack.c.h.b16 %v271
  %v1613 = vunpack.c.l.b16 %v272
  %v1614 = vunpack.c.h.b16 %v272
  %v1615 = vunpack.c.l.b16 %v273
  %v1616 = vunpack.c.h.b16 %v273
  %v1617 = vunpack.c.l.b16 %v274
  %v1618 = vunpack.c.h.b16 %v274
  %v1619 = vunpack.c.l.b16 %v275
  %v1620 = vunpack.c.h.b16 %v275
  %v1621 = vunpack.c.l.b16 %v276
  %v1622 = vunpack.c.h.b16 %v276
  %v1623 = vunpack.c.l.b16 %v277
  %v1624 = vunpack.c.h.b16 %v277
  %v1625 = vunpack.c.l.b16 %v278
  %v1626 = vunpack.c.h.b16 %v278
  %v1627 = vunpack.c.l.b16 %v279
  %v1628 = vunpack.c.h.b16 %v279
  %v1629 = vunpack.c.l.b16 %v280
  %v1630 = vunpack.c.h.b16 %v280
  %v1631 = vunpack.c.l.b16 %v281
  %v1632 = vunpack.c.h.b16 %v281
  %v1633 = vunpack.c.l.b16 %v282
  %v1634 = vunpack.c.h.b16 %v282
  %v1635 = vunpack.c.l.b16 %v283
  %v1636 = vunpack.c.h.b16 %v283
  %v1637 = vunpack.c.l.b16 %v284
  %v1638 = vunpack.c.h.b16 %v284
  %v1639 = vunpack.c.l.b16 %v285
  %v1640 = vunpack.c.h.b16 %v285
  %v1641 = vunpack.c.l.b16 %v286
  %v1642 = vunpack.c.h.b16 %v286
  %v1643 = vunpack.c.l.b16 %v287
  %v1644 = vunpack.c.h.b16 %v287
  %v1645 = vunpack.c.l.b16 %v288
  %v1646 = vunpack.c.h.b16 %v288
  %v1647 = vunpack.c.l.b16 %v289
  %v1648 = vunpack.c.h.b16 %v289
  %v1649 = vunpack.c.l.b16 %v290
  %v1650 = vunpack.c.h.b16 %v290
  %v1651 = vunpack.c.l.b16 %v291
  %v1652 = vunpack.c.h.b16 %v291
  %v1653 = vunpack.c.l.b16 %v292
  %v1654 = vunpack.c.h.b16 %v292
  %v1655 = vunpack.c.l.b16 %v293
  %v1656 = vunpack.c.h.b16 %v293
  %v1657 = vunpack.c.l.b16 %v294
  %v1658 = vunpack.c.h.b16 %v294
  %v1659 = vunpack.c.l.b16 %v295
  %v1660 = vunpack.c.h.b16 %v295
  %v1661 = vunpack.c.l.b16 %v296
  %v1662 = vunpack.c.h.b16 %v296
  %v1663 = vunpack.c.l.b16 %v297
  %v1664 = vunpack.c.h.b16 %v297
  %v1665 = vunpack.c.l.b16 %v298
  %v1666 = vunpack.c.h.b16 %v298
  %v1667 = vunpack.c.l.b16 %v299
  %v1668 = vunpack.c.h.b16 %v299
  %v1669 = vunpack.c.l.b16 %v300
  %v1670 = vunpack.c.h.b16 %v300
  %v1671 = vunpack.c.l.b16 %v301
  %v1672 = vunpack.c.h.b16 %v301
  %v1673 = vunpack.c.l.b16 %v302
  %v1674 = vunpack.c.h.b16 %v302
  %v1675 = vunpack.c.l.b16 %v303
  %v1676 = vunpack.c.h.b16 %v303
  %v1677 = vunpack.c.l.b16 %v304
  %v1678 = vunpack.c.h.b16 %v304
  %v1679 = vunpack.c.l.b16 %v305
  %v1680 = vunpack.c.h.b16 %v305
  %v1681 = vunpack.c.l.b16 %v306
  %v1682 = vunpack.c.h.b16 %v306
  %v1683 = vunpack.c.l.b16 %v307
  %v1684 = vunpack.c.h.b16 %v307
  %v1685 = vunpack.c.l.b16 %v308
  %v1686 = vunpack.c.h.b16 %v308
  %v1687 = vunpack.c.l.b16 %v309
  %v1688 = vunpack.c.h.b16 %v309
  %v1689 = vunpack.c.l.b16 %v310
  %v1690 = vunpack.c.h.b16 %v310
  %v1691 = vunpack.c.l.b16 %v311
  %v1692 = vunpack.c.h.b16 %v311
  %v1693 = vunpack.c.l.b16 %v312
  %v1694 = vunpack.c.h.b16 %v312
  %v1695 = vunpack.c.l.b16 %v313
  %v1696 = vunpack.c.h.b16 %v313
  %v1697 = vunpack.c.l.b16 %v314
  %v1698 = vunpack.c.h.b16 %v314
  %v1699 = vunpack.c.l.b16 %v315
  %v1700 = vunpack.c.h.b16 %v315
  %v1701 = vunpack.c.l.b16 %v316
  %v1702 = vunpack.c.h.b16 %v316
  %v1703 = vunpack.c.l.b16 %v317
  %v1704 = vunpack.c.h.b16 %v317
  %v1705 = vunpack.c.l.b16 %v318
  %v1706 = vunpack.c.h.b16 %v318
  %v1707 = vunpack.c.l.b16 %v319
  %v1708 = vunpack.c.h.b16 %v319
  %v1709 = vunpack.c.l.b16 %v320
  %v1710 = vunpack.c.h.b16 %v320
  %v1711 = vunpack.c.l.b16 %v321
  %v1712 = vunpack.c.h.b16 %v321
  %v1713 = vunpack.c.l.b16 %v322
  %v1714 = vunpack.c.h.b16 %v322
  %v1715 = vunpack.c.l.b16 %v323
  %v1716 = vunpack.c.h.b16 %v323
  %v1717 = vunpack.c.l.b16 %v324
  %v1718 = vunpack.c.h.b16 %v324
  %v1719 = vunpack.c.l.b16 %v325
  %v1720 = vunpack.c.h.b16 %v325
  %v1721 = vunpack.c.l.b16 %v326
  %v1722 = vunpack.c.h.b16 %v326
  %v1723 = vunpack.c.l.b16 %v327
  %v1724 = vunpack.c.h.b16 %v327
  %v1725 = vunpack.c.l.b16 %v328
  %v1726 = vunpack.c.h.b16 %v328
  %v1727 = vunpack.c.l.b16 %v329
  %v1728 = vunpack.c.h.b16 %v329
  %v1729 = vunpack.c.l.b16 %v330
  %v1730 = vunpack.c.h.b16 %v330
  %v1731 = vunpack.c.l.b16 %v331
  %v1732 = vunpack.c.h.b16 %v331
  %v1733 = vunpack.c.l.b16 %v332
  %v1734 = vunpack.c.h.b16 %v332
  %v1735 = vunpack.c.l.b16 %v333
  %v1736 = vunpack.c.h.b16 %v333
  %v1737 = vunpack.c.l.b16 %v334
  %v1738 = vunpack.c.h.b16 %v334
  %v1739 = vunpack.c.l.b16 %v335
  %v1740 = vunpack.c.h.b16 %v335
  %v1741 = vunpack.c.l.b16 %v336
  %v1742 = vunpack.c.h.b16 %v336
  %v1743 = vunpack.c.l.b16 %v337
  %v1744 = vunpack.c.h.b16 %v337
  %v1745 = vunpack.c.l.b16 %v338
  %v1746 = vunpack.c.h.b16 %v338
  %v1747 = vunpack.c.l.b16 %v339
  %v1748 = vunpack.c.h.b16 %v339
  %v1749 = vunpack.c.l.b16 %v340
  %v1750 = vunpack.c.h.b16 %v340
  %v1751 = vunpack.c.l.b16 %v341
  %v1752 = vunpack.c.h.b16 %v341
  %v1753 = vunpack.c.l.b16 %v342
  %v1754 = vunpack.c.h.b16 %v342
  %v1755 = vunpack.c.l.b16 %v343
  %v1756 = vunpack.c.h.b16 %v343
  %v1757 = vunpack.c.l.b16 %v344
  %v1758 = vunpack.c.h.b16 %v344
  %v1759 = vunpack.c.l.b16 %v345
  %v1760 = vunpack.c.h.b16 %v345
  %v1761 = vunpack.c.l.b16 %v346
  %v1762 = vunpack.c.h.b16 %v346
  %v1763 = vunpack.c.l.b16 %v347
  %v1764 = vunpack.c.h.b16 %v347
  %v1765 = vunpack.c.l.b16 %v348
  %v1766 = vunpack.c.h.b16 %v348
  %v1767 = vunpack.c.l.b16 %v349
  %v1768 = vunpack.c.h.b16 %v349
  %v1769 = vunpack.c.l.b16 %v350
  %v1770 = vunpack.c.h.b16 %v350
  %v1771 = vunpack.c.l.b16 %v351
  %v1772 = vunpack.c.h.b16 %v351
  %v1773 = vunpack.c.l.b16 %v352
  %v1774 = vunpack.c.h.b16 %v352
  %v1775 = vunpack.c.l.b16 %v353
  %v1776 = vunpack.c.h.b16 %v353
  %v1777 = vunpack.c.l.b16 %v354
  %v1778 = vunpack.c.h.b16 %v354
  %v1779 = vunpack.c.l.b16 %v355
  %v1780 = vunpack.c.h.b16 %v355
  %v1781 = vunpack.c.l.b16 %v356
  %v1782 = vunpack.c.h.b16 %v356
  %v1783 = vunpack.c.l.b16 %v357
  %v1784 = vunpack.c.h.b16 %v357
  %v1785 = vunpack.c.l.b16 %v358
  %v1786 = vunpack.c.h.b16 %v358
  %v1787 = vunpack.c.l.b16 %v359
  %v1788 = vunpack.c.h.b16 %v359
  %v1789 = vunpack.c.l.b16 %v360
  %v1790 = vunpack.c.h.b16 %v360
  %v1791 = vunpack.c.l.b16 %v361
  %v1792 = vunpack.c.h.b16 %v361
  %v1793 = vunpack.c.l.b16 %v362
  %v1794 = vunpack.c.h.b16 %v362
  %v1795 = vunpack.c.l.b16 %v363
  %v1796 = vunpack.c.h.b16 %v363
  %v1797 = vunpack.c.l.b16 %v364
  %v1798 = vunpack.c.h.b16 %v364
  %v1799 = vunpack.c.l.b16 %v365
  %v1800 = vunpack.c.h.b16 %v365
  %v1801 = vunpack.c.l.b16 %v366
  %v1802 = vunpack.c.h.b16 %v366
  %v1803 = vunpack.c.l.b16 %v367
  %v1804 = vunpack.c.h.b16 %v367
  %v1805 = vunpack.c.l.b16 %v368
  %v1806 = vunpack.c.h.b16 %v368
  %v1807 = vunpack.c.l.b16 %v369
  %v1808 = vunpack.c.h.b16 %v369
  %v1809 = vunpack.c.l.b16 %v370
  %v1810 = vunpack.c.h.b16 %v370
  %v1811 = vunpack.c.l.b16 %v371
  %v1812 = vunpack.c.h.b16 %v371
  %v1813 = vunpack.c.l.b16 %v372
  %v1814 = vunpack.c.h.b16 %v372
  %v1815 = vunpack.c.l.b16 %v373
  %v1816 = vunpack.c.h.b16 %v373
  %v1817 = vunpack.c.l.b16 %v374
  %v1818 = vunpack.c.h.b16 %v374
  %v1819 = vunpack.c.l.b16 %v375
  %v1820 = vunpack.c.h.b16 %v375
  %v1821 = vunpack.c.l.b16 %v376
  %v1822 = vunpack.c.h.b16 %v376
  %v1823 = vunpack.c.l.b16 %v377
  %v1824 = vunpack.c.h.b16 %v377
  %v1825 = vunpack.c.l.b16 %v378
  %v1826 = vunpack.c.h.b16 %v378
  %v1827 = vunpack.c.l.b16 %v379
  %v1828 = vunpack.c.h.b16 %v379
  %v1829 = vunpack.c.l.b16 %v380
  %v1830 = vunpack.c.h.b16 %v380
  %v1831 = vunpack.c.l.b16 %v381
  %v1832 = vunpack.c.h.b16 %v381
  %v1833 = vunpack.c.l.b16 %v382
  %v1834 = vunpack.c.h.b16 %v382
  %v1835 = vunpack.c.l.b16 %v383
  %v1836 = vunpack.c.h.b16 %v383
  %v1837 = vunpack.c.l.b16 %v384
  %v1838 = vunpack.c.h.b16 %v384
  %v1839 = vunpack.c.l.b16 %v385
  %v1840 = vunpack.c.h.b16 %v385
  %v1841 = vunpack.c.l.b16 %v386
  %v1842 = vunpack.c.h.b16 %v386
  %v1843 = vunpack.c.l.b16 %v387
  %v1844 = vunpack.c.h.b16 %v387
  %v1845 = vunpack.c.l.b16 %v388
  %v1846 = vunpack.c.h.b16 %v388
  %v1847 = vunpack.c.l.b16 %v389
  %v1848 = vunpack.c.h.b16 %v389
  %v1849 = vunpack.c.l.b16 %v390
  %v1850 = vunpack.c.h.b16 %v390
  %v1851 = vunpack.c.l.b16 %v391
  %v1852 = vunpack.c.h.b16 %v391
  %v1853 = vunpack.c.l.b16 %v392
  %v1854 = vunpack.c.h.b16 %v392
  %v1855 = vunpack.c.l.b16 %v393
  %v1856 = vunpack.c.h.b16 %v393
  %v1857 = vunpack.c.l.b16 %v394
  %v1858 = vunpack.c.h.b16 %v394
  %v1859 = vunpack.c.l.b16 %v395
  %v1860 = vunpack.c.h.b16 %v395
  %v1861 = vunpack.c.l.b16 %v396
  %v1862 = vunpack.c.h.b16 %v396
  %v1863 = vunpack.c.l.b16 %v397
  %v1864 = vunpack.c.h.b16 %v397
  %v1865 = vunpack.c.l.b16 %v398
  %v1866 = vunpack.c.h.b16 %v398
  %v1867 = vunpack.c.l.b16 %v399
  %v1868 = vunpack.c.h.b16 %v399
  %v1869 = vunpack.c.l.b16 %v400
  %v1870 = vunpack.c.h.b16 %v400
  %v1871 = vunpack.c.l.b16 %v401
  %v1872 = vunpack.c.h.b16 %v401
  %v1873 = vunpack.c.l.b16 %v402
  %v1874 = vunpack.c.h.b16 %v402
  %v1875 = vunpack.c.l.b16 %v403
  %v1876 = vunpack.c.h.b16 %v403
  %v1877 = vunpack.c.l.b16 %v404
  %v1878 = vunpack.c.h.b16 %v404
  %v1879 = vunpack.c.l.b16 %v405
  %v1880 = vunpack.c.h.b16 %v405
  %v1881 = vunpack.c.l.b16 %v406
  %v1882 = vunpack.c.h.b16 %v406
  %v1883 = vunpack.c.l.b16 %v407
  %v1884 = vunpack.c.h.b16 %v407
  %v1885 = vunpack.c.l.b16 %v408
  %v1886 = vunpack.c.h.b16 %v408
  %v1887 = vunpack.c.l.b16 %v409
  %v1888 = vunpack.c.h.b16 %v409
  %v1889 = vunpack.c.l.b16 %v410
  %v1890 = vunpack.c.h.b16 %v410
  %v1891 = vunpack.c.l.b16 %v411
  %v1892 = vunpack.c.h.b16 %v411
  %v1893 = vunpack.c.l.b16 %v412
  %v1894 = vunpack.c.h.b16 %v412
  %v1895 = vunpack.c.l.b16 %v413
  %v1896 = vunpack.c.h.b16 %v413
  %v1897 = vunpack.c.l.b16 %v414
  %v1898 = vunpack.c.h.b16 %v414
  %v1899 = vunpack.c.l.b16 %v415
  %v1900 = vunpack.c.h.b16 %v415
  %v1901 = vunpack.c.l.b16 %v416
  %v1902 = vunpack.c.h.b16 %v416
  %v1903 = vunpack.c.l.b16 %v417
  %v1904 = vunpack.c.h.b16 %v417
  %v1905 = vunpack.c.l.b16 %v418
  %v1906 = vunpack.c.h.b16 %v418
  %v1907 = vunpack.c.l.b16 %v419
  %v1908 = vunpack.c.h.b16 %v419
  %v1909 = vunpack.c.l.b16 %v420
  %v1910 = vunpack.c.h.b16 %v420
  %v1911 = vunpack.c.l.b16 %v421
  %v1912 = vunpack.c.h.b16 %v421
  %v1913 = vunpack.c.l.b16 %v422
  %v1914 = vunpack.c.h.b16 %v422
  %v1915 = vunpack.c.l.b16 %v423
  %v1916 = vunpack.c.h.b16 %v423
  %v1917 = vunpack.c.l.b16 %v424
  %v1918 = vunpack.c.h.b16 %v424
  %v1919 = vunpack.c.l.b16 %v425
  %v1920 = vunpack.c.h.b16 %v425
  %v1921 = vunpack.c.l.b16 %v426
  %v1922 = vunpack.c.h.b16 %v426
  %v1923 = vunpack.c.l.b16 %v427
  %v1924 = vunpack.c.h.b16 %v427
  %v1925 = vunpack.c.l.b16 %v428
  %v1926 = vunpack.c.h.b16 %v428
  %v1927 = vunpack.c.l.b16 %v429
  %v1928 = vunpack.c.h.b16 %v429
  %v1929 = vunpack.c.l.b16 %v430
  %v1930 = vunpack.c.h.b16 %v430
  %v1931 = vunpack.c.l.b16 %v431
  %v1932 = vunpack.c.h.b16 %v431
  %v1933 = vunpack.c.l.b16 %v432
  %v1934 = vunpack.c.h.b16 %v432
  %v1935 = vunpack.c.l.b16 %v433
  %v1936 = vunpack.c.h.b16 %v433
  %v1937 = vunpack.c.l.b16 %v434
  %v1938 = vunpack.c.h.b16 %v434
  %v1939 = vunpack.c.l.b16 %v435
  %v1940 = vunpack.c.h.b16 %v435
  %v1941 = vunpack.c.l.b16 %v436
  %v1942 = vunpack.c.h.b16 %v436
  %v1943 = vunpack.c.l.b16 %v437
  %v1944 = vunpack.c.h.b16 %v437
  %v1945 = vunpack.c.l.b16 %v438
  %v1946 = vunpack.c.h.b16 %v438
  %v1947 = vunpack.c.l.b16 %v439
  %v1948 = vunpack.c.h.b16 %v439
  %v1949 = vunpack.c.l.b16 %v440
  %v1950 = vunpack.c.h.b16 %v440
  %v1951 = vunpack.c.l.b16 %v441
  %v1952 = vunpack.c.h.b16 %v441
  %v1953 = vunpack.c.l.b16 %v442
  %v1954 = vunpack.c.h.b16 %v442
  %v1955 = vunpack.c.l.b16 %v443
  %v1956 = vunpack.c.h.b16 %v443
  %v1957 = vunpack.c.l.b16 %v444
  %v1958 = vunpack.c.h.b16 %v444
  %v1959 = vunpack.c.l.b16 %v445
  %v1960 = vunpack.c.h.b16 %v445
  %v1961 = vunpack.c.l.b16 %v446
  %v1962 = vunpack.c.h.b16 %v446
  %v1963 = vunpack.c.l.b16 %v447
  %v1964 = vunpack.c.h.b16 %v447
  %v1965 = vunpack.c.l.b16 %v448
  %v1966 = vunpack.c.h.b16 %v448
  %v1967 = vunpack.c.l.b16 %v449
  %v1968 = vunpack.c.h.b16 %v449
  %v1969 = vunpack.c.l.b16 %v450
  %v1970 = vunpack.c.h.b16 %v450
  %v1971 = vunpack.c.l.b16 %v451
  %v1972 = vunpack.c.h.b16 %v451
  %v1973 = vunpack.c.l.b16 %v452
  %v1974 = vunpack.c.h.b16 %v452
  %v1975 = vunpack.c.l.b16 %v453
  %v1976 = vunpack.c.h.b16 %v453
  %v1977 = vunpack.c.l.b16 %v454
  %v1978 = vunpack.c.h.b16 %v454
  %v1979 = vunpack.c.l.b16 %v455
  %v1980 = vunpack.c.h.b16 %v455
  %v1981 = vunpack.c.l.b16 %v456
  %v1982 = vunpack.c.h.b16 %v456
  %v1983 = vunpack.c.l.b16 %v457
  %v1984 = vunpack.c.h.b16 %v457
  %v1985 = vunpack.c.l.b16 %v458
  %v1986 = vunpack.c.h.b16 %v458
  %v1987 = vunpack.c.l.b16 %v459
  %v1988 = vunpack.c.h.b16 %v459
  %v1989 = vunpack.c.l.b16 %v460
  %v1990 = vunpack.c.h.b16 %v460
  %v1991 = vunpack.c.l.b16 %v461
  %v1992 = vunpack.c.h.b16 %v461
  %v1993 = vunpack.c.l.b16 %v462
  %v1994 = vunpack.c.h.b16 %v462
  %v1995 = vunpack.c.l.b16 %v463
  %v1996 = vunpack.c.h.b16 %v463
  %v1997 = vunpack.c.l.b16 %v464
  %v1998 = vunpack.c.h.b16 %v464
  %v1999 = vunpack.c.l.b16 %v465
  %v2000 = vunpack.c.h.b16 %v465
  %v2001 = vunpack.c.l.b16 %v466
  %v2002 = vunpack.c.h.b16 %v466
  %v2003 = vunpack.c.l.b16 %v467
  %v2004 = vunpack.c.h.b16 %v467
  %v2005 = vunpack.c.l.b16 %v468
  %v2006 = vunpack.c.h.b16 %v468
  %v2007 = vunpack.c.l.b16 %v469
  %v2008 = vunpack.c.h.b16 %v469
  %v2009 = vunpack.c.l.b16 %v470
  %v2010 = vunpack.c.h.b16 %v470
  %v2011 = vunpack.c.l.b16 %v471
  %v2012 = vunpack.c.h.b16 %v471
  %v2013 = vunpack.c.l.b16 %v472
  %v2014 = vunpack.c.h.b16 %v472
  %v2015 = vunpack.c.l.b16 %v473
  %v2016 = vunpack.c.h.b16 %v473
  %v2017 = vunpack.c.l.b16 %v474
  %v2018 = vunpack.c.h.b16 %v474
  %v2019 = vunpack.c.l.b16 %v475
  %v2020 = vunpack.c.h.b16 %v475
  %v2021 = vunpack.c.l.b16 %v476
  %v2022 = vunpack.c.h.b16 %v476
  %v2023 = vunpack.c.l.b16 %v477
  %v2024 = vunpack.c.h.b16 %v477
  %v2025 = vunpack.c.l.b16 %v478
  %v2026 = vunpack.c.h.b16 %v478
  %v2027 = vunpack.c.l.b16 %v479
  %v2028 = vunpack.c.h.b16 %v479
  %v2029 = vunpack.c.l.b16 %v480
  %v2030 = vunpack.c.h.b16 %v480
  %v2031 = vunpack.c.l.b16 %v481
  %v2032 = vunpack.c.h.b16 %v481
  %v2033 = vunpack.c.l.b16 %v482
  %v2034 = vunpack.c.h.b16 %v482
  %v2035 = vunpack.c.l.b16 %v483
  %v2036 = vunpack.c.h.b16 %v483
  %v2037 = vunpack.c.l.b16 %v484
  %v2038 = vunpack.c.h.b16 %v484
  %v2039 = vunpack.c.l.b16 %v485
  %v2040 = vunpack.c.h.b16 %v485
  %v2041 = vunpack.c.l.b16 %v486
  %v2042 = vunpack.c.h.b16 %v486
  %v2043 = vunpack.c.l.b16 %v487
  %v2044 = vunpack.c.h.b16 %v487
  %v2045 = vunpack.c.l.b16 %v488
  %v2046 = vunpack.c.h.b16 %v488
  %v2047 = vunpack.c.l.b16 %v489
  %v2048 = vunpack.c.h.b16 %v489
  %v2049 = vunpack.c.l.b16 %v490
  %v2050 = vunpack.c.h.b16 %v490
  %v2051 = vunpack.c.l.b16 %v491
  %v2052 = vunpack.c.h.b16 %v491
  %v2053 = vunpack.c.l.b16 %v492
  %v2054 = vunpack.c.h.b16 %v492
  %v2055 = vunpack.c.l.b16 %v493
  %v2056 = vunpack.c.h.b16 %v493
  %v2057 = vunpack.c.l.b16 %v494
  %v2058 = vunpack.c.h.b16 %v494
  %v2059 = vunpack.c.l.b16 %v495
  %v2060 = vunpack.c.h.b16 %v495
  %v2061 = vunpack.c.l.b16 %v496
  %v2062 = vunpack.c.h.b16 %v496
  %v2063 = vunpack.c.l.b16 %v497
  %v2064 = vunpack.c.h.b16 %v497
  %v2065 = vunpack.c.l.b16 %v498
  %v2066 = vunpack.c.h.b16 %v498
  %v2067 = vunpack.c.l.b16 %v499
  %v2068 = vunpack.c.h.b16 %v499
  %v2069 = vunpack.c.l.b16 %v500
  %v2070 = vunpack.c.h.b16 %v500
  %v2071 = vunpack.c.l.b16 %v501
  %v2072 = vunpack.c.h.b16 %v501
  %v2073 = vunpack.c.l.b16 %v502
  %v2074 = vunpack.c.h.b16 %v502
  %v2075 = vunpack.c.l.b16 %v503
  %v2076 = vunpack.c.h.b16 %v503
  %v2077 = vunpack.c.l.b16 %v504
  %v2078 = vunpack.c.h.b16 %v504
  %v2079 = vunpack.c.l.b16 %v505
  %v2080 = vunpack.c.h.b16 %v505
  %v2081 = vunpack.c.l.b16 %v506
  %v2082 = vunpack.c.h.b16 %v506
  %v2083 = vunpack.c.l.b16 %v507
  %v2084 = vunpack.c.h.b16 %v507
  %v2085 = vunpack.c.l.b16 %v508
  %v2086 = vunpack.c.h.b16 %v508
  %v2087 = vunpack.c.l.b16 %v509
  %v2088 = vunpack.c.h.b16 %v509
  %v2089 = vunpack.c.l.b16 %v510
  %v2090 = vunpack.c.h.b16 %v510
  %v2091 = vunpack.c.l.b16 %v511
  %v2092 = vunpack.c.h.b16 %v511
  %v2093 = vunpack.c.l.b16 %v512
  %v2094 = vunpack.c.h.b16 %v512
  %v2095 = vunpack.c.l.b16 %v513
  %v2096 = vunpack.c.h.b16 %v513
  %v2097 = vunpack.c.l.b16 %v514
  %v2098 = vunpack.c.h.b16 %v514
  %v2099 = vunpack.c.l.b16 %v515
  %v2100 = vunpack.c.h.b16 %v515
  %v2101 = vunpack.c.l.b16 %v516
  %v2102 = vunpack.c.h.b16 %v516
  %v2103 = vunpack.c.l.b16 %v517
  %v2104 = vunpack.c.h.b16 %v517
  %v2105 = vunpack.c.l.b16 %v518
  %v2106 = vunpack.c.h.b16 %v518
  %v2107 = vunpack.c.l.b16 %v519
  %v2108 = vunpack.c.h.b16 %v519
  %v2109 = vunpack.c.l.b16 %v520
  %v2110 = vunpack.c.h.b16 %v520
  %v2111 = vunpack.c.l.b16 %v521
  %v2112 = vunpack.c.h.b16 %v521
  %v2113 = vunpack.c.l.b16 %v522
  %v2114 = vunpack.c.h.b16 %v522
  %v2115 = vunpack.c.l.b16 %v523
  %v2116 = vunpack.c.h.b16 %v523
  %v2117 = vunpack.c.l.b16 %v524
  %v2118 = vunpack.c.h.b16 %v524
  %v2119 = vunpack.c.l.b16 %v525
  %v2120 = vunpack.c.h.b16 %v525
  %v2121 = vunpack.c.l.b16 %v526
  %v2122 = vunpack.c.h.b16 %v526
  %v2123 = vunpack.c.l.b16 %v527
  %v2124 = vunpack.c.h.b16 %v527
  %v2125 = vunpack.c.l.b16 %v528
  %v2126 = vunpack.c.h.b16 %v528
  %v2127 = vunpack.c.l.b16 %v529
  %v2128 = vunpack.c.h.b16 %v529
  %v2129 = vunpack.c.l.b16 %v530
  %v2130 = vunpack.c.h.b16 %v530
  %v2131 = vunpack.c.l.b16 %v531
  %v2132 = vunpack.c.h.b16 %v531
  %v2133 = vunpack.c.l.b16 %v532
  %v2134 = vunpack.c.h.b16 %v532
  %v2135 = vunpack.c.l.b16 %v533
  %v2136 = vunpack.c.h.b16 %v533
  %v2137 = vunpack.c.l.b16 %v534
  %v2138 = vunpack.c.h.b16 %v534
  %v2139 = vunpack.c.l.b16 %v535
  %v2140 = vunpack.c.h.b16 %v535
  %v2141 = vunpack.c.l.b16 %v536
  %v2142 = vunpack.c.h.b16 %v536
  %v2143 = vpack.c.b16 %v1127, %v1119
  %v2144 = vpack.c.b16 %v1128, %v1120
  %v2145 = vpack.c.b16 %v1129, %v1121
  %v2146 = vpack.c.b16 %v1130, %v1122
  %v2147 = vpack.c.b16 %v1131, %v1123
  %v2148 = vpack.c.b16 %v1132, %v1124
  %v2149 = vpack.c.b16 %v1133, %v1125
  %v2150 = vpack.c.b16 %v1134, %v1126
  %v2151 = vpack.c.b16 %v1143, %v1135
  %v2152 = vpack.c.b16 %v1144, %v1136
  %v2153 = vpack.c.b16 %v1145, %v1137
  %v2154 = vpack.c.b16 %v1146, %v1138
  %v2155 = vpack.c.b16 %v1147, %v1139
  %v2156 = vpack.c.b16 %v1148, %v1140
  %v2157 = vpack.c.b16 %v1149, %v1141
  %v2158 = vpack.c.b16 %v1150, %v1142
  %v2159 = vpack.c.b16 %v1159, %v1151
  %v2160 = vpack.c.b16 %v1160, %v1152
  %v2161 = vpack.c.b16 %v1161, %v1153
  %v2162 = vpack.c.b16 %v1162, %v1154
  %v2163 = vpack.c.b16 %v1163, %v1155
  %v2164 = vpack.c.b16 %v1164, %v1156
  %v2165 = vpack.c.b16 %v1165, %v1157
  %v2166 = vpack.c.b16 %v1166, %v1158
  %v2167 = vpack.c.b16 %v1175, %v1167
  %v2168 = vpack.c.b16 %v1176, %v1168
  %v2169 = vpack.c.b16 %v1177, %v1169
  %v2170 = vpack.c.b16 %v1178, %v1170
  %v2171 = vpack.c.b16 %v1179, %v1171
  %v2172 = vpack.c.b16 %v1180, %v1172
  %v2173 = vpack.c.b16 %v1181, %v1173
  %v2174 = vpack.c.b16 %v1182, %v1174
  %v2175 = vpack.c.b16 %v1191, %v1183
  %v2176 = vpack.c.b16 %v1192, %v1184
  %v2177 = vpack.c.b16 %v1193, %v1185
  %v2178 = vpack.c.b16 %v1194, %v1186
  %v2179 = vpack.c.b16 %v1195, %v1187
  %v2180 = vpack.c.b16 %v1196, %v1188
  %v2181 = vpack.c.b16 %v1197, %v1189
  %v2182 = vpack.c.b16 %v1198, %v1190
  %v2183 = vpack.c.b16 %v1207, %v1199
  %v2184 = vpack.c.b16 %v1208, %v1200
  %v2185 = vpack.c.b16 %v1209, %v1201
  %v2186 = vpack.c.b16 %v1210, %v1202
  %v2187 = vpack.c.b16 %v1211, %v1203
  %v2188 = vpack.c.b16 %v1212, %v1204
  %v2189 = vpack.c.b16 %v1213, %v1205
  %v2190 = vpack.c.b16 %v1214, %v1206
  %v2191 = vpack.c.b16 %v1223, %v1215
  %v2192 = vpack.c.b16 %v1224, %v1216
  %v2193 = vpack.c.b16 %v1225, %v1217
  %v2194 = vpack.c.b16 %v1226, %v1218
  %v2195 = vpack.c.b16 %v1227, %v1219
  %v2196 = vpack.c.b16 %v1228, %v1220
  %v2197 = vpack.c.b16 %v1229, %v1221
  %v2198 = vpack.c.b16 %v1230, %v1222
  %v2199 = vpack.c.b16 %v1239, %v1231
  %v2200 = vpack.c.b16 %v1240, %v1232
  %v2201 = vpack.c.b16 %v1241, %v1233
  %v2202 = vpack.c.b16 %v1242, %v1234
  %v2203 = vpack.c.b16 %v1243, %v1235
  %v2204 = vpack.c.b16 %v1244, %v1236
  %v2205 = vpack.c.b16 %v1245, %v1237
  %v2206 = vpack.c.b16 %v1246, %v1238
  %v2207 = vpack.c.b16 %v1255, %v1247
  %v2208 = vpack.c.b16 %v1256, %v1248
  %v2209 = vpack.c.b16 %v1257, %v1249
  %v2210 = vpack.c.b16 %v1258, %v1250
  %v2211 = vpack.c.b16 %v1259, %v1251
  %v2212 = vpack.c.b16 %v1260, %v1252
  %v2213 = vpack.c.b16 %v1261, %v1253
  %v2214 = vpack.c.b16 %v1262, %v1254
  %v2215 = vpack.c.b16 %v1271, %v1263
  %v2216 = vpack.c.b16 %v1272, %v1264
  %v2217 = vpack.c.b16 %v1273, %v1265
  %v2218 = vpack.c.b16 %v1274, %v1266
  %v2219 = vpack.c.b16 %v1275, %v1267
  %v2220 = vpack.c.b16 %v1276, %v1268
  %v2221 = vpack.c.b16 %v1277, %v1269
  %v2222 = vpack.c.b16 %v1278, %v1270
  %v2223 = vpack.c.b16 %v1287, %v1279
  %v2224 = vpack.c.b16 %v1288, %v1280
  %v2225 = vpack.c.b16 %v1289, %v1281
  %v2226 = vpack.c.b16 %v1290, %v1282
  %v2227 = vpack.c.b16 %v1291, %v1283
  %v2228 = vpack.c.b16 %v1292, %v1284
  %v2229 = vpack.c.b16 %v1293, %v1285
  %v2230 = vpack.c.b16 %v1294, %v1286
  %v2231 = vpack.c.b16 %v1303, %v1295
  %v2232 = vpack.c.b16 %v1304, %v1296
  %v2233 = vpack.c.b16 %v1305, %v1297
  %v2234 = vpack.c.b16 %v1306, %v1298
  %v2235 = vpack.c.b16 %v1307, %v1299
  %v2236 = vpack.c.b16 %v1308, %v1300
  %v2237 = vpack.c.b16 %v1309, %v1301
  %v2238 = vpack.c.b16 %v1310, %v1302
  %v2239 = vpack.c.b16 %v1319, %v1311
  %v2240 = vpack.c.b16 %v1320, %v1312
  %v2241 = vpack.c.b16 %v1321, %v1313
  %v2242 = vpack.c.b16 %v1322, %v1314
  %v2243 = vpack.c.b16 %v1323, %v1315
  %v2244 = vpack.c.b16 %v1324, %v1316
  %v2245 = vpack.c.b16 %v1325, %v1317
  %v2246 = vpack.c.b16 %v1326, %v1318
  %v2247 = vpack.c.b16 %v1335, %v1327
  %v2248 = vpack.c.b16 %v1336, %v1328
  %v2249 = vpack.c.b16 %v1337, %v1329
  %v2250 = vpack.c.b16 %v1338, %v1330
  %v2251 = vpack.c.b16 %v1339, %v1331
  %v2252 = vpack.c.b16 %v1340, %v1332
  %v2253 = vpack.c.b16 %v1341, %v1333
  %v2254 = vpack.c.b16 %v1342, %v1334
  %v2255 = vpack.c.b16 %v1351, %v1343
  %v2256 = vpack.c.b16 %v1352, %v1344
  %v2257 = vpack.c.b16 %v1353, %v1345
  %v2258 = vpack.c.b16 %v1354, %v1346
  %v2259 = vpack.c.b16 %v1355, %v1347
  %v2260 = vpack.c.b16 %v1356, %v1348
  %v2261 = vpack.c.b16 %v1357, %v1349
  %v2262 = vpack.c.b16 %v1358, %v1350
  %v2263 = vpack.c.b16 %v1367, %v1359
  %v2264 = vpack.c.b16 %v1368, %v1360
  %v2265 = vpack.c.b16 %v1369, %v1361
  %v2266 = vpack.c.b16 %v1370, %v1362
  %v2267 = vpack.c.b16 %v1371, %v1363
  %v2268 = vpack.c.b16 %v1372, %v1364
  %v2269 = vpack.c.b16 %v1373, %v1365
  %v2270 = vpack.c.b16 %v1374, %v1366
  %v2271 = vpack.c.b16 %v1383, %v1375
  %v2272 = vpack.c.b16 %v1384, %v1376
  %v2273 = vpack.c.b16 %v1385, %v1377
  %v2274 = vpack.c.b16 %v1386, %v1378
  %v2275 = vpack.c.b16 %v1387, %v1379
  %v2276 = vpack.c.b16 %v1388, %v1380
  %v2277 = vpack.c.b16 %v1389, %v1381
  %v2278 = vpack.c.b16 %v1390, %v1382
  %v2279 = vpack.c.b16 %v1399, %v1391
  %v2280 = vpack.c.b16 %v1400, %v1392
  %v2281 = vpack.c.b16 %v1401, %v1393
  %v2282 = vpack.c.b16 %v1402, %v1394
  %v2283 = vpack.c.b16 %v1403, %v1395
  %v2284 = vpack.c.b16 %v1404, %v1396
  %v2285 = vpack.c.b16 %v1405, %v1397
  %v2286 = vpack.c.b16 %v1406, %v1398
  %v2287 = vpack.c.b16 %v1415, %v1407
  %v2288 = vpack.c.b16 %v1416, %v1408
  %v2289 = vpack.c.b16 %v1417, %v1409
  %v2290 = vpack.c.b16 %v1418, %v1410
  %v2291 = vpack.c.b16 %v1419, %v1411
  %v2292 = vpack.c.b16 %v1420, %v1412
  %v2293 = vpack.c.b16 %v1421, %v1413
  %v2294 = vpack.c.b16 %v1422, %v1414
  %v2295 = vpack.c.b16 %v1431, %v1423
  %v2296 = vpack.c.b16 %v1432, %v1424
  %v2297 = vpack.c.b16 %v1433, %v1425
  %v2298 = vpack.c.b16 %v1434, %v1426
  %v2299 = vpack.c.b16 %v1435, %v1427
  %v2300 = vpack.c.b16 %v1436, %v1428
  %v2301 = vpack.c.b16 %v1437, %v1429
  %v2302 = vpack.c.b16 %v1438, %v1430
  %v2303 = vpack.c.b16 %v1447, %v1439
  %v2304 = vpack.c.b16 %v1448, %v1440
  %v2305 = vpack.c.b16 %v1449, %v1441
  %v2306 = vpack.c.b16 %v1450, %v1442
  %v2307 = vpack.c.b16 %v1451, %v1443
  %v2308 = vpack.c.b16 %v1452, %v1444
  %v2309 = vpack.c.b16 %v1453, %v1445
  %v2310 = vpack.c.b16 %v1454, %v1446
  %v2311 = vpack.c.b16 %v1463, %v1455
  %v2312 = vpack.c.b16 %v1464, %v1456
  %v2313 = vpack.c.b16 %v1465, %v1457
  %v2314 = vpack.c.b16 %v1466, %v1458
  %v2315 = vpack.c.b16 %v1467, %v1459
  %v2316 = vpack.c.b16 %v1468, %v1460
  %v2317 = vpack.c.b16 %v1469, %v1461
  %v2318 = vpack.c.b16 %v1470, %v1462
  %v2319 = vpack.c.b16 %v1479, %v1471
  %v2320 = vpack.c.b16 %v1480, %v1472
  %v2321 = vpack.c.b16 %v1481, %v1473
  %v2322 = vpack.c.b16 %v1482, %v1474
  %v2323 = vpack.c.b16 %v1483, %v1475
  %v2324 = vpack.c.b16 %v1484, %v1476
  %v2325 = vpack.c.b16 %v1485, %v1477
  %v2326 = vpack.c.b16 %v1486, %v1478
  %v2327 = vpack.c.b16 %v1495, %v1487
  %v2328 = vpack.c.b16 %v1496, %v1488
  %v2329 = vpack.c.b16 %v1497, %v1489
  %v2330 = vpack.c.b16 %v1498, %v1490
  %v2331 = vpack.c.b16 %v1499, %v1491
  %v2332 = vpack.c.b16 %v1500, %v1492
  %v2333 = vpack.c.b16 %v1501, %v1493
  %v2334 = vpack.c.b16 %v1502, %v1494
  %v2335 = vpack.c.b16 %v1511, %v1503
  %v2336 = vpack.c.b16 %v1512, %v1504
  %v2337 = vpack.c.b16 %v1513, %v1505
  %v2338 = vpack.c.b16 %v1514, %v1506
  %v2339 = vpack.c.b16 %v1515, %v1507
  %v2340 = vpack.c.b16 %v1516, %v1508
  %v2341 = vpack.c.b16 %v1517, %v1509
  %v2342 = vpack.c.b16 %v1518, %v1510
  %v2343 = vpack.c.b16 %v1527, %v1519
  %v2344 = vpack.c.b16 %v1528, %v1520
  %v2345 = vpack.c.b16 %v1529, %v1521
  %v2346 = vpack.c.b16 %v1530, %v1522
  %v2347 = vpack.c.b16 %v1531, %v1523
  %v2348 = vpack.c.b16 %v1532, %v1524
  %v2349 = vpack.c.b16 %v1533, %v1525
  %v2350 = vpack.c.b16 %v1534, %v1526
  %v2351 = vpack.c.b16 %v1543, %v1535
  %v2352 = vpack.c.b16 %v1544, %v1536
  %v2353 = vpack.c.b16 %v1545, %v1537
  %v2354 = vpack.c.b16 %v1546, %v1538
  %v2355 = vpack.c.b16 %v1547, %v1539
  %v2356 = vpack.c.b16 %v1548, %v1540
  %v2357 = vpack.c.b16 %v1549, %v1541
  %v2358 = vpack.c.b16 %v1550, %v1542
  %v2359 = vpack.c.b16 %v1559, %v1551
  %v2360 = vpack.c.b16 %v1560, %v1552
  %v2361 = vpack.c.b16 %v1561, %v1553
  %v2362 = vpack.c.b16 %v1562, %v1554
  %v2363 = vpack.c.b16 %v1563, %v1555
  %v2364 = vpack.c.b16 %v1564, %v1556
  %v2365 = vpack.c.b16 %v1565, %v1557
  %v2366 = vpack.c.b16 %v1566, %v1558
  %v2367 = vpack.c.b16 %v1575, %v1567
  %v2368 = vpack.c.b16 %v1576, %v1568
  %v2369 = vpack.c.b16 %v1577, %v1569
  %v2370 = vpack.c.b16 %v1578, %v1570
  %v2371 = vpack.c.b16 %v1579, %v1571
  %v2372 = vpack.c.b16 %v1580, %v1572
  %v2373 = vpack.c.b16 %v1581, %v1573
  %v2374 = vpack.c.b16 %v1582, %v1574
  %v2375 = vpack.c.b16 %v1591, %v1583
  %v2376 = vpack.c.b16 %v1592, %v1584
  %v2377 = vpack.c.b16 %v1593, %v1585
  %v2378 = vpack.c.b16 %v1594, %v1586
  %v2379 = vpack.c.b16 %v1595, %v1587
  %v2380 = vpack.c.b16 %v1596, %v1588
  %v2381 = vpack.c.b16 %v1597, %v1589
  %v2382 = vpack.c.b16 %v1598, %v1590
  %v2383 = vpack.c.b16 %v1607, %v1599
  %v2384 = vpack.c.b16 %v1608, %v1600
  %v2385 = vpack.c.b16 %v1609, %v1601
  %v2386 = vpack.c.b16 %v1610, %v1602
  %v2387 = vpack.c.b16 %v1611, %v1603
  %v2388 = vpack.c.b16 %v1612, %v1604
  %v2389 = vpack.c.b16 %v1613, %v1605
  %v2390 = vpack.c.b16 %v1614, %v1606
  %v2391 = vpack.c.b16 %v1623, %v1615
  %v2392 = vpack.c.b16 %v1624, %v1616
  %v2393 = vpack.c.b16 %v1625, %v1617
  %v2394 = vpack.c.b16 %v1626, %v1618
  %v2395 = vpack.c.b16 %v1627, %v1619
  %v2396 = vpack.c.b16 %v1628, %v1620
  %v2397 = vpack.c.b16 %v1629, %v1621
  %v2398 = vpack.c.b16 %v1630, %v1622
  %v2399 = vpack.c.b16 %v1639, %v1631
  %v2400 = vpack.c.b16 %v1640, %v1632
  %v2401 = vpack.c.b16 %v1641, %v1633
  %v2402 = vpack.c.b16 %v1642, %v1634
  %v2403 = vpack.c.b16 %v1643, %v1635
  %v2404 = vpack.c.b16 %v1644, %v1636
  %v2405 = vpack.c.b16 %v1645, %v1637
  %v2406 = vpack.c.b16 %v1646, %v1638
  %v2407 = vpack.c.b16 %v1655, %v1647
  %v2408 = vpack.c.b16 %v1656, %v1648
  %v2409 = vpack.c.b16 %v1657, %v1649
  %v2410 = vpack.c.b16 %v1658, %v1650
  %v2411 = vpack.c.b16 %v1659, %v1651
  %v2412 = vpack.c.b16 %v1660, %v1652
  %v2413 = vpack.c.b16 %v1661, %v1653
  %v2414 = vpack.c.b16 %v1662, %v1654
  %v2415 = vpack.c.b16 %v1671, %v1663
  %v2416 = vpack.c.b16 %v1672, %v1664
  %v2417 = vpack.c.b16 %v1673, %v1665
  %v2418 = vpack.c.b16 %v1674, %v1666
  %v2419 = vpack.c.b16 %v1675, %v1667
  %v2420 = vpack.c.b16 %v1676, %v1668
  %v2421 = vpack.c.b16 %v1677, %v1669
  %v2422 = vpack.c.b16 %v1678, %v1670
  %v2423 = vpack.c.b16 %v1687, %v1679
  %v2424 = vpack.c.b16 %v1688, %v1680
  %v2425 = vpack.c.b16 %v1689, %v1681
  %v2426 = vpack.c.b16 %v1690, %v1682
  %v2427 = vpack.c.b16 %v1691, %v1683
  %v2428 = vpack.c.b16 %v1692, %v1684
  %v2429 = vpack.c.b16 %v1693, %v1685
  %v2430 = vpack.c.b16 %v1694, %v1686
  %v2431 = vpack.c.b16 %v1703, %v1695
  %v2432 = vpack.c.b16 %v1704, %v1696
  %v2433 = vpack.c.b16 %v1705, %v1697
  %v2434 = vpack.c.b16 %v1706, %v1698
  %v2435 = vpack.c.b16 %v1707, %v1699
  %v2436 = vpack.c.b16 %v1708, %v1700
  %v2437 = vpack.c.b16 %v1709, %v1701
  %v2438 = vpack.c.b16 %v1710, %v1702
  %v2439 = vpack.c.b16 %v1719, %v1711
  %v2440 = vpack.c.b16 %v1720, %v1712
  %v2441 = vpack.c.b16 %v1721, %v1713
  %v2442 = vpack.c.b16 %v1722, %v1714
  %v2443 = vpack.c.b16 %v1723, %v1715
  %v2444 = vpack.c.b16 %v1724, %v1716
  %v2445 = vpack.c.b16 %v1725, %v1717
  %v2446 = vpack.c.b16 %v1726, %v1718
  %v2447 = vpack.c.b16 %v1735, %v1727
  %v2448 = vpack.c.b16 %v1736, %v1728
  %v2449 = vpack.c.b16 %v1737, %v1729
  %v2450 = vpack.c.b16 %v1738, %v1730
  %v2451 = vpack.c.b16 %v1739, %v1731
  %v2452 = vpack.c.b16 %v1740, %v1732
  %v2453 = vpack.c.b16 %v1741, %v1733
  %v2454 = vpack.c.b16 %v1742, %v1734
  %v2455 = vpack.c.b16 %v1751, %v1743
  %v2456 = vpack.c.b16 %v1752, %v1744
  %v2457 = vpack.c.b16 %v1753, %v1745
  %v2458 = vpack.c.b16 %v1754, %v1746
  %v2459 = vpack.c.b16 %v1755, %v1747
  %v2460 = vpack.c.b16 %v1756, %v1748
  %v2461 = vpack.c.b16 %v1757, %v1749
  %v2462 = vpack.c.b16 %v1758, %v1750
  %v2463 = vpack.c.b16 %v1767, %v1759
  %v2464 = vpack.c.b16 %v1768, %v1760
  %v2465 = vpack.c.b16 %v1769, %v1761
  %v2466 = vpack.c.b16 %v1770, %v1762
  %v2467 = vpack.c.b16 %v1771, %v1763
  %v2468 = vpack.c.b16 %v1772, %v1764
  %v2469 = vpack.c.b16 %v1773, %v1765
  %v2470 = vpack.c.b16 %v1774, %v1766
  %v2471 = vpack.c.b16 %v1783, %v1775
  %v2472 = vpack.c.b16 %v1784, %v1776
  %v2473 = vpack.c.b16 %v1785, %v1777
  %v2474 = vpack.c.b16 %v1786, %v1778
  %v2475 = vpack.c.b16 %v1787, %v1779
  %v2476 = vpack.c.b16 %v1788, %v1780
  %v2477 = vpack.c.b16 %v1789, %v1781
  %v2478 = vpack.c.b16 %v1790, %v1782
  %v2479 = vpack.c.b16 %v1799, %v1791
  %v2480 = vpack.c.b16 %v1800, %v1792
  %v2481 = vpack.c.b16 %v1801, %v1793
  %v2482 = vpack.c.b16 %v1802, %v1794
  %v2483 = vpack.c.b16 %v1803, %v1795
  %v2484 = vpack.c.b16 %v1804, %v1796
  %v2485 = vpack.c.b16 %v1805, %v1797
  %v2486 = vpack.c.b16 %v1806, %v1798
  %v2487 = vpack.c.b16 %v1815, %v1807
  %v2488 = vpack.c.b16 %v1816, %v1808
  %v2489 = vpack.c.b16 %v1817, %v1809
  %v2490 = vpack.c.b16 %v1818, %v1810
  %v2491 = vpack.c.b16 %v1819, %v1811
  %v2492 = vpack.c.b16 %v1820, %v1812
  %v2493 = vpack.c.b16 %v1821, %v1813
  %v2494 = vpack.c.b16 %v1822, %v1814
  %v2495 = vpack.c.b16 %v1831, %v1823
  %v2496 = vpack.c.b16 %v1832, %v1824
  %v2497 = vpack.c.b16 %v1833, %v1825
  %v2498 = vpack.c.b16 %v1834, %v1826
  %v2499 = vpack.c.b16 %v1835, %v1827
  %v2500 = vpack.c.b16 %v1836, %v1828
  %v2501 = vpack.c.b16 %v1837, %v1829
  %v2502 = vpack.c.b16 %v1838, %v1830
  %v2503 = vpack.c.b16 %v1847, %v1839
  %v2504 = vpack.c.b16 %v1848, %v1840
  %v2505 = vpack.c.b16 %v1849, %v1841
  %v2506 = vpack.c.b16 %v1850, %v1842
  %v2507 = vpack.c.b16 %v1851, %v1843
  %v2508 = vpack.c.b16 %v1852, %v1844
  %v2509 = vpack.c.b16 %v1853, %v1845
  %v2510 = vpack.c.b16 %v1854, %v1846
  %v2511 = vpack.c.b16 %v1863, %v1855
  %v2512 = vpack.c.b16 %v1864, %v1856
  %v2513 = vpack.c.b16 %v1865, %v1857
  %v2514 = vpack.c.b16 %v1866, %v1858
  %v2515 = vpack.c.b16 %v1867, %v1859
  %v2516 = vpack.c.b16 %v1868, %v1860
  %v2517 = vpack.c.b16 %v1869, %v1861
  %v2518 = vpack.c.b16 %v1870, %v1862
  %v2519 = vpack.c.b16 %v1879, %v1871
  %v2520 = vpack.c.b16 %v1880, %v1872
  %v2521 = vpack.c.b16 %v1881, %v1873
  %v2522 = vpack.c.b16 %v1882, %v1874
  %v2523 = vpack.c.b16 %v1883, %v1875
  %v2524 = vpack.c.b16 %v1884, %v1876
  %v2525 = vpack.c.b16 %v1885, %v1877
  %v2526 = vpack.c.b16 %v1886, %v1878
  %v2527 = vpack.c.b16 %v1895, %v1887
  %v2528 = vpack.c.b16 %v1896, %v1888
  %v2529 = vpack.c.b16 %v1897, %v1889
  %v2530 = vpack.c.b16 %v1898, %v1890
  %v2531 = vpack.c.b16 %v1899, %v1891
  %v2532 = vpack.c.b16 %v1900, %v1892
  %v2533 = vpack.c.b16 %v1901, %v1893
  %v2534 = vpack.c.b16 %v1902, %v1894
  %v2535 = vpack.c.b16 %v1911, %v1903
  %v2536 = vpack.c.b16 %v1912, %v1904
  %v2537 = vpack.c.b16 %v1913, %v1905
  %v2538 = vpack.c.b16 %v1914, %v1906
  %v2539 = vpack.c.b16 %v1915, %v1907
  %v2540 = vpack.c.b16 %v1916, %v1908
  %v2541 = vpack.c.b16 %v1917, %v1909
  %v2542 = vpack.c.b16 %v1918, %v1910
  %v2543 = vpack.c.b16 %v1927, %v1919
  %v2544 = vpack.c.b16 %v1928, %v1920
  %v2545 = vpack.c.b16 %v1929, %v1921
  %v2546 = vpack.c.b16 %v1930, %v1922
  %v2547 = vpack.c.b16 %v1931, %v1923
  %v2548 = vpack.c.b16 %v1932, %v1924
  %v2549 = vpack.c.b16 %v1933, %v1925
  %v2550 = vpack.c.b16 %v1934, %v1926
  %v2551 = vpack.c.b16 %v1943, %v1935
  %v2552 = vpack.c.b16 %v1944, %v1936
  %v2553 = vpack.c.b16 %v1945, %v1937
  %v2554 = vpack.c.b16 %v1946, %v1938
  %v2555 = vpack.c.b16 %v1947, %v1939
  %v2556 = vpack.c.b16 %v1948, %v1940
  %v2557 = vpack.c.b16 %v1949, %v1941
  %v2558 = vpack.c.b16 %v1950, %v1942
  %v2559 = vpack.c.b16 %v1959, %v1951
  %v2560 = vpack.c.b16 %v1960, %v1952
  %v2561 = vpack.c.b16 %v1961, %v1953
  %v2562 = vpack.c.b16 %v1962, %v1954
  %v2563 = vpack.c.b16 %v1963, %v1955
  %v2564 = vpack.c.b16 %v1964, %v1956
  %v2565 = vpack.c.b16 %v1965, %v1957
  %v2566 = vpack.c.b16 %v1966, %v1958
  %v2567 = vpack.c.b16 %v1975, %v1967
  %v2568 = vpack.c.b16 %v1976, %v1968
  %v2569 = vpack.c.b16 %v1977, %v1969
  %v2570 = vpack.c.b16 %v1978, %v1970
  %v2571 = vpack.c.b16 %v1979, %v1971
  %v2572 = vpack.c.b16 %v1980, %v1972
  %v2573 = vpack.c.b16 %v1981, %v1973
  %v2574 = vpack.c.b16 %v1982, %v1974
  %v2575 = vpack.c.b16 %v1991, %v1983
  %v2576 = vpack.c.b16 %v1992, %v1984
  %v2577 = vpack.c.b16 %v1993, %v1985
  %v2578 = vpack.c.b16 %v1994, %v1986
  %v2579 = vpack.c.b16 %v1995, %v1987
  %v2580 = vpack.c.b16 %v1996, %v1988
  %v2581 = vpack.c.b16 %v1997, %v1989
  %v2582 = vpack.c.b16 %v1998, %v1990
  %v2583 = vpack.c.b16 %v2007, %v1999
  %v2584 = vpack.c.b16 %v2008, %v2000
  %v2585 = vpack.c.b16 %v2009, %v2001
  %v2586 = vpack.c.b16 %v2010, %v2002
  %v2587 = vpack.c.b16 %v2011, %v2003
  %v2588 = vpack.c.b16 %v2012, %v2004
  %v2589 = vpack.c.b16 %v2013, %v2005
  %v2590 = vpack.c.b16 %v2014, %v2006
  %v2591 = vpack.c.b16 %v2023, %v2015
  %v2592 = vpack.c.b16 %v2024, %v2016
  %v2593 = vpack.c.b16 %v2025, %v2017
  %v2594 = vpack.c.b16 %v2026, %v2018
  %v2595 = vpack.c.b16 %v2027, %v2019
  %v2596 = vpack.c.b16 %v2028, %v2020
  %v2597 = vpack.c.b16 %v2029, %v2021
  %v2598 = vpack.c.b16 %v2030, %v2022
  %v2599 = vpack.c.b16 %v2039, %v2031
  %v2600 = vpack.c.b16 %v2040, %v2032
  %v2601 = vpack.c.b16 %v2041, %v2033
  %v2602 = vpack.c.b16 %v2042, %v2034
  %v2603 = vpack.c.b16 %v2043, %v2035
  %v2604 = vpack.c.b16 %v2044, %v2036
  %v2605 = vpack.c.b16 %v2045, %v2037
  %v2606 = vpack.c.b16 %v2046, %v2038
  %v2607 = vpack.c.b16 %v2055, %v2047
  %v2608 = vpack.c.b16 %v2056, %v2048
  %v2609 = vpack.c.b16 %v2057, %v2049
  %v2610 = vpack.c.b16 %v2058, %v2050
  %v2611 = vpack.c.b16 %v2059, %v2051
  %v2612 = vpack.c.b16 %v2060, %v2052
  %v2613 = vpack.c.b16 %v2061, %v2053
  %v2614 = vpack.c.b16 %v2062, %v2054
  %v2615 = vpack.c.b16 %v2071, %v2063
  %v2616 = vpack.c.b16 %v2072, %v2064
  %v2617 = vpack.c.b16 %v2073, %v2065
  %v2618 = vpack.c.b16 %v2074, %v2066
  %v2619 = vpack.c.b16 %v2075, %v2067
  %v2620 = vpack.c.b16 %v2076, %v2068
  %v2621 = vpack.c.b16 %v2077, %v2069
  %v2622 = vpack.c.b16 %v2078, %v2070
  %v2623 = vpack.c.b16 %v2087, %v2079
  %v2624 = vpack.c.b16 %v2088, %v2080
  %v2625 = vpack.c.b16 %v2089, %v2081
  %v2626 = vpack.c.b16 %v2090, %v2082
  %v2627 = vpack.c.b16 %v2091, %v2083
  %v2628 = vpack.c.b16 %v2092, %v2084
  %v2629 = vpack.c.b16 %v2093, %v2085
  %v2630 = vpack.c.b16 %v2094, %v2086
  %v2631 = vpack.c.b16 %v2103, %v2095
  %v2632 = vpack.c.b16 %v2104, %v2096
  %v2633 = vpack.c.b16 %v2105, %v2097
  %v2634 = vpack.c.b16 %v2106, %v2098
  %v2635 = vpack.c.b16 %v2107, %v2099
  %v2636 = vpack.c.b16 %v2108, %v2100
  %v2637 = vpack.c.b16 %v2109, %v2101
  %v2638 = vpack.c.b16 %v2110, %v2102
  %v2639 = vpack.c.b16 %v2119, %v2111
  %v2640 = vpack.c.b16 %v2120, %v2112
  %v2641 = vpack.c.b16 %v2121, %v2113
  %v2642 = vpack.c.b16 %v2122, %v2114
  %v2643 = vpack.c.b16 %v2123, %v2115
  %v2644 = vpack.c.b16 %v2124, %v2116
  %v2645 = vpack.c.b16 %v2125, %v2117
  %v2646 = vpack.c.b16 %v2126, %v2118
  %v2647 = vpack.c.b16 %v2135, %v2127
  %v2648 = vpack.c.b16 %v2136, %v2128
  %v2649 = vpack.c.b16 %v2137, %v2129
  %v2650 = vpack.c.b16 %v2138, %v2130
  %v2651 = vpack.c.b16 %v2139, %v2131
  %v2652 = vpack.c.b16 %v2140, %v2132
  %v2653 = vpack.c.b16 %v2141, %v2133
  %v2654 = vpack.c.b16 %v2142, %v2134
  %3167 = vmatprep.subr.bf16.mxu0 %v2144
  %3168 = vmatpush1.bf16.msra.mxu0 %v2143
  %3169 = vmatprep.subr.bf16.mxu0 %v2152
  %3170 = vmatpush1.bf16.msra.mxu0 %v2151
  %3171 = vmatprep.subr.bf16.mxu0 %v2160
  %3172 = vmatpush1.bf16.msra.mxu0 %v2159
  %3173 = vmatprep.subr.bf16.mxu0 %v2168
  %3174 = vmatpush1.bf16.msra.mxu0 %v2167
  %3175 = vmatprep.subr.bf16.mxu0 %v2176
  %3176 = vmatpush1.bf16.msra.mxu0 %v2175
  %3177 = vmatprep.subr.bf16.mxu0 %v2184
  %3178 = vmatpush1.bf16.msra.mxu0 %v2183
  %3179 = vmatprep.subr.bf16.mxu0 %v2192
  %3180 = vmatpush1.bf16.msra.mxu0 %v2191
  %3181 = vmatprep.subr.bf16.mxu0 %v2200
  %3182 = vmatpush1.bf16.msra.mxu0 %v2199
  %3183 = vmatprep.subr.bf16.mxu0 %v2208
  %3184 = vmatpush1.bf16.msra.mxu0 %v2207
  %3185 = vmatprep.subr.bf16.mxu0 %v2216
  %3186 = vmatpush1.bf16.msra.mxu0 %v2215
  %3187 = vmatprep.subr.bf16.mxu0 %v2224
  %3188 = vmatpush1.bf16.msra.mxu0 %v2223
  %3189 = vmatprep.subr.bf16.mxu0 %v2232
  %3190 = vmatpush1.bf16.msra.mxu0 %v2231
  %3191 = vmatprep.subr.bf16.mxu0 %v2240
  %3192 = vmatpush1.bf16.msra.mxu0 %v2239
  %3193 = vmatprep.subr.bf16.mxu0 %v2248
  %3194 = vmatpush1.bf16.msra.mxu0 %v2247
  %3195 = vmatprep.subr.bf16.mxu0 %v2256
  %3196 = vmatpush1.bf16.msra.mxu0 %v2255
  %3197 = vmatprep.subr.bf16.mxu0 %v2264
  %3198 = vmatpush1.bf16.msra.mxu0 %v2263
  %3199 = vmatprep.mubr.bf16.mxu0 %v592
  %3200 = vmatmul.mubr.bf16.gmra.mrb[0].mxu0 %v591
  %v3201 = vpop.f32.mrb[0].mxu0
  %v3202 = vadd.f32 %v542, %v3201
  %v3203 = vpop.f32.mrb[0].mxu0
  %v3204 = vadd.f32 %v546, %v3203
  %v3205 = vpop.f32.mrb[0].mxu0
  %v3206 = vpop.f32.mrb[0].mxu0
  %3207 = vdwg.mxu0
  %3208 = vmatprep.subr.bf16.mxu0 %v2272
  %3209 = vmatpush1.bf16.msra.mxu0 %v2271
  %3210 = vmatprep.subr.bf16.mxu0 %v2280
  %3211 = vmatpush1.bf16.msra.mxu0 %v2279
  %3212 = vmatprep.subr.bf16.mxu0 %v2288
  %3213 = vmatpush1.bf16.msra.mxu0 %v2287
  %3214 = vmatprep.subr.bf16.mxu0 %v2296
  %3215 = vmatpush1.bf16.msra.mxu0 %v2295
  %3216 = vmatprep.subr.bf16.mxu0 %v2304
  %3217 = vmatpush1.bf16.msra.mxu0 %v2303
  %3218 = vmatprep.subr.bf16.mxu0 %v2312
  %3219 = vmatpush1.bf16.msra.mxu0 %v2311
  %3220 = vmatprep.subr.bf16.mxu0 %v2320
  %3221 = vmatpush1.bf16.msra.mxu0 %v2319
  %3222 = vmatprep.subr.bf16.mxu0 %v2328
  %3223 = vmatpush1.bf16.msra.mxu0 %v2327
  %3224 = vmatprep.subr.bf16.mxu0 %v2336
  %3225 = vmatpush1.bf16.msra.mxu0 %v2335
  %3226 = vmatprep.subr.bf16.mxu0 %v2344
  %3227 = vmatpush1.bf16.msra.mxu0 %v2343
  %3228 = vmatprep.subr.bf16.mxu0 %v2352
  %3229 = vmatpush1.bf16.msra.mxu0 %v2351
  %3230 = vmatprep.subr.bf16.mxu0 %v2360
  %3231 = vmatpush1.bf16.msra.mxu0 %v2359
  %3232 = vmatprep.subr.bf16.mxu0 %v2368
  %3233 = vmatpush1.bf16.msra.mxu0 %v2367
  %3234 = vmatprep.subr.bf16.mxu0 %v2376
  %3235 = vmatpush1.bf16.msra.mxu0 %v2375
  %3236 = vmatprep.subr.bf16.mxu0 %v2384
  %3237 = vmatpush1.bf16.msra.mxu0 %v2383
  %3238 = vmatprep.subr.bf16.mxu0 %v2392
  %3239 = vmatpush1.bf16.msra.mxu0 %v2391
  %3240 = vmatprep.mubr.bf16.mxu0 %v594
  %3241 = vmatmul.mubr.bf16.gmra.mrb[0].mxu0 %v593
  %v3242 = vpop.f32.mrb[0].mxu0
  %v3243 = vadd.f32 %v3202, %v3242
  %v3244 = vpop.f32.mrb[0].mxu0
  %v3245 = vadd.f32 %v3204, %v3244
  %v3246 = vpop.f32.mrb[0].mxu0
  %v3247 = vpop.f32.mrb[0].mxu0
  %3248 = vdwg.mxu0
  %3249 = vmatprep.subr.bf16.mxu0 %v2400
  %3250 = vmatpush1.bf16.msra.mxu0 %v2399
  %3251 = vmatprep.subr.bf16.mxu0 %v2408
  %3252 = vmatpush1.bf16.msra.mxu0 %v2407
  %3253 = vmatprep.subr.bf16.mxu0 %v2416
  %3254 = vmatpush1.bf16.msra.mxu0 %v2415
  %3255 = vmatprep.subr.bf16.mxu0 %v2424
  %3256 = vmatpush1.bf16.msra.mxu0 %v2423
  %3257 = vmatprep.subr.bf16.mxu0 %v2432
  %3258 = vmatpush1.bf16.msra.mxu0 %v2431
  %3259 = vmatprep.subr.bf16.mxu0 %v2440
  %3260 = vmatpush1.bf16.msra.mxu0 %v2439
  %3261 = vmatprep.subr.bf16.mxu0 %v2448
  %3262 = vmatpush1.bf16.msra.mxu0 %v2447
  %3263 = vmatprep.subr.bf16.mxu0 %v2456
  %3264 = vmatpush1.bf16.msra.mxu0 %v2455
  %3265 = vmatprep.subr.bf16.mxu0 %v2464
  %3266 = vmatpush1.bf16.msra.mxu0 %v2463
  %3267 = vmatprep.subr.bf16.mxu0 %v2472
  %3268 = vmatpush1.bf16.msra.mxu0 %v2471
  %3269 = vmatprep.subr.bf16.mxu0 %v2480
  %3270 = vmatpush1.bf16.msra.mxu0 %v2479
  %3271 = vmatprep.subr.bf16.mxu0 %v2488
  %3272 = vmatpush1.bf16.msra.mxu0 %v2487
  %3273 = vmatprep.subr.bf16.mxu0 %v2496
  %3274 = vmatpush1.bf16.msra.mxu0 %v2495
  %3275 = vmatprep.subr.bf16.mxu0 %v2504
  %3276 = vmatpush1.bf16.msra.mxu0 %v2503
  %3277 = vmatprep.subr.bf16.mxu0 %v2512
  %3278 = vmatpush1.bf16.msra.mxu0 %v2511
  %3279 = vmatprep.subr.bf16.mxu0 %v2520
  %3280 = vmatpush1.bf16.msra.mxu0 %v2519
  %3281 = vmatprep.mubr.bf16.mxu0 %v596
  %3282 = vmatmul.mubr.bf16.gmra.mrb[0].mxu0 %v595
  %v3283 = vpop.f32.mrb[0].mxu0
  %v3284 = vadd.f32 %v3243, %v3283
  %v3285 = vpop.f32.mrb[0].mxu0
  %v3286 = vadd.f32 %v3245, %v3285
  %v3287 = vpop.f32.mrb[0].mxu0
  %v3288 = vpop.f32.mrb[0].mxu0
  %3289 = vdwg.mxu0
  %3290 = vmatprep.subr.bf16.mxu0 %v2528
  %3291 = vmatpush1.bf16.msra.mxu0 %v2527
  %3292 = vmatprep.subr.bf16.mxu0 %v2536
  %3293 = vmatpush1.bf16.msra.mxu0 %v2535
  %3294 = vmatprep.subr.bf16.mxu0 %v2544
  %3295 = vmatpush1.bf16.msra.mxu0 %v2543
  %3296 = vmatprep.subr.bf16.mxu0 %v2552
  %3297 = vmatpush1.bf16.msra.mxu0 %v2551
  %3298 = vmatprep.subr.bf16.mxu0 %v2560
  %3299 = vmatpush1.bf16.msra.mxu0 %v2559
  %3300 = vmatprep.subr.bf16.mxu0 %v2568
  %3301 = vmatpush1.bf16.msra.mxu0 %v2567
  %3302 = vmatprep.subr.bf16.mxu0 %v2576
  %3303 = vmatpush1.bf16.msra.mxu0 %v2575
  %3304 = vmatprep.subr.bf16.mxu0 %v2584
  %3305 = vmatpush1.bf16.msra.mxu0 %v2583
  %3306 = vmatprep.subr.bf16.mxu0 %v2592
  %3307 = vmatpush1.bf16.msra.mxu0 %v2591
  %3308 = vmatprep.subr.bf16.mxu0 %v2600
  %3309 = vmatpush1.bf16.msra.mxu0 %v2599
  %3310 = vmatprep.subr.bf16.mxu0 %v2608
  %3311 = vmatpush1.bf16.msra.mxu0 %v2607
  %3312 = vmatprep.subr.bf16.mxu0 %v2616
  %3313 = vmatpush1.bf16.msra.mxu0 %v2615
  %3314 = vmatprep.subr.bf16.mxu0 %v2624
  %3315 = vmatpush1.bf16.msra.mxu0 %v2623
  %3316 = vmatprep.subr.bf16.mxu0 %v2632
  %3317 = vmatpush1.bf16.msra.mxu0 %v2631
  %3318 = vmatprep.subr.bf16.mxu0 %v2640
  %3319 = vmatpush1.bf16.msra.mxu0 %v2639
  %3320 = vmatprep.subr.bf16.mxu0 %v2648
  %3321 = vmatpush1.bf16.msra.mxu0 %v2647
  %3322 = vmatprep.mubr.bf16.mxu0 %v598
  %3323 = vmatmul.mubr.bf16.gmra.mrb[0].mxu0 %v597
  %v3324 = vpop.f32.mrb[0].mxu0
  %v3325 = vadd.f32 %v3284, %v3324
  %v3326 = vpop.f32.mrb[0].mxu0
  %v3327 = vadd.f32 %v3286, %v3326
  %v3328 = vpop.f32.mrb[0].mxu0
  %v3329 = vpop.f32.mrb[0].mxu0
  %3330 = vdwg.mxu0
  %3331 = vmatprep.subr.bf16.mxu0 %v2146
  %3332 = vmatpush1.bf16.msra.mxu0 %v2145
  %3333 = vmatprep.subr.bf16.mxu0 %v2154
  %3334 = vmatpush1.bf16.msra.mxu0 %v2153
  %3335 = vmatprep.subr.bf16.mxu0 %v2162
  %3336 = vmatpush1.bf16.msra.mxu0 %v2161
  %3337 = vmatprep.subr.bf16.mxu0 %v2170
  %3338 = vmatpush1.bf16.msra.mxu0 %v2169
  %3339 = vmatprep.subr.bf16.mxu0 %v2178
  %3340 = vmatpush1.bf16.msra.mxu0 %v2177
  %3341 = vmatprep.subr.bf16.mxu0 %v2186
  %3342 = vmatpush1.bf16.msra.mxu0 %v2185
  %3343 = vmatprep.subr.bf16.mxu0 %v2194
  %3344 = vmatpush1.bf16.msra.mxu0 %v2193
  %3345 = vmatprep.subr.bf16.mxu0 %v2202
  %3346 = vmatpush1.bf16.msra.mxu0 %v2201
  %3347 = vmatprep.subr.bf16.mxu0 %v2210
  %3348 = vmatpush1.bf16.msra.mxu0 %v2209
  %3349 = vmatprep.subr.bf16.mxu0 %v2218
  %3350 = vmatpush1.bf16.msra.mxu0 %v2217
  %3351 = vmatprep.subr.bf16.mxu0 %v2226
  %3352 = vmatpush1.bf16.msra.mxu0 %v2225
  %3353 = vmatprep.subr.bf16.mxu0 %v2234
  %3354 = vmatpush1.bf16.msra.mxu0 %v2233
  %3355 = vmatprep.subr.bf16.mxu0 %v2242
  %3356 = vmatpush1.bf16.msra.mxu0 %v2241
  %3357 = vmatprep.subr.bf16.mxu0 %v2250
  %3358 = vmatpush1.bf16.msra.mxu0 %v2249
  %3359 = vmatprep.subr.bf16.mxu0 %v2258
  %3360 = vmatpush1.bf16.msra.mxu0 %v2257
  %3361 = vmatprep.subr.bf16.mxu0 %v2266
  %3362 = vmatpush1.bf16.msra.mxu0 %v2265
  %3363 = vmatprep.mubr.bf16.mxu0 %v592
  %3364 = vmatmul.mubr.bf16.gmra.mrb[0].mxu0 %v591
  %v3365 = vpop.f32.mrb[0].mxu0
  %v3366 = vadd.f32 %v550, %v3365
  %v3367 = vpop.f32.mrb[0].mxu0
  %v3368 = vadd.f32 %v554, %v3367
  %v3369 = vpop.f32.mrb[0].mxu0
  %v3370 = vpop.f32.mrb[0].mxu0
  %3371 = vdwg.mxu0
  %3372 = vmatprep.subr.bf16.mxu0 %v2274
  %3373 = vmatpush1.bf16.msra.mxu0 %v2273
  %3374 = vmatprep.subr.bf16.mxu0 %v2282
  %3375 = vmatpush1.bf16.msra.mxu0 %v2281
  %3376 = vmatprep.subr.bf16.mxu0 %v2290
  %3377 = vmatpush1.bf16.msra.mxu0 %v2289
  %3378 = vmatprep.subr.bf16.mxu0 %v2298
  %3379 = vmatpush1.bf16.msra.mxu0 %v2297
  %3380 = vmatprep.subr.bf16.mxu0 %v2306
  %3381 = vmatpush1.bf16.msra.mxu0 %v2305
  %3382 = vmatprep.subr.bf16.mxu0 %v2314
  %3383 = vmatpush1.bf16.msra.mxu0 %v2313
  %3384 = vmatprep.subr.bf16.mxu0 %v2322
  %3385 = vmatpush1.bf16.msra.mxu0 %v2321
  %3386 = vmatprep.subr.bf16.mxu0 %v2330
  %3387 = vmatpush1.bf16.msra.mxu0 %v2329
  %3388 = vmatprep.subr.bf16.mxu0 %v2338
  %3389 = vmatpush1.bf16.msra.mxu0 %v2337
  %3390 = vmatprep.subr.bf16.mxu0 %v2346
  %3391 = vmatpush1.bf16.msra.mxu0 %v2345
  %3392 = vmatprep.subr.bf16.mxu0 %v2354
  %3393 = vmatpush1.bf16.msra.mxu0 %v2353
  %3394 = vmatprep.subr.bf16.mxu0 %v2362
  %3395 = vmatpush1.bf16.msra.mxu0 %v2361
  %3396 = vmatprep.subr.bf16.mxu0 %v2370
  %3397 = vmatpush1.bf16.msra.mxu0 %v2369
  %3398 = vmatprep.subr.bf16.mxu0 %v2378
  %3399 = vmatpush1.bf16.msra.mxu0 %v2377
  %3400 = vmatprep.subr.bf16.mxu0 %v2386
  %3401 = vmatpush1.bf16.msra.mxu0 %v2385
  %3402 = vmatprep.subr.bf16.mxu0 %v2394
  %3403 = vmatpush1.bf16.msra.mxu0 %v2393
  %3404 = vmatprep.mubr.bf16.mxu0 %v594
  %3405 = vmatmul.mubr.bf16.gmra.mrb[0].mxu0 %v593
  %v3406 = vpop.f32.mrb[0].mxu0
  %v3407 = vadd.f32 %v3366, %v3406
  %v3408 = vpop.f32.mrb[0].mxu0
  %v3409 = vadd.f32 %v3368, %v3408
  %v3410 = vpop.f32.mrb[0].mxu0
  %v3411 = vpop.f32.mrb[0].mxu0
  %3412 = vdwg.mxu0
  %3413 = vmatprep.subr.bf16.mxu0 %v2402
  %3414 = vmatpush1.bf16.msra.mxu0 %v2401
  %3415 = vmatprep.subr.bf16.mxu0 %v2410
  %3416 = vmatpush1.bf16.msra.mxu0 %v2409
  %3417 = vmatprep.subr.bf16.mxu0 %v2418
  %3418 = vmatpush1.bf16.msra.mxu0 %v2417
  %3419 = vmatprep.subr.bf16.mxu0 %v2426
  %3420 = vmatpush1.bf16.msra.mxu0 %v2425
  %3421 = vmatprep.subr.bf16.mxu0 %v2434
  %3422 = vmatpush1.bf16.msra.mxu0 %v2433
  %3423 = vmatprep.subr.bf16.mxu0 %v2442
  %3424 = vmatpush1.bf16.msra.mxu0 %v2441
  %3425 = vmatprep.subr.bf16.mxu0 %v2450
  %3426 = vmatpush1.bf16.msra.mxu0 %v2449
  %3427 = vmatprep.subr.bf16.mxu0 %v2458
  %3428 = vmatpush1.bf16.msra.mxu0 %v2457
  %3429 = vmatprep.subr.bf16.mxu0 %v2466
  %3430 = vmatpush1.bf16.msra.mxu0 %v2465
  %3431 = vmatprep.subr.bf16.mxu0 %v2474
  %3432 = vmatpush1.bf16.msra.mxu0 %v2473
  %3433 = vmatprep.subr.bf16.mxu0 %v2482
  %3434 = vmatpush1.bf16.msra.mxu0 %v2481
  %3435 = vmatprep.subr.bf16.mxu0 %v2490
  %3436 = vmatpush1.bf16.msra.mxu0 %v2489
  %3437 = vmatprep.subr.bf16.mxu0 %v2498
  %3438 = vmatpush1.bf16.msra.mxu0 %v2497
  %3439 = vmatprep.subr.bf16.mxu0 %v2506
  %3440 = vmatpush1.bf16.msra.mxu0 %v2505
  %3441 = vmatprep.subr.bf16.mxu0 %v2514
  %3442 = vmatpush1.bf16.msra.mxu0 %v2513
  %3443 = vmatprep.subr.bf16.mxu0 %v2522
  %3444 = vmatpush1.bf16.msra.mxu0 %v2521
  %3445 = vmatprep.mubr.bf16.mxu0 %v596
  %3446 = vmatmul.mubr.bf16.gmra.mrb[0].mxu0 %v595
  %v3447 = vpop.f32.mrb[0].mxu0
  %v3448 = vadd.f32 %v3407, %v3447
  %v3449 = vpop.f32.mrb[0].mxu0
  %v3450 = vadd.f32 %v3409, %v3449
  %v3451 = vpop.f32.mrb[0].mxu0
  %v3452 = vpop.f32.mrb[0].mxu0
  %3453 = vdwg.mxu0
  %3454 = vmatprep.subr.bf16.mxu0 %v2530
  %3455 = vmatpush1.bf16.msra.mxu0 %v2529
  %3456 = vmatprep.subr.bf16.mxu0 %v2538
  %3457 = vmatpush1.bf16.msra.mxu0 %v2537
  %3458 = vmatprep.subr.bf16.mxu0 %v2546
  %3459 = vmatpush1.bf16.msra.mxu0 %v2545
  %3460 = vmatprep.subr.bf16.mxu0 %v2554
  %3461 = vmatpush1.bf16.msra.mxu0 %v2553
  %3462 = vmatprep.subr.bf16.mxu0 %v2562
  %3463 = vmatpush1.bf16.msra.mxu0 %v2561
  %3464 = vmatprep.subr.bf16.mxu0 %v2570
  %3465 = vmatpush1.bf16.msra.mxu0 %v2569
  %3466 = vmatprep.subr.bf16.mxu0 %v2578
  %3467 = vmatpush1.bf16.msra.mxu0 %v2577
  %3468 = vmatprep.subr.bf16.mxu0 %v2586
  %3469 = vmatpush1.bf16.msra.mxu0 %v2585
  %3470 = vmatprep.subr.bf16.mxu0 %v2594
  %3471 = vmatpush1.bf16.msra.mxu0 %v2593
  %3472 = vmatprep.subr.bf16.mxu0 %v2602
  %3473 = vmatpush1.bf16.msra.mxu0 %v2601
  %3474 = vmatprep.subr.bf16.mxu0 %v2610
  %3475 = vmatpush1.bf16.msra.mxu0 %v2609
  %3476 = vmatprep.subr.bf16.mxu0 %v2618
  %3477 = vmatpush1.bf16.msra.mxu0 %v2617
  %3478 = vmatprep.subr.bf16.mxu0 %v2626
  %3479 = vmatpush1.bf16.msra.mxu0 %v2625
  %3480 = vmatprep.subr.bf16.mxu0 %v2634
  %3481 = vmatpush1.bf16.msra.mxu0 %v2633
  %3482 = vmatprep.subr.bf16.mxu0 %v2642
  %3483 = vmatpush1.bf16.msra.mxu0 %v2641
  %3484 = vmatprep.subr.bf16.mxu0 %v2650
  %3485 = vmatpush1.bf16.msra.mxu0 %v2649
  %3486 = vmatprep.mubr.bf16.mxu0 %v598
  %3487 = vmatmul.mubr.bf16.gmra.mrb[0].mxu0 %v597
  %v3488 = vpop.f32.mrb[0].mxu0
  %v3489 = vadd.f32 %v3448, %v3488
  %v3490 = vpop.f32.mrb[0].mxu0
  %v3491 = vadd.f32 %v3450, %v3490
  %v3492 = vpop.f32.mrb[0].mxu0
  %v3493 = vpop.f32.mrb[0].mxu0
  %3494 = vdwg.mxu0
  %3495 = vmatprep.subr.bf16.mxu0 %v2148
  %3496 = vmatpush1.bf16.msra.mxu0 %v2147
  %3497 = vmatprep.subr.bf16.mxu0 %v2156
  %3498 = vmatpush1.bf16.msra.mxu0 %v2155
  %3499 = vmatprep.subr.bf16.mxu0 %v2164
  %3500 = vmatpush1.bf16.msra.mxu0 %v2163
  %3501 = vmatprep.subr.bf16.mxu0 %v2172
  %3502 = vmatpush1.bf16.msra.mxu0 %v2171
  %3503 = vmatprep.subr.bf16.mxu0 %v2180
  %3504 = vmatpush1.bf16.msra.mxu0 %v2179
  %3505 = vmatprep.subr.bf16.mxu0 %v2188
  %3506 = vmatpush1.bf16.msra.mxu0 %v2187
  %3507 = vmatprep.subr.bf16.mxu0 %v2196
  %3508 = vmatpush1.bf16.msra.mxu0 %v2195
  %3509 = vmatprep.subr.bf16.mxu0 %v2204
  %3510 = vmatpush1.bf16.msra.mxu0 %v2203
  %3511 = vmatprep.subr.bf16.mxu0 %v2212
  %3512 = vmatpush1.bf16.msra.mxu0 %v2211
  %3513 = vmatprep.subr.bf16.mxu0 %v2220
  %3514 = vmatpush1.bf16.msra.mxu0 %v2219
  %3515 = vmatprep.subr.bf16.mxu0 %v2228
  %3516 = vmatpush1.bf16.msra.mxu0 %v2227
  %3517 = vmatprep.subr.bf16.mxu0 %v2236
  %3518 = vmatpush1.bf16.msra.mxu0 %v2235
  %3519 = vmatprep.subr.bf16.mxu0 %v2244
  %3520 = vmatpush1.bf16.msra.mxu0 %v2243
  %3521 = vmatprep.subr.bf16.mxu0 %v2252
  %3522 = vmatpush1.bf16.msra.mxu0 %v2251
  %3523 = vmatprep.subr.bf16.mxu0 %v2260
  %3524 = vmatpush1.bf16.msra.mxu0 %v2259
  %3525 = vmatprep.subr.bf16.mxu0 %v2268
  %3526 = vmatpush1.bf16.msra.mxu0 %v2267
  %3527 = vmatprep.mubr.bf16.mxu0 %v592
  %3528 = vmatmul.mubr.bf16.gmra.mrb[0].mxu0 %v591
  %v3529 = vpop.f32.mrb[0].mxu0
  %v3530 = vadd.f32 %v558, %v3529
  %v3531 = vpop.f32.mrb[0].mxu0
  %v3532 = vadd.f32 %v562, %v3531
  %v3533 = vpop.f32.mrb[0].mxu0
  %v3534 = vpop.f32.mrb[0].mxu0
  %3535 = vdwg.mxu0
  %3536 = vmatprep.subr.bf16.mxu0 %v2276
  %3537 = vmatpush1.bf16.msra.mxu0 %v2275
  %3538 = vmatprep.subr.bf16.mxu0 %v2284
  %3539 = vmatpush1.bf16.msra.mxu0 %v2283
  %3540 = vmatprep.subr.bf16.mxu0 %v2292
  %3541 = vmatpush1.bf16.msra.mxu0 %v2291
  %3542 = vmatprep.subr.bf16.mxu0 %v2300
  %3543 = vmatpush1.bf16.msra.mxu0 %v2299
  %3544 = vmatprep.subr.bf16.mxu0 %v2308
  %3545 = vmatpush1.bf16.msra.mxu0 %v2307
  %3546 = vmatprep.subr.bf16.mxu0 %v2316
  %3547 = vmatpush1.bf16.msra.mxu0 %v2315
  %3548 = vmatprep.subr.bf16.mxu0 %v2324
  %3549 = vmatpush1.bf16.msra.mxu0 %v2323
  %3550 = vmatprep.subr.bf16.mxu0 %v2332
  %3551 = vmatpush1.bf16.msra.mxu0 %v2331
  %3552 = vmatprep.subr.bf16.mxu0 %v2340
  %3553 = vmatpush1.bf16.msra.mxu0 %v2339
  %3554 = vmatprep.subr.bf16.mxu0 %v2348
  %3555 = vmatpush1.bf16.msra.mxu0 %v2347
  %3556 = vmatprep.subr.bf16.mxu0 %v2356
  %3557 = vmatpush1.bf16.msra.mxu0 %v2355
  %3558 = vmatprep.subr.bf16.mxu0 %v2364
  %3559 = vmatpush1.bf16.msra.mxu0 %v2363
  %3560 = vmatprep.subr.bf16.mxu0 %v2372
  %3561 = vmatpush1.bf16.msra.mxu0 %v2371
  %3562 = vmatprep.subr.bf16.mxu0 %v2380
  %3563 = vmatpush1.bf16.msra.mxu0 %v2379
  %3564 = vmatprep.subr.bf16.mxu0 %v2388
  %3565 = vmatpush1.bf16.msra.mxu0 %v2387
  %3566 = vmatprep.subr.bf16.mxu0 %v2396
  %3567 = vmatpush1.bf16.msra.mxu0 %v2395
  %3568 = vmatprep.mubr.bf16.mxu0 %v594
  %3569 = vmatmul.mubr.bf16.gmra.mrb[0].mxu0 %v593
  %v3570 = vpop.f32.mrb[0].mxu0
  %v3571 = vadd.f32 %v3530, %v3570
  %v3572 = vpop.f32.mrb[0].mxu0
  %v3573 = vadd.f32 %v3532, %v3572
  %v3574 = vpop.f32.mrb[0].mxu0
  %v3575 = vpop.f32.mrb[0].mxu0
  %3576 = vdwg.mxu0
  %3577 = vmatprep.subr.bf16.mxu0 %v2404
  %3578 = vmatpush1.bf16.msra.mxu0 %v2403
  %3579 = vmatprep.subr.bf16.mxu0 %v2412
  %3580 = vmatpush1.bf16.msra.mxu0 %v2411
  %3581 = vmatprep.subr.bf16.mxu0 %v2420
  %3582 = vmatpush1.bf16.msra.mxu0 %v2419
  %3583 = vmatprep.subr.bf16.mxu0 %v2428
  %3584 = vmatpush1.bf16.msra.mxu0 %v2427
  %3585 = vmatprep.subr.bf16.mxu0 %v2436
  %3586 = vmatpush1.bf16.msra.mxu0 %v2435
  %3587 = vmatprep.subr.bf16.mxu0 %v2444
  %3588 = vmatpush1.bf16.msra.mxu0 %v2443
  %3589 = vmatprep.subr.bf16.mxu0 %v2452
  %3590 = vmatpush1.bf16.msra.mxu0 %v2451
  %3591 = vmatprep.subr.bf16.mxu0 %v2460
  %3592 = vmatpush1.bf16.msra.mxu0 %v2459
  %3593 = vmatprep.subr.bf16.mxu0 %v2468
  %3594 = vmatpush1.bf16.msra.mxu0 %v2467
  %3595 = vmatprep.subr.bf16.mxu0 %v2476
  %3596 = vmatpush1.bf16.msra.mxu0 %v2475
  %3597 = vmatprep.subr.bf16.mxu0 %v2484
  %3598 = vmatpush1.bf16.msra.mxu0 %v2483
  %3599 = vmatprep.subr.bf16.mxu0 %v2492
  %3600 = vmatpush1.bf16.msra.mxu0 %v2491
  %3601 = vmatprep.subr.bf16.mxu0 %v2500
  %3602 = vmatpush1.bf16.msra.mxu0 %v2499
  %3603 = vmatprep.subr.bf16.mxu0 %v2508
  %3604 = vmatpush1.bf16.msra.mxu0 %v2507
  %3605 = vmatprep.subr.bf16.mxu0 %v2516
  %3606 = vmatpush1.bf16.msra.mxu0 %v2515
  %3607 = vmatprep.subr.bf16.mxu0 %v2524
  %3608 = vmatpush1.bf16.msra.mxu0 %v2523
  %3609 = vmatprep.mubr.bf16.mxu0 %v596
  %3610 = vmatmul.mubr.bf16.gmra.mrb[0].mxu0 %v595
  %v3611 = vpop.f32.mrb[0].mxu0
  %v3612 = vadd.f32 %v3571, %v3611
  %v3613 = vpop.f32.mrb[0].mxu0
  %v3614 = vadd.f32 %v3573, %v3613
  %v3615 = vpop.f32.mrb[0].mxu0
  %v3616 = vpop.f32.mrb[0].mxu0
  %3617 = vdwg.mxu0
  %3618 = vmatprep.subr.bf16.mxu0 %v2532
  %3619 = vmatpush1.bf16.msra.mxu0 %v2531
  %3620 = vmatprep.subr.bf16.mxu0 %v2540
  %3621 = vmatpush1.bf16.msra.mxu0 %v2539
  %3622 = vmatprep.subr.bf16.mxu0 %v2548
  %3623 = vmatpush1.bf16.msra.mxu0 %v2547
  %3624 = vmatprep.subr.bf16.mxu0 %v2556
  %3625 = vmatpush1.bf16.msra.mxu0 %v2555
  %3626 = vmatprep.subr.bf16.mxu0 %v2564
  %3627 = vmatpush1.bf16.msra.mxu0 %v2563
  %3628 = vmatprep.subr.bf16.mxu0 %v2572
  %3629 = vmatpush1.bf16.msra.mxu0 %v2571
  %3630 = vmatprep.subr.bf16.mxu0 %v2580
  %3631 = vmatpush1.bf16.msra.mxu0 %v2579
  %3632 = vmatprep.subr.bf16.mxu0 %v2588
  %3633 = vmatpush1.bf16.msra.mxu0 %v2587
  %3634 = vmatprep.subr.bf16.mxu0 %v2596
  %3635 = vmatpush1.bf16.msra.mxu0 %v2595
  %3636 = vmatprep.subr.bf16.mxu0 %v2604
  %3637 = vmatpush1.bf16.msra.mxu0 %v2603
  %3638 = vmatprep.subr.bf16.mxu0 %v2612
  %3639 = vmatpush1.bf16.msra.mxu0 %v2611
  %3640 = vmatprep.subr.bf16.mxu0 %v2620
  %3641 = vmatpush1.bf16.msra.mxu0 %v2619
  %3642 = vmatprep.subr.bf16.mxu0 %v2628
  %3643 = vmatpush1.bf16.msra.mxu0 %v2627
  %3644 = vmatprep.subr.bf16.mxu0 %v2636
  %3645 = vmatpush1.bf16.msra.mxu0 %v2635
  %3646 = vmatprep.subr.bf16.mxu0 %v2644
  %3647 = vmatpush1.bf16.msra.mxu0 %v2643
  %3648 = vmatprep.subr.bf16.mxu0 %v2652
  %3649 = vmatpush1.bf16.msra.mxu0 %v2651
  %3650 = vmatprep.mubr.bf16.mxu0 %v598
  %3651 = vmatmul.mubr.bf16.gmra.mrb[0].mxu0 %v597
  %v3652 = vpop.f32.mrb[0].mxu0
  %v3653 = vadd.f32 %v3612, %v3652
  %v3654 = vpop.f32.mrb[0].mxu0
  %v3655 = vadd.f32 %v3614, %v3654
  %v3656 = vpop.f32.mrb[0].mxu0
  %v3657 = vpop.f32.mrb[0].mxu0
  %3658 = vdwg.mxu0
  %3659 = vmatprep.subr.bf16.mxu0 %v2150
  %3660 = vmatpush1.bf16.msra.mxu0 %v2149
  %3661 = vmatprep.subr.bf16.mxu0 %v2158
  %3662 = vmatpush1.bf16.msra.mxu0 %v2157
  %3663 = vmatprep.subr.bf16.mxu0 %v2166
  %3664 = vmatpush1.bf16.msra.mxu0 %v2165
  %3665 = vmatprep.subr.bf16.mxu0 %v2174
  %3666 = vmatpush1.bf16.msra.mxu0 %v2173
  %3667 = vmatprep.subr.bf16.mxu0 %v2182
  %3668 = vmatpush1.bf16.msra.mxu0 %v2181
  %3669 = vmatprep.subr.bf16.mxu0 %v2190
  %3670 = vmatpush1.bf16.msra.mxu0 %v2189
  %3671 = vmatprep.subr.bf16.mxu0 %v2198
  %3672 = vmatpush1.bf16.msra.mxu0 %v2197
  %3673 = vmatprep.subr.bf16.mxu0 %v2206
  %3674 = vmatpush1.bf16.msra.mxu0 %v2205
  %3675 = vmatprep.subr.bf16.mxu0 %v2214
  %3676 = vmatpush1.bf16.msra.mxu0 %v2213
  %3677 = vmatprep.subr.bf16.mxu0 %v2222
  %3678 = vmatpush1.bf16.msra.mxu0 %v2221
  %3679 = vmatprep.subr.bf16.mxu0 %v2230
  %3680 = vmatpush1.bf16.msra.mxu0 %v2229
  %3681 = vmatprep.subr.bf16.mxu0 %v2238
  %3682 = vmatpush1.bf16.msra.mxu0 %v2237
  %3683 = vmatprep.subr.bf16.mxu0 %v2246
  %3684 = vmatpush1.bf16.msra.mxu0 %v2245
  %3685 = vmatprep.subr.bf16.mxu0 %v2254
  %3686 = vmatpush1.bf16.msra.mxu0 %v2253
  %3687 = vmatprep.subr.bf16.mxu0 %v2262
  %3688 = vmatpush1.bf16.msra.mxu0 %v2261
  %3689 = vmatprep.subr.bf16.mxu0 %v2270
  %3690 = vmatpush1.bf16.msra.mxu0 %v2269
  %3691 = vmatprep.mubr.bf16.mxu0 %v592
  %3692 = vmatmul.mubr.bf16.gmra.mrb[0].mxu0 %v591
  %v3693 = vpop.f32.mrb[0].mxu0
  %v3694 = vadd.f32 %v566, %v3693
  %v3695 = vpop.f32.mrb[0].mxu0
  %v3696 = vadd.f32 %v570, %v3695
  %v3697 = vpop.f32.mrb[0].mxu0
  %v3698 = vpop.f32.mrb[0].mxu0
  %3699 = vdwg.mxu0
  %3700 = vmatprep.subr.bf16.mxu0 %v2278
  %3701 = vmatpush1.bf16.msra.mxu0 %v2277
  %3702 = vmatprep.subr.bf16.mxu0 %v2286
  %3703 = vmatpush1.bf16.msra.mxu0 %v2285
  %3704 = vmatprep.subr.bf16.mxu0 %v2294
  %3705 = vmatpush1.bf16.msra.mxu0 %v2293
  %3706 = vmatprep.subr.bf16.mxu0 %v2302
  %3707 = vmatpush1.bf16.msra.mxu0 %v2301
  %3708 = vmatprep.subr.bf16.mxu0 %v2310
  %3709 = vmatpush1.bf16.msra.mxu0 %v2309
  %3710 = vmatprep.subr.bf16.mxu0 %v2318
  %3711 = vmatpush1.bf16.msra.mxu0 %v2317
  %3712 = vmatprep.subr.bf16.mxu0 %v2326
  %3713 = vmatpush1.bf16.msra.mxu0 %v2325
  %3714 = vmatprep.subr.bf16.mxu0 %v2334
  %3715 = vmatpush1.bf16.msra.mxu0 %v2333
  %3716 = vmatprep.subr.bf16.mxu0 %v2342
  %3717 = vmatpush1.bf16.msra.mxu0 %v2341
  %3718 = vmatprep.subr.bf16.mxu0 %v2350
  %3719 = vmatpush1.bf16.msra.mxu0 %v2349
  %3720 = vmatprep.subr.bf16.mxu0 %v2358
  %3721 = vmatpush1.bf16.msra.mxu0 %v2357
  %3722 = vmatprep.subr.bf16.mxu0 %v2366
  %3723 = vmatpush1.bf16.msra.mxu0 %v2365
  %3724 = vmatprep.subr.bf16.mxu0 %v2374
  %3725 = vmatpush1.bf16.msra.mxu0 %v2373
  %3726 = vmatprep.subr.bf16.mxu0 %v2382
  %3727 = vmatpush1.bf16.msra.mxu0 %v2381
  %3728 = vmatprep.subr.bf16.mxu0 %v2390
  %3729 = vmatpush1.bf16.msra.mxu0 %v2389
  %3730 = vmatprep.subr.bf16.mxu0 %v2398
  %3731 = vmatpush1.bf16.msra.mxu0 %v2397
  %3732 = vmatprep.mubr.bf16.mxu0 %v594
  %3733 = vmatmul.mubr.bf16.gmra.mrb[0].mxu0 %v593
  %v3734 = vpop.f32.mrb[0].mxu0
  %v3735 = vadd.f32 %v3694, %v3734
  %v3736 = vpop.f32.mrb[0].mxu0
  %v3737 = vadd.f32 %v3696, %v3736
  %v3738 = vpop.f32.mrb[0].mxu0
  %v3739 = vpop.f32.mrb[0].mxu0
  %3740 = vdwg.mxu0
  %3741 = vmatprep.subr.bf16.mxu0 %v2406
  %3742 = vmatpush1.bf16.msra.mxu0 %v2405
  %3743 = vmatprep.subr.bf16.mxu0 %v2414
  %3744 = vmatpush1.bf16.msra.mxu0 %v2413
  %3745 = vmatprep.subr.bf16.mxu0 %v2422
  %3746 = vmatpush1.bf16.msra.mxu0 %v2421
  %3747 = vmatprep.subr.bf16.mxu0 %v2430
  %3748 = vmatpush1.bf16.msra.mxu0 %v2429
  %3749 = vmatprep.subr.bf16.mxu0 %v2438
  %3750 = vmatpush1.bf16.msra.mxu0 %v2437
  %3751 = vmatprep.subr.bf16.mxu0 %v2446
  %3752 = vmatpush1.bf16.msra.mxu0 %v2445
  %3753 = vmatprep.subr.bf16.mxu0 %v2454
  %3754 = vmatpush1.bf16.msra.mxu0 %v2453
  %3755 = vmatprep.subr.bf16.mxu0 %v2462
  %3756 = vmatpush1.bf16.msra.mxu0 %v2461
  %3757 = vmatprep.subr.bf16.mxu0 %v2470
  %3758 = vmatpush1.bf16.msra.mxu0 %v2469
  %3759 = vmatprep.subr.bf16.mxu0 %v2478
  %3760 = vmatpush1.bf16.msra.mxu0 %v2477
  %3761 = vmatprep.subr.bf16.mxu0 %v2486
  %3762 = vmatpush1.bf16.msra.mxu0 %v2485
  %3763 = vmatprep.subr.bf16.mxu0 %v2494
  %3764 = vmatpush1.bf16.msra.mxu0 %v2493
  %3765 = vmatprep.subr.bf16.mxu0 %v2502
  %3766 = vmatpush1.bf16.msra.mxu0 %v2501
  %3767 = vmatprep.subr.bf16.mxu0 %v2510
  %3768 = vmatpush1.bf16.msra.mxu0 %v2509
  %3769 = vmatprep.subr.bf16.mxu0 %v2518
  %3770 = vmatpush1.bf16.msra.mxu0 %v2517
  %3771 = vmatprep.subr.bf16.mxu0 %v2526
  %3772 = vmatpush1.bf16.msra.mxu0 %v2525
  %3773 = vmatprep.mubr.bf16.mxu0 %v596
  %3774 = vmatmul.mubr.bf16.gmra.mrb[0].mxu0 %v595
  %v3775 = vpop.f32.mrb[0].mxu0
  %v3776 = vadd.f32 %v3735, %v3775
  %v3777 = vpop.f32.mrb[0].mxu0
  %v3778 = vadd.f32 %v3737, %v3777
  %v3779 = vpop.f32.mrb[0].mxu0
  %v3780 = vpop.f32.mrb[0].mxu0
  %3781 = vdwg.mxu0
  %3782 = vmatprep.subr.bf16.mxu0 %v2534
  %3783 = vmatpush1.bf16.msra.mxu0 %v2533
  %3784 = vmatprep.subr.bf16.mxu0 %v2542
  %3785 = vmatpush1.bf16.msra.mxu0 %v2541
  %3786 = vmatprep.subr.bf16.mxu0 %v2550
  %3787 = vmatpush1.bf16.msra.mxu0 %v2549
  %3788 = vmatprep.subr.bf16.mxu0 %v2558
  %3789 = vmatpush1.bf16.msra.mxu0 %v2557
  %3790 = vmatprep.subr.bf16.mxu0 %v2566
  %3791 = vmatpush1.bf16.msra.mxu0 %v2565
  %3792 = vmatprep.subr.bf16.mxu0 %v2574
  %3793 = vmatpush1.bf16.msra.mxu0 %v2573
  %3794 = vmatprep.subr.bf16.mxu0 %v2582
  %3795 = vmatpush1.bf16.msra.mxu0 %v2581
  %3796 = vmatprep.subr.bf16.mxu0 %v2590
  %3797 = vmatpush1.bf16.msra.mxu0 %v2589
  %3798 = vmatprep.subr.bf16.mxu0 %v2598
  %3799 = vmatpush1.bf16.msra.mxu0 %v2597
  %3800 = vmatprep.subr.bf16.mxu0 %v2606
  %3801 = vmatpush1.bf16.msra.mxu0 %v2605
  %3802 = vmatprep.subr.bf16.mxu0 %v2614
  %3803 = vmatpush1.bf16.msra.mxu0 %v2613
  %3804 = vmatprep.subr.bf16.mxu0 %v2622
  %3805 = vmatpush1.bf16.msra.mxu0 %v2621
  %3806 = vmatprep.subr.bf16.mxu0 %v2630
  %3807 = vmatpush1.bf16.msra.mxu0 %v2629
  %3808 = vmatprep.subr.bf16.mxu0 %v2638
  %3809 = vmatpush1.bf16.msra.mxu0 %v2637
  %3810 = vmatprep.subr.bf16.mxu0 %v2646
  %3811 = vmatpush1.bf16.msra.mxu0 %v2645
  %3812 = vmatprep.subr.bf16.mxu0 %v2654
  %3813 = vmatpush1.bf16.msra.mxu0 %v2653
  %3814 = vmatprep.mubr.bf16.mxu0 %v598
  %3815 = vmatmul.mubr.bf16.gmra.mrb[0].mxu0 %v597
  %v3816 = vpop.f32.mrb[0].mxu0
  %v3817 = vadd.f32 %v3776, %v3816
  %v3818 = vpop.f32.mrb[0].mxu0
  %v3819 = vadd.f32 %v3778, %v3818
  %v3820 = vpop.f32.mrb[0].mxu0
  %v3821 = vpop.f32.mrb[0].mxu0
  %3822 = vdwg.mxu0
  %vm3823 = vcmp.ge.f32.partialorder %v3325, 0.0
  %vm3824 = vcmp.ge.f32.partialorder %v3327, 0.0
  %vm3825 = vcmp.ge.f32.partialorder %v3489, 0.0
  %vm3826 = vcmp.ge.f32.partialorder %v3491, 0.0
  %vm3827 = vcmp.ge.f32.partialorder %v3653, 0.0
  %vm3828 = vcmp.ge.f32.partialorder %v3655, 0.0
  %vm3829 = vcmp.ge.f32.partialorder %v3817, 0.0
  %vm3830 = vcmp.ge.f32.partialorder %v3819, 0.0
  %v3831 = vmul.f32 %v3325, 0.2
  %v3832 = vmul.f32 %v3327, 0.2
  %v3833 = vmul.f32 %v3489, 0.2
  %v3834 = vmul.f32 %v3491, 0.2
  %v3835 = vmul.f32 %v3653, 0.2
  %v3836 = vmul.f32 %v3655, 0.2
  %v3837 = vmul.f32 %v3817, 0.2
  %v3838 = vmul.f32 %v3819, 0.2
  %v3839 = vsel %vm3823, %v3325, %v3831
  %v3840 = vsel %vm3824, %v3327, %v3832
  %v3841 = vsel %vm3825, %v3489, %v3833
  %v3842 = vsel %vm3826, %v3491, %v3834
  %v3843 = vsel %vm3827, %v3653, %v3835
  %v3844 = vsel %vm3828, %v3655, %v3836
  %v3845 = vsel %vm3829, %v3817, %v3837
  %v3846 = vsel %vm3830, %v3819, %v3838
  %v3847 = vpack.c.bf16 %v3839, %v3839
  %v3848 = vpack.c.bf16 %v3840, %v3840
  %v3849 = vpack.c.bf16 %v3841, %v3841
  %v3850 = vpack.c.bf16 %v3842, %v3842
  %v3851 = vpack.c.bf16 %v3843, %v3843
  %v3852 = vpack.c.bf16 %v3844, %v3844
  %v3853 = vpack.c.bf16 %v3845, %v3845
  %v3854 = vpack.c.bf16 %v3846, %v3846
  %v3855 = vld [vmem:[%s3] sm:$0xf]
  %v3856 = vld [vmem:[%s3 + $0x4] sm:$0xf]
  %v3857 = vld [vmem:[%s3 + $0x8] sm:$0xf]
  %v3858 = vld [vmem:[%s3 + $0xc] sm:$0xf]
  %v3859 = vld [vmem:[%s3 + $0x10] sm:$0xf]
  %v3860 = vld [vmem:[%s3 + $0x14] sm:$0xf]
  %v3861 = vld [vmem:[%s3 + $0x18] sm:$0xf]
  %v3862 = vld [vmem:[%s3 + $0x1c] sm:$0xf]
  %v3863 = vld [vmem:[%s3 + $0x20] sm:$0xf]
  %v3864 = vld [vmem:[%s3 + $0x24] sm:$0xf]
  %v3865 = vld [vmem:[%s3 + $0x28] sm:$0xf]
  %v3866 = vld [vmem:[%s3 + $0x2c] sm:$0xf]
  %v3867 = vld [vmem:[%s3 + $0x30] sm:$0xf]
  %v3868 = vld [vmem:[%s3 + $0x34] sm:$0xf]
  %v3869 = vld [vmem:[%s3 + $0x38] sm:$0xf]
  %v3870 = vld [vmem:[%s3 + $0x3c] sm:$0xf]
  %v3871 = vld [vmem:[%s3 + $0x40] sm:$0xf]
  %v3872 = vld [vmem:[%s3 + $0x44] sm:$0xf]
  %v3873 = vld [vmem:[%s3 + $0x48] sm:$0xf]
  %v3874 = vld [vmem:[%s3 + $0x4c] sm:$0xf]
  %v3875 = vld [vmem:[%s3 + $0x50] sm:$0xf]
  %v3876 = vld [vmem:[%s3 + $0x54] sm:$0xf]
  %v3877 = vld [vmem:[%s3 + $0x58] sm:$0xf]
  %v3878 = vld [vmem:[%s3 + $0x5c] sm:$0xf]
  %v3879 = vld [vmem:[%s3 + $0x60] sm:$0xf]
  %v3880 = vld [vmem:[%s3 + $0x64] sm:$0xf]
  %v3881 = vld [vmem:[%s3 + $0x68] sm:$0xf]
  %v3882 = vld [vmem:[%s3 + $0x6c] sm:$0xf]
  %v3883 = vld [vmem:[%s3 + $0x70] sm:$0xf]
  %v3884 = vld [vmem:[%s3 + $0x74] sm:$0xf]
  %v3885 = vld [vmem:[%s3 + $0x78] sm:$0xf]
  %v3886 = vld [vmem:[%s3 + $0x7c] sm:$0xf]
  %v3887 = vld [vmem:[%s3 + $0x80] sm:$0xf]
  %v3888 = vld [vmem:[%s3 + $0x84] sm:$0xf]
  %v3889 = vld [vmem:[%s3 + $0x88] sm:$0xf]
  %v3890 = vld [vmem:[%s3 + $0x8c] sm:$0xf]
  %v3891 = vld [vmem:[%s3 + $0x90] sm:$0xf]
  %v3892 = vld [vmem:[%s3 + $0x94] sm:$0xf]
  %v3893 = vld [vmem:[%s3 + $0x98] sm:$0xf]
  %v3894 = vld [vmem:[%s3 + $0x9c] sm:$0xf]
  %v3895 = vld [vmem:[%s3 + $0xa0] sm:$0xf]
  %v3896 = vld [vmem:[%s3 + $0xa4] sm:$0xf]
  %v3897 = vld [vmem:[%s3 + $0xa8] sm:$0xf]
  %v3898 = vld [vmem:[%s3 + $0xac] sm:$0xf]
  %v3899 = vld [vmem:[%s3 + $0xb0] sm:$0xf]
  %v3900 = vld [vmem:[%s3 + $0xb4] sm:$0xf]
  %v3901 = vld [vmem:[%s3 + $0xb8] sm:$0xf]
  %v3902 = vld [vmem:[%s3 + $0xbc] sm:$0xf]
  %v3903 = vld [vmem:[%s3 + $0xc0] sm:$0xf]
  %v3904 = vld [vmem:[%s3 + $0xc4] sm:$0xf]
  %v3905 = vld [vmem:[%s3 + $0xc8] sm:$0xf]
  %v3906 = vld [vmem:[%s3 + $0xcc] sm:$0xf]
  %v3907 = vld [vmem:[%s3 + $0xd0] sm:$0xf]
  %v3908 = vld [vmem:[%s3 + $0xd4] sm:$0xf]
  %v3909 = vld [vmem:[%s3 + $0xd8] sm:$0xf]
  %v3910 = vld [vmem:[%s3 + $0xdc] sm:$0xf]
  %v3911 = vld [vmem:[%s3 + $0xe0] sm:$0xf]
  %v3912 = vld [vmem:[%s3 + $0xe4] sm:$0xf]
  %v3913 = vld [vmem:[%s3 + $0xe8] sm:$0xf]
  %v3914 = vld [vmem:[%s3 + $0xec] sm:$0xf]
  %v3915 = vld [vmem:[%s3 + $0xf0] sm:$0xf]
  %v3916 = vld [vmem:[%s3 + $0xf4] sm:$0xf]
  %v3917 = vld [vmem:[%s3 + $0xf8] sm:$0xf]
  %v3918 = vld [vmem:[%s3 + $0xfc] sm:$0xf]
  %v3919 = vld [vmem:[%s3 + $0x100] sm:$0xf]
  %v3920 = vld [vmem:[%s3 + $0x104] sm:$0xf]
  %v3921 = vld [vmem:[%s3 + $0x108] sm:$0xf]
  %v3922 = vld [vmem:[%s3 + $0x10c] sm:$0xf]
  %v3923 = vld [vmem:[%s3 + $0x110] sm:$0xf]
  %v3924 = vld [vmem:[%s3 + $0x114] sm:$0xf]
  %v3925 = vld [vmem:[%s3 + $0x118] sm:$0xf]
  %v3926 = vld [vmem:[%s3 + $0x11c] sm:$0xf]
  %v3927 = vld [vmem:[%s3 + $0x120] sm:$0xf]
  %v3928 = vld [vmem:[%s3 + $0x124] sm:$0xf]
  %v3929 = vld [vmem:[%s3 + $0x128] sm:$0xf]
  %v3930 = vld [vmem:[%s3 + $0x12c] sm:$0xf]
  %v3931 = vld [vmem:[%s3 + $0x130] sm:$0xf]
  %v3932 = vld [vmem:[%s3 + $0x134] sm:$0xf]
  %v3933 = vld [vmem:[%s3 + $0x138] sm:$0xf]
  %v3934 = vld [vmem:[%s3 + $0x13c] sm:$0xf]
  %v3935 = vld [vmem:[%s3 + $0x140] sm:$0xf]
  %v3936 = vld [vmem:[%s3 + $0x144] sm:$0xf]
  %v3937 = vld [vmem:[%s3 + $0x148] sm:$0xf]
  %v3938 = vld [vmem:[%s3 + $0x14c] sm:$0xf]
  %v3939 = vld [vmem:[%s3 + $0x150] sm:$0xf]
  %v3940 = vld [vmem:[%s3 + $0x154] sm:$0xf]
  %v3941 = vld [vmem:[%s3 + $0x158] sm:$0xf]
  %v3942 = vld [vmem:[%s3 + $0x15c] sm:$0xf]
  %v3943 = vld [vmem:[%s3 + $0x160] sm:$0xf]
  %v3944 = vld [vmem:[%s3 + $0x164] sm:$0xf]
  %v3945 = vld [vmem:[%s3 + $0x168] sm:$0xf]
  %v3946 = vld [vmem:[%s3 + $0x16c] sm:$0xf]
  %v3947 = vld [vmem:[%s3 + $0x170] sm:$0xf]
  %v3948 = vld [vmem:[%s3 + $0x174] sm:$0xf]
  %v3949 = vld [vmem:[%s3 + $0x178] sm:$0xf]
  %v3950 = vld [vmem:[%s3 + $0x17c] sm:$0xf]
  %v3951 = vld [vmem:[%s3 + $0x180] sm:$0xf]
  %v3952 = vld [vmem:[%s3 + $0x184] sm:$0xf]
  %v3953 = vld [vmem:[%s3 + $0x188] sm:$0xf]
  %v3954 = vld [vmem:[%s3 + $0x18c] sm:$0xf]
  %v3955 = vld [vmem:[%s3 + $0x190] sm:$0xf]
  %v3956 = vld [vmem:[%s3 + $0x194] sm:$0xf]
  %v3957 = vld [vmem:[%s3 + $0x198] sm:$0xf]
  %v3958 = vld [vmem:[%s3 + $0x19c] sm:$0xf]
  %v3959 = vld [vmem:[%s3 + $0x1a0] sm:$0xf]
  %v3960 = vld [vmem:[%s3 + $0x1a4] sm:$0xf]
  %v3961 = vld [vmem:[%s3 + $0x1a8] sm:$0xf]
  %v3962 = vld [vmem:[%s3 + $0x1ac] sm:$0xf]
  %v3963 = vld [vmem:[%s3 + $0x1b0] sm:$0xf]
  %v3964 = vld [vmem:[%s3 + $0x1b4] sm:$0xf]
  %v3965 = vld [vmem:[%s3 + $0x1b8] sm:$0xf]
  %v3966 = vld [vmem:[%s3 + $0x1bc] sm:$0xf]
  %v3967 = vld [vmem:[%s3 + $0x1c0] sm:$0xf]
  %v3968 = vld [vmem:[%s3 + $0x1c4] sm:$0xf]
  %v3969 = vld [vmem:[%s3 + $0x1c8] sm:$0xf]
  %v3970 = vld [vmem:[%s3 + $0x1cc] sm:$0xf]
  %v3971 = vld [vmem:[%s3 + $0x1d0] sm:$0xf]
  %v3972 = vld [vmem:[%s3 + $0x1d4] sm:$0xf]
  %v3973 = vld [vmem:[%s3 + $0x1d8] sm:$0xf]
  %v3974 = vld [vmem:[%s3 + $0x1dc] sm:$0xf]
  %v3975 = vld [vmem:[%s3 + $0x1e0] sm:$0xf]
  %v3976 = vld [vmem:[%s3 + $0x1e4] sm:$0xf]
  %v3977 = vld [vmem:[%s3 + $0x1e8] sm:$0xf]
  %v3978 = vld [vmem:[%s3 + $0x1ec] sm:$0xf]
  %v3979 = vld [vmem:[%s3 + $0x1f0] sm:$0xf]
  %v3980 = vld [vmem:[%s3 + $0x1f4] sm:$0xf]
  %v3981 = vld [vmem:[%s3 + $0x1f8] sm:$0xf]
  %v3982 = vld [vmem:[%s3 + $0x1fc] sm:$0xf]
  %v3983 = vld [vmem:[%s4] sm:$0x1]
  %v3985 = vlaneseq
  %v3986 = vshrl.u32 %v3985, 7
  %v3987 = vsub.s32 0, %v3986
  %v3988 = vrot.slane %v3983, %v3987
  %v4118 = vunpack.c.l.b16 %v3855
  %v4119 = vunpack.c.l.b16 %v3856
  %v4120 = vunpack.c.l.b16 %v3857
  %v4121 = vunpack.c.l.b16 %v3858
  %v4122 = vunpack.c.l.b16 %v3859
  %v4123 = vunpack.c.l.b16 %v3860
  %v4124 = vunpack.c.l.b16 %v3861
  %v4125 = vunpack.c.l.b16 %v3862
  %v4126 = vunpack.c.l.b16 %v3863
  %v4127 = vunpack.c.l.b16 %v3864
  %v4128 = vunpack.c.l.b16 %v3865
  %v4129 = vunpack.c.l.b16 %v3866
  %v4130 = vunpack.c.l.b16 %v3867
  %v4131 = vunpack.c.l.b16 %v3868
  %v4132 = vunpack.c.l.b16 %v3869
  %v4133 = vunpack.c.l.b16 %v3870
  %v4134 = vunpack.c.l.b16 %v3871
  %v4135 = vunpack.c.l.b16 %v3872
  %v4136 = vunpack.c.l.b16 %v3873
  %v4137 = vunpack.c.l.b16 %v3874
  %v4138 = vunpack.c.l.b16 %v3875
  %v4139 = vunpack.c.l.b16 %v3876
  %v4140 = vunpack.c.l.b16 %v3877
  %v4141 = vunpack.c.l.b16 %v3878
  %v4142 = vunpack.c.l.b16 %v3879
  %v4143 = vunpack.c.l.b16 %v3880
  %v4144 = vunpack.c.l.b16 %v3881
  %v4145 = vunpack.c.l.b16 %v3882
  %v4146 = vunpack.c.l.b16 %v3883
  %v4147 = vunpack.c.l.b16 %v3884
  %v4148 = vunpack.c.l.b16 %v3885
  %v4149 = vunpack.c.l.b16 %v3886
  %v4150 = vunpack.c.l.b16 %v3887
  %v4151 = vunpack.c.l.b16 %v3888
  %v4152 = vunpack.c.l.b16 %v3889
  %v4153 = vunpack.c.l.b16 %v3890
  %v4154 = vunpack.c.l.b16 %v3891
  %v4155 = vunpack.c.l.b16 %v3892
  %v4156 = vunpack.c.l.b16 %v3893
  %v4157 = vunpack.c.l.b16 %v3894
  %v4158 = vunpack.c.l.b16 %v3895
  %v4159 = vunpack.c.l.b16 %v3896
  %v4160 = vunpack.c.l.b16 %v3897
  %v4161 = vunpack.c.l.b16 %v3898
  %v4162 = vunpack.c.l.b16 %v3899
  %v4163 = vunpack.c.l.b16 %v3900
  %v4164 = vunpack.c.l.b16 %v3901
  %v4165 = vunpack.c.l.b16 %v3902
  %v4166 = vunpack.c.l.b16 %v3903
  %v4167 = vunpack.c.l.b16 %v3904
  %v4168 = vunpack.c.l.b16 %v3905
  %v4169 = vunpack.c.l.b16 %v3906
  %v4170 = vunpack.c.l.b16 %v3907
  %v4171 = vunpack.c.l.b16 %v3908
  %v4172 = vunpack.c.l.b16 %v3909
  %v4173 = vunpack.c.l.b16 %v3910
  %v4174 = vunpack.c.l.b16 %v3911
  %v4175 = vunpack.c.l.b16 %v3912
  %v4176 = vunpack.c.l.b16 %v3913
  %v4177 = vunpack.c.l.b16 %v3914
  %v4178 = vunpack.c.l.b16 %v3915
  %v4179 = vunpack.c.l.b16 %v3916
  %v4180 = vunpack.c.l.b16 %v3917
  %v4181 = vunpack.c.l.b16 %v3918
  %v4182 = vunpack.c.l.b16 %v3919
  %v4183 = vunpack.c.l.b16 %v3920
  %v4184 = vunpack.c.l.b16 %v3921
  %v4185 = vunpack.c.l.b16 %v3922
  %v4186 = vunpack.c.l.b16 %v3923
  %v4187 = vunpack.c.l.b16 %v3924
  %v4188 = vunpack.c.l.b16 %v3925
  %v4189 = vunpack.c.l.b16 %v3926
  %v4190 = vunpack.c.l.b16 %v3927
  %v4191 = vunpack.c.l.b16 %v3928
  %v4192 = vunpack.c.l.b16 %v3929
  %v4193 = vunpack.c.l.b16 %v3930
  %v4194 = vunpack.c.l.b16 %v3931
  %v4195 = vunpack.c.l.b16 %v3932
  %v4196 = vunpack.c.l.b16 %v3933
  %v4197 = vunpack.c.l.b16 %v3934
  %v4198 = vunpack.c.l.b16 %v3935
  %v4199 = vunpack.c.l.b16 %v3936
  %v4200 = vunpack.c.l.b16 %v3937
  %v4201 = vunpack.c.l.b16 %v3938
  %v4202 = vunpack.c.l.b16 %v3939
  %v4203 = vunpack.c.l.b16 %v3940
  %v4204 = vunpack.c.l.b16 %v3941
  %v4205 = vunpack.c.l.b16 %v3942
  %v4206 = vunpack.c.l.b16 %v3943
  %v4207 = vunpack.c.l.b16 %v3944
  %v4208 = vunpack.c.l.b16 %v3945
  %v4209 = vunpack.c.l.b16 %v3946
  %v4210 = vunpack.c.l.b16 %v3947
  %v4211 = vunpack.c.l.b16 %v3948
  %v4212 = vunpack.c.l.b16 %v3949
  %v4213 = vunpack.c.l.b16 %v3950
  %v4214 = vunpack.c.l.b16 %v3951
  %v4215 = vunpack.c.l.b16 %v3952
  %v4216 = vunpack.c.l.b16 %v3953
  %v4217 = vunpack.c.l.b16 %v3954
  %v4218 = vunpack.c.l.b16 %v3955
  %v4219 = vunpack.c.l.b16 %v3956
  %v4220 = vunpack.c.l.b16 %v3957
  %v4221 = vunpack.c.l.b16 %v3958
  %v4222 = vunpack.c.l.b16 %v3959
  %v4223 = vunpack.c.l.b16 %v3960
  %v4224 = vunpack.c.l.b16 %v3961
  %v4225 = vunpack.c.l.b16 %v3962
  %v4226 = vunpack.c.l.b16 %v3963
  %v4227 = vunpack.c.l.b16 %v3964
  %v4228 = vunpack.c.l.b16 %v3965
  %v4229 = vunpack.c.l.b16 %v3966
  %v4230 = vunpack.c.l.b16 %v3967
  %v4231 = vunpack.c.l.b16 %v3968
  %v4232 = vunpack.c.l.b16 %v3969
  %v4233 = vunpack.c.l.b16 %v3970
  %v4234 = vunpack.c.l.b16 %v3971
  %v4235 = vunpack.c.l.b16 %v3972
  %v4236 = vunpack.c.l.b16 %v3973
  %v4237 = vunpack.c.l.b16 %v3974
  %v4238 = vunpack.c.l.b16 %v3975
  %v4239 = vunpack.c.l.b16 %v3976
  %v4240 = vunpack.c.l.b16 %v3977
  %v4241 = vunpack.c.l.b16 %v3978
  %v4242 = vunpack.c.l.b16 %v3979
  %v4243 = vunpack.c.l.b16 %v3980
  %v4244 = vunpack.c.l.b16 %v3981
  %v4245 = vunpack.c.l.b16 %v3982
  %v4246 = vpack.c.b16 %v4119, %v4118
  %v4247 = vpack.c.b16 %v4121, %v4120
  %v4248 = vpack.c.b16 %v4123, %v4122
  %v4249 = vpack.c.b16 %v4125, %v4124
  %v4250 = vpack.c.b16 %v4127, %v4126
  %v4251 = vpack.c.b16 %v4129, %v4128
  %v4252 = vpack.c.b16 %v4131, %v4130
  %v4253 = vpack.c.b16 %v4133, %v4132
  %v4254 = vpack.c.b16 %v4135, %v4134
  %v4255 = vpack.c.b16 %v4137, %v4136
  %v4256 = vpack.c.b16 %v4139, %v4138
  %v4257 = vpack.c.b16 %v4141, %v4140
  %v4258 = vpack.c.b16 %v4143, %v4142
  %v4259 = vpack.c.b16 %v4145, %v4144
  %v4260 = vpack.c.b16 %v4147, %v4146
  %v4261 = vpack.c.b16 %v4149, %v4148
  %v4262 = vpack.c.b16 %v4151, %v4150
  %v4263 = vpack.c.b16 %v4153, %v4152
  %v4264 = vpack.c.b16 %v4155, %v4154
  %v4265 = vpack.c.b16 %v4157, %v4156
  %v4266 = vpack.c.b16 %v4159, %v4158
  %v4267 = vpack.c.b16 %v4161, %v4160
  %v4268 = vpack.c.b16 %v4163, %v4162
  %v4269 = vpack.c.b16 %v4165, %v4164
  %v4270 = vpack.c.b16 %v4167, %v4166
  %v4271 = vpack.c.b16 %v4169, %v4168
  %v4272 = vpack.c.b16 %v4171, %v4170
  %v4273 = vpack.c.b16 %v4173, %v4172
  %v4274 = vpack.c.b16 %v4175, %v4174
  %v4275 = vpack.c.b16 %v4177, %v4176
  %v4276 = vpack.c.b16 %v4179, %v4178
  %v4277 = vpack.c.b16 %v4181, %v4180
  %v4278 = vpack.c.b16 %v4183, %v4182
  %v4279 = vpack.c.b16 %v4185, %v4184
  %v4280 = vpack.c.b16 %v4187, %v4186
  %v4281 = vpack.c.b16 %v4189, %v4188
  %v4282 = vpack.c.b16 %v4191, %v4190
  %v4283 = vpack.c.b16 %v4193, %v4192
  %v4284 = vpack.c.b16 %v4195, %v4194
  %v4285 = vpack.c.b16 %v4197, %v4196
  %v4286 = vpack.c.b16 %v4199, %v4198
  %v4287 = vpack.c.b16 %v4201, %v4200
  %v4288 = vpack.c.b16 %v4203, %v4202
  %v4289 = vpack.c.b16 %v4205, %v4204
  %v4290 = vpack.c.b16 %v4207, %v4206
  %v4291 = vpack.c.b16 %v4209, %v4208
  %v4292 = vpack.c.b16 %v4211, %v4210
  %v4293 = vpack.c.b16 %v4213, %v4212
  %v4294 = vpack.c.b16 %v4215, %v4214
  %v4295 = vpack.c.b16 %v4217, %v4216
  %v4296 = vpack.c.b16 %v4219, %v4218
  %v4297 = vpack.c.b16 %v4221, %v4220
  %v4298 = vpack.c.b16 %v4223, %v4222
  %v4299 = vpack.c.b16 %v4225, %v4224
  %v4300 = vpack.c.b16 %v4227, %v4226
  %v4301 = vpack.c.b16 %v4229, %v4228
  %v4302 = vpack.c.b16 %v4231, %v4230
  %v4303 = vpack.c.b16 %v4233, %v4232
  %v4304 = vpack.c.b16 %v4235, %v4234
  %v4305 = vpack.c.b16 %v4237, %v4236
  %v4306 = vpack.c.b16 %v4239, %v4238
  %v4307 = vpack.c.b16 %v4241, %v4240
  %v4308 = vpack.c.b16 %v4243, %v4242
  %v4309 = vpack.c.b16 %v4245, %v4244
  %4374 = vmatprep.subr.bf16.mxu0 0
  %4375 = vmatpush1.bf16.msra.mxu0 %v4246
  %4376 = vmatprep.subr.bf16.mxu0 0
  %4377 = vmatpush1.bf16.msra.mxu0 %v4247
  %4378 = vmatprep.subr.bf16.mxu0 0
  %4379 = vmatpush1.bf16.msra.mxu0 %v4248
  %4380 = vmatprep.subr.bf16.mxu0 0
  %4381 = vmatpush1.bf16.msra.mxu0 %v4249
  %4382 = vmatprep.subr.bf16.mxu0 0
  %4383 = vmatpush1.bf16.msra.mxu0 %v4250
  %4384 = vmatprep.subr.bf16.mxu0 0
  %4385 = vmatpush1.bf16.msra.mxu0 %v4251
  %4386 = vmatprep.subr.bf16.mxu0 0
  %4387 = vmatpush1.bf16.msra.mxu0 %v4252
  %4388 = vmatprep.subr.bf16.mxu0 0
  %4389 = vmatpush1.bf16.msra.mxu0 %v4253
  %4390 = vmatprep.subr.bf16.mxu0 0
  %4391 = vmatpush1.bf16.msra.mxu0 %v4254
  %4392 = vmatprep.subr.bf16.mxu0 0
  %4393 = vmatpush1.bf16.msra.mxu0 %v4255
  %4394 = vmatprep.subr.bf16.mxu0 0
  %4395 = vmatpush1.bf16.msra.mxu0 %v4256
  %4396 = vmatprep.subr.bf16.mxu0 0
  %4397 = vmatpush1.bf16.msra.mxu0 %v4257
  %4398 = vmatprep.subr.bf16.mxu0 0
  %4399 = vmatpush1.bf16.msra.mxu0 %v4258
  %4400 = vmatprep.subr.bf16.mxu0 0
  %4401 = vmatpush1.bf16.msra.mxu0 %v4259
  %4402 = vmatprep.subr.bf16.mxu0 0
  %4403 = vmatpush1.bf16.msra.mxu0 %v4260
  %4404 = vmatprep.subr.bf16.mxu0 0
  %4405 = vmatpush1.bf16.msra.mxu0 %v4261
  %4406 = vmatprep.mubr.bf16.mxu0 %v3848
  %4407 = vmatmul.mubr.bf16.gmra.mrb[0].mxu0 %v3847
  %v4408 = vpop.f32.mrb[0].mxu0
  %v4409 = vadd.f32 %v3988, %v4408
  %v4410 = vpop.f32.mrb[0].mxu0
  %v4411 = vpop.f32.mrb[0].mxu0
  %v4412 = vpop.f32.mrb[0].mxu0
  %4413 = vdwg.mxu0
  %4414 = vmatprep.subr.bf16.mxu0 0
  %4415 = vmatpush1.bf16.msra.mxu0 %v4262
  %4416 = vmatprep.subr.bf16.mxu0 0
  %4417 = vmatpush1.bf16.msra.mxu0 %v4263
  %4418 = vmatprep.subr.bf16.mxu0 0
  %4419 = vmatpush1.bf16.msra.mxu0 %v4264
  %4420 = vmatprep.subr.bf16.mxu0 0
  %4421 = vmatpush1.bf16.msra.mxu0 %v4265
  %4422 = vmatprep.subr.bf16.mxu0 0
  %4423 = vmatpush1.bf16.msra.mxu0 %v4266
  %4424 = vmatprep.subr.bf16.mxu0 0
  %4425 = vmatpush1.bf16.msra.mxu0 %v4267
  %4426 = vmatprep.subr.bf16.mxu0 0
  %4427 = vmatpush1.bf16.msra.mxu0 %v4268
  %4428 = vmatprep.subr.bf16.mxu0 0
  %4429 = vmatpush1.bf16.msra.mxu0 %v4269
  %4430 = vmatprep.subr.bf16.mxu0 0
  %4431 = vmatpush1.bf16.msra.mxu0 %v4270
  %4432 = vmatprep.subr.bf16.mxu0 0
  %4433 = vmatpush1.bf16.msra.mxu0 %v4271
  %4434 = vmatprep.subr.bf16.mxu0 0
  %4435 = vmatpush1.bf16.msra.mxu0 %v4272
  %4436 = vmatprep.subr.bf16.mxu0 0
  %4437 = vmatpush1.bf16.msra.mxu0 %v4273
  %4438 = vmatprep.subr.bf16.mxu0 0
  %4439 = vmatpush1.bf16.msra.mxu0 %v4274
  %4440 = vmatprep.subr.bf16.mxu0 0
  %4441 = vmatpush1.bf16.msra.mxu0 %v4275
  %4442 = vmatprep.subr.bf16.mxu0 0
  %4443 = vmatpush1.bf16.msra.mxu0 %v4276
  %4444 = vmatprep.subr.bf16.mxu0 0
  %4445 = vmatpush1.bf16.msra.mxu0 %v4277
  %4446 = vmatprep.mubr.bf16.mxu0 %v3850
  %4447 = vmatmul.mubr.bf16.gmra.mrb[0].mxu0 %v3849
  %v4448 = vpop.f32.mrb[0].mxu0
  %v4449 = vadd.f32 %v4409, %v4448
  %v4450 = vpop.f32.mrb[0].mxu0
  %v4451 = vpop.f32.mrb[0].mxu0
  %v4452 = vpop.f32.mrb[0].mxu0
  %4453 = vdwg.mxu0
  %4454 = vmatprep.subr.bf16.mxu0 0
  %4455 = vmatpush1.bf16.msra.mxu0 %v4278
  %4456 = vmatprep.subr.bf16.mxu0 0
  %4457 = vmatpush1.bf16.msra.mxu0 %v4279
  %4458 = vmatprep.subr.bf16.mxu0 0
  %4459 = vmatpush1.bf16.msra.mxu0 %v4280
  %4460 = vmatprep.subr.bf16.mxu0 0
  %4461 = vmatpush1.bf16.msra.mxu0 %v4281
  %4462 = vmatprep.subr.bf16.mxu0 0
  %4463 = vmatpush1.bf16.msra.mxu0 %v4282
  %4464 = vmatprep.subr.bf16.mxu0 0
  %4465 = vmatpush1.bf16.msra.mxu0 %v4283
  %4466 = vmatprep.subr.bf16.mxu0 0
  %4467 = vmatpush1.bf16.msra.mxu0 %v4284
  %4468 = vmatprep.subr.bf16.mxu0 0
  %4469 = vmatpush1.bf16.msra.mxu0 %v4285
  %4470 = vmatprep.subr.bf16.mxu0 0
  %4471 = vmatpush1.bf16.msra.mxu0 %v4286
  %4472 = vmatprep.subr.bf16.mxu0 0
  %4473 = vmatpush1.bf16.msra.mxu0 %v4287
  %4474 = vmatprep.subr.bf16.mxu0 0
  %4475 = vmatpush1.bf16.msra.mxu0 %v4288
  %4476 = vmatprep.subr.bf16.mxu0 0
  %4477 = vmatpush1.bf16.msra.mxu0 %v4289
  %4478 = vmatprep.subr.bf16.mxu0 0
  %4479 = vmatpush1.bf16.msra.mxu0 %v4290
  %4480 = vmatprep.subr.bf16.mxu0 0
  %4481 = vmatpush1.bf16.msra.mxu0 %v4291
  %4482 = vmatprep.subr.bf16.mxu0 0
  %4483 = vmatpush1.bf16.msra.mxu0 %v4292
  %4484 = vmatprep.subr.bf16.mxu0 0
  %4485 = vmatpush1.bf16.msra.mxu0 %v4293
  %4486 = vmatprep.mubr.bf16.mxu0 %v3852
  %4487 = vmatmul.mubr.bf16.gmra.mrb[0].mxu0 %v3851
  %v4488 = vpop.f32.mrb[0].mxu0
  %v4489 = vadd.f32 %v4449, %v4488
  %v4490 = vpop.f32.mrb[0].mxu0
  %v4491 = vpop.f32.mrb[0].mxu0
  %v4492 = vpop.f32.mrb[0].mxu0
  %4493 = vdwg.mxu0
  %4494 = vmatprep.subr.bf16.mxu0 0
  %4495 = vmatpush1.bf16.msra.mxu0 %v4294
  %4496 = vmatprep.subr.bf16.mxu0 0
  %4497 = vmatpush1.bf16.msra.mxu0 %v4295
  %4498 = vmatprep.subr.bf16.mxu0 0
  %4499 = vmatpush1.bf16.msra.mxu0 %v4296
  %4500 = vmatprep.subr.bf16.mxu0 0
  %4501 = vmatpush1.bf16.msra.mxu0 %v4297
  %4502 = vmatprep.subr.bf16.mxu0 0
  %4503 = vmatpush1.bf16.msra.mxu0 %v4298
  %4504 = vmatprep.subr.bf16.mxu0 0
  %4505 = vmatpush1.bf16.msra.mxu0 %v4299
  %4506 = vmatprep.subr.bf16.mxu0 0
  %4507 = vmatpush1.bf16.msra.mxu0 %v4300
  %4508 = vmatprep.subr.bf16.mxu0 0
  %4509 = vmatpush1.bf16.msra.mxu0 %v4301
  %4510 = vmatprep.subr.bf16.mxu0 0
  %4511 = vmatpush1.bf16.msra.mxu0 %v4302
  %4512 = vmatprep.subr.bf16.mxu0 0
  %4513 = vmatpush1.bf16.msra.mxu0 %v4303
  %4514 = vmatprep.subr.bf16.mxu0 0
  %4515 = vmatpush1.bf16.msra.mxu0 %v4304
  %4516 = vmatprep.subr.bf16.mxu0 0
  %4517 = vmatpush1.bf16.msra.mxu0 %v4305
  %4518 = vmatprep.subr.bf16.mxu0 0
  %4519 = vmatpush1.bf16.msra.mxu0 %v4306
  %4520 = vmatprep.subr.bf16.mxu0 0
  %4521 = vmatpush1.bf16.msra.mxu0 %v4307
  %4522 = vmatprep.subr.bf16.mxu0 0
  %4523 = vmatpush1.bf16.msra.mxu0 %v4308
  %4524 = vmatprep.subr.bf16.mxu0 0
  %4525 = vmatpush1.bf16.msra.mxu0 %v4309
  %4526 = vmatprep.mubr.bf16.mxu0 %v3854
  %4527 = vmatmul.mubr.bf16.gmra.mrb[0].mxu0 %v3853
  %v4528 = vpop.f32.mrb[0].mxu0
  %v4529 = vadd.f32 %v4489, %v4528
  %v4530 = vpop.f32.mrb[0].mxu0
  %v4531 = vpop.f32.mrb[0].mxu0
  %v4532 = vpop.f32.mrb[0].mxu0
  %4533 = vdwg.mxu0
  %vm4534 = vcmask 15360
  %4535 = vst.msk [vmem:[%s5] sm:$0xff] %vm4534, %v4529
  // Predicated region
  $region22: #{discriminator_forward.5} parent=0 // pred_check
    _
  $region23: #{discriminator_forward.5} parent=0 // pred_check_branch
    %4537 = sbr.rel (0) target = $region25
  $region24: #{discriminator_forward.5} parent=0 // pred_region
    _
  $region25: #{discriminator_forward.5} parent=0 // pred_fallthru
    _
  // Predicated region
  $region26: #{discriminator_forward.5} parent=0 // pred_check
    _
  $region27: #{discriminator_forward.5} parent=0 // pred_check_branch
    %4539 = sbr.rel (0) target = $region29
  $region28: #{discriminator_forward.5} parent=0 // pred_region
    _
  $region29: #{discriminator_forward.5} parent=0 // pred_fallthru
    _

</llo_original>
